<compile_context>
chip_gen: v7x
topology: tpu7x:2x2x1
jax: 0.10.0
libtpu: 0.0.40
codegen_flags: <defaults>
</compile_context>

<pallas_src>
import numpy as np
import jax
import jax.numpy as jnp
from jax import lax
from jax.experimental import pallas as pl
from jax.experimental.pallas import tpu as pltpu


# -----------------------------------------------------------------------------
# Device-generation knobs
# -----------------------------------------------------------------------------
def _tpu_generation():
    try:
        kind = jax.devices()[0].device_kind.lower()
    except Exception:
        kind = ""
    for gen in (7, 6, 5, 4):
        if f"v{gen}" in kind:
            return gen
    return 0


# -----------------------------------------------------------------------------
# Kernel: whole PointNet forward for ONE batch element (grid axis = batch).
# -----------------------------------------------------------------------------
def make_kernel(tn, num_chunks, ew_bf16):
    ew = jnp.bfloat16 if ew_bf16 else jnp.float32

    def kernel(x_ref,
               w1, b1, w2, b2, w3, b3, w4, b4, w5, b5,
               w6a, w6b, b6, w7, b7, w8, b8, w9, b9, w10, b10,
               o_ref, gmax_buf):

        def act(w, h_bf16, b):
            # bf16 MXU matmul, f32 accumulation; bias-add + tanh in `ew`
            # (bf16 on v6e/v7x, f32 on v5e) and return bf16 for the next matmul.
            acc = jnp.dot(w[...], h_bf16, preferred_element_type=jnp.float32)
            z = acc.astype(ew) + b[...].astype(ew)
            return jnp.tanh(z).astype(jnp.bfloat16)

        def conv12(xc_bf16):
            # conv1 + conv2 (cheap; recomputed in pass 2 instead of caching h2)
            h1 = act(w1, xc_bf16, b1)
            return act(w2, h1, b2)

        c1024 = gmax_buf.shape[0]
        num_slabs = tn // 128
        rem = tn % 128

        # lane-parallel running max over the points axis (re-init every batch)
        gmax_buf[...] = jnp.full(gmax_buf.shape, -jnp.inf, dtype=gmax_buf.dtype)

        # ---- pass 1: conv1..conv4 + conv5 pre-activation, streaming max ------
        def pass1(c, carry):
            start = pl.multiple_of(c * tn, tn)
            xc = x_ref[:, pl.ds(start, tn)]                     # [Cin_p, tn] bf16
            h2 = conv12(xc)                                     # [64,  tn] bf16
            h3 = act(w3, h2, b3)                                # [64,  tn]
            h4 = act(w4, h3, b4)                                # [128, tn]
            # conv5 PRE-activation only: max commutes past the monotone tanh
            # and the per-row constant bias, so no bias/tanh here.
            z5 = jnp.dot(w5[...], h4, preferred_element_type=jnp.float32)
            m = gmax_buf[...]                                   # [1024, 128]
            for s in range(num_slabs):                          # pure VPU maxes
                m = jnp.maximum(m, z5[:, s * 128:(s + 1) * 128])
            if rem:                                             # ragged tail
                m = jnp.maximum(
                    m, jnp.max(z5[:, num_slabs * 128:], axis=1, keepdims=True))
            gmax_buf[...] = m
            return carry

        lax.fori_loop(0, num_chunks, pass1, None)

        # ---- once per batch element: finish max-pool, bias+tanh, gterm -------
        g = jnp.max(gmax_buf[...], axis=1, keepdims=True)       # [1024, 1] (XLU x1)
        g = jnp.tanh(g + b5[...])                               # exact commute
        g128 = jnp.broadcast_to(g, (c1024, 128)).astype(jnp.bfloat16)
        gterm = jnp.dot(w6b[...], g128,
                        preferred_element_type=jnp.float32)[:, 0:1]   # [512, 1]
        gb6 = (gterm + b6[...]).astype(ew)                      # hoisted b6 add

        # ---- pass 2: conv6..conv10, lane-dense NCW output --------------------
        def pass2(c, carry):
            start = pl.multiple_of(c * tn, tn)
            xc = x_ref[:, pl.ds(start, tn)]
            loc = conv12(xc)                                    # recompute h2
            acc6 = jnp.dot(w6a[...], loc, preferred_element_type=jnp.float32)
            h6 = jnp.tanh(acc6.astype(ew) + gb6).astype(jnp.bfloat16)   # [512, tn]
            h7 = act(w7, h6, b7)                                # [256, tn]
            h8 = act(w8, h7, b8)                                # [128, tn]
            h9 = act(w9, h8, b9)                                # [128, tn]
            # final layer in f32 for output accuracy (tiny: C_out rows)
            acc10 = jnp.dot(w10[...], h9, preferred_element_type=jnp.float32)
            h10 = jnp.tanh(acc10 + b10[...])                    # [Cout, tn] f32
            o_ref[:, pl.ds(start, tn)] = h10.astype(o_ref.dtype)
            return carry

        lax.fori_loop(0, num_chunks, pass2, None)

    return kernel


# -----------------------------------------------------------------------------
# Parameter packing: PyTorch Conv1d layout -> kernel layout
# -----------------------------------------------------------------------------
def pack_params(ws, bs):
    """ws[k]: [C_out, C_in] f32 (Conv1d weight, kernel dim squeezed), bs[k]: [C_out].
    Returns the flat kernel param list: bf16 channel-major weights, f32 [C,1]
    biases, conv1 input channels zero-padded to a multiple of 16 (bf16 sublane
    tile), conv6 split into its local / global parts."""
    c64 = ws[1].shape[0]

    def W(a):
        return a.astype(jnp.bfloat16)

    def Bc(a):
        return a.reshape(-1, 1).astype(jnp.float32)

    w1 = ws[0]
    cin = w1.shape[1]
    cin_pad = ((cin + 15) // 16) * 16
    w1p = jnp.zeros((w1.shape[0], cin_pad), w1.dtype).at[:, :cin].set(w1)
    w6a, w6b = ws[5][:, :c64], ws[5][:, c64:]

    return [W(w1p), Bc(bs[0]), W(ws[1]), Bc(bs[1]), W(ws[2]), Bc(bs[2]),
            W(ws[3]), Bc(bs[3]), W(ws[4]), Bc(bs[4]),
            W(w6a), W(w6b), Bc(bs[5]),
            W(ws[6]), Bc(bs[6]), W(ws[7]), Bc(bs[7]),
            W(ws[8]), Bc(bs[8]), W(ws[9]), Bc(bs[9])]


# -----------------------------------------------------------------------------
# Wrapper
# -----------------------------------------------------------------------------
def pointnet_forward(x_ncw, flat_params):
    """x_ncw: [B, C_in, N] float32 (PyTorch NCW). flat_params: from pack_params."""
    B, c_in, N = x_ncw.shape
    cin_pad = flat_params[0].shape[1]
    c1024 = flat_params[9].shape[0]       # b5 is [1024, 1]
    c_out = flat_params[19].shape[0]      # w10 is [C_out, 128]

    gen = _tpu_generation()
    ew_bf16 = gen >= 6                    # bf16 VPU/EUP only on v6e / v7x
    big_mxu = gen >= 6                    # 256-wide MXU -> longer TN pays off
    if gen >= 7:
        vmem_limit = 56 * 1024 * 1024     # v7x: 64 MiB physical per TC
    elif gen in (4, 5, 6):
        vmem_limit = 100 * 1024 * 1024    # 128 MiB parts
    else:
        vmem_limit = 48 * 1024 * 1024     # unknown: conservative

    # points-chunk size: keep the lane axis a multiple of 128 when possible
    if N % 128 == 0:
        cands = (512, 256, 128) if big_mxu else (256, 128)
        tn = next(c for c in cands if N % c == 0)
    else:
        # TODO(synk): pad N to a multiple of 128 (with a masked max in pass 1)
        # instead of falling back to a non-lane-aligned chunk.
        tn = N
    assert N % tn == 0
    num_chunks = N // tn

    # zero-pad the input channels to the padded conv1 weight and cast to bf16
    # (halves the resident x block and its DMA; matmul inputs were bf16 anyway)
    if cin_pad != c_in:
        x_ncw = jnp.concatenate(
            [x_ncw, jnp.zeros((B, cin_pad - c_in, N), x_ncw.dtype)], axis=1)
    x_ncw = x_ncw.astype(jnp.bfloat16)

    kernel = make_kernel(tn, num_chunks, ew_bf16)

    in_specs = [pl.BlockSpec((None, cin_pad, N), lambda b: (b, 0, 0))]
    in_specs += [pl.BlockSpec(p.shape, lambda b: (0, 0)) for p in flat_params]

    # --- advisory cost estimate (streamed MACs per point; gterm once/batch) ---
    def nmac(i):
        return int(flat_params[i].shape[0]) * int(flat_params[i].shape[1])

    # conv1/conv2 counted twice (recomputed in pass 2); w6b excluded (per batch)
    macs_pt = (2 * (nmac(0) + nmac(2)) + nmac(4) + nmac(6) + nmac(8)
               + nmac(10) + nmac(13) + nmac(15) + nmac(17) + nmac(19))
    tanh_pt = (2 * (flat_params[0].shape[0] + flat_params[2].shape[0])
               + flat_params[4].shape[0] + flat_params[6].shape[0]
               + flat_params[10].shape[0] + flat_params[13].shape[0]
               + flat_params[15].shape[0] + flat_params[17].shape[0] + c_out)
    flops = 2 * B * N * macs_pt + 2 * B * nmac(11) * 128
    transcendentals = B * N * tanh_pt + B * c1024
    bytes_acc = (int(x_ncw.size) * 2 + int(B * c_out * N) * 4
                 + sum(int(p.size) * p.dtype.itemsize for p in flat_params))

    # TODO(synk): for B == 1 on v7x (2 TensorCores) add a second parallel grid
    # axis over point halves (per-half running max + tiny cross-core combine)
    # so the second core is not idle.
    out = pl.pallas_call(
        kernel,
        out_shape=jax.ShapeDtypeStruct((B, c_out, N), jnp.float32),
        grid_spec=pltpu.PrefetchScalarGridSpec(
            num_scalar_prefetch=0,
            grid=(B,),
            in_specs=in_specs,
            out_specs=pl.BlockSpec((None, c_out, N), lambda b: (b, 0, 0)),
            scratch_shapes=[
                pltpu.VMEM((c1024, 128), jnp.float32),   # lane-parallel running max
            ],
        ),
        compiler_params=pltpu.CompilerParams(
            dimension_semantics=("parallel",),
            vmem_limit_bytes=vmem_limit,
        ),
        cost_estimate=pl.CostEstimate(
            flops=flops,
            transcendentals=transcendentals,
            bytes_accessed=bytes_acc,
        ),
    )(x_ncw, *flat_params)
    return out                                          # [B, C_out, N] (NCW)


# -----------------------------------------------------------------------------
# Deterministic parameter construction (PyTorch Conv1d layout / init range)
# -----------------------------------------------------------------------------
def make_params(key, input_channels, output_channels, scaling=1.0):
    c64 = int(64 * scaling)
    c128 = int(128 * scaling)
    c256 = int(256 * scaling)
    c512 = int(512 * scaling)
    c1024 = int(1024 * scaling)
    dims = [(input_channels, c64), (c64, c64), (c64, c64), (c64, c128),
            (c128, c1024), (c1024 + c64, c512), (c512, c256), (c256, c128),
            (c128, c128), (c128, output_channels)]
    ws, bs = [], []
    for cin, cout in dims:
        key, kw, kb = jax.random.split(key, 3)
        bound = 1.0 / np.sqrt(cin)
        ws.append(jax.random.uniform(kw, (cout, cin), jnp.float32, -bound, bound))
        bs.append(jax.random.uniform(kb, (cout,), jnp.float32, -bound, bound))
    return ws, bs


# -----------------------------------------------------------------------------
# Pure-JAX reference (mirrors the PyTorch forward exactly, all f32)
# -----------------------------------------------------------------------------
def reference_forward(x_ncw, ws, bs):
    def conv_tanh(h, w, b):
        return jnp.tanh(jnp.einsum('oi,bin->bon', w, h) + b[None, :, None])

    h = conv_tanh(x_ncw, ws[0], bs[0])
    h = conv_tanh(h, ws[1], bs[1])
    local = h
    h = conv_tanh(h, ws[2], bs[2])
    h = conv_tanh(h, ws[3], bs[3])
    h = conv_tanh(h, ws[4], bs[4])
    g = jnp.max(h, axis=2, keepdims=True)                       # max_pool1d
    g = jnp.broadcast_to(g, (h.shape[0], h.shape[1], x_ncw.shape[2]))
    h = jnp.concatenate([local, g], axis=1)
    h = conv_tanh(h, ws[5], bs[5])
    h = conv_tanh(h, ws[6], bs[6])
    h = conv_tanh(h, ws[7], bs[7])
    h = conv_tanh(h, ws[8], bs[8])
    h = conv_tanh(h, ws[9], bs[9])
    return h                                                     # [B, C_out, N]


if __name__ == "__main__":
    B, C_IN, N, C_OUT = 2, 3, 128, 4
    key = jax.random.PRNGKey(0)
    key, kx = jax.random.split(key)

    x = jax.random.normal(kx, (B, C_IN, N), jnp.float32)         # PyTorch NCW
    ws, bs = make_params(key, C_IN, C_OUT, scaling=1.0)
    flat_params = pack_params(ws, bs)

    out = jax.block_until_ready(pointnet_forward(x, flat_params))
    ref = jax.block_until_ready(reference_forward(x, ws, bs))

    assert out.shape == (B, C_OUT, N), out.shape
    max_err = float(jnp.max(jnp.abs(out - ref)))
    # bf16 matmul operands (and bf16 bias+tanh on v6e/v7x) vs all-f32 reference
    assert max_err < 7.5e-2, f"mismatch vs reference: max abs err {max_err}"
    print("KERNEL_OK")
</pallas_src>

<mosaic_0001>
module attributes {stable_mosaic.version = 11 : i64} {
  func.func @kernel(%arg0: i32, %arg1: memref<1x16x128xbf16, #tpu.memory_space<vmem>>, %arg2: memref<64x16xbf16, #tpu.memory_space<vmem>>, %arg3: memref<64x1xf32, #tpu.memory_space<vmem>>, %arg4: memref<64x64xbf16, #tpu.memory_space<vmem>>, %arg5: memref<64x1xf32, #tpu.memory_space<vmem>>, %arg6: memref<64x64xbf16, #tpu.memory_space<vmem>>, %arg7: memref<64x1xf32, #tpu.memory_space<vmem>>, %arg8: memref<128x64xbf16, #tpu.memory_space<vmem>>, %arg9: memref<128x1xf32, #tpu.memory_space<vmem>>, %arg10: memref<1024x128xbf16, #tpu.memory_space<vmem>>, %arg11: memref<1024x1xf32, #tpu.memory_space<vmem>>, %arg12: memref<512x64xbf16, #tpu.memory_space<vmem>>, %arg13: memref<512x1024xbf16, #tpu.memory_space<vmem>>, %arg14: memref<512x1xf32, #tpu.memory_space<vmem>>, %arg15: memref<256x512xbf16, #tpu.memory_space<vmem>>, %arg16: memref<256x1xf32, #tpu.memory_space<vmem>>, %arg17: memref<128x256xbf16, #tpu.memory_space<vmem>>, %arg18: memref<128x1xf32, #tpu.memory_space<vmem>>, %arg19: memref<128x128xbf16, #tpu.memory_space<vmem>>, %arg20: memref<128x1xf32, #tpu.memory_space<vmem>>, %arg21: memref<4x128xbf16, #tpu.memory_space<vmem>>, %arg22: memref<4x1xf32, #tpu.memory_space<vmem>>, %arg23: memref<1x4x128xf32, #tpu.memory_space<vmem>>, %arg24: memref<1024x128xf32, #tpu.memory_space<vmem>>) attributes {dimension_semantics = [#tpu.dimension_semantics<parallel>], iteration_bounds = array<i64: 2>, scalar_prefetch = 0 : i64, scratch_operands = 1 : i64, tpu.core_type = #tpu.core_type<tc>, window_params = [{transform_indices = @transform_0, window_bounds = array<i64: 1, 16, 128>}, {pipeline_mode = #tpu.pipeline_mode<synchronous>, transform_indices = @transform_1, window_bounds = array<i64: 64, 16>}, {pipeline_mode = #tpu.pipeline_mode<synchronous>, transform_indices = @transform_2, window_bounds = array<i64: 64, 1>}, {pipeline_mode = #tpu.pipeline_mode<synchronous>, transform_indices = @transform_3, window_bounds = array<i64: 64, 64>}, {pipeline_mode = #tpu.pipeline_mode<synchronous>, transform_indices = @transform_4, window_bounds = array<i64: 64, 1>}, {pipeline_mode = #tpu.pipeline_mode<synchronous>, transform_indices = @transform_5, window_bounds = array<i64: 64, 64>}, {pipeline_mode = #tpu.pipeline_mode<synchronous>, transform_indices = @transform_6, window_bounds = array<i64: 64, 1>}, {pipeline_mode = #tpu.pipeline_mode<synchronous>, transform_indices = @transform_7, window_bounds = array<i64: 128, 64>}, {pipeline_mode = #tpu.pipeline_mode<synchronous>, transform_indices = @transform_8, window_bounds = array<i64: 128, 1>}, {pipeline_mode = #tpu.pipeline_mode<synchronous>, transform_indices = @transform_9, window_bounds = array<i64: 1024, 128>}, {pipeline_mode = #tpu.pipeline_mode<synchronous>, transform_indices = @transform_10, window_bounds = array<i64: 1024, 1>}, {pipeline_mode = #tpu.pipeline_mode<synchronous>, transform_indices = @transform_11, window_bounds = array<i64: 512, 64>}, {pipeline_mode = #tpu.pipeline_mode<synchronous>, transform_indices = @transform_12, window_bounds = array<i64: 512, 1024>}, {pipeline_mode = #tpu.pipeline_mode<synchronous>, transform_indices = @transform_13, window_bounds = array<i64: 512, 1>}, {pipeline_mode = #tpu.pipeline_mode<synchronous>, transform_indices = @transform_14, window_bounds = array<i64: 256, 512>}, {pipeline_mode = #tpu.pipeline_mode<synchronous>, transform_indices = @transform_15, window_bounds = array<i64: 256, 1>}, {pipeline_mode = #tpu.pipeline_mode<synchronous>, transform_indices = @transform_16, window_bounds = array<i64: 128, 256>}, {pipeline_mode = #tpu.pipeline_mode<synchronous>, transform_indices = @transform_17, window_bounds = array<i64: 128, 1>}, {pipeline_mode = #tpu.pipeline_mode<synchronous>, transform_indices = @transform_18, window_bounds = array<i64: 128, 128>}, {pipeline_mode = #tpu.pipeline_mode<synchronous>, transform_indices = @transform_19, window_bounds = array<i64: 128, 1>}, {pipeline_mode = #tpu.pipeline_mode<synchronous>, transform_indices = @transform_20, window_bounds = array<i64: 4, 128>}, {pipeline_mode = #tpu.pipeline_mode<synchronous>, transform_indices = @transform_21, window_bounds = array<i64: 4, 1>}, {transform_indices = @transform_22, window_bounds = array<i64: 1, 4, 128>}]} {
    %cst = arith.constant 0xFF800000 : f32
    %0 = vector.broadcast %cst : f32 to vector<1024x128xf32>
    %c0 = arith.constant 0 : index
    %c0_0 = arith.constant 0 : index
    %1 = vector.load %arg24[%c0, %c0_0] : memref<1024x128xf32, #tpu.memory_space<vmem>>, vector<1024x128xf32>
    tpu.vector_store %arg24[%c0, %c0_0], %0 {strides = array<i32>} : memref<1024x128xf32, #tpu.memory_space<vmem>>, vector<1024x128xf32>,
    %c0_i32 = arith.constant 0 : i32
    %c128_i32 = arith.constant 128 : i32
    %2 = arith.muli %c0_i32, %c128_i32 : i32
    %3 = tpu.assume_multiple %2, 128 : i32
    %c0_1 = arith.constant 0 : index
    %c0_2 = arith.constant 0 : index
    %4 = arith.index_cast %3 : i32 to index
    %5 = vector.load %arg1[%c0_1, %c0_2, %4] : memref<1x16x128xbf16, #tpu.memory_space<vmem>>, vector<1x16x128xbf16>
    %6 = vector.shape_cast %5 : vector<1x16x128xbf16> to vector<16x128xbf16>
    %c0_3 = arith.constant 0 : index
    %c0_4 = arith.constant 0 : index
    %7 = vector.load %arg2[%c0_3, %c0_4] : memref<64x16xbf16, #tpu.memory_space<vmem>>, vector<64x16xbf16>
    %cst_5 = arith.constant dense<0.000000e+00> : vector<64x128xf32>
    %8 = tpu.matmul %7, %6, %cst_5 {dimension_numbers = #tpu.dot_dimension_numbers<[1], [0], [0], [1], [0, 0, 1, 1], [], []>} : vector<64x16xbf16>, vector<16x128xbf16>, vector<64x128xf32> -> vector<64x128xf32>
    %c0_6 = arith.constant 0 : index
    %c0_7 = arith.constant 0 : index
    %9 = vector.load %arg3[%c0_6, %c0_7] : memref<64x1xf32, #tpu.memory_space<vmem>>, vector<64x1xf32>
    %10 = vector.broadcast %9 : vector<64x1xf32> to vector<64x128xf32>
    %11 = arith.addf %8, %10 : vector<64x128xf32>
    %12 = math.tanh %11 : vector<64x128xf32>
    %13 = arith.truncf %12 : vector<64x128xf32> to vector<64x128xbf16>
    %c0_8 = arith.constant 0 : index
    %c0_9 = arith.constant 0 : index
    %14 = vector.load %arg4[%c0_8, %c0_9] : memref<64x64xbf16, #tpu.memory_space<vmem>>, vector<64x64xbf16>
    %cst_10 = arith.constant dense<0.000000e+00> : vector<64x128xf32>
    %15 = tpu.matmul %14, %13, %cst_10 {dimension_numbers = #tpu.dot_dimension_numbers<[1], [0], [0], [1], [0, 0, 1, 1], [], []>} : vector<64x64xbf16>, vector<64x128xbf16>, vector<64x128xf32> -> vector<64x128xf32>
    %c0_11 = arith.constant 0 : index
    %c0_12 = arith.constant 0 : index
    %16 = vector.load %arg5[%c0_11, %c0_12] : memref<64x1xf32, #tpu.memory_space<vmem>>, vector<64x1xf32>
    %17 = vector.broadcast %16 : vector<64x1xf32> to vector<64x128xf32>
    %18 = arith.addf %15, %17 : vector<64x128xf32>
    %19 = math.tanh %18 : vector<64x128xf32>
    %20 = arith.truncf %19 : vector<64x128xf32> to vector<64x128xbf16>
    %c0_13 = arith.constant 0 : index
    %c0_14 = arith.constant 0 : index
    %21 = vector.load %arg6[%c0_13, %c0_14] : memref<64x64xbf16, #tpu.memory_space<vmem>>, vector<64x64xbf16>
    %cst_15 = arith.constant dense<0.000000e+00> : vector<64x128xf32>
    %22 = tpu.matmul %21, %20, %cst_15 {dimension_numbers = #tpu.dot_dimension_numbers<[1], [0], [0], [1], [0, 0, 1, 1], [], []>} : vector<64x64xbf16>, vector<64x128xbf16>, vector<64x128xf32> -> vector<64x128xf32>
    %c0_16 = arith.constant 0 : index
    %c0_17 = arith.constant 0 : index
    %23 = vector.load %arg7[%c0_16, %c0_17] : memref<64x1xf32, #tpu.memory_space<vmem>>, vector<64x1xf32>
    %24 = vector.broadcast %23 : vector<64x1xf32> to vector<64x128xf32>
    %25 = arith.addf %22, %24 : vector<64x128xf32>
    %26 = math.tanh %25 : vector<64x128xf32>
    %27 = arith.truncf %26 : vector<64x128xf32> to vector<64x128xbf16>
    %c0_18 = arith.constant 0 : index
    %c0_19 = arith.constant 0 : index
    %28 = vector.load %arg8[%c0_18, %c0_19] : memref<128x64xbf16, #tpu.memory_space<vmem>>, vector<128x64xbf16>
    %cst_20 = arith.constant dense<0.000000e+00> : vector<128x128xf32>
    %29 = tpu.matmul %28, %27, %cst_20 {dimension_numbers = #tpu.dot_dimension_numbers<[1], [0], [0], [1], [0, 0, 1, 1], [], []>} : vector<128x64xbf16>, vector<64x128xbf16>, vector<128x128xf32> -> vector<128x128xf32>
    %c0_21 = arith.constant 0 : index
    %c0_22 = arith.constant 0 : index
    %30 = vector.load %arg9[%c0_21, %c0_22] : memref<128x1xf32, #tpu.memory_space<vmem>>, vector<128x1xf32>
    %31 = vector.broadcast %30 : vector<128x1xf32> to vector<128x128xf32>
    %32 = arith.addf %29, %31 : vector<128x128xf32>
    %33 = math.tanh %32 : vector<128x128xf32>
    %34 = arith.truncf %33 : vector<128x128xf32> to vector<128x128xbf16>
    %c0_23 = arith.constant 0 : index
    %c0_24 = arith.constant 0 : index
    %35 = vector.load %arg10[%c0_23, %c0_24] : memref<1024x128xbf16, #tpu.memory_space<vmem>>, vector<1024x128xbf16>
    %cst_25 = arith.constant dense<0.000000e+00> : vector<1024x128xf32>
    %36 = tpu.matmul %35, %34, %cst_25 {dimension_numbers = #tpu.dot_dimension_numbers<[1], [0], [0], [1], [0, 0, 1, 1], [], []>} : vector<1024x128xbf16>, vector<128x128xbf16>, vector<1024x128xf32> -> vector<1024x128xf32>
    %c0_26 = arith.constant 0 : index
    %c0_27 = arith.constant 0 : index
    %37 = vector.load %arg24[%c0_26, %c0_27] : memref<1024x128xf32, #tpu.memory_space<vmem>>, vector<1024x128xf32>
    %38 = arith.maximumf %37, %36 : vector<1024x128xf32>
    %c0_28 = arith.constant 0 : index
    %c0_29 = arith.constant 0 : index
    %39 = vector.load %arg24[%c0_28, %c0_29] : memref<1024x128xf32, #tpu.memory_space<vmem>>, vector<1024x128xf32>
    tpu.vector_store %arg24[%c0_28, %c0_29], %38 {strides = array<i32>} : memref<1024x128xf32, #tpu.memory_space<vmem>>, vector<1024x128xf32>,
    %c1_i32 = arith.constant 1 : i32
    %c0_30 = arith.constant 0 : index
    %c0_31 = arith.constant 0 : index
    %40 = vector.load %arg24[%c0_30, %c0_31] : memref<1024x128xf32, #tpu.memory_space<vmem>>, vector<1024x128xf32>
    %cst_32 = arith.constant dense<0xFF800000> : vector<1024xf32>
    %41 = vector.multi_reduction <maximumf>, %40, %cst_32 [1] : vector<1024x128xf32> to vector<1024xf32>
    %42 = vector.shape_cast %41 : vector<1024xf32> to vector<1024x1xf32>
    %c0_33 = arith.constant 0 : index
    %c0_34 = arith.constant 0 : index
    %43 = vector.load %arg11[%c0_33, %c0_34] : memref<1024x1xf32, #tpu.memory_space<vmem>>, vector<1024x1xf32>
    %44 = arith.addf %42, %43 : vector<1024x1xf32>
    %45 = math.tanh %44 : vector<1024x1xf32>
    %46 = vector.shape_cast %45 : vector<1024x1xf32> to vector<1024x1xf32>
    %47 = vector.broadcast %46 : vector<1024x1xf32> to vector<1024x128xf32>
    %48 = arith.truncf %47 : vector<1024x128xf32> to vector<1024x128xbf16>
    %c0_35 = arith.constant 0 : index
    %c0_36 = arith.constant 0 : index
    %49 = vector.load %arg13[%c0_35, %c0_36] : memref<512x1024xbf16, #tpu.memory_space<vmem>>, vector<512x1024xbf16>
    %cst_37 = arith.constant dense<0.000000e+00> : vector<512x128xf32>
    %50 = tpu.matmul %49, %48, %cst_37 {dimension_numbers = #tpu.dot_dimension_numbers<[1], [0], [0], [1], [0, 0, 1, 1], [], []>} : vector<512x1024xbf16>, vector<1024x128xbf16>, vector<512x128xf32> -> vector<512x128xf32>
    %51 = vector.extract_strided_slice %50 {offsets = [0, 0], sizes = [512, 1], strides = [1, 1]} : vector<512x128xf32> to vector<512x1xf32>
    %c0_38 = arith.constant 0 : index
    %c0_39 = arith.constant 0 : index
    %52 = vector.load %arg14[%c0_38, %c0_39] : memref<512x1xf32, #tpu.memory_space<vmem>>, vector<512x1xf32>
    %53 = arith.addf %51, %52 : vector<512x1xf32>
    %c0_i32_40 = arith.constant 0 : i32
    %c128_i32_41 = arith.constant 128 : i32
    %54 = arith.muli %c0_i32_40, %c128_i32_41 : i32
    %55 = tpu.assume_multiple %54, 128 : i32
    %c0_42 = arith.constant 0 : index
    %c0_43 = arith.constant 0 : index
    %56 = arith.index_cast %55 : i32 to index
    %57 = vector.load %arg1[%c0_42, %c0_43, %56] : memref<1x16x128xbf16, #tpu.memory_space<vmem>>, vector<1x16x128xbf16>
    %58 = vector.shape_cast %57 : vector<1x16x128xbf16> to vector<16x128xbf16>
    %c0_44 = arith.constant 0 : index
    %c0_45 = arith.constant 0 : index
    %59 = vector.load %arg2[%c0_44, %c0_45] : memref<64x16xbf16, #tpu.memory_space<vmem>>, vector<64x16xbf16>
    %cst_46 = arith.constant dense<0.000000e+00> : vector<64x128xf32>
    %60 = tpu.matmul %59, %58, %cst_46 {dimension_numbers = #tpu.dot_dimension_numbers<[1], [0], [0], [1], [0, 0, 1, 1], [], []>} : vector<64x16xbf16>, vector<16x128xbf16>, vector<64x128xf32> -> vector<64x128xf32>
    %c0_47 = arith.constant 0 : index
    %c0_48 = arith.constant 0 : index
    %61 = vector.load %arg3[%c0_47, %c0_48] : memref<64x1xf32, #tpu.memory_space<vmem>>, vector<64x1xf32>
    %62 = vector.broadcast %61 : vector<64x1xf32> to vector<64x128xf32>
    %63 = arith.addf %60, %62 : vector<64x128xf32>
    %64 = math.tanh %63 : vector<64x128xf32>
    %65 = arith.truncf %64 : vector<64x128xf32> to vector<64x128xbf16>
    %c0_49 = arith.constant 0 : index
    %c0_50 = arith.constant 0 : index
    %66 = vector.load %arg4[%c0_49, %c0_50] : memref<64x64xbf16, #tpu.memory_space<vmem>>, vector<64x64xbf16>
    %cst_51 = arith.constant dense<0.000000e+00> : vector<64x128xf32>
    %67 = tpu.matmul %66, %65, %cst_51 {dimension_numbers = #tpu.dot_dimension_numbers<[1], [0], [0], [1], [0, 0, 1, 1], [], []>} : vector<64x64xbf16>, vector<64x128xbf16>, vector<64x128xf32> -> vector<64x128xf32>
    %c0_52 = arith.constant 0 : index
    %c0_53 = arith.constant 0 : index
    %68 = vector.load %arg5[%c0_52, %c0_53] : memref<64x1xf32, #tpu.memory_space<vmem>>, vector<64x1xf32>
    %69 = vector.broadcast %68 : vector<64x1xf32> to vector<64x128xf32>
    %70 = arith.addf %67, %69 : vector<64x128xf32>
    %71 = math.tanh %70 : vector<64x128xf32>
    %72 = arith.truncf %71 : vector<64x128xf32> to vector<64x128xbf16>
    %c0_54 = arith.constant 0 : index
    %c0_55 = arith.constant 0 : index
    %73 = vector.load %arg12[%c0_54, %c0_55] : memref<512x64xbf16, #tpu.memory_space<vmem>>, vector<512x64xbf16>
    %cst_56 = arith.constant dense<0.000000e+00> : vector<512x128xf32>
    %74 = tpu.matmul %73, %72, %cst_56 {dimension_numbers = #tpu.dot_dimension_numbers<[1], [0], [0], [1], [0, 0, 1, 1], [], []>} : vector<512x64xbf16>, vector<64x128xbf16>, vector<512x128xf32> -> vector<512x128xf32>
    %75 = vector.broadcast %53 : vector<512x1xf32> to vector<512x128xf32>
    %76 = arith.addf %74, %75 : vector<512x128xf32>
    %77 = math.tanh %76 : vector<512x128xf32>
    %78 = arith.truncf %77 : vector<512x128xf32> to vector<512x128xbf16>
    %c0_57 = arith.constant 0 : index
    %c0_58 = arith.constant 0 : index
    %79 = vector.load %arg15[%c0_57, %c0_58] : memref<256x512xbf16, #tpu.memory_space<vmem>>, vector<256x512xbf16>
    %cst_59 = arith.constant dense<0.000000e+00> : vector<256x128xf32>
    %80 = tpu.matmul %79, %78, %cst_59 {dimension_numbers = #tpu.dot_dimension_numbers<[1], [0], [0], [1], [0, 0, 1, 1], [], []>} : vector<256x512xbf16>, vector<512x128xbf16>, vector<256x128xf32> -> vector<256x128xf32>
    %c0_60 = arith.constant 0 : index
    %c0_61 = arith.constant 0 : index
    %81 = vector.load %arg16[%c0_60, %c0_61] : memref<256x1xf32, #tpu.memory_space<vmem>>, vector<256x1xf32>
    %82 = vector.broadcast %81 : vector<256x1xf32> to vector<256x128xf32>
    %83 = arith.addf %80, %82 : vector<256x128xf32>
    %84 = math.tanh %83 : vector<256x128xf32>
    %85 = arith.truncf %84 : vector<256x128xf32> to vector<256x128xbf16>
    %c0_62 = arith.constant 0 : index
    %c0_63 = arith.constant 0 : index
    %86 = vector.load %arg17[%c0_62, %c0_63] : memref<128x256xbf16, #tpu.memory_space<vmem>>, vector<128x256xbf16>
    %cst_64 = arith.constant dense<0.000000e+00> : vector<128x128xf32>
    %87 = tpu.matmul %86, %85, %cst_64 {dimension_numbers = #tpu.dot_dimension_numbers<[1], [0], [0], [1], [0, 0, 1, 1], [], []>} : vector<128x256xbf16>, vector<256x128xbf16>, vector<128x128xf32> -> vector<128x128xf32>
    %c0_65 = arith.constant 0 : index
    %c0_66 = arith.constant 0 : index
    %88 = vector.load %arg18[%c0_65, %c0_66] : memref<128x1xf32, #tpu.memory_space<vmem>>, vector<128x1xf32>
    %89 = vector.broadcast %88 : vector<128x1xf32> to vector<128x128xf32>
    %90 = arith.addf %87, %89 : vector<128x128xf32>
    %91 = math.tanh %90 : vector<128x128xf32>
    %92 = arith.truncf %91 : vector<128x128xf32> to vector<128x128xbf16>
    %c0_67 = arith.constant 0 : index
    %c0_68 = arith.constant 0 : index
    %93 = vector.load %arg19[%c0_67, %c0_68] : memref<128x128xbf16, #tpu.memory_space<vmem>>, vector<128x128xbf16>
    %cst_69 = arith.constant dense<0.000000e+00> : vector<128x128xf32>
    %94 = tpu.matmul %93, %92, %cst_69 {dimension_numbers = #tpu.dot_dimension_numbers<[1], [0], [0], [1], [0, 0, 1, 1], [], []>} : vector<128x128xbf16>, vector<128x128xbf16>, vector<128x128xf32> -> vector<128x128xf32>
    %c0_70 = arith.constant 0 : index
    %c0_71 = arith.constant 0 : index
    %95 = vector.load %arg20[%c0_70, %c0_71] : memref<128x1xf32, #tpu.memory_space<vmem>>, vector<128x1xf32>
    %96 = vector.broadcast %95 : vector<128x1xf32> to vector<128x128xf32>
    %97 = arith.addf %94, %96 : vector<128x128xf32>
    %98 = math.tanh %97 : vector<128x128xf32>
    %99 = arith.truncf %98 : vector<128x128xf32> to vector<128x128xbf16>
    %c0_72 = arith.constant 0 : index
    %c0_73 = arith.constant 0 : index
    %100 = vector.load %arg21[%c0_72, %c0_73] : memref<4x128xbf16, #tpu.memory_space<vmem>>, vector<4x128xbf16>
    %cst_74 = arith.constant dense<0.000000e+00> : vector<4x128xf32>
    %101 = tpu.matmul %100, %99, %cst_74 {dimension_numbers = #tpu.dot_dimension_numbers<[1], [0], [0], [1], [0, 0, 1, 1], [], []>} : vector<4x128xbf16>, vector<128x128xbf16>, vector<4x128xf32> -> vector<4x128xf32>
    %c0_75 = arith.constant 0 : index
    %c0_76 = arith.constant 0 : index
    %102 = vector.load %arg22[%c0_75, %c0_76] : memref<4x1xf32, #tpu.memory_space<vmem>>, vector<4x1xf32>
    %103 = vector.broadcast %102 : vector<4x1xf32> to vector<4x128xf32>
    %104 = arith.addf %101, %103 : vector<4x128xf32>
    %105 = math.tanh %104 : vector<4x128xf32>
    %c0_77 = arith.constant 0 : index
    %c0_78 = arith.constant 0 : index
    %106 = arith.index_cast %55 : i32 to index
    %107 = vector.load %arg23[%c0_77, %c0_78, %106] : memref<1x4x128xf32, #tpu.memory_space<vmem>>, vector<1x4x128xf32>
    %108 = vector.shape_cast %107 : vector<1x4x128xf32> to vector<4x128xf32>
    %109 = vector.shape_cast %105 : vector<4x128xf32> to vector<1x4x128xf32>
    tpu.vector_store %arg23[%c0_77, %c0_78, %106], %109 {strides = array<i32>} : memref<1x4x128xf32, #tpu.memory_space<vmem>>, vector<1x4x128xf32>,
    %c1_i32_79 = arith.constant 1 : i32
    return
  }
  func.func @transform_0(%arg0: i32) -> (i32, i32, i32) {
    %c0_i32 = arith.constant 0 : i32
    %c0_i32_0 = arith.constant 0 : i32
    %c0_i32_1 = arith.constant 0 : i32
    return %arg0, %c0_i32, %c0_i32_0 : i32, i32, i32
  }
  func.func @transform_1(%arg0: i32) -> (i32, i32) {
    %c0_i32 = arith.constant 0 : i32
    %c0_i32_0 = arith.constant 0 : i32
    %c0_i32_1 = arith.constant 0 : i32
    return %c0_i32, %c0_i32_0 : i32, i32
  }
  func.func @transform_2(%arg0: i32) -> (i32, i32) {
    %c0_i32 = arith.constant 0 : i32
    %c0_i32_0 = arith.constant 0 : i32
    %c0_i32_1 = arith.constant 0 : i32
    return %c0_i32, %c0_i32_0 : i32, i32
  }
  func.func @transform_3(%arg0: i32) -> (i32, i32) {
    %c0_i32 = arith.constant 0 : i32
    %c0_i32_0 = arith.constant 0 : i32
    %c0_i32_1 = arith.constant 0 : i32
    return %c0_i32, %c0_i32_0 : i32, i32
  }
  func.func @transform_4(%arg0: i32) -> (i32, i32) {
    %c0_i32 = arith.constant 0 : i32
    %c0_i32_0 = arith.constant 0 : i32
    %c0_i32_1 = arith.constant 0 : i32
    return %c0_i32, %c0_i32_0 : i32, i32
  }
  func.func @transform_5(%arg0: i32) -> (i32, i32) {
    %c0_i32 = arith.constant 0 : i32
    %c0_i32_0 = arith.constant 0 : i32
    %c0_i32_1 = arith.constant 0 : i32
    return %c0_i32, %c0_i32_0 : i32, i32
  }
  func.func @transform_6(%arg0: i32) -> (i32, i32) {
    %c0_i32 = arith.constant 0 : i32
    %c0_i32_0 = arith.constant 0 : i32
    %c0_i32_1 = arith.constant 0 : i32
    return %c0_i32, %c0_i32_0 : i32, i32
  }
  func.func @transform_7(%arg0: i32) -> (i32, i32) {
    %c0_i32 = arith.constant 0 : i32
    %c0_i32_0 = arith.constant 0 : i32
    %c0_i32_1 = arith.constant 0 : i32
    return %c0_i32, %c0_i32_0 : i32, i32
  }
  func.func @transform_8(%arg0: i32) -> (i32, i32) {
    %c0_i32 = arith.constant 0 : i32
    %c0_i32_0 = arith.constant 0 : i32
    %c0_i32_1 = arith.constant 0 : i32
    return %c0_i32, %c0_i32_0 : i32, i32
  }
  func.func @transform_9(%arg0: i32) -> (i32, i32) {
    %c0_i32 = arith.constant 0 : i32
    %c0_i32_0 = arith.constant 0 : i32
    %c0_i32_1 = arith.constant 0 : i32
    return %c0_i32, %c0_i32_0 : i32, i32
  }
  func.func @transform_10(%arg0: i32) -> (i32, i32) {
    %c0_i32 = arith.constant 0 : i32
    %c0_i32_0 = arith.constant 0 : i32
    %c0_i32_1 = arith.constant 0 : i32
    return %c0_i32, %c0_i32_0 : i32, i32
  }
  func.func @transform_11(%arg0: i32) -> (i32, i32) {
    %c0_i32 = arith.constant 0 : i32
    %c0_i32_0 = arith.constant 0 : i32
    %c0_i32_1 = arith.constant 0 : i32
    return %c0_i32, %c0_i32_0 : i32, i32
  }
  func.func @transform_12(%arg0: i32) -> (i32, i32) {
    %c0_i32 = arith.constant 0 : i32
    %c0_i32_0 = arith.constant 0 : i32
    %c0_i32_1 = arith.constant 0 : i32
    return %c0_i32, %c0_i32_0 : i32, i32
  }
  func.func @transform_13(%arg0: i32) -> (i32, i32) {
    %c0_i32 = arith.constant 0 : i32
    %c0_i32_0 = arith.constant 0 : i32
    %c0_i32_1 = arith.constant 0 : i32
    return %c0_i32, %c0_i32_0 : i32, i32
  }
  func.func @transform_14(%arg0: i32) -> (i32, i32) {
    %c0_i32 = arith.constant 0 : i32
    %c0_i32_0 = arith.constant 0 : i32
    %c0_i32_1 = arith.constant 0 : i32
    return %c0_i32, %c0_i32_0 : i32, i32
  }
  func.func @transform_15(%arg0: i32) -> (i32, i32) {
    %c0_i32 = arith.constant 0 : i32
    %c0_i32_0 = arith.constant 0 : i32
    %c0_i32_1 = arith.constant 0 : i32
    return %c0_i32, %c0_i32_0 : i32, i32
  }
  func.func @transform_16(%arg0: i32) -> (i32, i32) {
    %c0_i32 = arith.constant 0 : i32
    %c0_i32_0 = arith.constant 0 : i32
    %c0_i32_1 = arith.constant 0 : i32
    return %c0_i32, %c0_i32_0 : i32, i32
  }
  func.func @transform_17(%arg0: i32) -> (i32, i32) {
    %c0_i32 = arith.constant 0 : i32
    %c0_i32_0 = arith.constant 0 : i32
    %c0_i32_1 = arith.constant 0 : i32
    return %c0_i32, %c0_i32_0 : i32, i32
  }
  func.func @transform_18(%arg0: i32) -> (i32, i32) {
    %c0_i32 = arith.constant 0 : i32
    %c0_i32_0 = arith.constant 0 : i32
    %c0_i32_1 = arith.constant 0 : i32
    return %c0_i32, %c0_i32_0 : i32, i32
  }
  func.func @transform_19(%arg0: i32) -> (i32, i32) {
    %c0_i32 = arith.constant 0 : i32
    %c0_i32_0 = arith.constant 0 : i32
    %c0_i32_1 = arith.constant 0 : i32
    return %c0_i32, %c0_i32_0 : i32, i32
  }
  func.func @transform_20(%arg0: i32) -> (i32, i32) {
    %c0_i32 = arith.constant 0 : i32
    %c0_i32_0 = arith.constant 0 : i32
    %c0_i32_1 = arith.constant 0 : i32
    return %c0_i32, %c0_i32_0 : i32, i32
  }
  func.func @transform_21(%arg0: i32) -> (i32, i32) {
    %c0_i32 = arith.constant 0 : i32
    %c0_i32_0 = arith.constant 0 : i32
    %c0_i32_1 = arith.constant 0 : i32
    return %c0_i32, %c0_i32_0 : i32, i32
  }
  func.func @transform_22(%arg0: i32) -> (i32, i32, i32) {
    %c0_i32 = arith.constant 0 : i32
    %c0_i32_0 = arith.constant 0 : i32
    %c0_i32_1 = arith.constant 0 : i32
    return %arg0, %c0_i32, %c0_i32_0 : i32, i32, i32
  }
}

</mosaic_0001>

<llo_original>
// kernel: tpu_custom_call.1
$region0: #{tpu_custom_call.1}
  #allocation0 [shape = 'u32[]', space=smem, size = 0x4, offset = 0x4, fixed_abs, tag = 'smem constant byte address 0x4 - core index']
  #allocation1 [shape = 'u32[144,128]{1,0:T(1,128)}', space=vmem, size = 0x12000, scoped, tag = 'internal scratch']
  #allocation2 [shape = 'f32[1024,128]{1,0:T(8,128)}', space=vmem, size = 0x80000, scoped, tag = 'scratch operand']
  %s0 = inlined_call_operand.vmem [shape: bf16[2,16,128], index: 0, kind: input, shape index: {}]
  %s1 = inlined_call_operand.vmem [shape: bf16[64,16], index: 1, kind: input, shape index: {}]
  %s2 = inlined_call_operand.vmem [shape: f32[64,1], index: 2, kind: input, shape index: {}]
  %s3 = inlined_call_operand.vmem [shape: bf16[64,64], index: 3, kind: input, shape index: {}]
  %s4 = inlined_call_operand.vmem [shape: f32[64,1], index: 4, kind: input, shape index: {}]
  %s5 = inlined_call_operand.vmem [shape: bf16[64,64], index: 5, kind: input, shape index: {}]
  %s6 = inlined_call_operand.vmem [shape: f32[64,1], index: 6, kind: input, shape index: {}]
  %s7 = inlined_call_operand.vmem [shape: bf16[128,64], index: 7, kind: input, shape index: {}]
  %s8 = inlined_call_operand.vmem [shape: f32[128,1], index: 8, kind: input, shape index: {}]
  %s9 = inlined_call_operand.vmem [shape: bf16[1024,128], index: 9, kind: input, shape index: {}]
  %s10 = inlined_call_operand.vmem [shape: f32[1024,1], index: 10, kind: input, shape index: {}]
  %s11 = inlined_call_operand.vmem [shape: bf16[512,64], index: 11, kind: input, shape index: {}]
  %s12 = inlined_call_operand.vmem [shape: bf16[512,1024], index: 12, kind: input, shape index: {}]
  %s13 = inlined_call_operand.vmem [shape: f32[512,1], index: 13, kind: input, shape index: {}]
  %s14 = inlined_call_operand.hbm [shape: bf16[256,512], index: 14, kind: input, shape index: {}]
  %s15 = inlined_call_operand.vmem [shape: f32[256,1], index: 15, kind: input, shape index: {}]
  %s16 = inlined_call_operand.vmem [shape: bf16[128,256], index: 16, kind: input, shape index: {}]
  %s17 = inlined_call_operand.vmem [shape: f32[128,1], index: 17, kind: input, shape index: {}]
  %s18 = inlined_call_operand.vmem [shape: bf16[128,128], index: 18, kind: input, shape index: {}]
  %s19 = inlined_call_operand.vmem [shape: f32[128,1], index: 19, kind: input, shape index: {}]
  %s20 = inlined_call_operand.vmem [shape: bf16[4,128], index: 20, kind: input, shape index: {}]
  %s21 = inlined_call_operand.vmem [shape: f32[4,1], index: 21, kind: input, shape index: {}]
  %s22 = inlined_call_operand.hbm [shape: f32[2,4,128], index: 22, kind: output, shape index: {}]
  %s23 = sld [smem:[#allocation0]]
  $region125: #{tpu_custom_call.1} parent=0
    _
  %s25 = ssub.s32 1, %s23
  %s26 = scalar_select 0, %s25, %s23
  $region1: #{tpu_custom_call.1} parent=0
    #allocation3 [shape = 'u8[262144]{0}', space=vmem, size = 0x40000, scoped, tag = 'input window, operand 14, single buffered']
    #allocation4 [shape = 's32[2]{0}', space=sflag, size = 0x8, scoped, tag = 'scoped memory for tpu_custom_call.1']
    #allocation5 [shape = 's32[2]{0}', space=sflag, size = 0x8, scoped, tag = 'scoped memory for tpu_custom_call.1']
    #allocation6 [shape = 'u8[4096]{0}', space=vmem, size = 0x1000, scoped, tag = 'output window, operand 0']
    %27 = vsyncpa [#allocation4], 0
    %28 = vsyncpa [#allocation5], 0
    %s29 = scalar_lea.sflag [#allocation5], 1
    %30 = vsyncpa %s29, 0
    loop: start=0, step=1, limit=4
    $region2: #{tpu_custom_call.1} parent=1 // loop_pre_header
      _
    $region3: #{tpu_custom_call.1} parent=1 // loop_header
      %s32 = sphi 0, %s36
      %p33 = scmp.ge.s32.totalorder %s32, 4
      %s42 = sphi 0, %s44
      %s45 = sphi 0, %s42
      %s46 = sphi 0, %s45
      %s62 = sphi 0, %s46
      %s66 = sphi 0, %s66
      %s68 = sphi 0, %s66
      %s69 = sphi 0, %s68
      %s83 = sphi 0, %s69
      %s87 = sphi 0, %s87
      %s89 = sphi 0, %s87
      %s90 = sphi 0, %s89
      %s104 = sphi 0, %s90
      %s108 = sphi 0, %s108
      %s110 = sphi 0, %s108
      %s111 = sphi 0, %s110
      %s125 = sphi 0, %s111
      %s129 = sphi 0, %s129
      %s131 = sphi 0, %s129
      %s132 = sphi 0, %s131
      %s146 = sphi 0, %s132
      %s150 = sphi 0, %s150
      %s152 = sphi 0, %s150
      %s153 = sphi 0, %s152
      %s167 = sphi 0, %s153
      %s171 = sphi 0, %s171
      %s173 = sphi 0, %s171
      %s174 = sphi 0, %s173
      %s188 = sphi 0, %s174
      %s192 = sphi 0, %s192
      %s194 = sphi 0, %s192
      %s195 = sphi 0, %s194
      %s209 = sphi 0, %s195
      %s213 = sphi 0, %s213
      %s215 = sphi 0, %s213
      %s216 = sphi 0, %s215
      %s230 = sphi 0, %s216
      %s234 = sphi 0, %s234
      %s236 = sphi 0, %s234
      %s237 = sphi 0, %s236
      %s251 = sphi 0, %s237
      %s255 = sphi 0, %s255
      %s257 = sphi 0, %s255
      %s258 = sphi 0, %s257
      %s272 = sphi 0, %s258
      %s276 = sphi 0, %s276
      %s278 = sphi 0, %s276
      %s279 = sphi 0, %s278
      %s293 = sphi 0, %s279
      %s297 = sphi 0, %s297
      %s299 = sphi 0, %s297
      %s300 = sphi 0, %s299
      %s314 = sphi 0, %s300
      %s318 = sphi 0, %s318
      %s320 = sphi 0, %s318
      %s321 = sphi 0, %s320
      %s335 = sphi 0, %s321
      %s339 = sphi 0, %s339
      %s341 = sphi 0, %s339
      %s342 = sphi 0, %s341
      %s356 = sphi 0, %s342
      %s360 = sphi 0, %s360
      %s362 = sphi 0, %s360
      %s363 = sphi 0, %s362
      %s377 = sphi 0, %s363
      %s381 = sphi 0, %s381
      %s383 = sphi 0, %s381
      %s384 = sphi 0, %s383
      %s398 = sphi 0, %s384
      %s402 = sphi 0, %s402
      %s404 = sphi 0, %s402
      %s405 = sphi 0, %s404
      %s419 = sphi 0, %s405
      %s423 = sphi 0, %s423
      %s425 = sphi 0, %s423
      %s426 = sphi 0, %s425
      %s440 = sphi 0, %s426
      %s444 = sphi 0, %s444
      %s446 = sphi 0, %s444
      %s447 = sphi 0, %s446
      %s461 = sphi 0, %s447
      %s465 = sphi 0, %s465
      %s467 = sphi 0, %s465
      %s468 = sphi 0, %s467
      %s482 = sphi 0, %s468
      %s486 = sphi 0, %s486
      %s488 = sphi 0, %s486
      %s489 = sphi 0, %s488
      %s503 = sphi 0, %s489
      %s509 = sphi 0, %s511
      %s512 = sphi 0, %s509
      %s513 = sphi 0, %s512
      %s529 = sphi 0, %s513
    $region4: #{tpu_custom_call.1} parent=1 // loop_header_branch
      %35 = sbr.rel (%p33) target = $region8
    $region5: #{tpu_custom_call.1} parent=1 // loop_body
      %s37 = ssub.s32 %s32, 1
      %s38 = ssub.s32 %s32, 2
      %s39 = sadd.s32 %s32, 1
      %s40 = ssub.s32 %s32, %s39
      %p41 = scmp.eq.s32.totalorder %s40, 0
      %s43 = sadd.s32 %s42, 1
      %s44 = scalar_select %p41, %s42, %s43
      %p47 = pneg %p41
      %p48 = scmp.eq.s32.totalorder %s32, 1
      %p49 = por %p47, %p48
      %p50 = scmp.ne.s32.totalorder %s42, %s45
      %p51 = scmp.eq.s32.totalorder %s32, 0
      %p52 = por %p50, %p51
      %p53 = scmp.ne.s32.totalorder %s42, %s45
      %p54 = scmp.eq.s32.totalorder %s37, 1
      %p55 = por %p53, %p54
      %p56 = scmp.ne.s32.totalorder %s45, %s46
      %p57 = scmp.eq.s32.totalorder %s37, 0
      %p58 = por %p56, %p57
      %p59 = scmp.ne.s32.totalorder %s45, %s46
      %p60 = scmp.eq.s32.totalorder %s38, 1
      %p61 = por %p59, %p60
      %p63 = scmp.ne.s32.totalorder %s46, %s62
      %p64 = scmp.eq.s32.totalorder %s38, 0
      %p65 = por %p63, %p64
      %s67 = sadd.s32 %s66, 1
      %p70 = scmp.eq.s32.totalorder %s32, 1
      %p71 = scmp.ne.s32.totalorder %s66, %s68
      %p72 = scmp.eq.s32.totalorder %s32, 0
      %p73 = por %p71, %p72
      %p74 = scmp.ne.s32.totalorder %s66, %s68
      %p75 = scmp.eq.s32.totalorder %s37, 1
      %p76 = por %p74, %p75
      %p77 = scmp.ne.s32.totalorder %s68, %s69
      %p78 = scmp.eq.s32.totalorder %s37, 0
      %p79 = por %p77, %p78
      %p80 = scmp.ne.s32.totalorder %s68, %s69
      %p81 = scmp.eq.s32.totalorder %s38, 1
      %p82 = por %p80, %p81
      %p84 = scmp.ne.s32.totalorder %s69, %s83
      %p85 = scmp.eq.s32.totalorder %s38, 0
      %p86 = por %p84, %p85
      %s88 = sadd.s32 %s87, 1
      %p91 = scmp.eq.s32.totalorder %s32, 1
      %p92 = scmp.ne.s32.totalorder %s87, %s89
      %p93 = scmp.eq.s32.totalorder %s32, 0
      %p94 = por %p92, %p93
      %p95 = scmp.ne.s32.totalorder %s87, %s89
      %p96 = scmp.eq.s32.totalorder %s37, 1
      %p97 = por %p95, %p96
      %p98 = scmp.ne.s32.totalorder %s89, %s90
      %p99 = scmp.eq.s32.totalorder %s37, 0
      %p100 = por %p98, %p99
      %p101 = scmp.ne.s32.totalorder %s89, %s90
      %p102 = scmp.eq.s32.totalorder %s38, 1
      %p103 = por %p101, %p102
      %p105 = scmp.ne.s32.totalorder %s90, %s104
      %p106 = scmp.eq.s32.totalorder %s38, 0
      %p107 = por %p105, %p106
      %s109 = sadd.s32 %s108, 1
      %p112 = scmp.eq.s32.totalorder %s32, 1
      %p113 = scmp.ne.s32.totalorder %s108, %s110
      %p114 = scmp.eq.s32.totalorder %s32, 0
      %p115 = por %p113, %p114
      %p116 = scmp.ne.s32.totalorder %s108, %s110
      %p117 = scmp.eq.s32.totalorder %s37, 1
      %p118 = por %p116, %p117
      %p119 = scmp.ne.s32.totalorder %s110, %s111
      %p120 = scmp.eq.s32.totalorder %s37, 0
      %p121 = por %p119, %p120
      %p122 = scmp.ne.s32.totalorder %s110, %s111
      %p123 = scmp.eq.s32.totalorder %s38, 1
      %p124 = por %p122, %p123
      %p126 = scmp.ne.s32.totalorder %s111, %s125
      %p127 = scmp.eq.s32.totalorder %s38, 0
      %p128 = por %p126, %p127
      %s130 = sadd.s32 %s129, 1
      %p133 = scmp.eq.s32.totalorder %s32, 1
      %p134 = scmp.ne.s32.totalorder %s129, %s131
      %p135 = scmp.eq.s32.totalorder %s32, 0
      %p136 = por %p134, %p135
      %p137 = scmp.ne.s32.totalorder %s129, %s131
      %p138 = scmp.eq.s32.totalorder %s37, 1
      %p139 = por %p137, %p138
      %p140 = scmp.ne.s32.totalorder %s131, %s132
      %p141 = scmp.eq.s32.totalorder %s37, 0
      %p142 = por %p140, %p141
      %p143 = scmp.ne.s32.totalorder %s131, %s132
      %p144 = scmp.eq.s32.totalorder %s38, 1
      %p145 = por %p143, %p144
      %p147 = scmp.ne.s32.totalorder %s132, %s146
      %p148 = scmp.eq.s32.totalorder %s38, 0
      %p149 = por %p147, %p148
      %s151 = sadd.s32 %s150, 1
      %p154 = scmp.eq.s32.totalorder %s32, 1
      %p155 = scmp.ne.s32.totalorder %s150, %s152
      %p156 = scmp.eq.s32.totalorder %s32, 0
      %p157 = por %p155, %p156
      %p158 = scmp.ne.s32.totalorder %s150, %s152
      %p159 = scmp.eq.s32.totalorder %s37, 1
      %p160 = por %p158, %p159
      %p161 = scmp.ne.s32.totalorder %s152, %s153
      %p162 = scmp.eq.s32.totalorder %s37, 0
      %p163 = por %p161, %p162
      %p164 = scmp.ne.s32.totalorder %s152, %s153
      %p165 = scmp.eq.s32.totalorder %s38, 1
      %p166 = por %p164, %p165
      %p168 = scmp.ne.s32.totalorder %s153, %s167
      %p169 = scmp.eq.s32.totalorder %s38, 0
      %p170 = por %p168, %p169
      %s172 = sadd.s32 %s171, 1
      %p175 = scmp.eq.s32.totalorder %s32, 1
      %p176 = scmp.ne.s32.totalorder %s171, %s173
      %p177 = scmp.eq.s32.totalorder %s32, 0
      %p178 = por %p176, %p177
      %p179 = scmp.ne.s32.totalorder %s171, %s173
      %p180 = scmp.eq.s32.totalorder %s37, 1
      %p181 = por %p179, %p180
      %p182 = scmp.ne.s32.totalorder %s173, %s174
      %p183 = scmp.eq.s32.totalorder %s37, 0
      %p184 = por %p182, %p183
      %p185 = scmp.ne.s32.totalorder %s173, %s174
      %p186 = scmp.eq.s32.totalorder %s38, 1
      %p187 = por %p185, %p186
      %p189 = scmp.ne.s32.totalorder %s174, %s188
      %p190 = scmp.eq.s32.totalorder %s38, 0
      %p191 = por %p189, %p190
      %s193 = sadd.s32 %s192, 1
      %p196 = scmp.eq.s32.totalorder %s32, 1
      %p197 = scmp.ne.s32.totalorder %s192, %s194
      %p198 = scmp.eq.s32.totalorder %s32, 0
      %p199 = por %p197, %p198
      %p200 = scmp.ne.s32.totalorder %s192, %s194
      %p201 = scmp.eq.s32.totalorder %s37, 1
      %p202 = por %p200, %p201
      %p203 = scmp.ne.s32.totalorder %s194, %s195
      %p204 = scmp.eq.s32.totalorder %s37, 0
      %p205 = por %p203, %p204
      %p206 = scmp.ne.s32.totalorder %s194, %s195
      %p207 = scmp.eq.s32.totalorder %s38, 1
      %p208 = por %p206, %p207
      %p210 = scmp.ne.s32.totalorder %s195, %s209
      %p211 = scmp.eq.s32.totalorder %s38, 0
      %p212 = por %p210, %p211
      %s214 = sadd.s32 %s213, 1
      %p217 = scmp.eq.s32.totalorder %s32, 1
      %p218 = scmp.ne.s32.totalorder %s213, %s215
      %p219 = scmp.eq.s32.totalorder %s32, 0
      %p220 = por %p218, %p219
      %p221 = scmp.ne.s32.totalorder %s213, %s215
      %p222 = scmp.eq.s32.totalorder %s37, 1
      %p223 = por %p221, %p222
      %p224 = scmp.ne.s32.totalorder %s215, %s216
      %p225 = scmp.eq.s32.totalorder %s37, 0
      %p226 = por %p224, %p225
      %p227 = scmp.ne.s32.totalorder %s215, %s216
      %p228 = scmp.eq.s32.totalorder %s38, 1
      %p229 = por %p227, %p228
      %p231 = scmp.ne.s32.totalorder %s216, %s230
      %p232 = scmp.eq.s32.totalorder %s38, 0
      %p233 = por %p231, %p232
      %s235 = sadd.s32 %s234, 1
      %p238 = scmp.eq.s32.totalorder %s32, 1
      %p239 = scmp.ne.s32.totalorder %s234, %s236
      %p240 = scmp.eq.s32.totalorder %s32, 0
      %p241 = por %p239, %p240
      %p242 = scmp.ne.s32.totalorder %s234, %s236
      %p243 = scmp.eq.s32.totalorder %s37, 1
      %p244 = por %p242, %p243
      %p245 = scmp.ne.s32.totalorder %s236, %s237
      %p246 = scmp.eq.s32.totalorder %s37, 0
      %p247 = por %p245, %p246
      %p248 = scmp.ne.s32.totalorder %s236, %s237
      %p249 = scmp.eq.s32.totalorder %s38, 1
      %p250 = por %p248, %p249
      %p252 = scmp.ne.s32.totalorder %s237, %s251
      %p253 = scmp.eq.s32.totalorder %s38, 0
      %p254 = por %p252, %p253
      %s256 = sadd.s32 %s255, 1
      %p259 = scmp.eq.s32.totalorder %s32, 1
      %p260 = scmp.ne.s32.totalorder %s255, %s257
      %p261 = scmp.eq.s32.totalorder %s32, 0
      %p262 = por %p260, %p261
      %p263 = scmp.ne.s32.totalorder %s255, %s257
      %p264 = scmp.eq.s32.totalorder %s37, 1
      %p265 = por %p263, %p264
      %p266 = scmp.ne.s32.totalorder %s257, %s258
      %p267 = scmp.eq.s32.totalorder %s37, 0
      %p268 = por %p266, %p267
      %p269 = scmp.ne.s32.totalorder %s257, %s258
      %p270 = scmp.eq.s32.totalorder %s38, 1
      %p271 = por %p269, %p270
      %p273 = scmp.ne.s32.totalorder %s258, %s272
      %p274 = scmp.eq.s32.totalorder %s38, 0
      %p275 = por %p273, %p274
      %s277 = sadd.s32 %s276, 1
      %p280 = scmp.eq.s32.totalorder %s32, 1
      %p281 = scmp.ne.s32.totalorder %s276, %s278
      %p282 = scmp.eq.s32.totalorder %s32, 0
      %p283 = por %p281, %p282
      %p284 = scmp.ne.s32.totalorder %s276, %s278
      %p285 = scmp.eq.s32.totalorder %s37, 1
      %p286 = por %p284, %p285
      %p287 = scmp.ne.s32.totalorder %s278, %s279
      %p288 = scmp.eq.s32.totalorder %s37, 0
      %p289 = por %p287, %p288
      %p290 = scmp.ne.s32.totalorder %s278, %s279
      %p291 = scmp.eq.s32.totalorder %s38, 1
      %p292 = por %p290, %p291
      %p294 = scmp.ne.s32.totalorder %s279, %s293
      %p295 = scmp.eq.s32.totalorder %s38, 0
      %p296 = por %p294, %p295
      %s298 = sadd.s32 %s297, 1
      %p301 = scmp.eq.s32.totalorder %s32, 1
      %p302 = scmp.ne.s32.totalorder %s297, %s299
      %p303 = scmp.eq.s32.totalorder %s32, 0
      %p304 = por %p302, %p303
      %p305 = scmp.ne.s32.totalorder %s297, %s299
      %p306 = scmp.eq.s32.totalorder %s37, 1
      %p307 = por %p305, %p306
      %p308 = scmp.ne.s32.totalorder %s299, %s300
      %p309 = scmp.eq.s32.totalorder %s37, 0
      %p310 = por %p308, %p309
      %p311 = scmp.ne.s32.totalorder %s299, %s300
      %p312 = scmp.eq.s32.totalorder %s38, 1
      %p313 = por %p311, %p312
      %p315 = scmp.ne.s32.totalorder %s300, %s314
      %p316 = scmp.eq.s32.totalorder %s38, 0
      %p317 = por %p315, %p316
      %s319 = sadd.s32 %s318, 1
      %p322 = scmp.eq.s32.totalorder %s32, 1
      %p323 = scmp.ne.s32.totalorder %s318, %s320
      %p324 = scmp.eq.s32.totalorder %s32, 0
      %p325 = por %p323, %p324
      %p326 = scmp.ne.s32.totalorder %s318, %s320
      %p327 = scmp.eq.s32.totalorder %s37, 1
      %p328 = por %p326, %p327
      %p329 = scmp.ne.s32.totalorder %s320, %s321
      %p330 = scmp.eq.s32.totalorder %s37, 0
      %p331 = por %p329, %p330
      %p332 = scmp.ne.s32.totalorder %s320, %s321
      %p333 = scmp.eq.s32.totalorder %s38, 1
      %p334 = por %p332, %p333
      %p336 = scmp.ne.s32.totalorder %s321, %s335
      %p337 = scmp.eq.s32.totalorder %s38, 0
      %p338 = por %p336, %p337
      %s340 = sadd.s32 %s339, 1
      %p343 = scmp.eq.s32.totalorder %s32, 1
      %p344 = scmp.ne.s32.totalorder %s339, %s341
      %p345 = scmp.eq.s32.totalorder %s32, 0
      %p346 = por %p344, %p345
      %p347 = scmp.ne.s32.totalorder %s339, %s341
      %p348 = scmp.eq.s32.totalorder %s37, 1
      %p349 = por %p347, %p348
      %p350 = scmp.ne.s32.totalorder %s341, %s342
      %p351 = scmp.eq.s32.totalorder %s37, 0
      %p352 = por %p350, %p351
      %p353 = scmp.ne.s32.totalorder %s341, %s342
      %p354 = scmp.eq.s32.totalorder %s38, 1
      %p355 = por %p353, %p354
      %p357 = scmp.ne.s32.totalorder %s342, %s356
      %p358 = scmp.eq.s32.totalorder %s38, 0
      %p359 = por %p357, %p358
      %s361 = sadd.s32 %s360, 1
      %p364 = scmp.eq.s32.totalorder %s32, 1
      %p365 = scmp.ne.s32.totalorder %s360, %s362
      %p366 = scmp.eq.s32.totalorder %s32, 0
      %p367 = por %p365, %p366
      %p368 = scmp.ne.s32.totalorder %s360, %s362
      %p369 = scmp.eq.s32.totalorder %s37, 1
      %p370 = por %p368, %p369
      %p371 = scmp.ne.s32.totalorder %s362, %s363
      %p372 = scmp.eq.s32.totalorder %s37, 0
      %p373 = por %p371, %p372
      %p374 = scmp.ne.s32.totalorder %s362, %s363
      %p375 = scmp.eq.s32.totalorder %s38, 1
      %p376 = por %p374, %p375
      %p378 = scmp.ne.s32.totalorder %s363, %s377
      %p379 = scmp.eq.s32.totalorder %s38, 0
      %p380 = por %p378, %p379
      %s382 = sadd.s32 %s381, 1
      %p385 = scmp.eq.s32.totalorder %s32, 1
      %p386 = scmp.ne.s32.totalorder %s381, %s383
      %p387 = scmp.eq.s32.totalorder %s32, 0
      %p388 = por %p386, %p387
      %p389 = scmp.ne.s32.totalorder %s381, %s383
      %p390 = scmp.eq.s32.totalorder %s37, 1
      %p391 = por %p389, %p390
      %p392 = scmp.ne.s32.totalorder %s383, %s384
      %p393 = scmp.eq.s32.totalorder %s37, 0
      %p394 = por %p392, %p393
      %p395 = scmp.ne.s32.totalorder %s383, %s384
      %p396 = scmp.eq.s32.totalorder %s38, 1
      %p397 = por %p395, %p396
      %p399 = scmp.ne.s32.totalorder %s384, %s398
      %p400 = scmp.eq.s32.totalorder %s38, 0
      %p401 = por %p399, %p400
      %s403 = sadd.s32 %s402, 1
      %p406 = scmp.eq.s32.totalorder %s32, 1
      %p407 = scmp.ne.s32.totalorder %s402, %s404
      %p408 = scmp.eq.s32.totalorder %s32, 0
      %p409 = por %p407, %p408
      %p410 = scmp.ne.s32.totalorder %s402, %s404
      %p411 = scmp.eq.s32.totalorder %s37, 1
      %p412 = por %p410, %p411
      %p413 = scmp.ne.s32.totalorder %s404, %s405
      %p414 = scmp.eq.s32.totalorder %s37, 0
      %p415 = por %p413, %p414
      %p416 = scmp.ne.s32.totalorder %s404, %s405
      %p417 = scmp.eq.s32.totalorder %s38, 1
      %p418 = por %p416, %p417
      %p420 = scmp.ne.s32.totalorder %s405, %s419
      %p421 = scmp.eq.s32.totalorder %s38, 0
      %p422 = por %p420, %p421
      %s424 = sadd.s32 %s423, 1
      %p427 = scmp.eq.s32.totalorder %s32, 1
      %p428 = scmp.ne.s32.totalorder %s423, %s425
      %p429 = scmp.eq.s32.totalorder %s32, 0
      %p430 = por %p428, %p429
      %p431 = scmp.ne.s32.totalorder %s423, %s425
      %p432 = scmp.eq.s32.totalorder %s37, 1
      %p433 = por %p431, %p432
      %p434 = scmp.ne.s32.totalorder %s425, %s426
      %p435 = scmp.eq.s32.totalorder %s37, 0
      %p436 = por %p434, %p435
      %p437 = scmp.ne.s32.totalorder %s425, %s426
      %p438 = scmp.eq.s32.totalorder %s38, 1
      %p439 = por %p437, %p438
      %p441 = scmp.ne.s32.totalorder %s426, %s440
      %p442 = scmp.eq.s32.totalorder %s38, 0
      %p443 = por %p441, %p442
      %s445 = sadd.s32 %s444, 1
      %p448 = scmp.eq.s32.totalorder %s32, 1
      %p449 = scmp.ne.s32.totalorder %s444, %s446
      %p450 = scmp.eq.s32.totalorder %s32, 0
      %p451 = por %p449, %p450
      %p452 = scmp.ne.s32.totalorder %s444, %s446
      %p453 = scmp.eq.s32.totalorder %s37, 1
      %p454 = por %p452, %p453
      %p455 = scmp.ne.s32.totalorder %s446, %s447
      %p456 = scmp.eq.s32.totalorder %s37, 0
      %p457 = por %p455, %p456
      %p458 = scmp.ne.s32.totalorder %s446, %s447
      %p459 = scmp.eq.s32.totalorder %s38, 1
      %p460 = por %p458, %p459
      %p462 = scmp.ne.s32.totalorder %s447, %s461
      %p463 = scmp.eq.s32.totalorder %s38, 0
      %p464 = por %p462, %p463
      %s466 = sadd.s32 %s465, 1
      %p469 = scmp.eq.s32.totalorder %s32, 1
      %p470 = scmp.ne.s32.totalorder %s465, %s467
      %p471 = scmp.eq.s32.totalorder %s32, 0
      %p472 = por %p470, %p471
      %p473 = scmp.ne.s32.totalorder %s465, %s467
      %p474 = scmp.eq.s32.totalorder %s37, 1
      %p475 = por %p473, %p474
      %p476 = scmp.ne.s32.totalorder %s467, %s468
      %p477 = scmp.eq.s32.totalorder %s37, 0
      %p478 = por %p476, %p477
      %p479 = scmp.ne.s32.totalorder %s467, %s468
      %p480 = scmp.eq.s32.totalorder %s38, 1
      %p481 = por %p479, %p480
      %p483 = scmp.ne.s32.totalorder %s468, %s482
      %p484 = scmp.eq.s32.totalorder %s38, 0
      %p485 = por %p483, %p484
      %s487 = sadd.s32 %s486, 1
      %p490 = scmp.eq.s32.totalorder %s32, 1
      %p491 = scmp.ne.s32.totalorder %s486, %s488
      %p492 = scmp.eq.s32.totalorder %s32, 0
      %p493 = por %p491, %p492
      %p494 = scmp.ne.s32.totalorder %s486, %s488
      %p495 = scmp.eq.s32.totalorder %s37, 1
      %p496 = por %p494, %p495
      %p497 = scmp.ne.s32.totalorder %s488, %s489
      %p498 = scmp.eq.s32.totalorder %s37, 0
      %p499 = por %p497, %p498
      %p500 = scmp.ne.s32.totalorder %s488, %s489
      %p501 = scmp.eq.s32.totalorder %s38, 1
      %p502 = por %p500, %p501
      %p504 = scmp.ne.s32.totalorder %s489, %s503
      %p505 = scmp.eq.s32.totalorder %s38, 0
      %p506 = por %p504, %p505
      %s507 = ssub.s32 %s32, %s39
      %p508 = scmp.eq.s32.totalorder %s507, 0
      %s510 = sadd.s32 %s509, 1
      %s511 = scalar_select %p508, %s509, %s510
      %p514 = pneg %p508
      %p515 = scmp.eq.s32.totalorder %s32, 1
      %p516 = por %p514, %p515
      %p517 = scmp.ne.s32.totalorder %s509, %s512
      %p518 = scmp.eq.s32.totalorder %s32, 0
      %p519 = por %p517, %p518
      %p520 = scmp.ne.s32.totalorder %s509, %s512
      %p521 = scmp.eq.s32.totalorder %s37, 1
      %p522 = por %p520, %p521
      %p523 = scmp.ne.s32.totalorder %s512, %s513
      %p524 = scmp.eq.s32.totalorder %s37, 0
      %p525 = por %p523, %p524
      %p526 = scmp.ne.s32.totalorder %s512, %s513
      %p527 = scmp.eq.s32.totalorder %s38, 1
      %p528 = por %p526, %p527
      %p530 = scmp.ne.s32.totalorder %s513, %s529
      %p531 = scmp.eq.s32.totalorder %s38, 0
      %p532 = por %p530, %p531
      %p533 = scmp.le.s32.totalorder 1, %s32
      %p534 = scmp.lt.s32.totalorder %s32, 3
      %p535 = pnand %p533, %p534
      %p536 = pneg %p535
      // Predicated region
      $region9: #{tpu_custom_call.1} parent=5 // pred_check
        _
      $region10: #{tpu_custom_call.1} parent=5 // pred_check_branch
        %538 = sbr.rel (%p535) target = $region12
      $region11: #{tpu_custom_call.1} parent=5 // pred_region
        %s539 = ssub.s32 %s32, 1
        // Predicated region
        $region13: #{tpu_custom_call.1} parent=11 // pred_check
          %p540 = pneg %p79
        $region14: #{tpu_custom_call.1} parent=11 // pred_check_branch
          %542 = sbr.rel (%p540) target = $region16
        $region15: #{tpu_custom_call.1} parent=11 // pred_region
          _
        $region16: #{tpu_custom_call.1} parent=11 // pred_fallthru
          _
        // Predicated region
        $region17: #{tpu_custom_call.1} parent=11 // pred_check
          %p543 = pneg %p100
        $region18: #{tpu_custom_call.1} parent=11 // pred_check_branch
          %545 = sbr.rel (%p543) target = $region20
        $region19: #{tpu_custom_call.1} parent=11 // pred_region
          _
        $region20: #{tpu_custom_call.1} parent=11 // pred_fallthru
          _
        // Predicated region
        $region21: #{tpu_custom_call.1} parent=11 // pred_check
          %p546 = pneg %p121
        $region22: #{tpu_custom_call.1} parent=11 // pred_check_branch
          %548 = sbr.rel (%p546) target = $region24
        $region23: #{tpu_custom_call.1} parent=11 // pred_region
          _
        $region24: #{tpu_custom_call.1} parent=11 // pred_fallthru
          _
        // Predicated region
        $region25: #{tpu_custom_call.1} parent=11 // pred_check
          %p549 = pneg %p142
        $region26: #{tpu_custom_call.1} parent=11 // pred_check_branch
          %551 = sbr.rel (%p549) target = $region28
        $region27: #{tpu_custom_call.1} parent=11 // pred_region
          _
        $region28: #{tpu_custom_call.1} parent=11 // pred_fallthru
          _
        // Predicated region
        $region29: #{tpu_custom_call.1} parent=11 // pred_check
          %p552 = pneg %p163
        $region30: #{tpu_custom_call.1} parent=11 // pred_check_branch
          %554 = sbr.rel (%p552) target = $region32
        $region31: #{tpu_custom_call.1} parent=11 // pred_region
          _
        $region32: #{tpu_custom_call.1} parent=11 // pred_fallthru
          _
        // Predicated region
        $region33: #{tpu_custom_call.1} parent=11 // pred_check
          %p555 = pneg %p184
        $region34: #{tpu_custom_call.1} parent=11 // pred_check_branch
          %557 = sbr.rel (%p555) target = $region36
        $region35: #{tpu_custom_call.1} parent=11 // pred_region
          _
        $region36: #{tpu_custom_call.1} parent=11 // pred_fallthru
          _
        // Predicated region
        $region37: #{tpu_custom_call.1} parent=11 // pred_check
          %p558 = pneg %p205
        $region38: #{tpu_custom_call.1} parent=11 // pred_check_branch
          %560 = sbr.rel (%p558) target = $region40
        $region39: #{tpu_custom_call.1} parent=11 // pred_region
          _
        $region40: #{tpu_custom_call.1} parent=11 // pred_fallthru
          _
        // Predicated region
        $region41: #{tpu_custom_call.1} parent=11 // pred_check
          %p561 = pneg %p226
        $region42: #{tpu_custom_call.1} parent=11 // pred_check_branch
          %563 = sbr.rel (%p561) target = $region44
        $region43: #{tpu_custom_call.1} parent=11 // pred_region
          _
        $region44: #{tpu_custom_call.1} parent=11 // pred_fallthru
          _
        // Predicated region
        $region45: #{tpu_custom_call.1} parent=11 // pred_check
          %p564 = pneg %p247
        $region46: #{tpu_custom_call.1} parent=11 // pred_check_branch
          %566 = sbr.rel (%p564) target = $region48
        $region47: #{tpu_custom_call.1} parent=11 // pred_region
          _
        $region48: #{tpu_custom_call.1} parent=11 // pred_fallthru
          _
        // Predicated region
        $region49: #{tpu_custom_call.1} parent=11 // pred_check
          %p567 = pneg %p268
        $region50: #{tpu_custom_call.1} parent=11 // pred_check_branch
          %569 = sbr.rel (%p567) target = $region52
        $region51: #{tpu_custom_call.1} parent=11 // pred_region
          _
        $region52: #{tpu_custom_call.1} parent=11 // pred_fallthru
          _
        // Predicated region
        $region53: #{tpu_custom_call.1} parent=11 // pred_check
          %p570 = pneg %p289
        $region54: #{tpu_custom_call.1} parent=11 // pred_check_branch
          %572 = sbr.rel (%p570) target = $region56
        $region55: #{tpu_custom_call.1} parent=11 // pred_region
          _
        $region56: #{tpu_custom_call.1} parent=11 // pred_fallthru
          _
        // Predicated region
        $region57: #{tpu_custom_call.1} parent=11 // pred_check
          %p573 = pneg %p310
        $region58: #{tpu_custom_call.1} parent=11 // pred_check_branch
          %575 = sbr.rel (%p573) target = $region60
        $region59: #{tpu_custom_call.1} parent=11 // pred_region
          _
        $region60: #{tpu_custom_call.1} parent=11 // pred_fallthru
          _
        // Predicated region
        $region61: #{tpu_custom_call.1} parent=11 // pred_check
          %p576 = pneg %p331
        $region62: #{tpu_custom_call.1} parent=11 // pred_check_branch
          %578 = sbr.rel (%p576) target = $region64
        $region63: #{tpu_custom_call.1} parent=11 // pred_region
          _
        $region64: #{tpu_custom_call.1} parent=11 // pred_fallthru
          _
        // Predicated region
        $region65: #{tpu_custom_call.1} parent=11 // pred_check
          %p579 = pneg %p352
        $region66: #{tpu_custom_call.1} parent=11 // pred_check_branch
          %581 = sbr.rel (%p579) target = $region68
        $region67: #{tpu_custom_call.1} parent=11 // pred_region
          %s583 = ssub.s32 8192, 8192
          %584 = vsyncadd [#allocation4], %s583
          %s585 = sshll.u32 [#allocation3], 4
          %s586 = int_to_ptr.vmem [resolvable:$true] %s585
          %591 = dma.hbm_to_vmem [thread:$0]  %s14, 8192, %s586, [#allocation4], 256, 256, 16
        $region68: #{tpu_custom_call.1} parent=11 // pred_fallthru
          _
        // Predicated region
        $region69: #{tpu_custom_call.1} parent=11 // pred_check
          %p592 = pneg %p373
        $region70: #{tpu_custom_call.1} parent=11 // pred_check_branch
          %594 = sbr.rel (%p592) target = $region72
        $region71: #{tpu_custom_call.1} parent=11 // pred_region
          _
        $region72: #{tpu_custom_call.1} parent=11 // pred_fallthru
          _
        // Predicated region
        $region73: #{tpu_custom_call.1} parent=11 // pred_check
          %p595 = pneg %p394
        $region74: #{tpu_custom_call.1} parent=11 // pred_check_branch
          %597 = sbr.rel (%p595) target = $region76
        $region75: #{tpu_custom_call.1} parent=11 // pred_region
          _
        $region76: #{tpu_custom_call.1} parent=11 // pred_fallthru
          _
        // Predicated region
        $region77: #{tpu_custom_call.1} parent=11 // pred_check
          %p598 = pneg %p415
        $region78: #{tpu_custom_call.1} parent=11 // pred_check_branch
          %600 = sbr.rel (%p598) target = $region80
        $region79: #{tpu_custom_call.1} parent=11 // pred_region
          _
        $region80: #{tpu_custom_call.1} parent=11 // pred_fallthru
          _
        // Predicated region
        $region81: #{tpu_custom_call.1} parent=11 // pred_check
          %p601 = pneg %p436
        $region82: #{tpu_custom_call.1} parent=11 // pred_check_branch
          %603 = sbr.rel (%p601) target = $region84
        $region83: #{tpu_custom_call.1} parent=11 // pred_region
          _
        $region84: #{tpu_custom_call.1} parent=11 // pred_fallthru
          _
        // Predicated region
        $region85: #{tpu_custom_call.1} parent=11 // pred_check
          %p604 = pneg %p457
        $region86: #{tpu_custom_call.1} parent=11 // pred_check_branch
          %606 = sbr.rel (%p604) target = $region88
        $region87: #{tpu_custom_call.1} parent=11 // pred_region
          _
        $region88: #{tpu_custom_call.1} parent=11 // pred_fallthru
          _
        // Predicated region
        $region89: #{tpu_custom_call.1} parent=11 // pred_check
          %p607 = pneg %p478
        $region90: #{tpu_custom_call.1} parent=11 // pred_check_branch
          %609 = sbr.rel (%p607) target = $region92
        $region91: #{tpu_custom_call.1} parent=11 // pred_region
          _
        $region92: #{tpu_custom_call.1} parent=11 // pred_fallthru
          _
        // Predicated region
        $region93: #{tpu_custom_call.1} parent=11 // pred_check
          %p610 = pneg %p499
        $region94: #{tpu_custom_call.1} parent=11 // pred_check_branch
          %612 = sbr.rel (%p610) target = $region96
        $region95: #{tpu_custom_call.1} parent=11 // pred_region
          _
        $region96: #{tpu_custom_call.1} parent=11 // pred_fallthru
          _
      $region12: #{tpu_custom_call.1} parent=5 // pred_fallthru
        _
      %p613 = scmp.lt.s32.totalorder %s32, 2
      // Predicated region
      $region97: #{tpu_custom_call.1} parent=5 // pred_check
        %p614 = pneg %p613
      $region98: #{tpu_custom_call.1} parent=5 // pred_check_branch
        %616 = sbr.rel (%p614) target = $region100
      $region99: #{tpu_custom_call.1} parent=5 // pred_region
        // Predicated region
        $region101: #{tpu_custom_call.1} parent=99 // pred_check
          %p617 = pneg %p52
        $region102: #{tpu_custom_call.1} parent=99 // pred_check_branch
          %619 = sbr.rel (%p617) target = $region104
        $region103: #{tpu_custom_call.1} parent=99 // pred_region
          %p620 = scmp.lt.s32.totalorder %s32, 1
          %s621 = scalar_select %p620, %s32, 1
          %s622 = smul.addr %s621, 2
          %s623 = smul.addr %s622, 4
          %s624 = scalar_lea.vmem %s0, %s623
        $region104: #{tpu_custom_call.1} parent=99 // pred_fallthru
          _
      $region100: #{tpu_custom_call.1} parent=5 // pred_fallthru
        _
      %p625 = scmp.le.s32.totalorder 1, %s32
      %p626 = scmp.lt.s32.totalorder %s32, 3
      %p627 = pnand %p625, %p626
      %p628 = pneg %p627
      // Predicated region
      $region105: #{tpu_custom_call.1} parent=5 // pred_check
        _
      $region106: #{tpu_custom_call.1} parent=5 // pred_check_branch
        %630 = sbr.rel (%p627) target = $region108
      $region107: #{tpu_custom_call.1} parent=5 // pred_region
        %s631 = ssub.s32 %s32, 1
        // Predicated region
        $region109: #{tpu_custom_call.1} parent=107 // pred_check
          %p632 = pneg %p352
        $region110: #{tpu_custom_call.1} parent=107 // pred_check_branch
          %634 = sbr.rel (%p632) target = $region112
        $region111: #{tpu_custom_call.1} parent=107 // pred_region
          %635 = dma.done [#allocation4], 8192
        $region112: #{tpu_custom_call.1} parent=107 // pred_fallthru
          _
        %p636 = scmp.lt.s32.totalorder %s37, 1
        %s637 = scalar_select %p636, %s37, 1
        %s638 = smul.addr %s637, 2
        %s639 = smul.addr %s638, 4
        %s640 = scalar_lea.vmem %s0, %s639
        %p641 = pneg %p58
        %p642 = pneg %p55
        %p643 = pneg %p79
        %p644 = pneg %p76
        %p645 = pneg %p100
        %p646 = pneg %p97
        %p647 = pneg %p121
        %p648 = pneg %p118
        %p649 = pneg %p142
        %p650 = pneg %p139
        %p651 = pneg %p163
        %p652 = pneg %p160
        %p653 = pneg %p184
        %p654 = pneg %p181
        %p655 = pneg %p205
        %p656 = pneg %p202
        %p657 = pneg %p226
        %p658 = pneg %p223
        %p659 = pneg %p247
        %p660 = pneg %p244
        %p661 = pneg %p268
        %p662 = pneg %p265
        %p663 = pneg %p289
        %p664 = pneg %p286
        %p665 = pneg %p310
        %p666 = pneg %p307
        %p667 = pneg %p331
        %p668 = pneg %p328
        %p669 = pneg %p352
        %p670 = pneg %p349
        %p671 = pneg %p373
        %p672 = pneg %p370
        %p673 = pneg %p394
        %p674 = pneg %p391
        %p675 = pneg %p415
        %p676 = pneg %p412
        %p677 = pneg %p436
        %p678 = pneg %p433
        %p679 = pneg %p457
        %p680 = pneg %p454
        %p681 = pneg %p478
        %p682 = pneg %p475
        %p683 = pneg %p499
        %p684 = pneg %p496
        %p685 = pneg %p525
        %p686 = pneg %p522
        %s687 = sand.u32 %s512, 1
        %s688 = scalar_lea.sflag [#allocation5], %s687
        %s689 = sand.u32 %s512, 1
        %s690 = smul.addr %s689, 4
        %s691 = scalar_lea.vmem [#allocation6], %s690
        %p692 = scmp.lt.s32.totalorder %s37, 1
        %s693 = scalar_select %p692, %s37, 1
        %s694 = smul.addr %s693, 2
        %s695 = smul.addr %s694, 4
        %s696 = scalar_lea.vmem %s0, %s695
        %698 = vst [vmem:[#allocation2] sm:$0xff] -inf
        %699 = vst [vmem:[#allocation2 + $0x8] sm:$0xff] -inf
        %700 = vst [vmem:[#allocation2 + $0x10] sm:$0xff] -inf
        %701 = vst [vmem:[#allocation2 + $0x18] sm:$0xff] -inf
        %702 = vst [vmem:[#allocation2 + $0x20] sm:$0xff] -inf
        %703 = vst [vmem:[#allocation2 + $0x28] sm:$0xff] -inf
        %704 = vst [vmem:[#allocation2 + $0x30] sm:$0xff] -inf
        %705 = vst [vmem:[#allocation2 + $0x38] sm:$0xff] -inf
        %706 = vst [vmem:[#allocation2 + $0x40] sm:$0xff] -inf
        %707 = vst [vmem:[#allocation2 + $0x48] sm:$0xff] -inf
        %708 = vst [vmem:[#allocation2 + $0x50] sm:$0xff] -inf
        %709 = vst [vmem:[#allocation2 + $0x58] sm:$0xff] -inf
        %710 = vst [vmem:[#allocation2 + $0x60] sm:$0xff] -inf
        %711 = vst [vmem:[#allocation2 + $0x68] sm:$0xff] -inf
        %712 = vst [vmem:[#allocation2 + $0x70] sm:$0xff] -inf
        %713 = vst [vmem:[#allocation2 + $0x78] sm:$0xff] -inf
        %714 = vst [vmem:[#allocation2 + $0x80] sm:$0xff] -inf
        %715 = vst [vmem:[#allocation2 + $0x88] sm:$0xff] -inf
        %716 = vst [vmem:[#allocation2 + $0x90] sm:$0xff] -inf
        %717 = vst [vmem:[#allocation2 + $0x98] sm:$0xff] -inf
        %718 = vst [vmem:[#allocation2 + $0xa0] sm:$0xff] -inf
        %719 = vst [vmem:[#allocation2 + $0xa8] sm:$0xff] -inf
        %720 = vst [vmem:[#allocation2 + $0xb0] sm:$0xff] -inf
        %721 = vst [vmem:[#allocation2 + $0xb8] sm:$0xff] -inf
        %722 = vst [vmem:[#allocation2 + $0xc0] sm:$0xff] -inf
        %723 = vst [vmem:[#allocation2 + $0xc8] sm:$0xff] -inf
        %724 = vst [vmem:[#allocation2 + $0xd0] sm:$0xff] -inf
        %725 = vst [vmem:[#allocation2 + $0xd8] sm:$0xff] -inf
        %726 = vst [vmem:[#allocation2 + $0xe0] sm:$0xff] -inf
        %727 = vst [vmem:[#allocation2 + $0xe8] sm:$0xff] -inf
        %728 = vst [vmem:[#allocation2 + $0xf0] sm:$0xff] -inf
        %729 = vst [vmem:[#allocation2 + $0xf8] sm:$0xff] -inf
        %730 = vst [vmem:[#allocation2 + $0x100] sm:$0xff] -inf
        %731 = vst [vmem:[#allocation2 + $0x108] sm:$0xff] -inf
        %732 = vst [vmem:[#allocation2 + $0x110] sm:$0xff] -inf
        %733 = vst [vmem:[#allocation2 + $0x118] sm:$0xff] -inf
        %734 = vst [vmem:[#allocation2 + $0x120] sm:$0xff] -inf
        %735 = vst [vmem:[#allocation2 + $0x128] sm:$0xff] -inf
        %736 = vst [vmem:[#allocation2 + $0x130] sm:$0xff] -inf
        %737 = vst [vmem:[#allocation2 + $0x138] sm:$0xff] -inf
        %738 = vst [vmem:[#allocation2 + $0x140] sm:$0xff] -inf
        %739 = vst [vmem:[#allocation2 + $0x148] sm:$0xff] -inf
        %740 = vst [vmem:[#allocation2 + $0x150] sm:$0xff] -inf
        %741 = vst [vmem:[#allocation2 + $0x158] sm:$0xff] -inf
        %742 = vst [vmem:[#allocation2 + $0x160] sm:$0xff] -inf
        %743 = vst [vmem:[#allocation2 + $0x168] sm:$0xff] -inf
        %744 = vst [vmem:[#allocation2 + $0x170] sm:$0xff] -inf
        %745 = vst [vmem:[#allocation2 + $0x178] sm:$0xff] -inf
        %746 = vst [vmem:[#allocation2 + $0x180] sm:$0xff] -inf
        %747 = vst [vmem:[#allocation2 + $0x188] sm:$0xff] -inf
        %748 = vst [vmem:[#allocation2 + $0x190] sm:$0xff] -inf
        %749 = vst [vmem:[#allocation2 + $0x198] sm:$0xff] -inf
        %750 = vst [vmem:[#allocation2 + $0x1a0] sm:$0xff] -inf
        %751 = vst [vmem:[#allocation2 + $0x1a8] sm:$0xff] -inf
        %752 = vst [vmem:[#allocation2 + $0x1b0] sm:$0xff] -inf
        %753 = vst [vmem:[#allocation2 + $0x1b8] sm:$0xff] -inf
        %754 = vst [vmem:[#allocation2 + $0x1c0] sm:$0xff] -inf
        %755 = vst [vmem:[#allocation2 + $0x1c8] sm:$0xff] -inf
        %756 = vst [vmem:[#allocation2 + $0x1d0] sm:$0xff] -inf
        %757 = vst [vmem:[#allocation2 + $0x1d8] sm:$0xff] -inf
        %758 = vst [vmem:[#allocation2 + $0x1e0] sm:$0xff] -inf
        %759 = vst [vmem:[#allocation2 + $0x1e8] sm:$0xff] -inf
        %760 = vst [vmem:[#allocation2 + $0x1f0] sm:$0xff] -inf
        %761 = vst [vmem:[#allocation2 + $0x1f8] sm:$0xff] -inf
        %762 = vst [vmem:[#allocation2 + $0x200] sm:$0xff] -inf
        %763 = vst [vmem:[#allocation2 + $0x208] sm:$0xff] -inf
        %764 = vst [vmem:[#allocation2 + $0x210] sm:$0xff] -inf
        %765 = vst [vmem:[#allocation2 + $0x218] sm:$0xff] -inf
        %766 = vst [vmem:[#allocation2 + $0x220] sm:$0xff] -inf
        %767 = vst [vmem:[#allocation2 + $0x228] sm:$0xff] -inf
        %768 = vst [vmem:[#allocation2 + $0x230] sm:$0xff] -inf
        %769 = vst [vmem:[#allocation2 + $0x238] sm:$0xff] -inf
        %770 = vst [vmem:[#allocation2 + $0x240] sm:$0xff] -inf
        %771 = vst [vmem:[#allocation2 + $0x248] sm:$0xff] -inf
        %772 = vst [vmem:[#allocation2 + $0x250] sm:$0xff] -inf
        %773 = vst [vmem:[#allocation2 + $0x258] sm:$0xff] -inf
        %774 = vst [vmem:[#allocation2 + $0x260] sm:$0xff] -inf
        %775 = vst [vmem:[#allocation2 + $0x268] sm:$0xff] -inf
        %776 = vst [vmem:[#allocation2 + $0x270] sm:$0xff] -inf
        %777 = vst [vmem:[#allocation2 + $0x278] sm:$0xff] -inf
        %778 = vst [vmem:[#allocation2 + $0x280] sm:$0xff] -inf
        %779 = vst [vmem:[#allocation2 + $0x288] sm:$0xff] -inf
        %780 = vst [vmem:[#allocation2 + $0x290] sm:$0xff] -inf
        %781 = vst [vmem:[#allocation2 + $0x298] sm:$0xff] -inf
        %782 = vst [vmem:[#allocation2 + $0x2a0] sm:$0xff] -inf
        %783 = vst [vmem:[#allocation2 + $0x2a8] sm:$0xff] -inf
        %784 = vst [vmem:[#allocation2 + $0x2b0] sm:$0xff] -inf
        %785 = vst [vmem:[#allocation2 + $0x2b8] sm:$0xff] -inf
        %786 = vst [vmem:[#allocation2 + $0x2c0] sm:$0xff] -inf
        %787 = vst [vmem:[#allocation2 + $0x2c8] sm:$0xff] -inf
        %788 = vst [vmem:[#allocation2 + $0x2d0] sm:$0xff] -inf
        %789 = vst [vmem:[#allocation2 + $0x2d8] sm:$0xff] -inf
        %790 = vst [vmem:[#allocation2 + $0x2e0] sm:$0xff] -inf
        %791 = vst [vmem:[#allocation2 + $0x2e8] sm:$0xff] -inf
        %792 = vst [vmem:[#allocation2 + $0x2f0] sm:$0xff] -inf
        %793 = vst [vmem:[#allocation2 + $0x2f8] sm:$0xff] -inf
        %794 = vst [vmem:[#allocation2 + $0x300] sm:$0xff] -inf
        %795 = vst [vmem:[#allocation2 + $0x308] sm:$0xff] -inf
        %796 = vst [vmem:[#allocation2 + $0x310] sm:$0xff] -inf
        %797 = vst [vmem:[#allocation2 + $0x318] sm:$0xff] -inf
        %798 = vst [vmem:[#allocation2 + $0x320] sm:$0xff] -inf
        %799 = vst [vmem:[#allocation2 + $0x328] sm:$0xff] -inf
        %800 = vst [vmem:[#allocation2 + $0x330] sm:$0xff] -inf
        %801 = vst [vmem:[#allocation2 + $0x338] sm:$0xff] -inf
        %802 = vst [vmem:[#allocation2 + $0x340] sm:$0xff] -inf
        %803 = vst [vmem:[#allocation2 + $0x348] sm:$0xff] -inf
        %804 = vst [vmem:[#allocation2 + $0x350] sm:$0xff] -inf
        %805 = vst [vmem:[#allocation2 + $0x358] sm:$0xff] -inf
        %806 = vst [vmem:[#allocation2 + $0x360] sm:$0xff] -inf
        %807 = vst [vmem:[#allocation2 + $0x368] sm:$0xff] -inf
        %808 = vst [vmem:[#allocation2 + $0x370] sm:$0xff] -inf
        %809 = vst [vmem:[#allocation2 + $0x378] sm:$0xff] -inf
        %810 = vst [vmem:[#allocation2 + $0x380] sm:$0xff] -inf
        %811 = vst [vmem:[#allocation2 + $0x388] sm:$0xff] -inf
        %812 = vst [vmem:[#allocation2 + $0x390] sm:$0xff] -inf
        %813 = vst [vmem:[#allocation2 + $0x398] sm:$0xff] -inf
        %814 = vst [vmem:[#allocation2 + $0x3a0] sm:$0xff] -inf
        %815 = vst [vmem:[#allocation2 + $0x3a8] sm:$0xff] -inf
        %816 = vst [vmem:[#allocation2 + $0x3b0] sm:$0xff] -inf
        %817 = vst [vmem:[#allocation2 + $0x3b8] sm:$0xff] -inf
        %818 = vst [vmem:[#allocation2 + $0x3c0] sm:$0xff] -inf
        %819 = vst [vmem:[#allocation2 + $0x3c8] sm:$0xff] -inf
        %820 = vst [vmem:[#allocation2 + $0x3d0] sm:$0xff] -inf
        %821 = vst [vmem:[#allocation2 + $0x3d8] sm:$0xff] -inf
        %822 = vst [vmem:[#allocation2 + $0x3e0] sm:$0xff] -inf
        %823 = vst [vmem:[#allocation2 + $0x3e8] sm:$0xff] -inf
        %824 = vst [vmem:[#allocation2 + $0x3f0] sm:$0xff] -inf
        %825 = vst [vmem:[#allocation2 + $0x3f8] sm:$0xff] -inf
        %v826 = vld [vmem:[%s696] sm:$0xf]
        %v827 = vld [vmem:[%s696 + $0x4] sm:$0xf]
        %v828 = vld [vmem:[%s1] sm:$0xf]
        %v829 = vld [vmem:[%s1 + $0x4] sm:$0xf]
        %v830 = vld [vmem:[%s1 + $0x8] sm:$0xf]
        %v831 = vld [vmem:[%s1 + $0xc] sm:$0xf]
        %v832 = vld [vmem:[%s1 + $0x10] sm:$0xf]
        %v833 = vld [vmem:[%s1 + $0x14] sm:$0xf]
        %v834 = vld [vmem:[%s1 + $0x18] sm:$0xf]
        %v835 = vld [vmem:[%s1 + $0x1c] sm:$0xf]
        %v836 = vld [vmem:[%s2] sm:$0xff]
        %v837 = vld [vmem:[%s2 + $0x8] sm:$0xff]
        %v838 = vld [vmem:[%s2 + $0x10] sm:$0xff]
        %v839 = vld [vmem:[%s2 + $0x18] sm:$0xff]
        %v840 = vld [vmem:[%s2 + $0x20] sm:$0xff]
        %v841 = vld [vmem:[%s2 + $0x28] sm:$0xff]
        %v842 = vld [vmem:[%s2 + $0x30] sm:$0xff]
        %v843 = vld [vmem:[%s2 + $0x38] sm:$0xff]
        %845 = vset.pattern.permute.xlu0 0
        %846 = vperm.xlu0 %845, %v836
        %v847 = vpop.permute.xlu0 %846
        %850 = vset.pattern.permute.xlu0 0
        %851 = vperm.xlu0 %850, %v837
        %v852 = vpop.permute.xlu0 %851
        %855 = vset.pattern.permute.xlu0 0
        %856 = vperm.xlu0 %855, %v838
        %v857 = vpop.permute.xlu0 %856
        %860 = vset.pattern.permute.xlu0 0
        %861 = vperm.xlu0 %860, %v839
        %v862 = vpop.permute.xlu0 %861
        %865 = vset.pattern.permute.xlu0 0
        %866 = vperm.xlu0 %865, %v840
        %v867 = vpop.permute.xlu0 %866
        %870 = vset.pattern.permute.xlu0 0
        %871 = vperm.xlu0 %870, %v841
        %v872 = vpop.permute.xlu0 %871
        %875 = vset.pattern.permute.xlu0 0
        %876 = vperm.xlu0 %875, %v842
        %v877 = vpop.permute.xlu0 %876
        %880 = vset.pattern.permute.xlu0 0
        %881 = vperm.xlu0 %880, %v843
        %v882 = vpop.permute.xlu0 %881
        %v892 = vunpack.c.l.b16 %v828
        %v893 = vunpack.c.l.b16 %v829
        %v894 = vunpack.c.l.b16 %v830
        %v895 = vunpack.c.l.b16 %v831
        %v896 = vunpack.c.l.b16 %v832
        %v897 = vunpack.c.l.b16 %v833
        %v898 = vunpack.c.l.b16 %v834
        %v899 = vunpack.c.l.b16 %v835
        %v900 = vpack.c.b16 %v893, %v892
        %v901 = vpack.c.b16 %v895, %v894
        %v902 = vpack.c.b16 %v897, %v896
        %v903 = vpack.c.b16 %v899, %v898
        %v906 = vunpack.c.l.b16 %v826
        %v907 = vunpack.c.l.b16 %v827
        %v908 = vpack.c.b16 %v907, %v906
        %vm910 = vcmask 130048
        %v912 = vsel %vm910, %v900, 0
        %v915 = vsel %vm910, %v901, 0
        %v918 = vsel %vm910, %v902, 0
        %v921 = vsel %vm910, %v903, 0
        %923 = vmatprep.subr.bf16.mxu0 0
        %924 = vmatpush1.bf16.msra.mxu0 %v908
        %925 = vmatprep.subr.bf16.mxu0 0
        %926 = vmatpush1.bf16.msra.mxu0 0
        %927 = vmatprep.subr.bf16.mxu0 0
        %928 = vmatpush1.bf16.msra.mxu0 0
        %929 = vmatprep.subr.bf16.mxu0 0
        %930 = vmatpush1.bf16.msra.mxu0 0
        %931 = vmatprep.subr.bf16.mxu0 0
        %932 = vmatpush1.bf16.msra.mxu0 0
        %933 = vmatprep.subr.bf16.mxu0 0
        %934 = vmatpush1.bf16.msra.mxu0 0
        %935 = vmatprep.subr.bf16.mxu0 0
        %936 = vmatpush1.bf16.msra.mxu0 0
        %937 = vmatprep.subr.bf16.mxu0 0
        %938 = vmatpush1.bf16.msra.mxu0 0
        %939 = vmatprep.subr.bf16.mxu0 0
        %940 = vmatpush1.bf16.msra.mxu0 0
        %941 = vmatprep.subr.bf16.mxu0 0
        %942 = vmatpush1.bf16.msra.mxu0 0
        %943 = vmatprep.subr.bf16.mxu0 0
        %944 = vmatpush1.bf16.msra.mxu0 0
        %945 = vmatprep.subr.bf16.mxu0 0
        %946 = vmatpush1.bf16.msra.mxu0 0
        %947 = vmatprep.subr.bf16.mxu0 0
        %948 = vmatpush1.bf16.msra.mxu0 0
        %949 = vmatprep.subr.bf16.mxu0 0
        %950 = vmatpush1.bf16.msra.mxu0 0
        %951 = vmatprep.subr.bf16.mxu0 0
        %952 = vmatpush1.bf16.msra.mxu0 0
        %953 = vmatprep.subr.bf16.mxu0 0
        %954 = vmatpush1.bf16.msra.mxu0 0
        %955 = vmatprep.mubr.bf16.mxu0 0
        %956 = vmatmul.mubr.bf16.gmra.mrb[0].mxu0 %v912
        %v957 = vpop.f32.mrb[0].mxu0
        %v958 = vadd.f32 %v847, %v957
        %v959 = vpop.f32.mrb[0].mxu0
        %v960 = vpop.f32.mrb[0].mxu0
        %v961 = vadd.f32 %v852, %v960
        %v962 = vpop.f32.mrb[0].mxu0
        %963 = vmatprep.mubr.bf16.mxu0 0
        %964 = vmatmul.mubr.bf16.gmra.mrb[0].mxu0 %v915
        %v965 = vpop.f32.mrb[0].mxu0
        %v966 = vadd.f32 %v857, %v965
        %v967 = vpop.f32.mrb[0].mxu0
        %v968 = vpop.f32.mrb[0].mxu0
        %v969 = vadd.f32 %v862, %v968
        %v970 = vpop.f32.mrb[0].mxu0
        %971 = vmatprep.mubr.bf16.mxu0 0
        %972 = vmatmul.mubr.bf16.gmra.mrb[0].mxu0 %v918
        %v973 = vpop.f32.mrb[0].mxu0
        %v974 = vadd.f32 %v867, %v973
        %v975 = vpop.f32.mrb[0].mxu0
        %v976 = vpop.f32.mrb[0].mxu0
        %v977 = vadd.f32 %v872, %v976
        %v978 = vpop.f32.mrb[0].mxu0
        %979 = vmatprep.mubr.bf16.mxu0 0
        %980 = vmatmul.mubr.bf16.gmra.mrb[0].mxu0 %v921
        %v981 = vpop.f32.mrb[0].mxu0
        %v982 = vadd.f32 %v877, %v981
        %v983 = vpop.f32.mrb[0].mxu0
        %v984 = vpop.f32.mrb[0].mxu0
        %v985 = vadd.f32 %v882, %v984
        %v986 = vpop.f32.mrb[0].mxu0
        %987 = vdwg.mxu0
        %v988 = vtanh.pop %v958
        %v989 = vtanh.pop %v961
        %v990 = vtanh.pop %v966
        %v991 = vtanh.pop %v969
        %v992 = vtanh.pop %v974
        %v993 = vtanh.pop %v977
        %v994 = vtanh.pop %v982
        %v995 = vtanh.pop %v985
        %v996 = vpack.c.bf16 %v989, %v988
        %v997 = vpack.c.bf16 %v991, %v990
        %v998 = vpack.c.bf16 %v993, %v992
        %v999 = vpack.c.bf16 %v995, %v994
        %v1000 = vld [vmem:[%s3] sm:$0xf]
        %v1001 = vld [vmem:[%s3 + $0x4] sm:$0xf]
        %v1002 = vld [vmem:[%s3 + $0x8] sm:$0xf]
        %v1003 = vld [vmem:[%s3 + $0xc] sm:$0xf]
        %v1004 = vld [vmem:[%s3 + $0x10] sm:$0xf]
        %v1005 = vld [vmem:[%s3 + $0x14] sm:$0xf]
        %v1006 = vld [vmem:[%s3 + $0x18] sm:$0xf]
        %v1007 = vld [vmem:[%s3 + $0x1c] sm:$0xf]
        %v1008 = vld [vmem:[%s4] sm:$0xff]
        %v1009 = vld [vmem:[%s4 + $0x8] sm:$0xff]
        %v1010 = vld [vmem:[%s4 + $0x10] sm:$0xff]
        %v1011 = vld [vmem:[%s4 + $0x18] sm:$0xff]
        %v1012 = vld [vmem:[%s4 + $0x20] sm:$0xff]
        %v1013 = vld [vmem:[%s4 + $0x28] sm:$0xff]
        %v1014 = vld [vmem:[%s4 + $0x30] sm:$0xff]
        %v1015 = vld [vmem:[%s4 + $0x38] sm:$0xff]
        %1017 = vset.pattern.permute.xlu0 0
        %1018 = vperm.xlu0 %1017, %v1008
        %v1019 = vpop.permute.xlu0 %1018
        %1022 = vset.pattern.permute.xlu0 0
        %1023 = vperm.xlu0 %1022, %v1009
        %v1024 = vpop.permute.xlu0 %1023
        %1027 = vset.pattern.permute.xlu0 0
        %1028 = vperm.xlu0 %1027, %v1010
        %v1029 = vpop.permute.xlu0 %1028
        %1032 = vset.pattern.permute.xlu0 0
        %1033 = vperm.xlu0 %1032, %v1011
        %v1034 = vpop.permute.xlu0 %1033
        %1037 = vset.pattern.permute.xlu0 0
        %1038 = vperm.xlu0 %1037, %v1012
        %v1039 = vpop.permute.xlu0 %1038
        %1042 = vset.pattern.permute.xlu0 0
        %1043 = vperm.xlu0 %1042, %v1013
        %v1044 = vpop.permute.xlu0 %1043
        %1047 = vset.pattern.permute.xlu0 0
        %1048 = vperm.xlu0 %1047, %v1014
        %v1049 = vpop.permute.xlu0 %1048
        %1052 = vset.pattern.permute.xlu0 0
        %1053 = vperm.xlu0 %1052, %v1015
        %v1054 = vpop.permute.xlu0 %1053
        %v1064 = vunpack.c.l.b16 %v1000
        %v1065 = vunpack.c.l.b16 %v1001
        %v1066 = vunpack.c.l.b16 %v1002
        %v1067 = vunpack.c.l.b16 %v1003
        %v1068 = vunpack.c.l.b16 %v1004
        %v1069 = vunpack.c.l.b16 %v1005
        %v1070 = vunpack.c.l.b16 %v1006
        %v1071 = vunpack.c.l.b16 %v1007
        %v1072 = vpack.c.b16 %v1065, %v1064
        %v1073 = vpack.c.b16 %v1067, %v1066
        %v1074 = vpack.c.b16 %v1069, %v1068
        %v1075 = vpack.c.b16 %v1071, %v1070
        %vm1076 = vcmask 523264
        %v1078 = vsel %vm1076, %v1072, 0
        %v1081 = vsel %vm1076, %v1073, 0
        %v1084 = vsel %vm1076, %v1074, 0
        %v1087 = vsel %vm1076, %v1075, 0
        %1089 = vmatprep.subr.bf16.mxu0 0
        %1090 = vmatpush1.bf16.msra.mxu0 %v996
        %1091 = vmatprep.subr.bf16.mxu0 0
        %1092 = vmatpush1.bf16.msra.mxu0 %v997
        %1093 = vmatprep.subr.bf16.mxu0 0
        %1094 = vmatpush1.bf16.msra.mxu0 %v998
        %1095 = vmatprep.subr.bf16.mxu0 0
        %1096 = vmatpush1.bf16.msra.mxu0 %v999
        %1097 = vmatprep.subr.bf16.mxu0 0
        %1098 = vmatpush1.bf16.msra.mxu0 0
        %1099 = vmatprep.subr.bf16.mxu0 0
        %1100 = vmatpush1.bf16.msra.mxu0 0
        %1101 = vmatprep.subr.bf16.mxu0 0
        %1102 = vmatpush1.bf16.msra.mxu0 0
        %1103 = vmatprep.subr.bf16.mxu0 0
        %1104 = vmatpush1.bf16.msra.mxu0 0
        %1105 = vmatprep.subr.bf16.mxu0 0
        %1106 = vmatpush1.bf16.msra.mxu0 0
        %1107 = vmatprep.subr.bf16.mxu0 0
        %1108 = vmatpush1.bf16.msra.mxu0 0
        %1109 = vmatprep.subr.bf16.mxu0 0
        %1110 = vmatpush1.bf16.msra.mxu0 0
        %1111 = vmatprep.subr.bf16.mxu0 0
        %1112 = vmatpush1.bf16.msra.mxu0 0
        %1113 = vmatprep.subr.bf16.mxu0 0
        %1114 = vmatpush1.bf16.msra.mxu0 0
        %1115 = vmatprep.subr.bf16.mxu0 0
        %1116 = vmatpush1.bf16.msra.mxu0 0
        %1117 = vmatprep.subr.bf16.mxu0 0
        %1118 = vmatpush1.bf16.msra.mxu0 0
        %1119 = vmatprep.subr.bf16.mxu0 0
        %1120 = vmatpush1.bf16.msra.mxu0 0
        %1121 = vmatprep.mubr.bf16.mxu0 0
        %1122 = vmatmul.mubr.bf16.gmra.mrb[0].mxu0 %v1078
        %v1123 = vpop.f32.mrb[0].mxu0
        %v1124 = vadd.f32 %v1019, %v1123
        %v1125 = vpop.f32.mrb[0].mxu0
        %v1126 = vpop.f32.mrb[0].mxu0
        %v1127 = vadd.f32 %v1024, %v1126
        %v1128 = vpop.f32.mrb[0].mxu0
        %1129 = vmatprep.mubr.bf16.mxu0 0
        %1130 = vmatmul.mubr.bf16.gmra.mrb[0].mxu0 %v1081
        %v1131 = vpop.f32.mrb[0].mxu0
        %v1132 = vadd.f32 %v1029, %v1131
        %v1133 = vpop.f32.mrb[0].mxu0
        %v1134 = vpop.f32.mrb[0].mxu0
        %v1135 = vadd.f32 %v1034, %v1134
        %v1136 = vpop.f32.mrb[0].mxu0
        %1137 = vmatprep.mubr.bf16.mxu0 0
        %1138 = vmatmul.mubr.bf16.gmra.mrb[0].mxu0 %v1084
        %v1139 = vpop.f32.mrb[0].mxu0
        %v1140 = vadd.f32 %v1039, %v1139
        %v1141 = vpop.f32.mrb[0].mxu0
        %v1142 = vpop.f32.mrb[0].mxu0
        %v1143 = vadd.f32 %v1044, %v1142
        %v1144 = vpop.f32.mrb[0].mxu0
        %1145 = vmatprep.mubr.bf16.mxu0 0
        %1146 = vmatmul.mubr.bf16.gmra.mrb[0].mxu0 %v1087
        %v1147 = vpop.f32.mrb[0].mxu0
        %v1148 = vadd.f32 %v1049, %v1147
        %v1149 = vpop.f32.mrb[0].mxu0
        %v1150 = vpop.f32.mrb[0].mxu0
        %v1151 = vadd.f32 %v1054, %v1150
        %v1152 = vpop.f32.mrb[0].mxu0
        %1153 = vdwg.mxu0
        %v1154 = vtanh.pop %v1124
        %v1155 = vtanh.pop %v1127
        %v1156 = vtanh.pop %v1132
        %v1157 = vtanh.pop %v1135
        %v1158 = vtanh.pop %v1140
        %v1159 = vtanh.pop %v1143
        %v1160 = vtanh.pop %v1148
        %v1161 = vtanh.pop %v1151
        %v1162 = vpack.c.bf16 %v1155, %v1154
        %v1163 = vpack.c.bf16 %v1157, %v1156
        %v1164 = vpack.c.bf16 %v1159, %v1158
        %v1165 = vpack.c.bf16 %v1161, %v1160
        %v1166 = vld [vmem:[%s5] sm:$0xf]
        %v1167 = vld [vmem:[%s5 + $0x4] sm:$0xf]
        %v1168 = vld [vmem:[%s5 + $0x8] sm:$0xf]
        %v1169 = vld [vmem:[%s5 + $0xc] sm:$0xf]
        %v1170 = vld [vmem:[%s5 + $0x10] sm:$0xf]
        %v1171 = vld [vmem:[%s5 + $0x14] sm:$0xf]
        %v1172 = vld [vmem:[%s5 + $0x18] sm:$0xf]
        %v1173 = vld [vmem:[%s5 + $0x1c] sm:$0xf]
        %v1174 = vld [vmem:[%s6] sm:$0xff]
        %v1175 = vld [vmem:[%s6 + $0x8] sm:$0xff]
        %v1176 = vld [vmem:[%s6 + $0x10] sm:$0xff]
        %v1177 = vld [vmem:[%s6 + $0x18] sm:$0xff]
        %v1178 = vld [vmem:[%s6 + $0x20] sm:$0xff]
        %v1179 = vld [vmem:[%s6 + $0x28] sm:$0xff]
        %v1180 = vld [vmem:[%s6 + $0x30] sm:$0xff]
        %v1181 = vld [vmem:[%s6 + $0x38] sm:$0xff]
        %1183 = vset.pattern.permute.xlu0 0
        %1184 = vperm.xlu0 %1183, %v1174
        %v1185 = vpop.permute.xlu0 %1184
        %1188 = vset.pattern.permute.xlu0 0
        %1189 = vperm.xlu0 %1188, %v1175
        %v1190 = vpop.permute.xlu0 %1189
        %1193 = vset.pattern.permute.xlu0 0
        %1194 = vperm.xlu0 %1193, %v1176
        %v1195 = vpop.permute.xlu0 %1194
        %1198 = vset.pattern.permute.xlu0 0
        %1199 = vperm.xlu0 %1198, %v1177
        %v1200 = vpop.permute.xlu0 %1199
        %1203 = vset.pattern.permute.xlu0 0
        %1204 = vperm.xlu0 %1203, %v1178
        %v1205 = vpop.permute.xlu0 %1204
        %1208 = vset.pattern.permute.xlu0 0
        %1209 = vperm.xlu0 %1208, %v1179
        %v1210 = vpop.permute.xlu0 %1209
        %1213 = vset.pattern.permute.xlu0 0
        %1214 = vperm.xlu0 %1213, %v1180
        %v1215 = vpop.permute.xlu0 %1214
        %1218 = vset.pattern.permute.xlu0 0
        %1219 = vperm.xlu0 %1218, %v1181
        %v1220 = vpop.permute.xlu0 %1219
        %v1230 = vunpack.c.l.b16 %v1166
        %v1231 = vunpack.c.l.b16 %v1167
        %v1232 = vunpack.c.l.b16 %v1168
        %v1233 = vunpack.c.l.b16 %v1169
        %v1234 = vunpack.c.l.b16 %v1170
        %v1235 = vunpack.c.l.b16 %v1171
        %v1236 = vunpack.c.l.b16 %v1172
        %v1237 = vunpack.c.l.b16 %v1173
        %v1238 = vpack.c.b16 %v1231, %v1230
        %v1239 = vpack.c.b16 %v1233, %v1232
        %v1240 = vpack.c.b16 %v1235, %v1234
        %v1241 = vpack.c.b16 %v1237, %v1236
        %v1243 = vsel %vm1076, %v1238, 0
        %v1246 = vsel %vm1076, %v1239, 0
        %v1249 = vsel %vm1076, %v1240, 0
        %v1252 = vsel %vm1076, %v1241, 0
        %1254 = vmatprep.subr.bf16.mxu0 0
        %1255 = vmatpush1.bf16.msra.mxu0 %v1162
        %1256 = vmatprep.subr.bf16.mxu0 0
        %1257 = vmatpush1.bf16.msra.mxu0 %v1163
        %1258 = vmatprep.subr.bf16.mxu0 0
        %1259 = vmatpush1.bf16.msra.mxu0 %v1164
        %1260 = vmatprep.subr.bf16.mxu0 0
        %1261 = vmatpush1.bf16.msra.mxu0 %v1165
        %1262 = vmatprep.subr.bf16.mxu0 0
        %1263 = vmatpush1.bf16.msra.mxu0 0
        %1264 = vmatprep.subr.bf16.mxu0 0
        %1265 = vmatpush1.bf16.msra.mxu0 0
        %1266 = vmatprep.subr.bf16.mxu0 0
        %1267 = vmatpush1.bf16.msra.mxu0 0
        %1268 = vmatprep.subr.bf16.mxu0 0
        %1269 = vmatpush1.bf16.msra.mxu0 0
        %1270 = vmatprep.subr.bf16.mxu0 0
        %1271 = vmatpush1.bf16.msra.mxu0 0
        %1272 = vmatprep.subr.bf16.mxu0 0
        %1273 = vmatpush1.bf16.msra.mxu0 0
        %1274 = vmatprep.subr.bf16.mxu0 0
        %1275 = vmatpush1.bf16.msra.mxu0 0
        %1276 = vmatprep.subr.bf16.mxu0 0
        %1277 = vmatpush1.bf16.msra.mxu0 0
        %1278 = vmatprep.subr.bf16.mxu0 0
        %1279 = vmatpush1.bf16.msra.mxu0 0
        %1280 = vmatprep.subr.bf16.mxu0 0
        %1281 = vmatpush1.bf16.msra.mxu0 0
        %1282 = vmatprep.subr.bf16.mxu0 0
        %1283 = vmatpush1.bf16.msra.mxu0 0
        %1284 = vmatprep.subr.bf16.mxu0 0
        %1285 = vmatpush1.bf16.msra.mxu0 0
        %1286 = vmatprep.mubr.bf16.mxu0 0
        %1287 = vmatmul.mubr.bf16.gmra.mrb[0].mxu0 %v1243
        %v1288 = vpop.f32.mrb[0].mxu0
        %v1289 = vadd.f32 %v1185, %v1288
        %v1290 = vpop.f32.mrb[0].mxu0
        %v1291 = vpop.f32.mrb[0].mxu0
        %v1292 = vadd.f32 %v1190, %v1291
        %v1293 = vpop.f32.mrb[0].mxu0
        %1294 = vmatprep.mubr.bf16.mxu0 0
        %1295 = vmatmul.mubr.bf16.gmra.mrb[0].mxu0 %v1246
        %v1296 = vpop.f32.mrb[0].mxu0
        %v1297 = vadd.f32 %v1195, %v1296
        %v1298 = vpop.f32.mrb[0].mxu0
        %v1299 = vpop.f32.mrb[0].mxu0
        %v1300 = vadd.f32 %v1200, %v1299
        %v1301 = vpop.f32.mrb[0].mxu0
        %1302 = vmatprep.mubr.bf16.mxu0 0
        %1303 = vmatmul.mubr.bf16.gmra.mrb[0].mxu0 %v1249
        %v1304 = vpop.f32.mrb[0].mxu0
        %v1305 = vadd.f32 %v1205, %v1304
        %v1306 = vpop.f32.mrb[0].mxu0
        %v1307 = vpop.f32.mrb[0].mxu0
        %v1308 = vadd.f32 %v1210, %v1307
        %v1309 = vpop.f32.mrb[0].mxu0
        %1310 = vmatprep.mubr.bf16.mxu0 0
        %1311 = vmatmul.mubr.bf16.gmra.mrb[0].mxu0 %v1252
        %v1312 = vpop.f32.mrb[0].mxu0
        %v1313 = vadd.f32 %v1215, %v1312
        %v1314 = vpop.f32.mrb[0].mxu0
        %v1315 = vpop.f32.mrb[0].mxu0
        %v1316 = vadd.f32 %v1220, %v1315
        %v1317 = vpop.f32.mrb[0].mxu0
        %1318 = vdwg.mxu0
        %v1319 = vtanh.pop %v1289
        %v1320 = vtanh.pop %v1292
        %v1321 = vtanh.pop %v1297
        %v1322 = vtanh.pop %v1300
        %v1323 = vtanh.pop %v1305
        %v1324 = vtanh.pop %v1308
        %v1325 = vtanh.pop %v1313
        %v1326 = vtanh.pop %v1316
        %v1327 = vpack.c.bf16 %v1320, %v1319
        %v1328 = vpack.c.bf16 %v1322, %v1321
        %v1329 = vpack.c.bf16 %v1324, %v1323
        %v1330 = vpack.c.bf16 %v1326, %v1325
        %v1331 = vld [vmem:[%s7] sm:$0xf]
        %v1332 = vld [vmem:[%s7 + $0x4] sm:$0xf]
        %v1333 = vld [vmem:[%s7 + $0x8] sm:$0xf]
        %v1334 = vld [vmem:[%s7 + $0xc] sm:$0xf]
        %v1335 = vld [vmem:[%s7 + $0x10] sm:$0xf]
        %v1336 = vld [vmem:[%s7 + $0x14] sm:$0xf]
        %v1337 = vld [vmem:[%s7 + $0x18] sm:$0xf]
        %v1338 = vld [vmem:[%s7 + $0x1c] sm:$0xf]
        %v1339 = vld [vmem:[%s7 + $0x20] sm:$0xf]
        %v1340 = vld [vmem:[%s7 + $0x24] sm:$0xf]
        %v1341 = vld [vmem:[%s7 + $0x28] sm:$0xf]
        %v1342 = vld [vmem:[%s7 + $0x2c] sm:$0xf]
        %v1343 = vld [vmem:[%s7 + $0x30] sm:$0xf]
        %v1344 = vld [vmem:[%s7 + $0x34] sm:$0xf]
        %v1345 = vld [vmem:[%s7 + $0x38] sm:$0xf]
        %v1346 = vld [vmem:[%s7 + $0x3c] sm:$0xf]
        %v1347 = vld [vmem:[%s8] sm:$0xff]
        %v1348 = vld [vmem:[%s8 + $0x8] sm:$0xff]
        %v1349 = vld [vmem:[%s8 + $0x10] sm:$0xff]
        %v1350 = vld [vmem:[%s8 + $0x18] sm:$0xff]
        %v1351 = vld [vmem:[%s8 + $0x20] sm:$0xff]
        %v1352 = vld [vmem:[%s8 + $0x28] sm:$0xff]
        %v1353 = vld [vmem:[%s8 + $0x30] sm:$0xff]
        %v1354 = vld [vmem:[%s8 + $0x38] sm:$0xff]
        %v1355 = vld [vmem:[%s8 + $0x40] sm:$0xff]
        %v1356 = vld [vmem:[%s8 + $0x48] sm:$0xff]
        %v1357 = vld [vmem:[%s8 + $0x50] sm:$0xff]
        %v1358 = vld [vmem:[%s8 + $0x58] sm:$0xff]
        %v1359 = vld [vmem:[%s8 + $0x60] sm:$0xff]
        %v1360 = vld [vmem:[%s8 + $0x68] sm:$0xff]
        %v1361 = vld [vmem:[%s8 + $0x70] sm:$0xff]
        %v1362 = vld [vmem:[%s8 + $0x78] sm:$0xff]
        %1364 = vset.pattern.permute.xlu0 0
        %1365 = vperm.xlu0 %1364, %v1347
        %v1366 = vpop.permute.xlu0 %1365
        %1369 = vset.pattern.permute.xlu0 0
        %1370 = vperm.xlu0 %1369, %v1348
        %v1371 = vpop.permute.xlu0 %1370
        %1374 = vset.pattern.permute.xlu0 0
        %1375 = vperm.xlu0 %1374, %v1349
        %v1376 = vpop.permute.xlu0 %1375
        %1379 = vset.pattern.permute.xlu0 0
        %1380 = vperm.xlu0 %1379, %v1350
        %v1381 = vpop.permute.xlu0 %1380
        %1384 = vset.pattern.permute.xlu0 0
        %1385 = vperm.xlu0 %1384, %v1351
        %v1386 = vpop.permute.xlu0 %1385
        %1389 = vset.pattern.permute.xlu0 0
        %1390 = vperm.xlu0 %1389, %v1352
        %v1391 = vpop.permute.xlu0 %1390
        %1394 = vset.pattern.permute.xlu0 0
        %1395 = vperm.xlu0 %1394, %v1353
        %v1396 = vpop.permute.xlu0 %1395
        %1399 = vset.pattern.permute.xlu0 0
        %1400 = vperm.xlu0 %1399, %v1354
        %v1401 = vpop.permute.xlu0 %1400
        %1404 = vset.pattern.permute.xlu0 0
        %1405 = vperm.xlu0 %1404, %v1355
        %v1406 = vpop.permute.xlu0 %1405
        %1409 = vset.pattern.permute.xlu0 0
        %1410 = vperm.xlu0 %1409, %v1356
        %v1411 = vpop.permute.xlu0 %1410
        %1414 = vset.pattern.permute.xlu0 0
        %1415 = vperm.xlu0 %1414, %v1357
        %v1416 = vpop.permute.xlu0 %1415
        %1419 = vset.pattern.permute.xlu0 0
        %1420 = vperm.xlu0 %1419, %v1358
        %v1421 = vpop.permute.xlu0 %1420
        %1424 = vset.pattern.permute.xlu0 0
        %1425 = vperm.xlu0 %1424, %v1359
        %v1426 = vpop.permute.xlu0 %1425
        %1429 = vset.pattern.permute.xlu0 0
        %1430 = vperm.xlu0 %1429, %v1360
        %v1431 = vpop.permute.xlu0 %1430
        %1434 = vset.pattern.permute.xlu0 0
        %1435 = vperm.xlu0 %1434, %v1361
        %v1436 = vpop.permute.xlu0 %1435
        %1439 = vset.pattern.permute.xlu0 0
        %1440 = vperm.xlu0 %1439, %v1362
        %v1441 = vpop.permute.xlu0 %1440
        %v1459 = vunpack.c.l.b16 %v1331
        %v1460 = vunpack.c.l.b16 %v1332
        %v1461 = vunpack.c.l.b16 %v1333
        %v1462 = vunpack.c.l.b16 %v1334
        %v1463 = vunpack.c.l.b16 %v1335
        %v1464 = vunpack.c.l.b16 %v1336
        %v1465 = vunpack.c.l.b16 %v1337
        %v1466 = vunpack.c.l.b16 %v1338
        %v1467 = vunpack.c.l.b16 %v1339
        %v1468 = vunpack.c.l.b16 %v1340
        %v1469 = vunpack.c.l.b16 %v1341
        %v1470 = vunpack.c.l.b16 %v1342
        %v1471 = vunpack.c.l.b16 %v1343
        %v1472 = vunpack.c.l.b16 %v1344
        %v1473 = vunpack.c.l.b16 %v1345
        %v1474 = vunpack.c.l.b16 %v1346
        %v1475 = vpack.c.b16 %v1460, %v1459
        %v1476 = vpack.c.b16 %v1462, %v1461
        %v1477 = vpack.c.b16 %v1464, %v1463
        %v1478 = vpack.c.b16 %v1466, %v1465
        %v1479 = vpack.c.b16 %v1468, %v1467
        %v1480 = vpack.c.b16 %v1470, %v1469
        %v1481 = vpack.c.b16 %v1472, %v1471
        %v1482 = vpack.c.b16 %v1474, %v1473
        %v1484 = vsel %vm1076, %v1475, 0
        %v1487 = vsel %vm1076, %v1476, 0
        %v1490 = vsel %vm1076, %v1477, 0
        %v1493 = vsel %vm1076, %v1478, 0
        %v1496 = vsel %vm1076, %v1479, 0
        %v1499 = vsel %vm1076, %v1480, 0
        %v1502 = vsel %vm1076, %v1481, 0
        %v1505 = vsel %vm1076, %v1482, 0
        %1507 = vmatprep.subr.bf16.mxu0 0
        %1508 = vmatpush1.bf16.msra.mxu0 %v1327
        %1509 = vmatprep.subr.bf16.mxu0 0
        %1510 = vmatpush1.bf16.msra.mxu0 %v1328
        %1511 = vmatprep.subr.bf16.mxu0 0
        %1512 = vmatpush1.bf16.msra.mxu0 %v1329
        %1513 = vmatprep.subr.bf16.mxu0 0
        %1514 = vmatpush1.bf16.msra.mxu0 %v1330
        %1515 = vmatprep.subr.bf16.mxu0 0
        %1516 = vmatpush1.bf16.msra.mxu0 0
        %1517 = vmatprep.subr.bf16.mxu0 0
        %1518 = vmatpush1.bf16.msra.mxu0 0
        %1519 = vmatprep.subr.bf16.mxu0 0
        %1520 = vmatpush1.bf16.msra.mxu0 0
        %1521 = vmatprep.subr.bf16.mxu0 0
        %1522 = vmatpush1.bf16.msra.mxu0 0
        %1523 = vmatprep.subr.bf16.mxu0 0
        %1524 = vmatpush1.bf16.msra.mxu0 0
        %1525 = vmatprep.subr.bf16.mxu0 0
        %1526 = vmatpush1.bf16.msra.mxu0 0
        %1527 = vmatprep.subr.bf16.mxu0 0
        %1528 = vmatpush1.bf16.msra.mxu0 0
        %1529 = vmatprep.subr.bf16.mxu0 0
        %1530 = vmatpush1.bf16.msra.mxu0 0
        %1531 = vmatprep.subr.bf16.mxu0 0
        %1532 = vmatpush1.bf16.msra.mxu0 0
        %1533 = vmatprep.subr.bf16.mxu0 0
        %1534 = vmatpush1.bf16.msra.mxu0 0
        %1535 = vmatprep.subr.bf16.mxu0 0
        %1536 = vmatpush1.bf16.msra.mxu0 0
        %1537 = vmatprep.subr.bf16.mxu0 0
        %1538 = vmatpush1.bf16.msra.mxu0 0
        %1539 = vmatprep.mubr.bf16.mxu0 0
        %1540 = vmatmul.mubr.bf16.gmra.mrb[0].mxu0 %v1484
        %v1541 = vpop.f32.mrb[0].mxu0
        %v1542 = vadd.f32 %v1366, %v1541
        %v1543 = vpop.f32.mrb[0].mxu0
        %v1544 = vpop.f32.mrb[0].mxu0
        %v1545 = vadd.f32 %v1371, %v1544
        %v1546 = vpop.f32.mrb[0].mxu0
        %1547 = vmatprep.mubr.bf16.mxu0 0
        %1548 = vmatmul.mubr.bf16.gmra.mrb[0].mxu0 %v1487
        %v1549 = vpop.f32.mrb[0].mxu0
        %v1550 = vadd.f32 %v1376, %v1549
        %v1551 = vpop.f32.mrb[0].mxu0
        %v1552 = vpop.f32.mrb[0].mxu0
        %v1553 = vadd.f32 %v1381, %v1552
        %v1554 = vpop.f32.mrb[0].mxu0
        %1555 = vmatprep.mubr.bf16.mxu0 0
        %1556 = vmatmul.mubr.bf16.gmra.mrb[0].mxu0 %v1490
        %v1557 = vpop.f32.mrb[0].mxu0
        %v1558 = vadd.f32 %v1386, %v1557
        %v1559 = vpop.f32.mrb[0].mxu0
        %v1560 = vpop.f32.mrb[0].mxu0
        %v1561 = vadd.f32 %v1391, %v1560
        %v1562 = vpop.f32.mrb[0].mxu0
        %1563 = vmatprep.mubr.bf16.mxu0 0
        %1564 = vmatmul.mubr.bf16.gmra.mrb[0].mxu0 %v1493
        %v1565 = vpop.f32.mrb[0].mxu0
        %v1566 = vadd.f32 %v1396, %v1565
        %v1567 = vpop.f32.mrb[0].mxu0
        %v1568 = vpop.f32.mrb[0].mxu0
        %v1569 = vadd.f32 %v1401, %v1568
        %v1570 = vpop.f32.mrb[0].mxu0
        %1571 = vmatprep.mubr.bf16.mxu0 0
        %1572 = vmatmul.mubr.bf16.gmra.mrb[0].mxu0 %v1496
        %v1573 = vpop.f32.mrb[0].mxu0
        %v1574 = vadd.f32 %v1406, %v1573
        %v1575 = vpop.f32.mrb[0].mxu0
        %v1576 = vpop.f32.mrb[0].mxu0
        %v1577 = vadd.f32 %v1411, %v1576
        %v1578 = vpop.f32.mrb[0].mxu0
        %1579 = vmatprep.mubr.bf16.mxu0 0
        %1580 = vmatmul.mubr.bf16.gmra.mrb[0].mxu0 %v1499
        %v1581 = vpop.f32.mrb[0].mxu0
        %v1582 = vadd.f32 %v1416, %v1581
        %v1583 = vpop.f32.mrb[0].mxu0
        %v1584 = vpop.f32.mrb[0].mxu0
        %v1585 = vadd.f32 %v1421, %v1584
        %v1586 = vpop.f32.mrb[0].mxu0
        %1587 = vmatprep.mubr.bf16.mxu0 0
        %1588 = vmatmul.mubr.bf16.gmra.mrb[0].mxu0 %v1502
        %v1589 = vpop.f32.mrb[0].mxu0
        %v1590 = vadd.f32 %v1426, %v1589
        %v1591 = vpop.f32.mrb[0].mxu0
        %v1592 = vpop.f32.mrb[0].mxu0
        %v1593 = vadd.f32 %v1431, %v1592
        %v1594 = vpop.f32.mrb[0].mxu0
        %1595 = vmatprep.mubr.bf16.mxu0 0
        %1596 = vmatmul.mubr.bf16.gmra.mrb[0].mxu0 %v1505
        %v1597 = vpop.f32.mrb[0].mxu0
        %v1598 = vadd.f32 %v1436, %v1597
        %v1599 = vpop.f32.mrb[0].mxu0
        %v1600 = vpop.f32.mrb[0].mxu0
        %v1601 = vadd.f32 %v1441, %v1600
        %v1602 = vpop.f32.mrb[0].mxu0
        %1603 = vdwg.mxu0
        %v1604 = vtanh.pop %v1542
        %v1605 = vtanh.pop %v1545
        %v1606 = vtanh.pop %v1550
        %v1607 = vtanh.pop %v1553
        %v1608 = vtanh.pop %v1558
        %v1609 = vtanh.pop %v1561
        %v1610 = vtanh.pop %v1566
        %v1611 = vtanh.pop %v1569
        %v1612 = vtanh.pop %v1574
        %v1613 = vtanh.pop %v1577
        %v1614 = vtanh.pop %v1582
        %v1615 = vtanh.pop %v1585
        %v1616 = vtanh.pop %v1590
        %v1617 = vtanh.pop %v1593
        %v1618 = vtanh.pop %v1598
        %v1619 = vtanh.pop %v1601
        %v1620 = vpack.c.bf16 %v1605, %v1604
        %v1621 = vpack.c.bf16 %v1607, %v1606
        %v1622 = vpack.c.bf16 %v1609, %v1608
        %v1623 = vpack.c.bf16 %v1611, %v1610
        %v1624 = vpack.c.bf16 %v1613, %v1612
        %v1625 = vpack.c.bf16 %v1615, %v1614
        %v1626 = vpack.c.bf16 %v1617, %v1616
        %v1627 = vpack.c.bf16 %v1619, %v1618
        %v1628 = vld [vmem:[%s9] sm:$0xf]
        %v1629 = vld [vmem:[%s9 + $0x4] sm:$0xf]
        %v1630 = vld [vmem:[%s9 + $0x8] sm:$0xf]
        %v1631 = vld [vmem:[%s9 + $0xc] sm:$0xf]
        %v1632 = vld [vmem:[%s9 + $0x10] sm:$0xf]
        %v1633 = vld [vmem:[%s9 + $0x14] sm:$0xf]
        %v1634 = vld [vmem:[%s9 + $0x18] sm:$0xf]
        %v1635 = vld [vmem:[%s9 + $0x1c] sm:$0xf]
        %v1636 = vld [vmem:[%s9 + $0x20] sm:$0xf]
        %v1637 = vld [vmem:[%s9 + $0x24] sm:$0xf]
        %v1638 = vld [vmem:[%s9 + $0x28] sm:$0xf]
        %v1639 = vld [vmem:[%s9 + $0x2c] sm:$0xf]
        %v1640 = vld [vmem:[%s9 + $0x30] sm:$0xf]
        %v1641 = vld [vmem:[%s9 + $0x34] sm:$0xf]
        %v1642 = vld [vmem:[%s9 + $0x38] sm:$0xf]
        %v1643 = vld [vmem:[%s9 + $0x3c] sm:$0xf]
        %v1644 = vld [vmem:[%s9 + $0x40] sm:$0xf]
        %v1645 = vld [vmem:[%s9 + $0x44] sm:$0xf]
        %v1646 = vld [vmem:[%s9 + $0x48] sm:$0xf]
        %v1647 = vld [vmem:[%s9 + $0x4c] sm:$0xf]
        %v1648 = vld [vmem:[%s9 + $0x50] sm:$0xf]
        %v1649 = vld [vmem:[%s9 + $0x54] sm:$0xf]
        %v1650 = vld [vmem:[%s9 + $0x58] sm:$0xf]
        %v1651 = vld [vmem:[%s9 + $0x5c] sm:$0xf]
        %v1652 = vld [vmem:[%s9 + $0x60] sm:$0xf]
        %v1653 = vld [vmem:[%s9 + $0x64] sm:$0xf]
        %v1654 = vld [vmem:[%s9 + $0x68] sm:$0xf]
        %v1655 = vld [vmem:[%s9 + $0x6c] sm:$0xf]
        %v1656 = vld [vmem:[%s9 + $0x70] sm:$0xf]
        %v1657 = vld [vmem:[%s9 + $0x74] sm:$0xf]
        %v1658 = vld [vmem:[%s9 + $0x78] sm:$0xf]
        %v1659 = vld [vmem:[%s9 + $0x7c] sm:$0xf]
        %v1660 = vld [vmem:[%s9 + $0x80] sm:$0xf]
        %v1661 = vld [vmem:[%s9 + $0x84] sm:$0xf]
        %v1662 = vld [vmem:[%s9 + $0x88] sm:$0xf]
        %v1663 = vld [vmem:[%s9 + $0x8c] sm:$0xf]
        %v1664 = vld [vmem:[%s9 + $0x90] sm:$0xf]
        %v1665 = vld [vmem:[%s9 + $0x94] sm:$0xf]
        %v1666 = vld [vmem:[%s9 + $0x98] sm:$0xf]
        %v1667 = vld [vmem:[%s9 + $0x9c] sm:$0xf]
        %v1668 = vld [vmem:[%s9 + $0xa0] sm:$0xf]
        %v1669 = vld [vmem:[%s9 + $0xa4] sm:$0xf]
        %v1670 = vld [vmem:[%s9 + $0xa8] sm:$0xf]
        %v1671 = vld [vmem:[%s9 + $0xac] sm:$0xf]
        %v1672 = vld [vmem:[%s9 + $0xb0] sm:$0xf]
        %v1673 = vld [vmem:[%s9 + $0xb4] sm:$0xf]
        %v1674 = vld [vmem:[%s9 + $0xb8] sm:$0xf]
        %v1675 = vld [vmem:[%s9 + $0xbc] sm:$0xf]
        %v1676 = vld [vmem:[%s9 + $0xc0] sm:$0xf]
        %v1677 = vld [vmem:[%s9 + $0xc4] sm:$0xf]
        %v1678 = vld [vmem:[%s9 + $0xc8] sm:$0xf]
        %v1679 = vld [vmem:[%s9 + $0xcc] sm:$0xf]
        %v1680 = vld [vmem:[%s9 + $0xd0] sm:$0xf]
        %v1681 = vld [vmem:[%s9 + $0xd4] sm:$0xf]
        %v1682 = vld [vmem:[%s9 + $0xd8] sm:$0xf]
        %v1683 = vld [vmem:[%s9 + $0xdc] sm:$0xf]
        %v1684 = vld [vmem:[%s9 + $0xe0] sm:$0xf]
        %v1685 = vld [vmem:[%s9 + $0xe4] sm:$0xf]
        %v1686 = vld [vmem:[%s9 + $0xe8] sm:$0xf]
        %v1687 = vld [vmem:[%s9 + $0xec] sm:$0xf]
        %v1688 = vld [vmem:[%s9 + $0xf0] sm:$0xf]
        %v1689 = vld [vmem:[%s9 + $0xf4] sm:$0xf]
        %v1690 = vld [vmem:[%s9 + $0xf8] sm:$0xf]
        %v1691 = vld [vmem:[%s9 + $0xfc] sm:$0xf]
        %v1692 = vld [vmem:[%s9 + $0x100] sm:$0xf]
        %v1693 = vld [vmem:[%s9 + $0x104] sm:$0xf]
        %v1694 = vld [vmem:[%s9 + $0x108] sm:$0xf]
        %v1695 = vld [vmem:[%s9 + $0x10c] sm:$0xf]
        %v1696 = vld [vmem:[%s9 + $0x110] sm:$0xf]
        %v1697 = vld [vmem:[%s9 + $0x114] sm:$0xf]
        %v1698 = vld [vmem:[%s9 + $0x118] sm:$0xf]
        %v1699 = vld [vmem:[%s9 + $0x11c] sm:$0xf]
        %v1700 = vld [vmem:[%s9 + $0x120] sm:$0xf]
        %v1701 = vld [vmem:[%s9 + $0x124] sm:$0xf]
        %v1702 = vld [vmem:[%s9 + $0x128] sm:$0xf]
        %v1703 = vld [vmem:[%s9 + $0x12c] sm:$0xf]
        %v1704 = vld [vmem:[%s9 + $0x130] sm:$0xf]
        %v1705 = vld [vmem:[%s9 + $0x134] sm:$0xf]
        %v1706 = vld [vmem:[%s9 + $0x138] sm:$0xf]
        %v1707 = vld [vmem:[%s9 + $0x13c] sm:$0xf]
        %v1708 = vld [vmem:[%s9 + $0x140] sm:$0xf]
        %v1709 = vld [vmem:[%s9 + $0x144] sm:$0xf]
        %v1710 = vld [vmem:[%s9 + $0x148] sm:$0xf]
        %v1711 = vld [vmem:[%s9 + $0x14c] sm:$0xf]
        %v1712 = vld [vmem:[%s9 + $0x150] sm:$0xf]
        %v1713 = vld [vmem:[%s9 + $0x154] sm:$0xf]
        %v1714 = vld [vmem:[%s9 + $0x158] sm:$0xf]
        %v1715 = vld [vmem:[%s9 + $0x15c] sm:$0xf]
        %v1716 = vld [vmem:[%s9 + $0x160] sm:$0xf]
        %v1717 = vld [vmem:[%s9 + $0x164] sm:$0xf]
        %v1718 = vld [vmem:[%s9 + $0x168] sm:$0xf]
        %v1719 = vld [vmem:[%s9 + $0x16c] sm:$0xf]
        %v1720 = vld [vmem:[%s9 + $0x170] sm:$0xf]
        %v1721 = vld [vmem:[%s9 + $0x174] sm:$0xf]
        %v1722 = vld [vmem:[%s9 + $0x178] sm:$0xf]
        %v1723 = vld [vmem:[%s9 + $0x17c] sm:$0xf]
        %v1724 = vld [vmem:[%s9 + $0x180] sm:$0xf]
        %v1725 = vld [vmem:[%s9 + $0x184] sm:$0xf]
        %v1726 = vld [vmem:[%s9 + $0x188] sm:$0xf]
        %v1727 = vld [vmem:[%s9 + $0x18c] sm:$0xf]
        %v1728 = vld [vmem:[%s9 + $0x190] sm:$0xf]
        %v1729 = vld [vmem:[%s9 + $0x194] sm:$0xf]
        %v1730 = vld [vmem:[%s9 + $0x198] sm:$0xf]
        %v1731 = vld [vmem:[%s9 + $0x19c] sm:$0xf]
        %v1732 = vld [vmem:[%s9 + $0x1a0] sm:$0xf]
        %v1733 = vld [vmem:[%s9 + $0x1a4] sm:$0xf]
        %v1734 = vld [vmem:[%s9 + $0x1a8] sm:$0xf]
        %v1735 = vld [vmem:[%s9 + $0x1ac] sm:$0xf]
        %v1736 = vld [vmem:[%s9 + $0x1b0] sm:$0xf]
        %v1737 = vld [vmem:[%s9 + $0x1b4] sm:$0xf]
        %v1738 = vld [vmem:[%s9 + $0x1b8] sm:$0xf]
        %v1739 = vld [vmem:[%s9 + $0x1bc] sm:$0xf]
        %v1740 = vld [vmem:[%s9 + $0x1c0] sm:$0xf]
        %v1741 = vld [vmem:[%s9 + $0x1c4] sm:$0xf]
        %v1742 = vld [vmem:[%s9 + $0x1c8] sm:$0xf]
        %v1743 = vld [vmem:[%s9 + $0x1cc] sm:$0xf]
        %v1744 = vld [vmem:[%s9 + $0x1d0] sm:$0xf]
        %v1745 = vld [vmem:[%s9 + $0x1d4] sm:$0xf]
        %v1746 = vld [vmem:[%s9 + $0x1d8] sm:$0xf]
        %v1747 = vld [vmem:[%s9 + $0x1dc] sm:$0xf]
        %v1748 = vld [vmem:[%s9 + $0x1e0] sm:$0xf]
        %v1749 = vld [vmem:[%s9 + $0x1e4] sm:$0xf]
        %v1750 = vld [vmem:[%s9 + $0x1e8] sm:$0xf]
        %v1751 = vld [vmem:[%s9 + $0x1ec] sm:$0xf]
        %v1752 = vld [vmem:[%s9 + $0x1f0] sm:$0xf]
        %v1753 = vld [vmem:[%s9 + $0x1f4] sm:$0xf]
        %v1754 = vld [vmem:[%s9 + $0x1f8] sm:$0xf]
        %v1755 = vld [vmem:[%s9 + $0x1fc] sm:$0xf]
        %v1884 = vunpack.c.l.b16 %v1628
        %v1885 = vunpack.c.l.b16 %v1629
        %v1886 = vunpack.c.l.b16 %v1630
        %v1887 = vunpack.c.l.b16 %v1631
        %v1888 = vunpack.c.l.b16 %v1632
        %v1889 = vunpack.c.l.b16 %v1633
        %v1890 = vunpack.c.l.b16 %v1634
        %v1891 = vunpack.c.l.b16 %v1635
        %v1892 = vunpack.c.l.b16 %v1636
        %v1893 = vunpack.c.l.b16 %v1637
        %v1894 = vunpack.c.l.b16 %v1638
        %v1895 = vunpack.c.l.b16 %v1639
        %v1896 = vunpack.c.l.b16 %v1640
        %v1897 = vunpack.c.l.b16 %v1641
        %v1898 = vunpack.c.l.b16 %v1642
        %v1899 = vunpack.c.l.b16 %v1643
        %v1900 = vunpack.c.l.b16 %v1644
        %v1901 = vunpack.c.l.b16 %v1645
        %v1902 = vunpack.c.l.b16 %v1646
        %v1903 = vunpack.c.l.b16 %v1647
        %v1904 = vunpack.c.l.b16 %v1648
        %v1905 = vunpack.c.l.b16 %v1649
        %v1906 = vunpack.c.l.b16 %v1650
        %v1907 = vunpack.c.l.b16 %v1651
        %v1908 = vunpack.c.l.b16 %v1652
        %v1909 = vunpack.c.l.b16 %v1653
        %v1910 = vunpack.c.l.b16 %v1654
        %v1911 = vunpack.c.l.b16 %v1655
        %v1912 = vunpack.c.l.b16 %v1656
        %v1913 = vunpack.c.l.b16 %v1657
        %v1914 = vunpack.c.l.b16 %v1658
        %v1915 = vunpack.c.l.b16 %v1659
        %v1916 = vunpack.c.l.b16 %v1660
        %v1917 = vunpack.c.l.b16 %v1661
        %v1918 = vunpack.c.l.b16 %v1662
        %v1919 = vunpack.c.l.b16 %v1663
        %v1920 = vunpack.c.l.b16 %v1664
        %v1921 = vunpack.c.l.b16 %v1665
        %v1922 = vunpack.c.l.b16 %v1666
        %v1923 = vunpack.c.l.b16 %v1667
        %v1924 = vunpack.c.l.b16 %v1668
        %v1925 = vunpack.c.l.b16 %v1669
        %v1926 = vunpack.c.l.b16 %v1670
        %v1927 = vunpack.c.l.b16 %v1671
        %v1928 = vunpack.c.l.b16 %v1672
        %v1929 = vunpack.c.l.b16 %v1673
        %v1930 = vunpack.c.l.b16 %v1674
        %v1931 = vunpack.c.l.b16 %v1675
        %v1932 = vunpack.c.l.b16 %v1676
        %v1933 = vunpack.c.l.b16 %v1677
        %v1934 = vunpack.c.l.b16 %v1678
        %v1935 = vunpack.c.l.b16 %v1679
        %v1936 = vunpack.c.l.b16 %v1680
        %v1937 = vunpack.c.l.b16 %v1681
        %v1938 = vunpack.c.l.b16 %v1682
        %v1939 = vunpack.c.l.b16 %v1683
        %v1940 = vunpack.c.l.b16 %v1684
        %v1941 = vunpack.c.l.b16 %v1685
        %v1942 = vunpack.c.l.b16 %v1686
        %v1943 = vunpack.c.l.b16 %v1687
        %v1944 = vunpack.c.l.b16 %v1688
        %v1945 = vunpack.c.l.b16 %v1689
        %v1946 = vunpack.c.l.b16 %v1690
        %v1947 = vunpack.c.l.b16 %v1691
        %v1948 = vunpack.c.l.b16 %v1692
        %v1949 = vunpack.c.l.b16 %v1693
        %v1950 = vunpack.c.l.b16 %v1694
        %v1951 = vunpack.c.l.b16 %v1695
        %v1952 = vunpack.c.l.b16 %v1696
        %v1953 = vunpack.c.l.b16 %v1697
        %v1954 = vunpack.c.l.b16 %v1698
        %v1955 = vunpack.c.l.b16 %v1699
        %v1956 = vunpack.c.l.b16 %v1700
        %v1957 = vunpack.c.l.b16 %v1701
        %v1958 = vunpack.c.l.b16 %v1702
        %v1959 = vunpack.c.l.b16 %v1703
        %v1960 = vunpack.c.l.b16 %v1704
        %v1961 = vunpack.c.l.b16 %v1705
        %v1962 = vunpack.c.l.b16 %v1706
        %v1963 = vunpack.c.l.b16 %v1707
        %v1964 = vunpack.c.l.b16 %v1708
        %v1965 = vunpack.c.l.b16 %v1709
        %v1966 = vunpack.c.l.b16 %v1710
        %v1967 = vunpack.c.l.b16 %v1711
        %v1968 = vunpack.c.l.b16 %v1712
        %v1969 = vunpack.c.l.b16 %v1713
        %v1970 = vunpack.c.l.b16 %v1714
        %v1971 = vunpack.c.l.b16 %v1715
        %v1972 = vunpack.c.l.b16 %v1716
        %v1973 = vunpack.c.l.b16 %v1717
        %v1974 = vunpack.c.l.b16 %v1718
        %v1975 = vunpack.c.l.b16 %v1719
        %v1976 = vunpack.c.l.b16 %v1720
        %v1977 = vunpack.c.l.b16 %v1721
        %v1978 = vunpack.c.l.b16 %v1722
        %v1979 = vunpack.c.l.b16 %v1723
        %v1980 = vunpack.c.l.b16 %v1724
        %v1981 = vunpack.c.l.b16 %v1725
        %v1982 = vunpack.c.l.b16 %v1726
        %v1983 = vunpack.c.l.b16 %v1727
        %v1984 = vunpack.c.l.b16 %v1728
        %v1985 = vunpack.c.l.b16 %v1729
        %v1986 = vunpack.c.l.b16 %v1730
        %v1987 = vunpack.c.l.b16 %v1731
        %v1988 = vunpack.c.l.b16 %v1732
        %v1989 = vunpack.c.l.b16 %v1733
        %v1990 = vunpack.c.l.b16 %v1734
        %v1991 = vunpack.c.l.b16 %v1735
        %v1992 = vunpack.c.l.b16 %v1736
        %v1993 = vunpack.c.l.b16 %v1737
        %v1994 = vunpack.c.l.b16 %v1738
        %v1995 = vunpack.c.l.b16 %v1739
        %v1996 = vunpack.c.l.b16 %v1740
        %v1997 = vunpack.c.l.b16 %v1741
        %v1998 = vunpack.c.l.b16 %v1742
        %v1999 = vunpack.c.l.b16 %v1743
        %v2000 = vunpack.c.l.b16 %v1744
        %v2001 = vunpack.c.l.b16 %v1745
        %v2002 = vunpack.c.l.b16 %v1746
        %v2003 = vunpack.c.l.b16 %v1747
        %v2004 = vunpack.c.l.b16 %v1748
        %v2005 = vunpack.c.l.b16 %v1749
        %v2006 = vunpack.c.l.b16 %v1750
        %v2007 = vunpack.c.l.b16 %v1751
        %v2008 = vunpack.c.l.b16 %v1752
        %v2009 = vunpack.c.l.b16 %v1753
        %v2010 = vunpack.c.l.b16 %v1754
        %v2011 = vunpack.c.l.b16 %v1755
        %v2012 = vpack.c.b16 %v1885, %v1884
        %v2013 = vpack.c.b16 %v1887, %v1886
        %v2014 = vpack.c.b16 %v1889, %v1888
        %v2015 = vpack.c.b16 %v1891, %v1890
        %v2016 = vpack.c.b16 %v1893, %v1892
        %v2017 = vpack.c.b16 %v1895, %v1894
        %v2018 = vpack.c.b16 %v1897, %v1896
        %v2019 = vpack.c.b16 %v1899, %v1898
        %v2020 = vpack.c.b16 %v1901, %v1900
        %v2021 = vpack.c.b16 %v1903, %v1902
        %v2022 = vpack.c.b16 %v1905, %v1904
        %v2023 = vpack.c.b16 %v1907, %v1906
        %v2024 = vpack.c.b16 %v1909, %v1908
        %v2025 = vpack.c.b16 %v1911, %v1910
        %v2026 = vpack.c.b16 %v1913, %v1912
        %v2027 = vpack.c.b16 %v1915, %v1914
        %v2028 = vpack.c.b16 %v1917, %v1916
        %v2029 = vpack.c.b16 %v1919, %v1918
        %v2030 = vpack.c.b16 %v1921, %v1920
        %v2031 = vpack.c.b16 %v1923, %v1922
        %v2032 = vpack.c.b16 %v1925, %v1924
        %v2033 = vpack.c.b16 %v1927, %v1926
        %v2034 = vpack.c.b16 %v1929, %v1928
        %v2035 = vpack.c.b16 %v1931, %v1930
        %v2036 = vpack.c.b16 %v1933, %v1932
        %v2037 = vpack.c.b16 %v1935, %v1934
        %v2038 = vpack.c.b16 %v1937, %v1936
        %v2039 = vpack.c.b16 %v1939, %v1938
        %v2040 = vpack.c.b16 %v1941, %v1940
        %v2041 = vpack.c.b16 %v1943, %v1942
        %v2042 = vpack.c.b16 %v1945, %v1944
        %v2043 = vpack.c.b16 %v1947, %v1946
        %v2044 = vpack.c.b16 %v1949, %v1948
        %v2045 = vpack.c.b16 %v1951, %v1950
        %v2046 = vpack.c.b16 %v1953, %v1952
        %v2047 = vpack.c.b16 %v1955, %v1954
        %v2048 = vpack.c.b16 %v1957, %v1956
        %v2049 = vpack.c.b16 %v1959, %v1958
        %v2050 = vpack.c.b16 %v1961, %v1960
        %v2051 = vpack.c.b16 %v1963, %v1962
        %v2052 = vpack.c.b16 %v1965, %v1964
        %v2053 = vpack.c.b16 %v1967, %v1966
        %v2054 = vpack.c.b16 %v1969, %v1968
        %v2055 = vpack.c.b16 %v1971, %v1970
        %v2056 = vpack.c.b16 %v1973, %v1972
        %v2057 = vpack.c.b16 %v1975, %v1974
        %v2058 = vpack.c.b16 %v1977, %v1976
        %v2059 = vpack.c.b16 %v1979, %v1978
        %v2060 = vpack.c.b16 %v1981, %v1980
        %v2061 = vpack.c.b16 %v1983, %v1982
        %v2062 = vpack.c.b16 %v1985, %v1984
        %v2063 = vpack.c.b16 %v1987, %v1986
        %v2064 = vpack.c.b16 %v1989, %v1988
        %v2065 = vpack.c.b16 %v1991, %v1990
        %v2066 = vpack.c.b16 %v1993, %v1992
        %v2067 = vpack.c.b16 %v1995, %v1994
        %v2068 = vpack.c.b16 %v1997, %v1996
        %v2069 = vpack.c.b16 %v1999, %v1998
        %v2070 = vpack.c.b16 %v2001, %v2000
        %v2071 = vpack.c.b16 %v2003, %v2002
        %v2072 = vpack.c.b16 %v2005, %v2004
        %v2073 = vpack.c.b16 %v2007, %v2006
        %v2074 = vpack.c.b16 %v2009, %v2008
        %v2075 = vpack.c.b16 %v2011, %v2010
        %2140 = vmatprep.subr.bf16.mxu0 0
        %2141 = vmatpush1.bf16.msra.mxu0 %v1620
        %2142 = vmatprep.subr.bf16.mxu0 0
        %2143 = vmatpush1.bf16.msra.mxu0 %v1621
        %2144 = vmatprep.subr.bf16.mxu0 0
        %2145 = vmatpush1.bf16.msra.mxu0 %v1622
        %2146 = vmatprep.subr.bf16.mxu0 0
        %2147 = vmatpush1.bf16.msra.mxu0 %v1623
        %2148 = vmatprep.subr.bf16.mxu0 0
        %2149 = vmatpush1.bf16.msra.mxu0 %v1624
        %2150 = vmatprep.subr.bf16.mxu0 0
        %2151 = vmatpush1.bf16.msra.mxu0 %v1625
        %2152 = vmatprep.subr.bf16.mxu0 0
        %2153 = vmatpush1.bf16.msra.mxu0 %v1626
        %2154 = vmatprep.subr.bf16.mxu0 0
        %2155 = vmatpush1.bf16.msra.mxu0 %v1627
        %2156 = vmatprep.subr.bf16.mxu0 0
        %2157 = vmatpush1.bf16.msra.mxu0 0
        %2158 = vmatprep.subr.bf16.mxu0 0
        %2159 = vmatpush1.bf16.msra.mxu0 0
        %2160 = vmatprep.subr.bf16.mxu0 0
        %2161 = vmatpush1.bf16.msra.mxu0 0
        %2162 = vmatprep.subr.bf16.mxu0 0
        %2163 = vmatpush1.bf16.msra.mxu0 0
        %2164 = vmatprep.subr.bf16.mxu0 0
        %2165 = vmatpush1.bf16.msra.mxu0 0
        %2166 = vmatprep.subr.bf16.mxu0 0
        %2167 = vmatpush1.bf16.msra.mxu0 0
        %2168 = vmatprep.subr.bf16.mxu0 0
        %2169 = vmatpush1.bf16.msra.mxu0 0
        %2170 = vmatprep.subr.bf16.mxu0 0
        %2171 = vmatpush1.bf16.msra.mxu0 0
        %2172 = vmatprep.mubr.bf16.mxu0 0
        %2173 = vmatmul.mubr.bf16.gmra.mrb[0].mxu0 %v2012
        %v2174 = vpop.f32.mrb[0].mxu0
        %v2175 = vadd.f32 0.0, %v2174
        %v2176 = vpop.f32.mrb[0].mxu0
        %v2177 = vpop.f32.mrb[0].mxu0
        %v2178 = vadd.f32 0.0, %v2177
        %v2179 = vpop.f32.mrb[0].mxu0
        %2180 = vmatprep.mubr.bf16.mxu0 0
        %2181 = vmatmul.mubr.bf16.gmra.mrb[0].mxu0 %v2013
        %v2182 = vpop.f32.mrb[0].mxu0
        %v2183 = vadd.f32 0.0, %v2182
        %v2184 = vpop.f32.mrb[0].mxu0
        %v2185 = vpop.f32.mrb[0].mxu0
        %v2186 = vadd.f32 0.0, %v2185
        %v2187 = vpop.f32.mrb[0].mxu0
        %2188 = vmatprep.mubr.bf16.mxu0 0
        %2189 = vmatmul.mubr.bf16.gmra.mrb[0].mxu0 %v2014
        %v2190 = vpop.f32.mrb[0].mxu0
        %v2191 = vadd.f32 0.0, %v2190
        %v2192 = vpop.f32.mrb[0].mxu0
        %v2193 = vpop.f32.mrb[0].mxu0
        %v2194 = vadd.f32 0.0, %v2193
        %v2195 = vpop.f32.mrb[0].mxu0
        %2196 = vmatprep.mubr.bf16.mxu0 0
        %2197 = vmatmul.mubr.bf16.gmra.mrb[0].mxu0 %v2015
        %v2198 = vpop.f32.mrb[0].mxu0
        %v2199 = vadd.f32 0.0, %v2198
        %v2200 = vpop.f32.mrb[0].mxu0
        %v2201 = vpop.f32.mrb[0].mxu0
        %v2202 = vadd.f32 0.0, %v2201
        %v2203 = vpop.f32.mrb[0].mxu0
        %2204 = vmatprep.mubr.bf16.mxu0 0
        %2205 = vmatmul.mubr.bf16.gmra.mrb[0].mxu0 %v2016
        %v2206 = vpop.f32.mrb[0].mxu0
        %v2207 = vadd.f32 0.0, %v2206
        %v2208 = vpop.f32.mrb[0].mxu0
        %v2209 = vpop.f32.mrb[0].mxu0
        %v2210 = vadd.f32 0.0, %v2209
        %v2211 = vpop.f32.mrb[0].mxu0
        %2212 = vmatprep.mubr.bf16.mxu0 0
        %2213 = vmatmul.mubr.bf16.gmra.mrb[0].mxu0 %v2017
        %v2214 = vpop.f32.mrb[0].mxu0
        %v2215 = vadd.f32 0.0, %v2214
        %v2216 = vpop.f32.mrb[0].mxu0
        %v2217 = vpop.f32.mrb[0].mxu0
        %v2218 = vadd.f32 0.0, %v2217
        %v2219 = vpop.f32.mrb[0].mxu0
        %2220 = vmatprep.mubr.bf16.mxu0 0
        %2221 = vmatmul.mubr.bf16.gmra.mrb[0].mxu0 %v2018
        %v2222 = vpop.f32.mrb[0].mxu0
        %v2223 = vadd.f32 0.0, %v2222
        %v2224 = vpop.f32.mrb[0].mxu0
        %v2225 = vpop.f32.mrb[0].mxu0
        %v2226 = vadd.f32 0.0, %v2225
        %v2227 = vpop.f32.mrb[0].mxu0
        %2228 = vmatprep.mubr.bf16.mxu0 0
        %2229 = vmatmul.mubr.bf16.gmra.mrb[0].mxu0 %v2019
        %v2230 = vpop.f32.mrb[0].mxu0
        %v2231 = vadd.f32 0.0, %v2230
        %v2232 = vpop.f32.mrb[0].mxu0
        %v2233 = vpop.f32.mrb[0].mxu0
        %v2234 = vadd.f32 0.0, %v2233
        %v2235 = vpop.f32.mrb[0].mxu0
        %2236 = vmatprep.mubr.bf16.mxu0 0
        %2237 = vmatmul.mubr.bf16.gmra.mrb[0].mxu0 %v2020
        %v2238 = vpop.f32.mrb[0].mxu0
        %v2239 = vadd.f32 0.0, %v2238
        %v2240 = vpop.f32.mrb[0].mxu0
        %v2241 = vpop.f32.mrb[0].mxu0
        %v2242 = vadd.f32 0.0, %v2241
        %v2243 = vpop.f32.mrb[0].mxu0
        %2244 = vmatprep.mubr.bf16.mxu0 0
        %2245 = vmatmul.mubr.bf16.gmra.mrb[0].mxu0 %v2021
        %v2246 = vpop.f32.mrb[0].mxu0
        %v2247 = vadd.f32 0.0, %v2246
        %v2248 = vpop.f32.mrb[0].mxu0
        %v2249 = vpop.f32.mrb[0].mxu0
        %v2250 = vadd.f32 0.0, %v2249
        %v2251 = vpop.f32.mrb[0].mxu0
        %2252 = vmatprep.mubr.bf16.mxu0 0
        %2253 = vmatmul.mubr.bf16.gmra.mrb[0].mxu0 %v2022
        %v2254 = vpop.f32.mrb[0].mxu0
        %v2255 = vadd.f32 0.0, %v2254
        %v2256 = vpop.f32.mrb[0].mxu0
        %v2257 = vpop.f32.mrb[0].mxu0
        %v2258 = vadd.f32 0.0, %v2257
        %v2259 = vpop.f32.mrb[0].mxu0
        %2260 = vmatprep.mubr.bf16.mxu0 0
        %2261 = vmatmul.mubr.bf16.gmra.mrb[0].mxu0 %v2023
        %v2262 = vpop.f32.mrb[0].mxu0
        %v2263 = vadd.f32 0.0, %v2262
        %v2264 = vpop.f32.mrb[0].mxu0
        %v2265 = vpop.f32.mrb[0].mxu0
        %v2266 = vadd.f32 0.0, %v2265
        %v2267 = vpop.f32.mrb[0].mxu0
        %2268 = vmatprep.mubr.bf16.mxu0 0
        %2269 = vmatmul.mubr.bf16.gmra.mrb[0].mxu0 %v2024
        %v2270 = vpop.f32.mrb[0].mxu0
        %v2271 = vadd.f32 0.0, %v2270
        %v2272 = vpop.f32.mrb[0].mxu0
        %v2273 = vpop.f32.mrb[0].mxu0
        %v2274 = vadd.f32 0.0, %v2273
        %v2275 = vpop.f32.mrb[0].mxu0
        %2276 = vmatprep.mubr.bf16.mxu0 0
        %2277 = vmatmul.mubr.bf16.gmra.mrb[0].mxu0 %v2025
        %v2278 = vpop.f32.mrb[0].mxu0
        %v2279 = vadd.f32 0.0, %v2278
        %v2280 = vpop.f32.mrb[0].mxu0
        %v2281 = vpop.f32.mrb[0].mxu0
        %v2282 = vadd.f32 0.0, %v2281
        %v2283 = vpop.f32.mrb[0].mxu0
        %2284 = vmatprep.mubr.bf16.mxu0 0
        %2285 = vmatmul.mubr.bf16.gmra.mrb[0].mxu0 %v2026
        %v2286 = vpop.f32.mrb[0].mxu0
        %v2287 = vadd.f32 0.0, %v2286
        %v2288 = vpop.f32.mrb[0].mxu0
        %v2289 = vpop.f32.mrb[0].mxu0
        %v2290 = vadd.f32 0.0, %v2289
        %v2291 = vpop.f32.mrb[0].mxu0
        %2292 = vmatprep.mubr.bf16.mxu0 0
        %2293 = vmatmul.mubr.bf16.gmra.mrb[0].mxu0 %v2027
        %v2294 = vpop.f32.mrb[0].mxu0
        %v2295 = vadd.f32 0.0, %v2294
        %v2296 = vpop.f32.mrb[0].mxu0
        %v2297 = vpop.f32.mrb[0].mxu0
        %v2298 = vadd.f32 0.0, %v2297
        %v2299 = vpop.f32.mrb[0].mxu0
        %2300 = vmatprep.mubr.bf16.mxu0 0
        %2301 = vmatmul.mubr.bf16.gmra.mrb[0].mxu0 %v2028
        %v2302 = vpop.f32.mrb[0].mxu0
        %v2303 = vadd.f32 0.0, %v2302
        %v2304 = vpop.f32.mrb[0].mxu0
        %v2305 = vpop.f32.mrb[0].mxu0
        %v2306 = vadd.f32 0.0, %v2305
        %v2307 = vpop.f32.mrb[0].mxu0
        %2308 = vmatprep.mubr.bf16.mxu0 0
        %2309 = vmatmul.mubr.bf16.gmra.mrb[0].mxu0 %v2029
        %v2310 = vpop.f32.mrb[0].mxu0
        %v2311 = vadd.f32 0.0, %v2310
        %v2312 = vpop.f32.mrb[0].mxu0
        %v2313 = vpop.f32.mrb[0].mxu0
        %v2314 = vadd.f32 0.0, %v2313
        %v2315 = vpop.f32.mrb[0].mxu0
        %2316 = vmatprep.mubr.bf16.mxu0 0
        %2317 = vmatmul.mubr.bf16.gmra.mrb[0].mxu0 %v2030
        %v2318 = vpop.f32.mrb[0].mxu0
        %v2319 = vadd.f32 0.0, %v2318
        %v2320 = vpop.f32.mrb[0].mxu0
        %v2321 = vpop.f32.mrb[0].mxu0
        %v2322 = vadd.f32 0.0, %v2321
        %v2323 = vpop.f32.mrb[0].mxu0
        %2324 = vmatprep.mubr.bf16.mxu0 0
        %2325 = vmatmul.mubr.bf16.gmra.mrb[0].mxu0 %v2031
        %v2326 = vpop.f32.mrb[0].mxu0
        %v2327 = vadd.f32 0.0, %v2326
        %v2328 = vpop.f32.mrb[0].mxu0
        %v2329 = vpop.f32.mrb[0].mxu0
        %v2330 = vadd.f32 0.0, %v2329
        %v2331 = vpop.f32.mrb[0].mxu0
        %2332 = vmatprep.mubr.bf16.mxu0 0
        %2333 = vmatmul.mubr.bf16.gmra.mrb[0].mxu0 %v2032
        %v2334 = vpop.f32.mrb[0].mxu0
        %v2335 = vadd.f32 0.0, %v2334
        %v2336 = vpop.f32.mrb[0].mxu0
        %v2337 = vpop.f32.mrb[0].mxu0
        %v2338 = vadd.f32 0.0, %v2337
        %v2339 = vpop.f32.mrb[0].mxu0
        %2340 = vmatprep.mubr.bf16.mxu0 0
        %2341 = vmatmul.mubr.bf16.gmra.mrb[0].mxu0 %v2033
        %v2342 = vpop.f32.mrb[0].mxu0
        %v2343 = vadd.f32 0.0, %v2342
        %v2344 = vpop.f32.mrb[0].mxu0
        %v2345 = vpop.f32.mrb[0].mxu0
        %v2346 = vadd.f32 0.0, %v2345
        %v2347 = vpop.f32.mrb[0].mxu0
        %2348 = vmatprep.mubr.bf16.mxu0 0
        %2349 = vmatmul.mubr.bf16.gmra.mrb[0].mxu0 %v2034
        %v2350 = vpop.f32.mrb[0].mxu0
        %v2351 = vadd.f32 0.0, %v2350
        %v2352 = vpop.f32.mrb[0].mxu0
        %v2353 = vpop.f32.mrb[0].mxu0
        %v2354 = vadd.f32 0.0, %v2353
        %v2355 = vpop.f32.mrb[0].mxu0
        %2356 = vmatprep.mubr.bf16.mxu0 0
        %2357 = vmatmul.mubr.bf16.gmra.mrb[0].mxu0 %v2035
        %v2358 = vpop.f32.mrb[0].mxu0
        %v2359 = vadd.f32 0.0, %v2358
        %v2360 = vpop.f32.mrb[0].mxu0
        %v2361 = vpop.f32.mrb[0].mxu0
        %v2362 = vadd.f32 0.0, %v2361
        %v2363 = vpop.f32.mrb[0].mxu0
        %2364 = vmatprep.mubr.bf16.mxu0 0
        %2365 = vmatmul.mubr.bf16.gmra.mrb[0].mxu0 %v2036
        %v2366 = vpop.f32.mrb[0].mxu0
        %v2367 = vadd.f32 0.0, %v2366
        %v2368 = vpop.f32.mrb[0].mxu0
        %v2369 = vpop.f32.mrb[0].mxu0
        %v2370 = vadd.f32 0.0, %v2369
        %v2371 = vpop.f32.mrb[0].mxu0
        %2372 = vmatprep.mubr.bf16.mxu0 0
        %2373 = vmatmul.mubr.bf16.gmra.mrb[0].mxu0 %v2037
        %v2374 = vpop.f32.mrb[0].mxu0
        %v2375 = vadd.f32 0.0, %v2374
        %v2376 = vpop.f32.mrb[0].mxu0
        %v2377 = vpop.f32.mrb[0].mxu0
        %v2378 = vadd.f32 0.0, %v2377
        %v2379 = vpop.f32.mrb[0].mxu0
        %2380 = vmatprep.mubr.bf16.mxu0 0
        %2381 = vmatmul.mubr.bf16.gmra.mrb[0].mxu0 %v2038
        %v2382 = vpop.f32.mrb[0].mxu0
        %v2383 = vadd.f32 0.0, %v2382
        %v2384 = vpop.f32.mrb[0].mxu0
        %v2385 = vpop.f32.mrb[0].mxu0
        %v2386 = vadd.f32 0.0, %v2385
        %v2387 = vpop.f32.mrb[0].mxu0
        %2388 = vmatprep.mubr.bf16.mxu0 0
        %2389 = vmatmul.mubr.bf16.gmra.mrb[0].mxu0 %v2039
        %v2390 = vpop.f32.mrb[0].mxu0
        %v2391 = vadd.f32 0.0, %v2390
        %v2392 = vpop.f32.mrb[0].mxu0
        %v2393 = vpop.f32.mrb[0].mxu0
        %v2394 = vadd.f32 0.0, %v2393
        %v2395 = vpop.f32.mrb[0].mxu0
        %2396 = vmatprep.mubr.bf16.mxu0 0
        %2397 = vmatmul.mubr.bf16.gmra.mrb[0].mxu0 %v2040
        %v2398 = vpop.f32.mrb[0].mxu0
        %v2399 = vadd.f32 0.0, %v2398
        %v2400 = vpop.f32.mrb[0].mxu0
        %v2401 = vpop.f32.mrb[0].mxu0
        %v2402 = vadd.f32 0.0, %v2401
        %v2403 = vpop.f32.mrb[0].mxu0
        %2404 = vmatprep.mubr.bf16.mxu0 0
        %2405 = vmatmul.mubr.bf16.gmra.mrb[0].mxu0 %v2041
        %v2406 = vpop.f32.mrb[0].mxu0
        %v2407 = vadd.f32 0.0, %v2406
        %v2408 = vpop.f32.mrb[0].mxu0
        %v2409 = vpop.f32.mrb[0].mxu0
        %v2410 = vadd.f32 0.0, %v2409
        %v2411 = vpop.f32.mrb[0].mxu0
        %2412 = vmatprep.mubr.bf16.mxu0 0
        %2413 = vmatmul.mubr.bf16.gmra.mrb[0].mxu0 %v2042
        %v2414 = vpop.f32.mrb[0].mxu0
        %v2415 = vadd.f32 0.0, %v2414
        %v2416 = vpop.f32.mrb[0].mxu0
        %v2417 = vpop.f32.mrb[0].mxu0
        %v2418 = vadd.f32 0.0, %v2417
        %v2419 = vpop.f32.mrb[0].mxu0
        %2420 = vmatprep.mubr.bf16.mxu0 0
        %2421 = vmatmul.mubr.bf16.gmra.mrb[0].mxu0 %v2043
        %v2422 = vpop.f32.mrb[0].mxu0
        %v2423 = vadd.f32 0.0, %v2422
        %v2424 = vpop.f32.mrb[0].mxu0
        %v2425 = vpop.f32.mrb[0].mxu0
        %v2426 = vadd.f32 0.0, %v2425
        %v2427 = vpop.f32.mrb[0].mxu0
        %2428 = vmatprep.mubr.bf16.mxu0 0
        %2429 = vmatmul.mubr.bf16.gmra.mrb[0].mxu0 %v2044
        %v2430 = vpop.f32.mrb[0].mxu0
        %v2431 = vadd.f32 0.0, %v2430
        %v2432 = vpop.f32.mrb[0].mxu0
        %v2433 = vpop.f32.mrb[0].mxu0
        %v2434 = vadd.f32 0.0, %v2433
        %v2435 = vpop.f32.mrb[0].mxu0
        %2436 = vmatprep.mubr.bf16.mxu0 0
        %2437 = vmatmul.mubr.bf16.gmra.mrb[0].mxu0 %v2045
        %v2438 = vpop.f32.mrb[0].mxu0
        %v2439 = vadd.f32 0.0, %v2438
        %v2440 = vpop.f32.mrb[0].mxu0
        %v2441 = vpop.f32.mrb[0].mxu0
        %v2442 = vadd.f32 0.0, %v2441
        %v2443 = vpop.f32.mrb[0].mxu0
        %2444 = vmatprep.mubr.bf16.mxu0 0
        %2445 = vmatmul.mubr.bf16.gmra.mrb[0].mxu0 %v2046
        %v2446 = vpop.f32.mrb[0].mxu0
        %v2447 = vadd.f32 0.0, %v2446
        %v2448 = vpop.f32.mrb[0].mxu0
        %v2449 = vpop.f32.mrb[0].mxu0
        %v2450 = vadd.f32 0.0, %v2449
        %v2451 = vpop.f32.mrb[0].mxu0
        %2452 = vmatprep.mubr.bf16.mxu0 0
        %2453 = vmatmul.mubr.bf16.gmra.mrb[0].mxu0 %v2047
        %v2454 = vpop.f32.mrb[0].mxu0
        %v2455 = vadd.f32 0.0, %v2454
        %v2456 = vpop.f32.mrb[0].mxu0
        %v2457 = vpop.f32.mrb[0].mxu0
        %v2458 = vadd.f32 0.0, %v2457
        %v2459 = vpop.f32.mrb[0].mxu0
        %2460 = vmatprep.mubr.bf16.mxu0 0
        %2461 = vmatmul.mubr.bf16.gmra.mrb[0].mxu0 %v2048
        %v2462 = vpop.f32.mrb[0].mxu0
        %v2463 = vadd.f32 0.0, %v2462
        %v2464 = vpop.f32.mrb[0].mxu0
        %v2465 = vpop.f32.mrb[0].mxu0
        %v2466 = vadd.f32 0.0, %v2465
        %v2467 = vpop.f32.mrb[0].mxu0
        %2468 = vmatprep.mubr.bf16.mxu0 0
        %2469 = vmatmul.mubr.bf16.gmra.mrb[0].mxu0 %v2049
        %v2470 = vpop.f32.mrb[0].mxu0
        %v2471 = vadd.f32 0.0, %v2470
        %v2472 = vpop.f32.mrb[0].mxu0
        %v2473 = vpop.f32.mrb[0].mxu0
        %v2474 = vadd.f32 0.0, %v2473
        %v2475 = vpop.f32.mrb[0].mxu0
        %2476 = vmatprep.mubr.bf16.mxu0 0
        %2477 = vmatmul.mubr.bf16.gmra.mrb[0].mxu0 %v2050
        %v2478 = vpop.f32.mrb[0].mxu0
        %v2479 = vadd.f32 0.0, %v2478
        %v2480 = vpop.f32.mrb[0].mxu0
        %v2481 = vpop.f32.mrb[0].mxu0
        %v2482 = vadd.f32 0.0, %v2481
        %v2483 = vpop.f32.mrb[0].mxu0
        %2484 = vmatprep.mubr.bf16.mxu0 0
        %2485 = vmatmul.mubr.bf16.gmra.mrb[0].mxu0 %v2051
        %v2486 = vpop.f32.mrb[0].mxu0
        %v2487 = vadd.f32 0.0, %v2486
        %v2488 = vpop.f32.mrb[0].mxu0
        %v2489 = vpop.f32.mrb[0].mxu0
        %v2490 = vadd.f32 0.0, %v2489
        %v2491 = vpop.f32.mrb[0].mxu0
        %2492 = vmatprep.mubr.bf16.mxu0 0
        %2493 = vmatmul.mubr.bf16.gmra.mrb[0].mxu0 %v2052
        %v2494 = vpop.f32.mrb[0].mxu0
        %v2495 = vadd.f32 0.0, %v2494
        %v2496 = vpop.f32.mrb[0].mxu0
        %v2497 = vpop.f32.mrb[0].mxu0
        %v2498 = vadd.f32 0.0, %v2497
        %v2499 = vpop.f32.mrb[0].mxu0
        %2500 = vmatprep.mubr.bf16.mxu0 0
        %2501 = vmatmul.mubr.bf16.gmra.mrb[0].mxu0 %v2053
        %v2502 = vpop.f32.mrb[0].mxu0
        %v2503 = vadd.f32 0.0, %v2502
        %v2504 = vpop.f32.mrb[0].mxu0
        %v2505 = vpop.f32.mrb[0].mxu0
        %v2506 = vadd.f32 0.0, %v2505
        %v2507 = vpop.f32.mrb[0].mxu0
        %2508 = vmatprep.mubr.bf16.mxu0 0
        %2509 = vmatmul.mubr.bf16.gmra.mrb[0].mxu0 %v2054
        %v2510 = vpop.f32.mrb[0].mxu0
        %v2511 = vadd.f32 0.0, %v2510
        %v2512 = vpop.f32.mrb[0].mxu0
        %v2513 = vpop.f32.mrb[0].mxu0
        %v2514 = vadd.f32 0.0, %v2513
        %v2515 = vpop.f32.mrb[0].mxu0
        %2516 = vmatprep.mubr.bf16.mxu0 0
        %2517 = vmatmul.mubr.bf16.gmra.mrb[0].mxu0 %v2055
        %v2518 = vpop.f32.mrb[0].mxu0
        %v2519 = vadd.f32 0.0, %v2518
        %v2520 = vpop.f32.mrb[0].mxu0
        %v2521 = vpop.f32.mrb[0].mxu0
        %v2522 = vadd.f32 0.0, %v2521
        %v2523 = vpop.f32.mrb[0].mxu0
        %2524 = vmatprep.mubr.bf16.mxu0 0
        %2525 = vmatmul.mubr.bf16.gmra.mrb[0].mxu0 %v2056
        %v2526 = vpop.f32.mrb[0].mxu0
        %v2527 = vadd.f32 0.0, %v2526
        %v2528 = vpop.f32.mrb[0].mxu0
        %v2529 = vpop.f32.mrb[0].mxu0
        %v2530 = vadd.f32 0.0, %v2529
        %v2531 = vpop.f32.mrb[0].mxu0
        %2532 = vmatprep.mubr.bf16.mxu0 0
        %2533 = vmatmul.mubr.bf16.gmra.mrb[0].mxu0 %v2057
        %v2534 = vpop.f32.mrb[0].mxu0
        %v2535 = vadd.f32 0.0, %v2534
        %v2536 = vpop.f32.mrb[0].mxu0
        %v2537 = vpop.f32.mrb[0].mxu0
        %v2538 = vadd.f32 0.0, %v2537
        %v2539 = vpop.f32.mrb[0].mxu0
        %2540 = vmatprep.mubr.bf16.mxu0 0
        %2541 = vmatmul.mubr.bf16.gmra.mrb[0].mxu0 %v2058
        %v2542 = vpop.f32.mrb[0].mxu0
        %v2543 = vadd.f32 0.0, %v2542
        %v2544 = vpop.f32.mrb[0].mxu0
        %v2545 = vpop.f32.mrb[0].mxu0
        %v2546 = vadd.f32 0.0, %v2545
        %v2547 = vpop.f32.mrb[0].mxu0
        %2548 = vmatprep.mubr.bf16.mxu0 0
        %2549 = vmatmul.mubr.bf16.gmra.mrb[0].mxu0 %v2059
        %v2550 = vpop.f32.mrb[0].mxu0
        %v2551 = vadd.f32 0.0, %v2550
        %v2552 = vpop.f32.mrb[0].mxu0
        %v2553 = vpop.f32.mrb[0].mxu0
        %v2554 = vadd.f32 0.0, %v2553
        %v2555 = vpop.f32.mrb[0].mxu0
        %2556 = vmatprep.mubr.bf16.mxu0 0
        %2557 = vmatmul.mubr.bf16.gmra.mrb[0].mxu0 %v2060
        %v2558 = vpop.f32.mrb[0].mxu0
        %v2559 = vadd.f32 0.0, %v2558
        %v2560 = vpop.f32.mrb[0].mxu0
        %v2561 = vpop.f32.mrb[0].mxu0
        %v2562 = vadd.f32 0.0, %v2561
        %v2563 = vpop.f32.mrb[0].mxu0
        %2564 = vmatprep.mubr.bf16.mxu0 0
        %2565 = vmatmul.mubr.bf16.gmra.mrb[0].mxu0 %v2061
        %v2566 = vpop.f32.mrb[0].mxu0
        %v2567 = vadd.f32 0.0, %v2566
        %v2568 = vpop.f32.mrb[0].mxu0
        %v2569 = vpop.f32.mrb[0].mxu0
        %v2570 = vadd.f32 0.0, %v2569
        %v2571 = vpop.f32.mrb[0].mxu0
        %2572 = vmatprep.mubr.bf16.mxu0 0
        %2573 = vmatmul.mubr.bf16.gmra.mrb[0].mxu0 %v2062
        %v2574 = vpop.f32.mrb[0].mxu0
        %v2575 = vadd.f32 0.0, %v2574
        %v2576 = vpop.f32.mrb[0].mxu0
        %v2577 = vpop.f32.mrb[0].mxu0
        %v2578 = vadd.f32 0.0, %v2577
        %v2579 = vpop.f32.mrb[0].mxu0
        %2580 = vmatprep.mubr.bf16.mxu0 0
        %2581 = vmatmul.mubr.bf16.gmra.mrb[0].mxu0 %v2063
        %v2582 = vpop.f32.mrb[0].mxu0
        %v2583 = vadd.f32 0.0, %v2582
        %v2584 = vpop.f32.mrb[0].mxu0
        %v2585 = vpop.f32.mrb[0].mxu0
        %v2586 = vadd.f32 0.0, %v2585
        %v2587 = vpop.f32.mrb[0].mxu0
        %2588 = vmatprep.mubr.bf16.mxu0 0
        %2589 = vmatmul.mubr.bf16.gmra.mrb[0].mxu0 %v2064
        %v2590 = vpop.f32.mrb[0].mxu0
        %v2591 = vadd.f32 0.0, %v2590
        %v2592 = vpop.f32.mrb[0].mxu0
        %v2593 = vpop.f32.mrb[0].mxu0
        %v2594 = vadd.f32 0.0, %v2593
        %v2595 = vpop.f32.mrb[0].mxu0
        %2596 = vmatprep.mubr.bf16.mxu0 0
        %2597 = vmatmul.mubr.bf16.gmra.mrb[0].mxu0 %v2065
        %v2598 = vpop.f32.mrb[0].mxu0
        %v2599 = vadd.f32 0.0, %v2598
        %v2600 = vpop.f32.mrb[0].mxu0
        %v2601 = vpop.f32.mrb[0].mxu0
        %v2602 = vadd.f32 0.0, %v2601
        %v2603 = vpop.f32.mrb[0].mxu0
        %2604 = vmatprep.mubr.bf16.mxu0 0
        %2605 = vmatmul.mubr.bf16.gmra.mrb[0].mxu0 %v2066
        %v2606 = vpop.f32.mrb[0].mxu0
        %v2607 = vadd.f32 0.0, %v2606
        %v2608 = vpop.f32.mrb[0].mxu0
        %v2609 = vpop.f32.mrb[0].mxu0
        %v2610 = vadd.f32 0.0, %v2609
        %v2611 = vpop.f32.mrb[0].mxu0
        %2612 = vmatprep.mubr.bf16.mxu0 0
        %2613 = vmatmul.mubr.bf16.gmra.mrb[0].mxu0 %v2067
        %v2614 = vpop.f32.mrb[0].mxu0
        %v2615 = vadd.f32 0.0, %v2614
        %v2616 = vpop.f32.mrb[0].mxu0
        %v2617 = vpop.f32.mrb[0].mxu0
        %v2618 = vadd.f32 0.0, %v2617
        %v2619 = vpop.f32.mrb[0].mxu0
        %2620 = vmatprep.mubr.bf16.mxu0 0
        %2621 = vmatmul.mubr.bf16.gmra.mrb[0].mxu0 %v2068
        %v2622 = vpop.f32.mrb[0].mxu0
        %v2623 = vadd.f32 0.0, %v2622
        %v2624 = vpop.f32.mrb[0].mxu0
        %v2625 = vpop.f32.mrb[0].mxu0
        %v2626 = vadd.f32 0.0, %v2625
        %v2627 = vpop.f32.mrb[0].mxu0
        %2628 = vmatprep.mubr.bf16.mxu0 0
        %2629 = vmatmul.mubr.bf16.gmra.mrb[0].mxu0 %v2069
        %v2630 = vpop.f32.mrb[0].mxu0
        %v2631 = vadd.f32 0.0, %v2630
        %v2632 = vpop.f32.mrb[0].mxu0
        %v2633 = vpop.f32.mrb[0].mxu0
        %v2634 = vadd.f32 0.0, %v2633
        %v2635 = vpop.f32.mrb[0].mxu0
        %2636 = vmatprep.mubr.bf16.mxu0 0
        %2637 = vmatmul.mubr.bf16.gmra.mrb[0].mxu0 %v2070
        %v2638 = vpop.f32.mrb[0].mxu0
        %v2639 = vadd.f32 0.0, %v2638
        %v2640 = vpop.f32.mrb[0].mxu0
        %v2641 = vpop.f32.mrb[0].mxu0
        %v2642 = vadd.f32 0.0, %v2641
        %v2643 = vpop.f32.mrb[0].mxu0
        %2644 = vmatprep.mubr.bf16.mxu0 0
        %2645 = vmatmul.mubr.bf16.gmra.mrb[0].mxu0 %v2071
        %v2646 = vpop.f32.mrb[0].mxu0
        %v2647 = vadd.f32 0.0, %v2646
        %v2648 = vpop.f32.mrb[0].mxu0
        %v2649 = vpop.f32.mrb[0].mxu0
        %v2650 = vadd.f32 0.0, %v2649
        %v2651 = vpop.f32.mrb[0].mxu0
        %2652 = vmatprep.mubr.bf16.mxu0 0
        %2653 = vmatmul.mubr.bf16.gmra.mrb[0].mxu0 %v2072
        %v2654 = vpop.f32.mrb[0].mxu0
        %v2655 = vadd.f32 0.0, %v2654
        %v2656 = vpop.f32.mrb[0].mxu0
        %v2657 = vpop.f32.mrb[0].mxu0
        %v2658 = vadd.f32 0.0, %v2657
        %v2659 = vpop.f32.mrb[0].mxu0
        %2660 = vmatprep.mubr.bf16.mxu0 0
        %2661 = vmatmul.mubr.bf16.gmra.mrb[0].mxu0 %v2073
        %v2662 = vpop.f32.mrb[0].mxu0
        %v2663 = vadd.f32 0.0, %v2662
        %v2664 = vpop.f32.mrb[0].mxu0
        %v2665 = vpop.f32.mrb[0].mxu0
        %v2666 = vadd.f32 0.0, %v2665
        %v2667 = vpop.f32.mrb[0].mxu0
        %2668 = vmatprep.mubr.bf16.mxu0 0
        %2669 = vmatmul.mubr.bf16.gmra.mrb[0].mxu0 %v2074
        %v2670 = vpop.f32.mrb[0].mxu0
        %v2671 = vadd.f32 0.0, %v2670
        %v2672 = vpop.f32.mrb[0].mxu0
        %v2673 = vpop.f32.mrb[0].mxu0
        %v2674 = vadd.f32 0.0, %v2673
        %v2675 = vpop.f32.mrb[0].mxu0
        %2676 = vmatprep.mubr.bf16.mxu0 0
        %2677 = vmatmul.mubr.bf16.gmra.mrb[0].mxu0 %v2075
        %v2678 = vpop.f32.mrb[0].mxu0
        %v2679 = vadd.f32 0.0, %v2678
        %v2680 = vpop.f32.mrb[0].mxu0
        %v2681 = vpop.f32.mrb[0].mxu0
        %v2682 = vadd.f32 0.0, %v2681
        %v2683 = vpop.f32.mrb[0].mxu0
        %2684 = vdwg.mxu0
        %v2685 = vld [vmem:[#allocation2] sm:$0xff]
        %v2686 = vld [vmem:[#allocation2 + $0x8] sm:$0xff]
        %v2687 = vld [vmem:[#allocation2 + $0x10] sm:$0xff]
        %v2688 = vld [vmem:[#allocation2 + $0x18] sm:$0xff]
        %v2689 = vld [vmem:[#allocation2 + $0x20] sm:$0xff]
        %v2690 = vld [vmem:[#allocation2 + $0x28] sm:$0xff]
        %v2691 = vld [vmem:[#allocation2 + $0x30] sm:$0xff]
        %v2692 = vld [vmem:[#allocation2 + $0x38] sm:$0xff]
        %v2693 = vld [vmem:[#allocation2 + $0x40] sm:$0xff]
        %v2694 = vld [vmem:[#allocation2 + $0x48] sm:$0xff]
        %v2695 = vld [vmem:[#allocation2 + $0x50] sm:$0xff]
        %v2696 = vld [vmem:[#allocation2 + $0x58] sm:$0xff]
        %v2697 = vld [vmem:[#allocation2 + $0x60] sm:$0xff]
        %v2698 = vld [vmem:[#allocation2 + $0x68] sm:$0xff]
        %v2699 = vld [vmem:[#allocation2 + $0x70] sm:$0xff]
        %v2700 = vld [vmem:[#allocation2 + $0x78] sm:$0xff]
        %v2701 = vld [vmem:[#allocation2 + $0x80] sm:$0xff]
        %v2702 = vld [vmem:[#allocation2 + $0x88] sm:$0xff]
        %v2703 = vld [vmem:[#allocation2 + $0x90] sm:$0xff]
        %v2704 = vld [vmem:[#allocation2 + $0x98] sm:$0xff]
        %v2705 = vld [vmem:[#allocation2 + $0xa0] sm:$0xff]
        %v2706 = vld [vmem:[#allocation2 + $0xa8] sm:$0xff]
        %v2707 = vld [vmem:[#allocation2 + $0xb0] sm:$0xff]
        %v2708 = vld [vmem:[#allocation2 + $0xb8] sm:$0xff]
        %v2709 = vld [vmem:[#allocation2 + $0xc0] sm:$0xff]
        %v2710 = vld [vmem:[#allocation2 + $0xc8] sm:$0xff]
        %v2711 = vld [vmem:[#allocation2 + $0xd0] sm:$0xff]
        %v2712 = vld [vmem:[#allocation2 + $0xd8] sm:$0xff]
        %v2713 = vld [vmem:[#allocation2 + $0xe0] sm:$0xff]
        %v2714 = vld [vmem:[#allocation2 + $0xe8] sm:$0xff]
        %v2715 = vld [vmem:[#allocation2 + $0xf0] sm:$0xff]
        %v2716 = vld [vmem:[#allocation2 + $0xf8] sm:$0xff]
        %v2717 = vld [vmem:[#allocation2 + $0x100] sm:$0xff]
        %v2718 = vld [vmem:[#allocation2 + $0x108] sm:$0xff]
        %v2719 = vld [vmem:[#allocation2 + $0x110] sm:$0xff]
        %v2720 = vld [vmem:[#allocation2 + $0x118] sm:$0xff]
        %v2721 = vld [vmem:[#allocation2 + $0x120] sm:$0xff]
        %v2722 = vld [vmem:[#allocation2 + $0x128] sm:$0xff]
        %v2723 = vld [vmem:[#allocation2 + $0x130] sm:$0xff]
        %v2724 = vld [vmem:[#allocation2 + $0x138] sm:$0xff]
        %v2725 = vld [vmem:[#allocation2 + $0x140] sm:$0xff]
        %v2726 = vld [vmem:[#allocation2 + $0x148] sm:$0xff]
        %v2727 = vld [vmem:[#allocation2 + $0x150] sm:$0xff]
        %v2728 = vld [vmem:[#allocation2 + $0x158] sm:$0xff]
        %v2729 = vld [vmem:[#allocation2 + $0x160] sm:$0xff]
        %v2730 = vld [vmem:[#allocation2 + $0x168] sm:$0xff]
        %v2731 = vld [vmem:[#allocation2 + $0x170] sm:$0xff]
        %v2732 = vld [vmem:[#allocation2 + $0x178] sm:$0xff]
        %v2733 = vld [vmem:[#allocation2 + $0x180] sm:$0xff]
        %v2734 = vld [vmem:[#allocation2 + $0x188] sm:$0xff]
        %v2735 = vld [vmem:[#allocation2 + $0x190] sm:$0xff]
        %v2736 = vld [vmem:[#allocation2 + $0x198] sm:$0xff]
        %v2737 = vld [vmem:[#allocation2 + $0x1a0] sm:$0xff]
        %v2738 = vld [vmem:[#allocation2 + $0x1a8] sm:$0xff]
        %v2739 = vld [vmem:[#allocation2 + $0x1b0] sm:$0xff]
        %v2740 = vld [vmem:[#allocation2 + $0x1b8] sm:$0xff]
        %v2741 = vld [vmem:[#allocation2 + $0x1c0] sm:$0xff]
        %v2742 = vld [vmem:[#allocation2 + $0x1c8] sm:$0xff]
        %v2743 = vld [vmem:[#allocation2 + $0x1d0] sm:$0xff]
        %v2744 = vld [vmem:[#allocation2 + $0x1d8] sm:$0xff]
        %v2745 = vld [vmem:[#allocation2 + $0x1e0] sm:$0xff]
        %v2746 = vld [vmem:[#allocation2 + $0x1e8] sm:$0xff]
        %v2747 = vld [vmem:[#allocation2 + $0x1f0] sm:$0xff]
        %v2748 = vld [vmem:[#allocation2 + $0x1f8] sm:$0xff]
        %v2749 = vld [vmem:[#allocation2 + $0x200] sm:$0xff]
        %v2750 = vld [vmem:[#allocation2 + $0x208] sm:$0xff]
        %v2751 = vld [vmem:[#allocation2 + $0x210] sm:$0xff]
        %v2752 = vld [vmem:[#allocation2 + $0x218] sm:$0xff]
        %v2753 = vld [vmem:[#allocation2 + $0x220] sm:$0xff]
        %v2754 = vld [vmem:[#allocation2 + $0x228] sm:$0xff]
        %v2755 = vld [vmem:[#allocation2 + $0x230] sm:$0xff]
        %v2756 = vld [vmem:[#allocation2 + $0x238] sm:$0xff]
        %v2757 = vld [vmem:[#allocation2 + $0x240] sm:$0xff]
        %v2758 = vld [vmem:[#allocation2 + $0x248] sm:$0xff]
        %v2759 = vld [vmem:[#allocation2 + $0x250] sm:$0xff]
        %v2760 = vld [vmem:[#allocation2 + $0x258] sm:$0xff]
        %v2761 = vld [vmem:[#allocation2 + $0x260] sm:$0xff]
        %v2762 = vld [vmem:[#allocation2 + $0x268] sm:$0xff]
        %v2763 = vld [vmem:[#allocation2 + $0x270] sm:$0xff]
        %v2764 = vld [vmem:[#allocation2 + $0x278] sm:$0xff]
        %v2765 = vld [vmem:[#allocation2 + $0x280] sm:$0xff]
        %v2766 = vld [vmem:[#allocation2 + $0x288] sm:$0xff]
        %v2767 = vld [vmem:[#allocation2 + $0x290] sm:$0xff]
        %v2768 = vld [vmem:[#allocation2 + $0x298] sm:$0xff]
        %v2769 = vld [vmem:[#allocation2 + $0x2a0] sm:$0xff]
        %v2770 = vld [vmem:[#allocation2 + $0x2a8] sm:$0xff]
        %v2771 = vld [vmem:[#allocation2 + $0x2b0] sm:$0xff]
        %v2772 = vld [vmem:[#allocation2 + $0x2b8] sm:$0xff]
        %v2773 = vld [vmem:[#allocation2 + $0x2c0] sm:$0xff]
        %v2774 = vld [vmem:[#allocation2 + $0x2c8] sm:$0xff]
        %v2775 = vld [vmem:[#allocation2 + $0x2d0] sm:$0xff]
        %v2776 = vld [vmem:[#allocation2 + $0x2d8] sm:$0xff]
        %v2777 = vld [vmem:[#allocation2 + $0x2e0] sm:$0xff]
        %v2778 = vld [vmem:[#allocation2 + $0x2e8] sm:$0xff]
        %v2779 = vld [vmem:[#allocation2 + $0x2f0] sm:$0xff]
        %v2780 = vld [vmem:[#allocation2 + $0x2f8] sm:$0xff]
        %v2781 = vld [vmem:[#allocation2 + $0x300] sm:$0xff]
        %v2782 = vld [vmem:[#allocation2 + $0x308] sm:$0xff]
        %v2783 = vld [vmem:[#allocation2 + $0x310] sm:$0xff]
        %v2784 = vld [vmem:[#allocation2 + $0x318] sm:$0xff]
        %v2785 = vld [vmem:[#allocation2 + $0x320] sm:$0xff]
        %v2786 = vld [vmem:[#allocation2 + $0x328] sm:$0xff]
        %v2787 = vld [vmem:[#allocation2 + $0x330] sm:$0xff]
        %v2788 = vld [vmem:[#allocation2 + $0x338] sm:$0xff]
        %v2789 = vld [vmem:[#allocation2 + $0x340] sm:$0xff]
        %v2790 = vld [vmem:[#allocation2 + $0x348] sm:$0xff]
        %v2791 = vld [vmem:[#allocation2 + $0x350] sm:$0xff]
        %v2792 = vld [vmem:[#allocation2 + $0x358] sm:$0xff]
        %v2793 = vld [vmem:[#allocation2 + $0x360] sm:$0xff]
        %v2794 = vld [vmem:[#allocation2 + $0x368] sm:$0xff]
        %v2795 = vld [vmem:[#allocation2 + $0x370] sm:$0xff]
        %v2796 = vld [vmem:[#allocation2 + $0x378] sm:$0xff]
        %v2797 = vld [vmem:[#allocation2 + $0x380] sm:$0xff]
        %v2798 = vld [vmem:[#allocation2 + $0x388] sm:$0xff]
        %v2799 = vld [vmem:[#allocation2 + $0x390] sm:$0xff]
        %v2800 = vld [vmem:[#allocation2 + $0x398] sm:$0xff]
        %v2801 = vld [vmem:[#allocation2 + $0x3a0] sm:$0xff]
        %v2802 = vld [vmem:[#allocation2 + $0x3a8] sm:$0xff]
        %v2803 = vld [vmem:[#allocation2 + $0x3b0] sm:$0xff]
        %v2804 = vld [vmem:[#allocation2 + $0x3b8] sm:$0xff]
        %v2805 = vld [vmem:[#allocation2 + $0x3c0] sm:$0xff]
        %v2806 = vld [vmem:[#allocation2 + $0x3c8] sm:$0xff]
        %v2807 = vld [vmem:[#allocation2 + $0x3d0] sm:$0xff]
        %v2808 = vld [vmem:[#allocation2 + $0x3d8] sm:$0xff]
        %v2809 = vld [vmem:[#allocation2 + $0x3e0] sm:$0xff]
        %v2810 = vld [vmem:[#allocation2 + $0x3e8] sm:$0xff]
        %v2811 = vld [vmem:[#allocation2 + $0x3f0] sm:$0xff]
        %v2812 = vld [vmem:[#allocation2 + $0x3f8] sm:$0xff]
        %v2813 = vmax.f32 %v2685, %v2175
        %v2814 = vmax.f32 %v2686, %v2178
        %v2815 = vmax.f32 %v2687, %v2183
        %v2816 = vmax.f32 %v2688, %v2186
        %v2817 = vmax.f32 %v2689, %v2191
        %v2818 = vmax.f32 %v2690, %v2194
        %v2819 = vmax.f32 %v2691, %v2199
        %v2820 = vmax.f32 %v2692, %v2202
        %v2821 = vmax.f32 %v2693, %v2207
        %v2822 = vmax.f32 %v2694, %v2210
        %v2823 = vmax.f32 %v2695, %v2215
        %v2824 = vmax.f32 %v2696, %v2218
        %v2825 = vmax.f32 %v2697, %v2223
        %v2826 = vmax.f32 %v2698, %v2226
        %v2827 = vmax.f32 %v2699, %v2231
        %v2828 = vmax.f32 %v2700, %v2234
        %v2829 = vmax.f32 %v2701, %v2239
        %v2830 = vmax.f32 %v2702, %v2242
        %v2831 = vmax.f32 %v2703, %v2247
        %v2832 = vmax.f32 %v2704, %v2250
        %v2833 = vmax.f32 %v2705, %v2255
        %v2834 = vmax.f32 %v2706, %v2258
        %v2835 = vmax.f32 %v2707, %v2263
        %v2836 = vmax.f32 %v2708, %v2266
        %v2837 = vmax.f32 %v2709, %v2271
        %v2838 = vmax.f32 %v2710, %v2274
        %v2839 = vmax.f32 %v2711, %v2279
        %v2840 = vmax.f32 %v2712, %v2282
        %v2841 = vmax.f32 %v2713, %v2287
        %v2842 = vmax.f32 %v2714, %v2290
        %v2843 = vmax.f32 %v2715, %v2295
        %v2844 = vmax.f32 %v2716, %v2298
        %v2845 = vmax.f32 %v2717, %v2303
        %v2846 = vmax.f32 %v2718, %v2306
        %v2847 = vmax.f32 %v2719, %v2311
        %v2848 = vmax.f32 %v2720, %v2314
        %v2849 = vmax.f32 %v2721, %v2319
        %v2850 = vmax.f32 %v2722, %v2322
        %v2851 = vmax.f32 %v2723, %v2327
        %v2852 = vmax.f32 %v2724, %v2330
        %v2853 = vmax.f32 %v2725, %v2335
        %v2854 = vmax.f32 %v2726, %v2338
        %v2855 = vmax.f32 %v2727, %v2343
        %v2856 = vmax.f32 %v2728, %v2346
        %v2857 = vmax.f32 %v2729, %v2351
        %v2858 = vmax.f32 %v2730, %v2354
        %v2859 = vmax.f32 %v2731, %v2359
        %v2860 = vmax.f32 %v2732, %v2362
        %v2861 = vmax.f32 %v2733, %v2367
        %v2862 = vmax.f32 %v2734, %v2370
        %v2863 = vmax.f32 %v2735, %v2375
        %v2864 = vmax.f32 %v2736, %v2378
        %v2865 = vmax.f32 %v2737, %v2383
        %v2866 = vmax.f32 %v2738, %v2386
        %v2867 = vmax.f32 %v2739, %v2391
        %v2868 = vmax.f32 %v2740, %v2394
        %v2869 = vmax.f32 %v2741, %v2399
        %v2870 = vmax.f32 %v2742, %v2402
        %v2871 = vmax.f32 %v2743, %v2407
        %v2872 = vmax.f32 %v2744, %v2410
        %v2873 = vmax.f32 %v2745, %v2415
        %v2874 = vmax.f32 %v2746, %v2418
        %v2875 = vmax.f32 %v2747, %v2423
        %v2876 = vmax.f32 %v2748, %v2426
        %v2877 = vmax.f32 %v2749, %v2431
        %v2878 = vmax.f32 %v2750, %v2434
        %v2879 = vmax.f32 %v2751, %v2439
        %v2880 = vmax.f32 %v2752, %v2442
        %v2881 = vmax.f32 %v2753, %v2447
        %v2882 = vmax.f32 %v2754, %v2450
        %v2883 = vmax.f32 %v2755, %v2455
        %v2884 = vmax.f32 %v2756, %v2458
        %v2885 = vmax.f32 %v2757, %v2463
        %v2886 = vmax.f32 %v2758, %v2466
        %v2887 = vmax.f32 %v2759, %v2471
        %v2888 = vmax.f32 %v2760, %v2474
        %v2889 = vmax.f32 %v2761, %v2479
        %v2890 = vmax.f32 %v2762, %v2482
        %v2891 = vmax.f32 %v2763, %v2487
        %v2892 = vmax.f32 %v2764, %v2490
        %v2893 = vmax.f32 %v2765, %v2495
        %v2894 = vmax.f32 %v2766, %v2498
        %v2895 = vmax.f32 %v2767, %v2503
        %v2896 = vmax.f32 %v2768, %v2506
        %v2897 = vmax.f32 %v2769, %v2511
        %v2898 = vmax.f32 %v2770, %v2514
        %v2899 = vmax.f32 %v2771, %v2519
        %v2900 = vmax.f32 %v2772, %v2522
        %v2901 = vmax.f32 %v2773, %v2527
        %v2902 = vmax.f32 %v2774, %v2530
        %v2903 = vmax.f32 %v2775, %v2535
        %v2904 = vmax.f32 %v2776, %v2538
        %v2905 = vmax.f32 %v2777, %v2543
        %v2906 = vmax.f32 %v2778, %v2546
        %v2907 = vmax.f32 %v2779, %v2551
        %v2908 = vmax.f32 %v2780, %v2554
        %v2909 = vmax.f32 %v2781, %v2559
        %v2910 = vmax.f32 %v2782, %v2562
        %v2911 = vmax.f32 %v2783, %v2567
        %v2912 = vmax.f32 %v2784, %v2570
        %v2913 = vmax.f32 %v2785, %v2575
        %v2914 = vmax.f32 %v2786, %v2578
        %v2915 = vmax.f32 %v2787, %v2583
        %v2916 = vmax.f32 %v2788, %v2586
        %v2917 = vmax.f32 %v2789, %v2591
        %v2918 = vmax.f32 %v2790, %v2594
        %v2919 = vmax.f32 %v2791, %v2599
        %v2920 = vmax.f32 %v2792, %v2602
        %v2921 = vmax.f32 %v2793, %v2607
        %v2922 = vmax.f32 %v2794, %v2610
        %v2923 = vmax.f32 %v2795, %v2615
        %v2924 = vmax.f32 %v2796, %v2618
        %v2925 = vmax.f32 %v2797, %v2623
        %v2926 = vmax.f32 %v2798, %v2626
        %v2927 = vmax.f32 %v2799, %v2631
        %v2928 = vmax.f32 %v2800, %v2634
        %v2929 = vmax.f32 %v2801, %v2639
        %v2930 = vmax.f32 %v2802, %v2642
        %v2931 = vmax.f32 %v2803, %v2647
        %v2932 = vmax.f32 %v2804, %v2650
        %v2933 = vmax.f32 %v2805, %v2655
        %v2934 = vmax.f32 %v2806, %v2658
        %v2935 = vmax.f32 %v2807, %v2663
        %v2936 = vmax.f32 %v2808, %v2666
        %v2937 = vmax.f32 %v2809, %v2671
        %v2938 = vmax.f32 %v2810, %v2674
        %v2939 = vmax.f32 %v2811, %v2679
        %v2940 = vmax.f32 %v2812, %v2682
        %2941 = vst [vmem:[#allocation2] sm:$0xff] %v2813
        %2942 = vst [vmem:[#allocation2 + $0x8] sm:$0xff] %v2814
        %2943 = vst [vmem:[#allocation2 + $0x10] sm:$0xff] %v2815
        %2944 = vst [vmem:[#allocation2 + $0x18] sm:$0xff] %v2816
        %2945 = vst [vmem:[#allocation2 + $0x20] sm:$0xff] %v2817
        %2946 = vst [vmem:[#allocation2 + $0x28] sm:$0xff] %v2818
        %2947 = vst [vmem:[#allocation2 + $0x30] sm:$0xff] %v2819
        %2948 = vst [vmem:[#allocation2 + $0x38] sm:$0xff] %v2820
        %2949 = vst [vmem:[#allocation2 + $0x40] sm:$0xff] %v2821
        %2950 = vst [vmem:[#allocation2 + $0x48] sm:$0xff] %v2822
        %2951 = vst [vmem:[#allocation2 + $0x50] sm:$0xff] %v2823
        %2952 = vst [vmem:[#allocation2 + $0x58] sm:$0xff] %v2824
        %2953 = vst [vmem:[#allocation2 + $0x60] sm:$0xff] %v2825
        %2954 = vst [vmem:[#allocation2 + $0x68] sm:$0xff] %v2826
        %2955 = vst [vmem:[#allocation2 + $0x70] sm:$0xff] %v2827
        %2956 = vst [vmem:[#allocation2 + $0x78] sm:$0xff] %v2828
        %2957 = vst [vmem:[#allocation2 + $0x80] sm:$0xff] %v2829
        %2958 = vst [vmem:[#allocation2 + $0x88] sm:$0xff] %v2830
        %2959 = vst [vmem:[#allocation2 + $0x90] sm:$0xff] %v2831
        %2960 = vst [vmem:[#allocation2 + $0x98] sm:$0xff] %v2832
        %2961 = vst [vmem:[#allocation2 + $0xa0] sm:$0xff] %v2833
        %2962 = vst [vmem:[#allocation2 + $0xa8] sm:$0xff] %v2834
        %2963 = vst [vmem:[#allocation2 + $0xb0] sm:$0xff] %v2835
        %2964 = vst [vmem:[#allocation2 + $0xb8] sm:$0xff] %v2836
        %2965 = vst [vmem:[#allocation2 + $0xc0] sm:$0xff] %v2837
        %2966 = vst [vmem:[#allocation2 + $0xc8] sm:$0xff] %v2838
        %2967 = vst [vmem:[#allocation2 + $0xd0] sm:$0xff] %v2839
        %2968 = vst [vmem:[#allocation2 + $0xd8] sm:$0xff] %v2840
        %2969 = vst [vmem:[#allocation2 + $0xe0] sm:$0xff] %v2841
        %2970 = vst [vmem:[#allocation2 + $0xe8] sm:$0xff] %v2842
        %2971 = vst [vmem:[#allocation2 + $0xf0] sm:$0xff] %v2843
        %2972 = vst [vmem:[#allocation2 + $0xf8] sm:$0xff] %v2844
        %2973 = vst [vmem:[#allocation2 + $0x100] sm:$0xff] %v2845
        %2974 = vst [vmem:[#allocation2 + $0x108] sm:$0xff] %v2846
        %2975 = vst [vmem:[#allocation2 + $0x110] sm:$0xff] %v2847
        %2976 = vst [vmem:[#allocation2 + $0x118] sm:$0xff] %v2848
        %2977 = vst [vmem:[#allocation2 + $0x120] sm:$0xff] %v2849
        %2978 = vst [vmem:[#allocation2 + $0x128] sm:$0xff] %v2850
        %2979 = vst [vmem:[#allocation2 + $0x130] sm:$0xff] %v2851
        %2980 = vst [vmem:[#allocation2 + $0x138] sm:$0xff] %v2852
        %2981 = vst [vmem:[#allocation2 + $0x140] sm:$0xff] %v2853
        %2982 = vst [vmem:[#allocation2 + $0x148] sm:$0xff] %v2854
        %2983 = vst [vmem:[#allocation2 + $0x150] sm:$0xff] %v2855
        %2984 = vst [vmem:[#allocation2 + $0x158] sm:$0xff] %v2856
        %2985 = vst [vmem:[#allocation2 + $0x160] sm:$0xff] %v2857
        %2986 = vst [vmem:[#allocation2 + $0x168] sm:$0xff] %v2858
        %2987 = vst [vmem:[#allocation2 + $0x170] sm:$0xff] %v2859
        %2988 = vst [vmem:[#allocation2 + $0x178] sm:$0xff] %v2860
        %2989 = vst [vmem:[#allocation2 + $0x180] sm:$0xff] %v2861
        %2990 = vst [vmem:[#allocation2 + $0x188] sm:$0xff] %v2862
        %2991 = vst [vmem:[#allocation2 + $0x190] sm:$0xff] %v2863
        %2992 = vst [vmem:[#allocation2 + $0x198] sm:$0xff] %v2864
        %2993 = vst [vmem:[#allocation2 + $0x1a0] sm:$0xff] %v2865
        %2994 = vst [vmem:[#allocation2 + $0x1a8] sm:$0xff] %v2866
        %2995 = vst [vmem:[#allocation2 + $0x1b0] sm:$0xff] %v2867
        %2996 = vst [vmem:[#allocation2 + $0x1b8] sm:$0xff] %v2868
        %2997 = vst [vmem:[#allocation2 + $0x1c0] sm:$0xff] %v2869
        %2998 = vst [vmem:[#allocation2 + $0x1c8] sm:$0xff] %v2870
        %2999 = vst [vmem:[#allocation2 + $0x1d0] sm:$0xff] %v2871
        %3000 = vst [vmem:[#allocation2 + $0x1d8] sm:$0xff] %v2872
        %3001 = vst [vmem:[#allocation2 + $0x1e0] sm:$0xff] %v2873
        %3002 = vst [vmem:[#allocation2 + $0x1e8] sm:$0xff] %v2874
        %3003 = vst [vmem:[#allocation2 + $0x1f0] sm:$0xff] %v2875
        %3004 = vst [vmem:[#allocation2 + $0x1f8] sm:$0xff] %v2876
        %3005 = vst [vmem:[#allocation2 + $0x200] sm:$0xff] %v2877
        %3006 = vst [vmem:[#allocation2 + $0x208] sm:$0xff] %v2878
        %3007 = vst [vmem:[#allocation2 + $0x210] sm:$0xff] %v2879
        %3008 = vst [vmem:[#allocation2 + $0x218] sm:$0xff] %v2880
        %3009 = vst [vmem:[#allocation2 + $0x220] sm:$0xff] %v2881
        %3010 = vst [vmem:[#allocation2 + $0x228] sm:$0xff] %v2882
        %3011 = vst [vmem:[#allocation2 + $0x230] sm:$0xff] %v2883
        %3012 = vst [vmem:[#allocation2 + $0x238] sm:$0xff] %v2884
        %3013 = vst [vmem:[#allocation2 + $0x240] sm:$0xff] %v2885
        %3014 = vst [vmem:[#allocation2 + $0x248] sm:$0xff] %v2886
        %3015 = vst [vmem:[#allocation2 + $0x250] sm:$0xff] %v2887
        %3016 = vst [vmem:[#allocation2 + $0x258] sm:$0xff] %v2888
        %3017 = vst [vmem:[#allocation2 + $0x260] sm:$0xff] %v2889
        %3018 = vst [vmem:[#allocation2 + $0x268] sm:$0xff] %v2890
        %3019 = vst [vmem:[#allocation2 + $0x270] sm:$0xff] %v2891
        %3020 = vst [vmem:[#allocation2 + $0x278] sm:$0xff] %v2892
        %3021 = vst [vmem:[#allocation2 + $0x280] sm:$0xff] %v2893
        %3022 = vst [vmem:[#allocation2 + $0x288] sm:$0xff] %v2894
        %3023 = vst [vmem:[#allocation2 + $0x290] sm:$0xff] %v2895
        %3024 = vst [vmem:[#allocation2 + $0x298] sm:$0xff] %v2896
        %3025 = vst [vmem:[#allocation2 + $0x2a0] sm:$0xff] %v2897
        %3026 = vst [vmem:[#allocation2 + $0x2a8] sm:$0xff] %v2898
        %3027 = vst [vmem:[#allocation2 + $0x2b0] sm:$0xff] %v2899
        %3028 = vst [vmem:[#allocation2 + $0x2b8] sm:$0xff] %v2900
        %3029 = vst [vmem:[#allocation2 + $0x2c0] sm:$0xff] %v2901
        %3030 = vst [vmem:[#allocation2 + $0x2c8] sm:$0xff] %v2902
        %3031 = vst [vmem:[#allocation2 + $0x2d0] sm:$0xff] %v2903
        %3032 = vst [vmem:[#allocation2 + $0x2d8] sm:$0xff] %v2904
        %3033 = vst [vmem:[#allocation2 + $0x2e0] sm:$0xff] %v2905
        %3034 = vst [vmem:[#allocation2 + $0x2e8] sm:$0xff] %v2906
        %3035 = vst [vmem:[#allocation2 + $0x2f0] sm:$0xff] %v2907
        %3036 = vst [vmem:[#allocation2 + $0x2f8] sm:$0xff] %v2908
        %3037 = vst [vmem:[#allocation2 + $0x300] sm:$0xff] %v2909
        %3038 = vst [vmem:[#allocation2 + $0x308] sm:$0xff] %v2910
        %3039 = vst [vmem:[#allocation2 + $0x310] sm:$0xff] %v2911
        %3040 = vst [vmem:[#allocation2 + $0x318] sm:$0xff] %v2912
        %3041 = vst [vmem:[#allocation2 + $0x320] sm:$0xff] %v2913
        %3042 = vst [vmem:[#allocation2 + $0x328] sm:$0xff] %v2914
        %3043 = vst [vmem:[#allocation2 + $0x330] sm:$0xff] %v2915
        %3044 = vst [vmem:[#allocation2 + $0x338] sm:$0xff] %v2916
        %3045 = vst [vmem:[#allocation2 + $0x340] sm:$0xff] %v2917
        %3046 = vst [vmem:[#allocation2 + $0x348] sm:$0xff] %v2918
        %3047 = vst [vmem:[#allocation2 + $0x350] sm:$0xff] %v2919
        %3048 = vst [vmem:[#allocation2 + $0x358] sm:$0xff] %v2920
        %3049 = vst [vmem:[#allocation2 + $0x360] sm:$0xff] %v2921
        %3050 = vst [vmem:[#allocation2 + $0x368] sm:$0xff] %v2922
        %3051 = vst [vmem:[#allocation2 + $0x370] sm:$0xff] %v2923
        %3052 = vst [vmem:[#allocation2 + $0x378] sm:$0xff] %v2924
        %3053 = vst [vmem:[#allocation2 + $0x380] sm:$0xff] %v2925
        %3054 = vst [vmem:[#allocation2 + $0x388] sm:$0xff] %v2926
        %3055 = vst [vmem:[#allocation2 + $0x390] sm:$0xff] %v2927
        %3056 = vst [vmem:[#allocation2 + $0x398] sm:$0xff] %v2928
        %3057 = vst [vmem:[#allocation2 + $0x3a0] sm:$0xff] %v2929
        %3058 = vst [vmem:[#allocation2 + $0x3a8] sm:$0xff] %v2930
        %3059 = vst [vmem:[#allocation2 + $0x3b0] sm:$0xff] %v2931
        %3060 = vst [vmem:[#allocation2 + $0x3b8] sm:$0xff] %v2932
        %3061 = vst [vmem:[#allocation2 + $0x3c0] sm:$0xff] %v2933
        %3062 = vst [vmem:[#allocation2 + $0x3c8] sm:$0xff] %v2934
        %3063 = vst [vmem:[#allocation2 + $0x3d0] sm:$0xff] %v2935
        %3064 = vst [vmem:[#allocation2 + $0x3d8] sm:$0xff] %v2936
        %3065 = vst [vmem:[#allocation2 + $0x3e0] sm:$0xff] %v2937
        %3066 = vst [vmem:[#allocation2 + $0x3e8] sm:$0xff] %v2938
        %3067 = vst [vmem:[#allocation2 + $0x3f0] sm:$0xff] %v2939
        %3068 = vst [vmem:[#allocation2 + $0x3f8] sm:$0xff] %v2940
        %v3069 = vld [vmem:[#allocation2] sm:$0xff]
        %v3070 = vld [vmem:[#allocation2 + $0x8] sm:$0xff]
        %v3071 = vld [vmem:[#allocation2 + $0x10] sm:$0xff]
        %v3072 = vld [vmem:[#allocation2 + $0x18] sm:$0xff]
        %v3073 = vld [vmem:[#allocation2 + $0x20] sm:$0xff]
        %v3074 = vld [vmem:[#allocation2 + $0x28] sm:$0xff]
        %v3075 = vld [vmem:[#allocation2 + $0x30] sm:$0xff]
        %v3076 = vld [vmem:[#allocation2 + $0x38] sm:$0xff]
        %v3077 = vld [vmem:[#allocation2 + $0x40] sm:$0xff]
        %v3078 = vld [vmem:[#allocation2 + $0x48] sm:$0xff]
        %v3079 = vld [vmem:[#allocation2 + $0x50] sm:$0xff]
        %v3080 = vld [vmem:[#allocation2 + $0x58] sm:$0xff]
        %v3081 = vld [vmem:[#allocation2 + $0x60] sm:$0xff]
        %v3082 = vld [vmem:[#allocation2 + $0x68] sm:$0xff]
        %v3083 = vld [vmem:[#allocation2 + $0x70] sm:$0xff]
        %v3084 = vld [vmem:[#allocation2 + $0x78] sm:$0xff]
        %v3085 = vld [vmem:[#allocation2 + $0x80] sm:$0xff]
        %v3086 = vld [vmem:[#allocation2 + $0x88] sm:$0xff]
        %v3087 = vld [vmem:[#allocation2 + $0x90] sm:$0xff]
        %v3088 = vld [vmem:[#allocation2 + $0x98] sm:$0xff]
        %v3089 = vld [vmem:[#allocation2 + $0xa0] sm:$0xff]
        %v3090 = vld [vmem:[#allocation2 + $0xa8] sm:$0xff]
        %v3091 = vld [vmem:[#allocation2 + $0xb0] sm:$0xff]
        %v3092 = vld [vmem:[#allocation2 + $0xb8] sm:$0xff]
        %v3093 = vld [vmem:[#allocation2 + $0xc0] sm:$0xff]
        %v3094 = vld [vmem:[#allocation2 + $0xc8] sm:$0xff]
        %v3095 = vld [vmem:[#allocation2 + $0xd0] sm:$0xff]
        %v3096 = vld [vmem:[#allocation2 + $0xd8] sm:$0xff]
        %v3097 = vld [vmem:[#allocation2 + $0xe0] sm:$0xff]
        %v3098 = vld [vmem:[#allocation2 + $0xe8] sm:$0xff]
        %v3099 = vld [vmem:[#allocation2 + $0xf0] sm:$0xff]
        %v3100 = vld [vmem:[#allocation2 + $0xf8] sm:$0xff]
        %v3101 = vld [vmem:[#allocation2 + $0x100] sm:$0xff]
        %v3102 = vld [vmem:[#allocation2 + $0x108] sm:$0xff]
        %v3103 = vld [vmem:[#allocation2 + $0x110] sm:$0xff]
        %v3104 = vld [vmem:[#allocation2 + $0x118] sm:$0xff]
        %v3105 = vld [vmem:[#allocation2 + $0x120] sm:$0xff]
        %v3106 = vld [vmem:[#allocation2 + $0x128] sm:$0xff]
        %v3107 = vld [vmem:[#allocation2 + $0x130] sm:$0xff]
        %v3108 = vld [vmem:[#allocation2 + $0x138] sm:$0xff]
        %v3109 = vld [vmem:[#allocation2 + $0x140] sm:$0xff]
        %v3110 = vld [vmem:[#allocation2 + $0x148] sm:$0xff]
        %v3111 = vld [vmem:[#allocation2 + $0x150] sm:$0xff]
        %v3112 = vld [vmem:[#allocation2 + $0x158] sm:$0xff]
        %v3113 = vld [vmem:[#allocation2 + $0x160] sm:$0xff]
        %v3114 = vld [vmem:[#allocation2 + $0x168] sm:$0xff]
        %v3115 = vld [vmem:[#allocation2 + $0x170] sm:$0xff]
        %v3116 = vld [vmem:[#allocation2 + $0x178] sm:$0xff]
        %v3117 = vld [vmem:[#allocation2 + $0x180] sm:$0xff]
        %v3118 = vld [vmem:[#allocation2 + $0x188] sm:$0xff]
        %v3119 = vld [vmem:[#allocation2 + $0x190] sm:$0xff]
        %v3120 = vld [vmem:[#allocation2 + $0x198] sm:$0xff]
        %v3121 = vld [vmem:[#allocation2 + $0x1a0] sm:$0xff]
        %v3122 = vld [vmem:[#allocation2 + $0x1a8] sm:$0xff]
        %v3123 = vld [vmem:[#allocation2 + $0x1b0] sm:$0xff]
        %v3124 = vld [vmem:[#allocation2 + $0x1b8] sm:$0xff]
        %v3125 = vld [vmem:[#allocation2 + $0x1c0] sm:$0xff]
        %v3126 = vld [vmem:[#allocation2 + $0x1c8] sm:$0xff]
        %v3127 = vld [vmem:[#allocation2 + $0x1d0] sm:$0xff]
        %v3128 = vld [vmem:[#allocation2 + $0x1d8] sm:$0xff]
        %v3129 = vld [vmem:[#allocation2 + $0x1e0] sm:$0xff]
        %v3130 = vld [vmem:[#allocation2 + $0x1e8] sm:$0xff]
        %v3131 = vld [vmem:[#allocation2 + $0x1f0] sm:$0xff]
        %v3132 = vld [vmem:[#allocation2 + $0x1f8] sm:$0xff]
        %v3133 = vld [vmem:[#allocation2 + $0x200] sm:$0xff]
        %v3134 = vld [vmem:[#allocation2 + $0x208] sm:$0xff]
        %v3135 = vld [vmem:[#allocation2 + $0x210] sm:$0xff]
        %v3136 = vld [vmem:[#allocation2 + $0x218] sm:$0xff]
        %v3137 = vld [vmem:[#allocation2 + $0x220] sm:$0xff]
        %v3138 = vld [vmem:[#allocation2 + $0x228] sm:$0xff]
        %v3139 = vld [vmem:[#allocation2 + $0x230] sm:$0xff]
        %v3140 = vld [vmem:[#allocation2 + $0x238] sm:$0xff]
        %v3141 = vld [vmem:[#allocation2 + $0x240] sm:$0xff]
        %v3142 = vld [vmem:[#allocation2 + $0x248] sm:$0xff]
        %v3143 = vld [vmem:[#allocation2 + $0x250] sm:$0xff]
        %v3144 = vld [vmem:[#allocation2 + $0x258] sm:$0xff]
        %v3145 = vld [vmem:[#allocation2 + $0x260] sm:$0xff]
        %v3146 = vld [vmem:[#allocation2 + $0x268] sm:$0xff]
        %v3147 = vld [vmem:[#allocation2 + $0x270] sm:$0xff]
        %v3148 = vld [vmem:[#allocation2 + $0x278] sm:$0xff]
        %v3149 = vld [vmem:[#allocation2 + $0x280] sm:$0xff]
        %v3150 = vld [vmem:[#allocation2 + $0x288] sm:$0xff]
        %v3151 = vld [vmem:[#allocation2 + $0x290] sm:$0xff]
        %v3152 = vld [vmem:[#allocation2 + $0x298] sm:$0xff]
        %v3153 = vld [vmem:[#allocation2 + $0x2a0] sm:$0xff]
        %v3154 = vld [vmem:[#allocation2 + $0x2a8] sm:$0xff]
        %v3155 = vld [vmem:[#allocation2 + $0x2b0] sm:$0xff]
        %v3156 = vld [vmem:[#allocation2 + $0x2b8] sm:$0xff]
        %v3157 = vld [vmem:[#allocation2 + $0x2c0] sm:$0xff]
        %v3158 = vld [vmem:[#allocation2 + $0x2c8] sm:$0xff]
        %v3159 = vld [vmem:[#allocation2 + $0x2d0] sm:$0xff]
        %v3160 = vld [vmem:[#allocation2 + $0x2d8] sm:$0xff]
        %v3161 = vld [vmem:[#allocation2 + $0x2e0] sm:$0xff]
        %v3162 = vld [vmem:[#allocation2 + $0x2e8] sm:$0xff]
        %v3163 = vld [vmem:[#allocation2 + $0x2f0] sm:$0xff]
        %v3164 = vld [vmem:[#allocation2 + $0x2f8] sm:$0xff]
        %v3165 = vld [vmem:[#allocation2 + $0x300] sm:$0xff]
        %v3166 = vld [vmem:[#allocation2 + $0x308] sm:$0xff]
        %v3167 = vld [vmem:[#allocation2 + $0x310] sm:$0xff]
        %v3168 = vld [vmem:[#allocation2 + $0x318] sm:$0xff]
        %v3169 = vld [vmem:[#allocation2 + $0x320] sm:$0xff]
        %v3170 = vld [vmem:[#allocation2 + $0x328] sm:$0xff]
        %v3171 = vld [vmem:[#allocation2 + $0x330] sm:$0xff]
        %v3172 = vld [vmem:[#allocation2 + $0x338] sm:$0xff]
        %v3173 = vld [vmem:[#allocation2 + $0x340] sm:$0xff]
        %v3174 = vld [vmem:[#allocation2 + $0x348] sm:$0xff]
        %v3175 = vld [vmem:[#allocation2 + $0x350] sm:$0xff]
        %v3176 = vld [vmem:[#allocation2 + $0x358] sm:$0xff]
        %v3177 = vld [vmem:[#allocation2 + $0x360] sm:$0xff]
        %v3178 = vld [vmem:[#allocation2 + $0x368] sm:$0xff]
        %v3179 = vld [vmem:[#allocation2 + $0x370] sm:$0xff]
        %v3180 = vld [vmem:[#allocation2 + $0x378] sm:$0xff]
        %v3181 = vld [vmem:[#allocation2 + $0x380] sm:$0xff]
        %v3182 = vld [vmem:[#allocation2 + $0x388] sm:$0xff]
        %v3183 = vld [vmem:[#allocation2 + $0x390] sm:$0xff]
        %v3184 = vld [vmem:[#allocation2 + $0x398] sm:$0xff]
        %v3185 = vld [vmem:[#allocation2 + $0x3a0] sm:$0xff]
        %v3186 = vld [vmem:[#allocation2 + $0x3a8] sm:$0xff]
        %v3187 = vld [vmem:[#allocation2 + $0x3b0] sm:$0xff]
        %v3188 = vld [vmem:[#allocation2 + $0x3b8] sm:$0xff]
        %v3189 = vld [vmem:[#allocation2 + $0x3c0] sm:$0xff]
        %v3190 = vld [vmem:[#allocation2 + $0x3c8] sm:$0xff]
        %v3191 = vld [vmem:[#allocation2 + $0x3d0] sm:$0xff]
        %v3192 = vld [vmem:[#allocation2 + $0x3d8] sm:$0xff]
        %v3193 = vld [vmem:[#allocation2 + $0x3e0] sm:$0xff]
        %v3194 = vld [vmem:[#allocation2 + $0x3e8] sm:$0xff]
        %v3195 = vld [vmem:[#allocation2 + $0x3f0] sm:$0xff]
        %v3196 = vld [vmem:[#allocation2 + $0x3f8] sm:$0xff]
        %3197 = vmax.xlane.f32.xlu0 %v3069
        %v3198 = vpop.xlane.xlu0 %3197
        %3199 = vmax.xlane.f32.xlu0 %v3070
        %v3200 = vpop.xlane.xlu0 %3199
        %3201 = vmax.xlane.f32.xlu0 %v3071
        %v3202 = vpop.xlane.xlu0 %3201
        %3203 = vmax.xlane.f32.xlu0 %v3072
        %v3204 = vpop.xlane.xlu0 %3203
        %3205 = vmax.xlane.f32.xlu0 %v3073
        %v3206 = vpop.xlane.xlu0 %3205
        %3207 = vmax.xlane.f32.xlu0 %v3074
        %v3208 = vpop.xlane.xlu0 %3207
        %3209 = vmax.xlane.f32.xlu0 %v3075
        %v3210 = vpop.xlane.xlu0 %3209
        %3211 = vmax.xlane.f32.xlu0 %v3076
        %v3212 = vpop.xlane.xlu0 %3211
        %3213 = vmax.xlane.f32.xlu0 %v3077
        %v3214 = vpop.xlane.xlu0 %3213
        %3215 = vmax.xlane.f32.xlu0 %v3078
        %v3216 = vpop.xlane.xlu0 %3215
        %3217 = vmax.xlane.f32.xlu0 %v3079
        %v3218 = vpop.xlane.xlu0 %3217
        %3219 = vmax.xlane.f32.xlu0 %v3080
        %v3220 = vpop.xlane.xlu0 %3219
        %3221 = vmax.xlane.f32.xlu0 %v3081
        %v3222 = vpop.xlane.xlu0 %3221
        %3223 = vmax.xlane.f32.xlu0 %v3082
        %v3224 = vpop.xlane.xlu0 %3223
        %3225 = vmax.xlane.f32.xlu0 %v3083
        %v3226 = vpop.xlane.xlu0 %3225
        %3227 = vmax.xlane.f32.xlu0 %v3084
        %v3228 = vpop.xlane.xlu0 %3227
        %3229 = vmax.xlane.f32.xlu0 %v3085
        %v3230 = vpop.xlane.xlu0 %3229
        %3231 = vmax.xlane.f32.xlu0 %v3086
        %v3232 = vpop.xlane.xlu0 %3231
        %3233 = vmax.xlane.f32.xlu0 %v3087
        %v3234 = vpop.xlane.xlu0 %3233
        %3235 = vmax.xlane.f32.xlu0 %v3088
        %v3236 = vpop.xlane.xlu0 %3235
        %3237 = vmax.xlane.f32.xlu0 %v3089
        %v3238 = vpop.xlane.xlu0 %3237
        %3239 = vmax.xlane.f32.xlu0 %v3090
        %v3240 = vpop.xlane.xlu0 %3239
        %3241 = vmax.xlane.f32.xlu0 %v3091
        %v3242 = vpop.xlane.xlu0 %3241
        %3243 = vmax.xlane.f32.xlu0 %v3092
        %v3244 = vpop.xlane.xlu0 %3243
        %3245 = vmax.xlane.f32.xlu0 %v3093
        %v3246 = vpop.xlane.xlu0 %3245
        %3247 = vmax.xlane.f32.xlu0 %v3094
        %v3248 = vpop.xlane.xlu0 %3247
        %3249 = vmax.xlane.f32.xlu0 %v3095
        %v3250 = vpop.xlane.xlu0 %3249
        %3251 = vmax.xlane.f32.xlu0 %v3096
        %v3252 = vpop.xlane.xlu0 %3251
        %3253 = vmax.xlane.f32.xlu0 %v3097
        %v3254 = vpop.xlane.xlu0 %3253
        %3255 = vmax.xlane.f32.xlu0 %v3098
        %v3256 = vpop.xlane.xlu0 %3255
        %3257 = vmax.xlane.f32.xlu0 %v3099
        %v3258 = vpop.xlane.xlu0 %3257
        %3259 = vmax.xlane.f32.xlu0 %v3100
        %v3260 = vpop.xlane.xlu0 %3259
        %3261 = vmax.xlane.f32.xlu0 %v3101
        %v3262 = vpop.xlane.xlu0 %3261
        %3263 = vmax.xlane.f32.xlu0 %v3102
        %v3264 = vpop.xlane.xlu0 %3263
        %3265 = vmax.xlane.f32.xlu0 %v3103
        %v3266 = vpop.xlane.xlu0 %3265
        %3267 = vmax.xlane.f32.xlu0 %v3104
        %v3268 = vpop.xlane.xlu0 %3267
        %3269 = vmax.xlane.f32.xlu0 %v3105
        %v3270 = vpop.xlane.xlu0 %3269
        %3271 = vmax.xlane.f32.xlu0 %v3106
        %v3272 = vpop.xlane.xlu0 %3271
        %3273 = vmax.xlane.f32.xlu0 %v3107
        %v3274 = vpop.xlane.xlu0 %3273
        %3275 = vmax.xlane.f32.xlu0 %v3108
        %v3276 = vpop.xlane.xlu0 %3275
        %3277 = vmax.xlane.f32.xlu0 %v3109
        %v3278 = vpop.xlane.xlu0 %3277
        %3279 = vmax.xlane.f32.xlu0 %v3110
        %v3280 = vpop.xlane.xlu0 %3279
        %3281 = vmax.xlane.f32.xlu0 %v3111
        %v3282 = vpop.xlane.xlu0 %3281
        %3283 = vmax.xlane.f32.xlu0 %v3112
        %v3284 = vpop.xlane.xlu0 %3283
        %3285 = vmax.xlane.f32.xlu0 %v3113
        %v3286 = vpop.xlane.xlu0 %3285
        %3287 = vmax.xlane.f32.xlu0 %v3114
        %v3288 = vpop.xlane.xlu0 %3287
        %3289 = vmax.xlane.f32.xlu0 %v3115
        %v3290 = vpop.xlane.xlu0 %3289
        %3291 = vmax.xlane.f32.xlu0 %v3116
        %v3292 = vpop.xlane.xlu0 %3291
        %3293 = vmax.xlane.f32.xlu0 %v3117
        %v3294 = vpop.xlane.xlu0 %3293
        %3295 = vmax.xlane.f32.xlu0 %v3118
        %v3296 = vpop.xlane.xlu0 %3295
        %3297 = vmax.xlane.f32.xlu0 %v3119
        %v3298 = vpop.xlane.xlu0 %3297
        %3299 = vmax.xlane.f32.xlu0 %v3120
        %v3300 = vpop.xlane.xlu0 %3299
        %3301 = vmax.xlane.f32.xlu0 %v3121
        %v3302 = vpop.xlane.xlu0 %3301
        %3303 = vmax.xlane.f32.xlu0 %v3122
        %v3304 = vpop.xlane.xlu0 %3303
        %3305 = vmax.xlane.f32.xlu0 %v3123
        %v3306 = vpop.xlane.xlu0 %3305
        %3307 = vmax.xlane.f32.xlu0 %v3124
        %v3308 = vpop.xlane.xlu0 %3307
        %3309 = vmax.xlane.f32.xlu0 %v3125
        %v3310 = vpop.xlane.xlu0 %3309
        %3311 = vmax.xlane.f32.xlu0 %v3126
        %v3312 = vpop.xlane.xlu0 %3311
        %3313 = vmax.xlane.f32.xlu0 %v3127
        %v3314 = vpop.xlane.xlu0 %3313
        %3315 = vmax.xlane.f32.xlu0 %v3128
        %v3316 = vpop.xlane.xlu0 %3315
        %3317 = vmax.xlane.f32.xlu0 %v3129
        %v3318 = vpop.xlane.xlu0 %3317
        %3319 = vmax.xlane.f32.xlu0 %v3130
        %v3320 = vpop.xlane.xlu0 %3319
        %3321 = vmax.xlane.f32.xlu0 %v3131
        %v3322 = vpop.xlane.xlu0 %3321
        %3323 = vmax.xlane.f32.xlu0 %v3132
        %v3324 = vpop.xlane.xlu0 %3323
        %3325 = vmax.xlane.f32.xlu0 %v3133
        %v3326 = vpop.xlane.xlu0 %3325
        %3327 = vmax.xlane.f32.xlu0 %v3134
        %v3328 = vpop.xlane.xlu0 %3327
        %3329 = vmax.xlane.f32.xlu0 %v3135
        %v3330 = vpop.xlane.xlu0 %3329
        %3331 = vmax.xlane.f32.xlu0 %v3136
        %v3332 = vpop.xlane.xlu0 %3331
        %3333 = vmax.xlane.f32.xlu0 %v3137
        %v3334 = vpop.xlane.xlu0 %3333
        %3335 = vmax.xlane.f32.xlu0 %v3138
        %v3336 = vpop.xlane.xlu0 %3335
        %3337 = vmax.xlane.f32.xlu0 %v3139
        %v3338 = vpop.xlane.xlu0 %3337
        %3339 = vmax.xlane.f32.xlu0 %v3140
        %v3340 = vpop.xlane.xlu0 %3339
        %3341 = vmax.xlane.f32.xlu0 %v3141
        %v3342 = vpop.xlane.xlu0 %3341
        %3343 = vmax.xlane.f32.xlu0 %v3142
        %v3344 = vpop.xlane.xlu0 %3343
        %3345 = vmax.xlane.f32.xlu0 %v3143
        %v3346 = vpop.xlane.xlu0 %3345
        %3347 = vmax.xlane.f32.xlu0 %v3144
        %v3348 = vpop.xlane.xlu0 %3347
        %3349 = vmax.xlane.f32.xlu0 %v3145
        %v3350 = vpop.xlane.xlu0 %3349
        %3351 = vmax.xlane.f32.xlu0 %v3146
        %v3352 = vpop.xlane.xlu0 %3351
        %3353 = vmax.xlane.f32.xlu0 %v3147
        %v3354 = vpop.xlane.xlu0 %3353
        %3355 = vmax.xlane.f32.xlu0 %v3148
        %v3356 = vpop.xlane.xlu0 %3355
        %3357 = vmax.xlane.f32.xlu0 %v3149
        %v3358 = vpop.xlane.xlu0 %3357
        %3359 = vmax.xlane.f32.xlu0 %v3150
        %v3360 = vpop.xlane.xlu0 %3359
        %3361 = vmax.xlane.f32.xlu0 %v3151
        %v3362 = vpop.xlane.xlu0 %3361
        %3363 = vmax.xlane.f32.xlu0 %v3152
        %v3364 = vpop.xlane.xlu0 %3363
        %3365 = vmax.xlane.f32.xlu0 %v3153
        %v3366 = vpop.xlane.xlu0 %3365
        %3367 = vmax.xlane.f32.xlu0 %v3154
        %v3368 = vpop.xlane.xlu0 %3367
        %3369 = vmax.xlane.f32.xlu0 %v3155
        %v3370 = vpop.xlane.xlu0 %3369
        %3371 = vmax.xlane.f32.xlu0 %v3156
        %v3372 = vpop.xlane.xlu0 %3371
        %3373 = vmax.xlane.f32.xlu0 %v3157
        %v3374 = vpop.xlane.xlu0 %3373
        %3375 = vmax.xlane.f32.xlu0 %v3158
        %v3376 = vpop.xlane.xlu0 %3375
        %3377 = vmax.xlane.f32.xlu0 %v3159
        %v3378 = vpop.xlane.xlu0 %3377
        %3379 = vmax.xlane.f32.xlu0 %v3160
        %v3380 = vpop.xlane.xlu0 %3379
        %3381 = vmax.xlane.f32.xlu0 %v3161
        %v3382 = vpop.xlane.xlu0 %3381
        %3383 = vmax.xlane.f32.xlu0 %v3162
        %v3384 = vpop.xlane.xlu0 %3383
        %3385 = vmax.xlane.f32.xlu0 %v3163
        %v3386 = vpop.xlane.xlu0 %3385
        %3387 = vmax.xlane.f32.xlu0 %v3164
        %v3388 = vpop.xlane.xlu0 %3387
        %3389 = vmax.xlane.f32.xlu0 %v3165
        %v3390 = vpop.xlane.xlu0 %3389
        %3391 = vmax.xlane.f32.xlu0 %v3166
        %v3392 = vpop.xlane.xlu0 %3391
        %3393 = vmax.xlane.f32.xlu0 %v3167
        %v3394 = vpop.xlane.xlu0 %3393
        %3395 = vmax.xlane.f32.xlu0 %v3168
        %v3396 = vpop.xlane.xlu0 %3395
        %3397 = vmax.xlane.f32.xlu0 %v3169
        %v3398 = vpop.xlane.xlu0 %3397
        %3399 = vmax.xlane.f32.xlu0 %v3170
        %v3400 = vpop.xlane.xlu0 %3399
        %3401 = vmax.xlane.f32.xlu0 %v3171
        %v3402 = vpop.xlane.xlu0 %3401
        %3403 = vmax.xlane.f32.xlu0 %v3172
        %v3404 = vpop.xlane.xlu0 %3403
        %3405 = vmax.xlane.f32.xlu0 %v3173
        %v3406 = vpop.xlane.xlu0 %3405
        %3407 = vmax.xlane.f32.xlu0 %v3174
        %v3408 = vpop.xlane.xlu0 %3407
        %3409 = vmax.xlane.f32.xlu0 %v3175
        %v3410 = vpop.xlane.xlu0 %3409
        %3411 = vmax.xlane.f32.xlu0 %v3176
        %v3412 = vpop.xlane.xlu0 %3411
        %3413 = vmax.xlane.f32.xlu0 %v3177
        %v3414 = vpop.xlane.xlu0 %3413
        %3415 = vmax.xlane.f32.xlu0 %v3178
        %v3416 = vpop.xlane.xlu0 %3415
        %3417 = vmax.xlane.f32.xlu0 %v3179
        %v3418 = vpop.xlane.xlu0 %3417
        %3419 = vmax.xlane.f32.xlu0 %v3180
        %v3420 = vpop.xlane.xlu0 %3419
        %3421 = vmax.xlane.f32.xlu0 %v3181
        %v3422 = vpop.xlane.xlu0 %3421
        %3423 = vmax.xlane.f32.xlu0 %v3182
        %v3424 = vpop.xlane.xlu0 %3423
        %3425 = vmax.xlane.f32.xlu0 %v3183
        %v3426 = vpop.xlane.xlu0 %3425
        %3427 = vmax.xlane.f32.xlu0 %v3184
        %v3428 = vpop.xlane.xlu0 %3427
        %3429 = vmax.xlane.f32.xlu0 %v3185
        %v3430 = vpop.xlane.xlu0 %3429
        %3431 = vmax.xlane.f32.xlu0 %v3186
        %v3432 = vpop.xlane.xlu0 %3431
        %3433 = vmax.xlane.f32.xlu0 %v3187
        %v3434 = vpop.xlane.xlu0 %3433
        %3435 = vmax.xlane.f32.xlu0 %v3188
        %v3436 = vpop.xlane.xlu0 %3435
        %3437 = vmax.xlane.f32.xlu0 %v3189
        %v3438 = vpop.xlane.xlu0 %3437
        %3439 = vmax.xlane.f32.xlu0 %v3190
        %v3440 = vpop.xlane.xlu0 %3439
        %3441 = vmax.xlane.f32.xlu0 %v3191
        %v3442 = vpop.xlane.xlu0 %3441
        %3443 = vmax.xlane.f32.xlu0 %v3192
        %v3444 = vpop.xlane.xlu0 %3443
        %3445 = vmax.xlane.f32.xlu0 %v3193
        %v3446 = vpop.xlane.xlu0 %3445
        %3447 = vmax.xlane.f32.xlu0 %v3194
        %v3448 = vpop.xlane.xlu0 %3447
        %3449 = vmax.xlane.f32.xlu0 %v3195
        %v3450 = vpop.xlane.xlu0 %3449
        %3451 = vmax.xlane.f32.xlu0 %v3196
        %v3452 = vpop.xlane.xlu0 %3451
        %v3453 = vld [vmem:[%s10] sm:$0xff]
        %v3454 = vld [vmem:[%s10 + $0x8] sm:$0xff]
        %v3455 = vld [vmem:[%s10 + $0x10] sm:$0xff]
        %v3456 = vld [vmem:[%s10 + $0x18] sm:$0xff]
        %v3457 = vld [vmem:[%s10 + $0x20] sm:$0xff]
        %v3458 = vld [vmem:[%s10 + $0x28] sm:$0xff]
        %v3459 = vld [vmem:[%s10 + $0x30] sm:$0xff]
        %v3460 = vld [vmem:[%s10 + $0x38] sm:$0xff]
        %v3461 = vld [vmem:[%s10 + $0x40] sm:$0xff]
        %v3462 = vld [vmem:[%s10 + $0x48] sm:$0xff]
        %v3463 = vld [vmem:[%s10 + $0x50] sm:$0xff]
        %v3464 = vld [vmem:[%s10 + $0x58] sm:$0xff]
        %v3465 = vld [vmem:[%s10 + $0x60] sm:$0xff]
        %v3466 = vld [vmem:[%s10 + $0x68] sm:$0xff]
        %v3467 = vld [vmem:[%s10 + $0x70] sm:$0xff]
        %v3468 = vld [vmem:[%s10 + $0x78] sm:$0xff]
        %v3469 = vld [vmem:[%s10 + $0x80] sm:$0xff]
        %v3470 = vld [vmem:[%s10 + $0x88] sm:$0xff]
        %v3471 = vld [vmem:[%s10 + $0x90] sm:$0xff]
        %v3472 = vld [vmem:[%s10 + $0x98] sm:$0xff]
        %v3473 = vld [vmem:[%s10 + $0xa0] sm:$0xff]
        %v3474 = vld [vmem:[%s10 + $0xa8] sm:$0xff]
        %v3475 = vld [vmem:[%s10 + $0xb0] sm:$0xff]
        %v3476 = vld [vmem:[%s10 + $0xb8] sm:$0xff]
        %v3477 = vld [vmem:[%s10 + $0xc0] sm:$0xff]
        %v3478 = vld [vmem:[%s10 + $0xc8] sm:$0xff]
        %v3479 = vld [vmem:[%s10 + $0xd0] sm:$0xff]
        %v3480 = vld [vmem:[%s10 + $0xd8] sm:$0xff]
        %v3481 = vld [vmem:[%s10 + $0xe0] sm:$0xff]
        %v3482 = vld [vmem:[%s10 + $0xe8] sm:$0xff]
        %v3483 = vld [vmem:[%s10 + $0xf0] sm:$0xff]
        %v3484 = vld [vmem:[%s10 + $0xf8] sm:$0xff]
        %v3485 = vld [vmem:[%s10 + $0x100] sm:$0xff]
        %v3486 = vld [vmem:[%s10 + $0x108] sm:$0xff]
        %v3487 = vld [vmem:[%s10 + $0x110] sm:$0xff]
        %v3488 = vld [vmem:[%s10 + $0x118] sm:$0xff]
        %v3489 = vld [vmem:[%s10 + $0x120] sm:$0xff]
        %v3490 = vld [vmem:[%s10 + $0x128] sm:$0xff]
        %v3491 = vld [vmem:[%s10 + $0x130] sm:$0xff]
        %v3492 = vld [vmem:[%s10 + $0x138] sm:$0xff]
        %v3493 = vld [vmem:[%s10 + $0x140] sm:$0xff]
        %v3494 = vld [vmem:[%s10 + $0x148] sm:$0xff]
        %v3495 = vld [vmem:[%s10 + $0x150] sm:$0xff]
        %v3496 = vld [vmem:[%s10 + $0x158] sm:$0xff]
        %v3497 = vld [vmem:[%s10 + $0x160] sm:$0xff]
        %v3498 = vld [vmem:[%s10 + $0x168] sm:$0xff]
        %v3499 = vld [vmem:[%s10 + $0x170] sm:$0xff]
        %v3500 = vld [vmem:[%s10 + $0x178] sm:$0xff]
        %v3501 = vld [vmem:[%s10 + $0x180] sm:$0xff]
        %v3502 = vld [vmem:[%s10 + $0x188] sm:$0xff]
        %v3503 = vld [vmem:[%s10 + $0x190] sm:$0xff]
        %v3504 = vld [vmem:[%s10 + $0x198] sm:$0xff]
        %v3505 = vld [vmem:[%s10 + $0x1a0] sm:$0xff]
        %v3506 = vld [vmem:[%s10 + $0x1a8] sm:$0xff]
        %v3507 = vld [vmem:[%s10 + $0x1b0] sm:$0xff]
        %v3508 = vld [vmem:[%s10 + $0x1b8] sm:$0xff]
        %v3509 = vld [vmem:[%s10 + $0x1c0] sm:$0xff]
        %v3510 = vld [vmem:[%s10 + $0x1c8] sm:$0xff]
        %v3511 = vld [vmem:[%s10 + $0x1d0] sm:$0xff]
        %v3512 = vld [vmem:[%s10 + $0x1d8] sm:$0xff]
        %v3513 = vld [vmem:[%s10 + $0x1e0] sm:$0xff]
        %v3514 = vld [vmem:[%s10 + $0x1e8] sm:$0xff]
        %v3515 = vld [vmem:[%s10 + $0x1f0] sm:$0xff]
        %v3516 = vld [vmem:[%s10 + $0x1f8] sm:$0xff]
        %v3517 = vld [vmem:[%s10 + $0x200] sm:$0xff]
        %v3518 = vld [vmem:[%s10 + $0x208] sm:$0xff]
        %v3519 = vld [vmem:[%s10 + $0x210] sm:$0xff]
        %v3520 = vld [vmem:[%s10 + $0x218] sm:$0xff]
        %v3521 = vld [vmem:[%s10 + $0x220] sm:$0xff]
        %v3522 = vld [vmem:[%s10 + $0x228] sm:$0xff]
        %v3523 = vld [vmem:[%s10 + $0x230] sm:$0xff]
        %v3524 = vld [vmem:[%s10 + $0x238] sm:$0xff]
        %v3525 = vld [vmem:[%s10 + $0x240] sm:$0xff]
        %v3526 = vld [vmem:[%s10 + $0x248] sm:$0xff]
        %v3527 = vld [vmem:[%s10 + $0x250] sm:$0xff]
        %v3528 = vld [vmem:[%s10 + $0x258] sm:$0xff]
        %v3529 = vld [vmem:[%s10 + $0x260] sm:$0xff]
        %v3530 = vld [vmem:[%s10 + $0x268] sm:$0xff]
        %v3531 = vld [vmem:[%s10 + $0x270] sm:$0xff]
        %v3532 = vld [vmem:[%s10 + $0x278] sm:$0xff]
        %v3533 = vld [vmem:[%s10 + $0x280] sm:$0xff]
        %v3534 = vld [vmem:[%s10 + $0x288] sm:$0xff]
        %v3535 = vld [vmem:[%s10 + $0x290] sm:$0xff]
        %v3536 = vld [vmem:[%s10 + $0x298] sm:$0xff]
        %v3537 = vld [vmem:[%s10 + $0x2a0] sm:$0xff]
        %v3538 = vld [vmem:[%s10 + $0x2a8] sm:$0xff]
        %v3539 = vld [vmem:[%s10 + $0x2b0] sm:$0xff]
        %v3540 = vld [vmem:[%s10 + $0x2b8] sm:$0xff]
        %v3541 = vld [vmem:[%s10 + $0x2c0] sm:$0xff]
        %v3542 = vld [vmem:[%s10 + $0x2c8] sm:$0xff]
        %v3543 = vld [vmem:[%s10 + $0x2d0] sm:$0xff]
        %v3544 = vld [vmem:[%s10 + $0x2d8] sm:$0xff]
        %v3545 = vld [vmem:[%s10 + $0x2e0] sm:$0xff]
        %v3546 = vld [vmem:[%s10 + $0x2e8] sm:$0xff]
        %v3547 = vld [vmem:[%s10 + $0x2f0] sm:$0xff]
        %v3548 = vld [vmem:[%s10 + $0x2f8] sm:$0xff]
        %v3549 = vld [vmem:[%s10 + $0x300] sm:$0xff]
        %v3550 = vld [vmem:[%s10 + $0x308] sm:$0xff]
        %v3551 = vld [vmem:[%s10 + $0x310] sm:$0xff]
        %v3552 = vld [vmem:[%s10 + $0x318] sm:$0xff]
        %v3553 = vld [vmem:[%s10 + $0x320] sm:$0xff]
        %v3554 = vld [vmem:[%s10 + $0x328] sm:$0xff]
        %v3555 = vld [vmem:[%s10 + $0x330] sm:$0xff]
        %v3556 = vld [vmem:[%s10 + $0x338] sm:$0xff]
        %v3557 = vld [vmem:[%s10 + $0x340] sm:$0xff]
        %v3558 = vld [vmem:[%s10 + $0x348] sm:$0xff]
        %v3559 = vld [vmem:[%s10 + $0x350] sm:$0xff]
        %v3560 = vld [vmem:[%s10 + $0x358] sm:$0xff]
        %v3561 = vld [vmem:[%s10 + $0x360] sm:$0xff]
        %v3562 = vld [vmem:[%s10 + $0x368] sm:$0xff]
        %v3563 = vld [vmem:[%s10 + $0x370] sm:$0xff]
        %v3564 = vld [vmem:[%s10 + $0x378] sm:$0xff]
        %v3565 = vld [vmem:[%s10 + $0x380] sm:$0xff]
        %v3566 = vld [vmem:[%s10 + $0x388] sm:$0xff]
        %v3567 = vld [vmem:[%s10 + $0x390] sm:$0xff]
        %v3568 = vld [vmem:[%s10 + $0x398] sm:$0xff]
        %v3569 = vld [vmem:[%s10 + $0x3a0] sm:$0xff]
        %v3570 = vld [vmem:[%s10 + $0x3a8] sm:$0xff]
        %v3571 = vld [vmem:[%s10 + $0x3b0] sm:$0xff]
        %v3572 = vld [vmem:[%s10 + $0x3b8] sm:$0xff]
        %v3573 = vld [vmem:[%s10 + $0x3c0] sm:$0xff]
        %v3574 = vld [vmem:[%s10 + $0x3c8] sm:$0xff]
        %v3575 = vld [vmem:[%s10 + $0x3d0] sm:$0xff]
        %v3576 = vld [vmem:[%s10 + $0x3d8] sm:$0xff]
        %v3577 = vld [vmem:[%s10 + $0x3e0] sm:$0xff]
        %v3578 = vld [vmem:[%s10 + $0x3e8] sm:$0xff]
        %v3579 = vld [vmem:[%s10 + $0x3f0] sm:$0xff]
        %v3580 = vld [vmem:[%s10 + $0x3f8] sm:$0xff]
        %v3581 = vadd.f32 %v3198, %v3453
        %v3582 = vadd.f32 %v3200, %v3454
        %v3583 = vadd.f32 %v3202, %v3455
        %v3584 = vadd.f32 %v3204, %v3456
        %v3585 = vadd.f32 %v3206, %v3457
        %v3586 = vadd.f32 %v3208, %v3458
        %v3587 = vadd.f32 %v3210, %v3459
        %v3588 = vadd.f32 %v3212, %v3460
        %v3589 = vadd.f32 %v3214, %v3461
        %v3590 = vadd.f32 %v3216, %v3462
        %v3591 = vadd.f32 %v3218, %v3463
        %v3592 = vadd.f32 %v3220, %v3464
        %v3593 = vadd.f32 %v3222, %v3465
        %v3594 = vadd.f32 %v3224, %v3466
        %v3595 = vadd.f32 %v3226, %v3467
        %v3596 = vadd.f32 %v3228, %v3468
        %v3597 = vadd.f32 %v3230, %v3469
        %v3598 = vadd.f32 %v3232, %v3470
        %v3599 = vadd.f32 %v3234, %v3471
        %v3600 = vadd.f32 %v3236, %v3472
        %v3601 = vadd.f32 %v3238, %v3473
        %v3602 = vadd.f32 %v3240, %v3474
        %v3603 = vadd.f32 %v3242, %v3475
        %v3604 = vadd.f32 %v3244, %v3476
        %v3605 = vadd.f32 %v3246, %v3477
        %v3606 = vadd.f32 %v3248, %v3478
        %v3607 = vadd.f32 %v3250, %v3479
        %v3608 = vadd.f32 %v3252, %v3480
        %v3609 = vadd.f32 %v3254, %v3481
        %v3610 = vadd.f32 %v3256, %v3482
        %v3611 = vadd.f32 %v3258, %v3483
        %v3612 = vadd.f32 %v3260, %v3484
        %v3613 = vadd.f32 %v3262, %v3485
        %v3614 = vadd.f32 %v3264, %v3486
        %v3615 = vadd.f32 %v3266, %v3487
        %v3616 = vadd.f32 %v3268, %v3488
        %v3617 = vadd.f32 %v3270, %v3489
        %v3618 = vadd.f32 %v3272, %v3490
        %v3619 = vadd.f32 %v3274, %v3491
        %v3620 = vadd.f32 %v3276, %v3492
        %v3621 = vadd.f32 %v3278, %v3493
        %v3622 = vadd.f32 %v3280, %v3494
        %v3623 = vadd.f32 %v3282, %v3495
        %v3624 = vadd.f32 %v3284, %v3496
        %v3625 = vadd.f32 %v3286, %v3497
        %v3626 = vadd.f32 %v3288, %v3498
        %v3627 = vadd.f32 %v3290, %v3499
        %v3628 = vadd.f32 %v3292, %v3500
        %v3629 = vadd.f32 %v3294, %v3501
        %v3630 = vadd.f32 %v3296, %v3502
        %v3631 = vadd.f32 %v3298, %v3503
        %v3632 = vadd.f32 %v3300, %v3504
        %v3633 = vadd.f32 %v3302, %v3505
        %v3634 = vadd.f32 %v3304, %v3506
        %v3635 = vadd.f32 %v3306, %v3507
        %v3636 = vadd.f32 %v3308, %v3508
        %v3637 = vadd.f32 %v3310, %v3509
        %v3638 = vadd.f32 %v3312, %v3510
        %v3639 = vadd.f32 %v3314, %v3511
        %v3640 = vadd.f32 %v3316, %v3512
        %v3641 = vadd.f32 %v3318, %v3513
        %v3642 = vadd.f32 %v3320, %v3514
        %v3643 = vadd.f32 %v3322, %v3515
        %v3644 = vadd.f32 %v3324, %v3516
        %v3645 = vadd.f32 %v3326, %v3517
        %v3646 = vadd.f32 %v3328, %v3518
        %v3647 = vadd.f32 %v3330, %v3519
        %v3648 = vadd.f32 %v3332, %v3520
        %v3649 = vadd.f32 %v3334, %v3521
        %v3650 = vadd.f32 %v3336, %v3522
        %v3651 = vadd.f32 %v3338, %v3523
        %v3652 = vadd.f32 %v3340, %v3524
        %v3653 = vadd.f32 %v3342, %v3525
        %v3654 = vadd.f32 %v3344, %v3526
        %v3655 = vadd.f32 %v3346, %v3527
        %v3656 = vadd.f32 %v3348, %v3528
        %v3657 = vadd.f32 %v3350, %v3529
        %v3658 = vadd.f32 %v3352, %v3530
        %v3659 = vadd.f32 %v3354, %v3531
        %v3660 = vadd.f32 %v3356, %v3532
        %v3661 = vadd.f32 %v3358, %v3533
        %v3662 = vadd.f32 %v3360, %v3534
        %v3663 = vadd.f32 %v3362, %v3535
        %v3664 = vadd.f32 %v3364, %v3536
        %v3665 = vadd.f32 %v3366, %v3537
        %v3666 = vadd.f32 %v3368, %v3538
        %v3667 = vadd.f32 %v3370, %v3539
        %v3668 = vadd.f32 %v3372, %v3540
        %v3669 = vadd.f32 %v3374, %v3541
        %v3670 = vadd.f32 %v3376, %v3542
        %v3671 = vadd.f32 %v3378, %v3543
        %v3672 = vadd.f32 %v3380, %v3544
        %v3673 = vadd.f32 %v3382, %v3545
        %v3674 = vadd.f32 %v3384, %v3546
        %v3675 = vadd.f32 %v3386, %v3547
        %v3676 = vadd.f32 %v3388, %v3548
        %v3677 = vadd.f32 %v3390, %v3549
        %v3678 = vadd.f32 %v3392, %v3550
        %v3679 = vadd.f32 %v3394, %v3551
        %v3680 = vadd.f32 %v3396, %v3552
        %v3681 = vadd.f32 %v3398, %v3553
        %v3682 = vadd.f32 %v3400, %v3554
        %v3683 = vadd.f32 %v3402, %v3555
        %v3684 = vadd.f32 %v3404, %v3556
        %v3685 = vadd.f32 %v3406, %v3557
        %v3686 = vadd.f32 %v3408, %v3558
        %v3687 = vadd.f32 %v3410, %v3559
        %v3688 = vadd.f32 %v3412, %v3560
        %v3689 = vadd.f32 %v3414, %v3561
        %v3690 = vadd.f32 %v3416, %v3562
        %v3691 = vadd.f32 %v3418, %v3563
        %v3692 = vadd.f32 %v3420, %v3564
        %v3693 = vadd.f32 %v3422, %v3565
        %v3694 = vadd.f32 %v3424, %v3566
        %v3695 = vadd.f32 %v3426, %v3567
        %v3696 = vadd.f32 %v3428, %v3568
        %v3697 = vadd.f32 %v3430, %v3569
        %v3698 = vadd.f32 %v3432, %v3570
        %v3699 = vadd.f32 %v3434, %v3571
        %v3700 = vadd.f32 %v3436, %v3572
        %v3701 = vadd.f32 %v3438, %v3573
        %v3702 = vadd.f32 %v3440, %v3574
        %v3703 = vadd.f32 %v3442, %v3575
        %v3704 = vadd.f32 %v3444, %v3576
        %v3705 = vadd.f32 %v3446, %v3577
        %v3706 = vadd.f32 %v3448, %v3578
        %v3707 = vadd.f32 %v3450, %v3579
        %v3708 = vadd.f32 %v3452, %v3580
        %v3709 = vtanh.pop %v3581
        %v3710 = vtanh.pop %v3582
        %v3711 = vtanh.pop %v3583
        %v3712 = vtanh.pop %v3584
        %v3713 = vtanh.pop %v3585
        %v3714 = vtanh.pop %v3586
        %v3715 = vtanh.pop %v3587
        %v3716 = vtanh.pop %v3588
        %v3717 = vtanh.pop %v3589
        %v3718 = vtanh.pop %v3590
        %v3719 = vtanh.pop %v3591
        %v3720 = vtanh.pop %v3592
        %v3721 = vtanh.pop %v3593
        %v3722 = vtanh.pop %v3594
        %v3723 = vtanh.pop %v3595
        %v3724 = vtanh.pop %v3596
        %v3725 = vtanh.pop %v3597
        %v3726 = vtanh.pop %v3598
        %v3727 = vtanh.pop %v3599
        %v3728 = vtanh.pop %v3600
        %v3729 = vtanh.pop %v3601
        %v3730 = vtanh.pop %v3602
        %v3731 = vtanh.pop %v3603
        %v3732 = vtanh.pop %v3604
        %v3733 = vtanh.pop %v3605
        %v3734 = vtanh.pop %v3606
        %v3735 = vtanh.pop %v3607
        %v3736 = vtanh.pop %v3608
        %v3737 = vtanh.pop %v3609
        %v3738 = vtanh.pop %v3610
        %v3739 = vtanh.pop %v3611
        %v3740 = vtanh.pop %v3612
        %v3741 = vtanh.pop %v3613
        %v3742 = vtanh.pop %v3614
        %v3743 = vtanh.pop %v3615
        %v3744 = vtanh.pop %v3616
        %v3745 = vtanh.pop %v3617
        %v3746 = vtanh.pop %v3618
        %v3747 = vtanh.pop %v3619
        %v3748 = vtanh.pop %v3620
        %v3749 = vtanh.pop %v3621
        %v3750 = vtanh.pop %v3622
        %v3751 = vtanh.pop %v3623
        %v3752 = vtanh.pop %v3624
        %v3753 = vtanh.pop %v3625
        %v3754 = vtanh.pop %v3626
        %v3755 = vtanh.pop %v3627
        %v3756 = vtanh.pop %v3628
        %v3757 = vtanh.pop %v3629
        %v3758 = vtanh.pop %v3630
        %v3759 = vtanh.pop %v3631
        %v3760 = vtanh.pop %v3632
        %v3761 = vtanh.pop %v3633
        %v3762 = vtanh.pop %v3634
        %v3763 = vtanh.pop %v3635
        %v3764 = vtanh.pop %v3636
        %v3765 = vtanh.pop %v3637
        %v3766 = vtanh.pop %v3638
        %v3767 = vtanh.pop %v3639
        %v3768 = vtanh.pop %v3640
        %v3769 = vtanh.pop %v3641
        %v3770 = vtanh.pop %v3642
        %v3771 = vtanh.pop %v3643
        %v3772 = vtanh.pop %v3644
        %v3773 = vtanh.pop %v3645
        %v3774 = vtanh.pop %v3646
        %v3775 = vtanh.pop %v3647
        %v3776 = vtanh.pop %v3648
        %v3777 = vtanh.pop %v3649
        %v3778 = vtanh.pop %v3650
        %v3779 = vtanh.pop %v3651
        %v3780 = vtanh.pop %v3652
        %v3781 = vtanh.pop %v3653
        %v3782 = vtanh.pop %v3654
        %v3783 = vtanh.pop %v3655
        %v3784 = vtanh.pop %v3656
        %v3785 = vtanh.pop %v3657
        %v3786 = vtanh.pop %v3658
        %v3787 = vtanh.pop %v3659
        %v3788 = vtanh.pop %v3660
        %v3789 = vtanh.pop %v3661
        %v3790 = vtanh.pop %v3662
        %v3791 = vtanh.pop %v3663
        %v3792 = vtanh.pop %v3664
        %v3793 = vtanh.pop %v3665
        %v3794 = vtanh.pop %v3666
        %v3795 = vtanh.pop %v3667
        %v3796 = vtanh.pop %v3668
        %v3797 = vtanh.pop %v3669
        %v3798 = vtanh.pop %v3670
        %v3799 = vtanh.pop %v3671
        %v3800 = vtanh.pop %v3672
        %v3801 = vtanh.pop %v3673
        %v3802 = vtanh.pop %v3674
        %v3803 = vtanh.pop %v3675
        %v3804 = vtanh.pop %v3676
        %v3805 = vtanh.pop %v3677
        %v3806 = vtanh.pop %v3678
        %v3807 = vtanh.pop %v3679
        %v3808 = vtanh.pop %v3680
        %v3809 = vtanh.pop %v3681
        %v3810 = vtanh.pop %v3682
        %v3811 = vtanh.pop %v3683
        %v3812 = vtanh.pop %v3684
        %v3813 = vtanh.pop %v3685
        %v3814 = vtanh.pop %v3686
        %v3815 = vtanh.pop %v3687
        %v3816 = vtanh.pop %v3688
        %v3817 = vtanh.pop %v3689
        %v3818 = vtanh.pop %v3690
        %v3819 = vtanh.pop %v3691
        %v3820 = vtanh.pop %v3692
        %v3821 = vtanh.pop %v3693
        %v3822 = vtanh.pop %v3694
        %v3823 = vtanh.pop %v3695
        %v3824 = vtanh.pop %v3696
        %v3825 = vtanh.pop %v3697
        %v3826 = vtanh.pop %v3698
        %v3827 = vtanh.pop %v3699
        %v3828 = vtanh.pop %v3700
        %v3829 = vtanh.pop %v3701
        %v3830 = vtanh.pop %v3702
        %v3831 = vtanh.pop %v3703
        %v3832 = vtanh.pop %v3704
        %v3833 = vtanh.pop %v3705
        %v3834 = vtanh.pop %v3706
        %v3835 = vtanh.pop %v3707
        %v3836 = vtanh.pop %v3708
        %3838 = vset.pattern.permute.xlu0 0
        %3839 = vperm.xlu0 %3838, %v3709
        %v3840 = vpop.permute.xlu0 %3839
        %3843 = vset.pattern.permute.xlu0 0
        %3844 = vperm.xlu0 %3843, %v3710
        %v3845 = vpop.permute.xlu0 %3844
        %3848 = vset.pattern.permute.xlu0 0
        %3849 = vperm.xlu0 %3848, %v3711
        %v3850 = vpop.permute.xlu0 %3849
        %3853 = vset.pattern.permute.xlu0 0
        %3854 = vperm.xlu0 %3853, %v3712
        %v3855 = vpop.permute.xlu0 %3854
        %3858 = vset.pattern.permute.xlu0 0
        %3859 = vperm.xlu0 %3858, %v3713
        %v3860 = vpop.permute.xlu0 %3859
        %3863 = vset.pattern.permute.xlu0 0
        %3864 = vperm.xlu0 %3863, %v3714
        %v3865 = vpop.permute.xlu0 %3864
        %3868 = vset.pattern.permute.xlu0 0
        %3869 = vperm.xlu0 %3868, %v3715
        %v3870 = vpop.permute.xlu0 %3869
        %3873 = vset.pattern.permute.xlu0 0
        %3874 = vperm.xlu0 %3873, %v3716
        %v3875 = vpop.permute.xlu0 %3874
        %3878 = vset.pattern.permute.xlu0 0
        %3879 = vperm.xlu0 %3878, %v3717
        %v3880 = vpop.permute.xlu0 %3879
        %3883 = vset.pattern.permute.xlu0 0
        %3884 = vperm.xlu0 %3883, %v3718
        %v3885 = vpop.permute.xlu0 %3884
        %3888 = vset.pattern.permute.xlu0 0
        %3889 = vperm.xlu0 %3888, %v3719
        %v3890 = vpop.permute.xlu0 %3889
        %3893 = vset.pattern.permute.xlu0 0
        %3894 = vperm.xlu0 %3893, %v3720
        %v3895 = vpop.permute.xlu0 %3894
        %3898 = vset.pattern.permute.xlu0 0
        %3899 = vperm.xlu0 %3898, %v3721
        %v3900 = vpop.permute.xlu0 %3899
        %3903 = vset.pattern.permute.xlu0 0
        %3904 = vperm.xlu0 %3903, %v3722
        %v3905 = vpop.permute.xlu0 %3904
        %3908 = vset.pattern.permute.xlu0 0
        %3909 = vperm.xlu0 %3908, %v3723
        %v3910 = vpop.permute.xlu0 %3909
        %3913 = vset.pattern.permute.xlu0 0
        %3914 = vperm.xlu0 %3913, %v3724
        %v3915 = vpop.permute.xlu0 %3914
        %3918 = vset.pattern.permute.xlu0 0
        %3919 = vperm.xlu0 %3918, %v3725
        %v3920 = vpop.permute.xlu0 %3919
        %3923 = vset.pattern.permute.xlu0 0
        %3924 = vperm.xlu0 %3923, %v3726
        %v3925 = vpop.permute.xlu0 %3924
        %3928 = vset.pattern.permute.xlu0 0
        %3929 = vperm.xlu0 %3928, %v3727
        %v3930 = vpop.permute.xlu0 %3929
        %3933 = vset.pattern.permute.xlu0 0
        %3934 = vperm.xlu0 %3933, %v3728
        %v3935 = vpop.permute.xlu0 %3934
        %3938 = vset.pattern.permute.xlu0 0
        %3939 = vperm.xlu0 %3938, %v3729
        %v3940 = vpop.permute.xlu0 %3939
        %3943 = vset.pattern.permute.xlu0 0
        %3944 = vperm.xlu0 %3943, %v3730
        %v3945 = vpop.permute.xlu0 %3944
        %3948 = vset.pattern.permute.xlu0 0
        %3949 = vperm.xlu0 %3948, %v3731
        %v3950 = vpop.permute.xlu0 %3949
        %3953 = vset.pattern.permute.xlu0 0
        %3954 = vperm.xlu0 %3953, %v3732
        %v3955 = vpop.permute.xlu0 %3954
        %3958 = vset.pattern.permute.xlu0 0
        %3959 = vperm.xlu0 %3958, %v3733
        %v3960 = vpop.permute.xlu0 %3959
        %3963 = vset.pattern.permute.xlu0 0
        %3964 = vperm.xlu0 %3963, %v3734
        %v3965 = vpop.permute.xlu0 %3964
        %3968 = vset.pattern.permute.xlu0 0
        %3969 = vperm.xlu0 %3968, %v3735
        %v3970 = vpop.permute.xlu0 %3969
        %3973 = vset.pattern.permute.xlu0 0
        %3974 = vperm.xlu0 %3973, %v3736
        %v3975 = vpop.permute.xlu0 %3974
        %3978 = vset.pattern.permute.xlu0 0
        %3979 = vperm.xlu0 %3978, %v3737
        %v3980 = vpop.permute.xlu0 %3979
        %3983 = vset.pattern.permute.xlu0 0
        %3984 = vperm.xlu0 %3983, %v3738
        %v3985 = vpop.permute.xlu0 %3984
        %3988 = vset.pattern.permute.xlu0 0
        %3989 = vperm.xlu0 %3988, %v3739
        %v3990 = vpop.permute.xlu0 %3989
        %3993 = vset.pattern.permute.xlu0 0
        %3994 = vperm.xlu0 %3993, %v3740
        %v3995 = vpop.permute.xlu0 %3994
        %3998 = vset.pattern.permute.xlu0 0
        %3999 = vperm.xlu0 %3998, %v3741
        %v4000 = vpop.permute.xlu0 %3999
        %4003 = vset.pattern.permute.xlu0 0
        %4004 = vperm.xlu0 %4003, %v3742
        %v4005 = vpop.permute.xlu0 %4004
        %4008 = vset.pattern.permute.xlu0 0
        %4009 = vperm.xlu0 %4008, %v3743
        %v4010 = vpop.permute.xlu0 %4009
        %4013 = vset.pattern.permute.xlu0 0
        %4014 = vperm.xlu0 %4013, %v3744
        %v4015 = vpop.permute.xlu0 %4014
        %4018 = vset.pattern.permute.xlu0 0
        %4019 = vperm.xlu0 %4018, %v3745
        %v4020 = vpop.permute.xlu0 %4019
        %4023 = vset.pattern.permute.xlu0 0
        %4024 = vperm.xlu0 %4023, %v3746
        %v4025 = vpop.permute.xlu0 %4024
        %4028 = vset.pattern.permute.xlu0 0
        %4029 = vperm.xlu0 %4028, %v3747
        %v4030 = vpop.permute.xlu0 %4029
        %4033 = vset.pattern.permute.xlu0 0
        %4034 = vperm.xlu0 %4033, %v3748
        %v4035 = vpop.permute.xlu0 %4034
        %4038 = vset.pattern.permute.xlu0 0
        %4039 = vperm.xlu0 %4038, %v3749
        %v4040 = vpop.permute.xlu0 %4039
        %4043 = vset.pattern.permute.xlu0 0
        %4044 = vperm.xlu0 %4043, %v3750
        %v4045 = vpop.permute.xlu0 %4044
        %4048 = vset.pattern.permute.xlu0 0
        %4049 = vperm.xlu0 %4048, %v3751
        %v4050 = vpop.permute.xlu0 %4049
        %4053 = vset.pattern.permute.xlu0 0
        %4054 = vperm.xlu0 %4053, %v3752
        %v4055 = vpop.permute.xlu0 %4054
        %4058 = vset.pattern.permute.xlu0 0
        %4059 = vperm.xlu0 %4058, %v3753
        %v4060 = vpop.permute.xlu0 %4059
        %4063 = vset.pattern.permute.xlu0 0
        %4064 = vperm.xlu0 %4063, %v3754
        %v4065 = vpop.permute.xlu0 %4064
        %4068 = vset.pattern.permute.xlu0 0
        %4069 = vperm.xlu0 %4068, %v3755
        %v4070 = vpop.permute.xlu0 %4069
        %4073 = vset.pattern.permute.xlu0 0
        %4074 = vperm.xlu0 %4073, %v3756
        %v4075 = vpop.permute.xlu0 %4074
        %4078 = vset.pattern.permute.xlu0 0
        %4079 = vperm.xlu0 %4078, %v3757
        %v4080 = vpop.permute.xlu0 %4079
        %4083 = vset.pattern.permute.xlu0 0
        %4084 = vperm.xlu0 %4083, %v3758
        %v4085 = vpop.permute.xlu0 %4084
        %4088 = vset.pattern.permute.xlu0 0
        %4089 = vperm.xlu0 %4088, %v3759
        %v4090 = vpop.permute.xlu0 %4089
        %4093 = vset.pattern.permute.xlu0 0
        %4094 = vperm.xlu0 %4093, %v3760
        %v4095 = vpop.permute.xlu0 %4094
        %4098 = vset.pattern.permute.xlu0 0
        %4099 = vperm.xlu0 %4098, %v3761
        %v4100 = vpop.permute.xlu0 %4099
        %4103 = vset.pattern.permute.xlu0 0
        %4104 = vperm.xlu0 %4103, %v3762
        %v4105 = vpop.permute.xlu0 %4104
        %4108 = vset.pattern.permute.xlu0 0
        %4109 = vperm.xlu0 %4108, %v3763
        %v4110 = vpop.permute.xlu0 %4109
        %4113 = vset.pattern.permute.xlu0 0
        %4114 = vperm.xlu0 %4113, %v3764
        %v4115 = vpop.permute.xlu0 %4114
        %4118 = vset.pattern.permute.xlu0 0
        %4119 = vperm.xlu0 %4118, %v3765
        %v4120 = vpop.permute.xlu0 %4119
        %4123 = vset.pattern.permute.xlu0 0
        %4124 = vperm.xlu0 %4123, %v3766
        %v4125 = vpop.permute.xlu0 %4124
        %4128 = vset.pattern.permute.xlu0 0
        %4129 = vperm.xlu0 %4128, %v3767
        %v4130 = vpop.permute.xlu0 %4129
        %4133 = vset.pattern.permute.xlu0 0
        %4134 = vperm.xlu0 %4133, %v3768
        %v4135 = vpop.permute.xlu0 %4134
        %4138 = vset.pattern.permute.xlu0 0
        %4139 = vperm.xlu0 %4138, %v3769
        %v4140 = vpop.permute.xlu0 %4139
        %4143 = vset.pattern.permute.xlu0 0
        %4144 = vperm.xlu0 %4143, %v3770
        %v4145 = vpop.permute.xlu0 %4144
        %4148 = vset.pattern.permute.xlu0 0
        %4149 = vperm.xlu0 %4148, %v3771
        %v4150 = vpop.permute.xlu0 %4149
        %4153 = vset.pattern.permute.xlu0 0
        %4154 = vperm.xlu0 %4153, %v3772
        %v4155 = vpop.permute.xlu0 %4154
        %4158 = vset.pattern.permute.xlu0 0
        %4159 = vperm.xlu0 %4158, %v3773
        %v4160 = vpop.permute.xlu0 %4159
        %4163 = vset.pattern.permute.xlu0 0
        %4164 = vperm.xlu0 %4163, %v3774
        %v4165 = vpop.permute.xlu0 %4164
        %4168 = vset.pattern.permute.xlu0 0
        %4169 = vperm.xlu0 %4168, %v3775
        %v4170 = vpop.permute.xlu0 %4169
        %4173 = vset.pattern.permute.xlu0 0
        %4174 = vperm.xlu0 %4173, %v3776
        %v4175 = vpop.permute.xlu0 %4174
        %4178 = vset.pattern.permute.xlu0 0
        %4179 = vperm.xlu0 %4178, %v3777
        %v4180 = vpop.permute.xlu0 %4179
        %4183 = vset.pattern.permute.xlu0 0
        %4184 = vperm.xlu0 %4183, %v3778
        %v4185 = vpop.permute.xlu0 %4184
        %4188 = vset.pattern.permute.xlu0 0
        %4189 = vperm.xlu0 %4188, %v3779
        %v4190 = vpop.permute.xlu0 %4189
        %4193 = vset.pattern.permute.xlu0 0
        %4194 = vperm.xlu0 %4193, %v3780
        %v4195 = vpop.permute.xlu0 %4194
        %4198 = vset.pattern.permute.xlu0 0
        %4199 = vperm.xlu0 %4198, %v3781
        %v4200 = vpop.permute.xlu0 %4199
        %4203 = vset.pattern.permute.xlu0 0
        %4204 = vperm.xlu0 %4203, %v3782
        %v4205 = vpop.permute.xlu0 %4204
        %4208 = vset.pattern.permute.xlu0 0
        %4209 = vperm.xlu0 %4208, %v3783
        %v4210 = vpop.permute.xlu0 %4209
        %4213 = vset.pattern.permute.xlu0 0
        %4214 = vperm.xlu0 %4213, %v3784
        %v4215 = vpop.permute.xlu0 %4214
        %4218 = vset.pattern.permute.xlu0 0
        %4219 = vperm.xlu0 %4218, %v3785
        %v4220 = vpop.permute.xlu0 %4219
        %4223 = vset.pattern.permute.xlu0 0
        %4224 = vperm.xlu0 %4223, %v3786
        %v4225 = vpop.permute.xlu0 %4224
        %4228 = vset.pattern.permute.xlu0 0
        %4229 = vperm.xlu0 %4228, %v3787
        %v4230 = vpop.permute.xlu0 %4229
        %4233 = vset.pattern.permute.xlu0 0
        %4234 = vperm.xlu0 %4233, %v3788
        %v4235 = vpop.permute.xlu0 %4234
        %4238 = vset.pattern.permute.xlu0 0
        %4239 = vperm.xlu0 %4238, %v3789
        %v4240 = vpop.permute.xlu0 %4239
        %4243 = vset.pattern.permute.xlu0 0
        %4244 = vperm.xlu0 %4243, %v3790
        %v4245 = vpop.permute.xlu0 %4244
        %4248 = vset.pattern.permute.xlu0 0
        %4249 = vperm.xlu0 %4248, %v3791
        %v4250 = vpop.permute.xlu0 %4249
        %4253 = vset.pattern.permute.xlu0 0
        %4254 = vperm.xlu0 %4253, %v3792
        %v4255 = vpop.permute.xlu0 %4254
        %4258 = vset.pattern.permute.xlu0 0
        %4259 = vperm.xlu0 %4258, %v3793
        %v4260 = vpop.permute.xlu0 %4259
        %4263 = vset.pattern.permute.xlu0 0
        %4264 = vperm.xlu0 %4263, %v3794
        %v4265 = vpop.permute.xlu0 %4264
        %4268 = vset.pattern.permute.xlu0 0
        %4269 = vperm.xlu0 %4268, %v3795
        %v4270 = vpop.permute.xlu0 %4269
        %4273 = vset.pattern.permute.xlu0 0
        %4274 = vperm.xlu0 %4273, %v3796
        %v4275 = vpop.permute.xlu0 %4274
        %4278 = vset.pattern.permute.xlu0 0
        %4279 = vperm.xlu0 %4278, %v3797
        %v4280 = vpop.permute.xlu0 %4279
        %4283 = vset.pattern.permute.xlu0 0
        %4284 = vperm.xlu0 %4283, %v3798
        %v4285 = vpop.permute.xlu0 %4284
        %4288 = vset.pattern.permute.xlu0 0
        %4289 = vperm.xlu0 %4288, %v3799
        %v4290 = vpop.permute.xlu0 %4289
        %4293 = vset.pattern.permute.xlu0 0
        %4294 = vperm.xlu0 %4293, %v3800
        %v4295 = vpop.permute.xlu0 %4294
        %4298 = vset.pattern.permute.xlu0 0
        %4299 = vperm.xlu0 %4298, %v3801
        %v4300 = vpop.permute.xlu0 %4299
        %4303 = vset.pattern.permute.xlu0 0
        %4304 = vperm.xlu0 %4303, %v3802
        %v4305 = vpop.permute.xlu0 %4304
        %4308 = vset.pattern.permute.xlu0 0
        %4309 = vperm.xlu0 %4308, %v3803
        %v4310 = vpop.permute.xlu0 %4309
        %4313 = vset.pattern.permute.xlu0 0
        %4314 = vperm.xlu0 %4313, %v3804
        %v4315 = vpop.permute.xlu0 %4314
        %4318 = vset.pattern.permute.xlu0 0
        %4319 = vperm.xlu0 %4318, %v3805
        %v4320 = vpop.permute.xlu0 %4319
        %4323 = vset.pattern.permute.xlu0 0
        %4324 = vperm.xlu0 %4323, %v3806
        %v4325 = vpop.permute.xlu0 %4324
        %4328 = vset.pattern.permute.xlu0 0
        %4329 = vperm.xlu0 %4328, %v3807
        %v4330 = vpop.permute.xlu0 %4329
        %4333 = vset.pattern.permute.xlu0 0
        %4334 = vperm.xlu0 %4333, %v3808
        %v4335 = vpop.permute.xlu0 %4334
        %4338 = vset.pattern.permute.xlu0 0
        %4339 = vperm.xlu0 %4338, %v3809
        %v4340 = vpop.permute.xlu0 %4339
        %4343 = vset.pattern.permute.xlu0 0
        %4344 = vperm.xlu0 %4343, %v3810
        %v4345 = vpop.permute.xlu0 %4344
        %4348 = vset.pattern.permute.xlu0 0
        %4349 = vperm.xlu0 %4348, %v3811
        %v4350 = vpop.permute.xlu0 %4349
        %4353 = vset.pattern.permute.xlu0 0
        %4354 = vperm.xlu0 %4353, %v3812
        %v4355 = vpop.permute.xlu0 %4354
        %4358 = vset.pattern.permute.xlu0 0
        %4359 = vperm.xlu0 %4358, %v3813
        %v4360 = vpop.permute.xlu0 %4359
        %4363 = vset.pattern.permute.xlu0 0
        %4364 = vperm.xlu0 %4363, %v3814
        %v4365 = vpop.permute.xlu0 %4364
        %4368 = vset.pattern.permute.xlu0 0
        %4369 = vperm.xlu0 %4368, %v3815
        %v4370 = vpop.permute.xlu0 %4369
        %4373 = vset.pattern.permute.xlu0 0
        %4374 = vperm.xlu0 %4373, %v3816
        %v4375 = vpop.permute.xlu0 %4374
        %4378 = vset.pattern.permute.xlu0 0
        %4379 = vperm.xlu0 %4378, %v3817
        %v4380 = vpop.permute.xlu0 %4379
        %4383 = vset.pattern.permute.xlu0 0
        %4384 = vperm.xlu0 %4383, %v3818
        %v4385 = vpop.permute.xlu0 %4384
        %4388 = vset.pattern.permute.xlu0 0
        %4389 = vperm.xlu0 %4388, %v3819
        %v4390 = vpop.permute.xlu0 %4389
        %4393 = vset.pattern.permute.xlu0 0
        %4394 = vperm.xlu0 %4393, %v3820
        %v4395 = vpop.permute.xlu0 %4394
        %4398 = vset.pattern.permute.xlu0 0
        %4399 = vperm.xlu0 %4398, %v3821
        %v4400 = vpop.permute.xlu0 %4399
        %4403 = vset.pattern.permute.xlu0 0
        %4404 = vperm.xlu0 %4403, %v3822
        %v4405 = vpop.permute.xlu0 %4404
        %4408 = vset.pattern.permute.xlu0 0
        %4409 = vperm.xlu0 %4408, %v3823
        %v4410 = vpop.permute.xlu0 %4409
        %4413 = vset.pattern.permute.xlu0 0
        %4414 = vperm.xlu0 %4413, %v3824
        %v4415 = vpop.permute.xlu0 %4414
        %4418 = vset.pattern.permute.xlu0 0
        %4419 = vperm.xlu0 %4418, %v3825
        %v4420 = vpop.permute.xlu0 %4419
        %4423 = vset.pattern.permute.xlu0 0
        %4424 = vperm.xlu0 %4423, %v3826
        %v4425 = vpop.permute.xlu0 %4424
        %4428 = vset.pattern.permute.xlu0 0
        %4429 = vperm.xlu0 %4428, %v3827
        %v4430 = vpop.permute.xlu0 %4429
        %4433 = vset.pattern.permute.xlu0 0
        %4434 = vperm.xlu0 %4433, %v3828
        %v4435 = vpop.permute.xlu0 %4434
        %4438 = vset.pattern.permute.xlu0 0
        %4439 = vperm.xlu0 %4438, %v3829
        %v4440 = vpop.permute.xlu0 %4439
        %4443 = vset.pattern.permute.xlu0 0
        %4444 = vperm.xlu0 %4443, %v3830
        %v4445 = vpop.permute.xlu0 %4444
        %4448 = vset.pattern.permute.xlu0 0
        %4449 = vperm.xlu0 %4448, %v3831
        %v4450 = vpop.permute.xlu0 %4449
        %4453 = vset.pattern.permute.xlu0 0
        %4454 = vperm.xlu0 %4453, %v3832
        %v4455 = vpop.permute.xlu0 %4454
        %4458 = vset.pattern.permute.xlu0 0
        %4459 = vperm.xlu0 %4458, %v3833
        %v4460 = vpop.permute.xlu0 %4459
        %4463 = vset.pattern.permute.xlu0 0
        %4464 = vperm.xlu0 %4463, %v3834
        %v4465 = vpop.permute.xlu0 %4464
        %4468 = vset.pattern.permute.xlu0 0
        %4469 = vperm.xlu0 %4468, %v3835
        %v4470 = vpop.permute.xlu0 %4469
        %4473 = vset.pattern.permute.xlu0 0
        %4474 = vperm.xlu0 %4473, %v3836
        %v4475 = vpop.permute.xlu0 %4474
        %v4477 = vpack.c.bf16 %v3845, %v3840
        %v4478 = vpack.c.bf16 %v3855, %v3850
        %v4479 = vpack.c.bf16 %v3865, %v3860
        %v4480 = vpack.c.bf16 %v3875, %v3870
        %v4481 = vpack.c.bf16 %v3885, %v3880
        %v4482 = vpack.c.bf16 %v3895, %v3890
        %v4483 = vpack.c.bf16 %v3905, %v3900
        %v4484 = vpack.c.bf16 %v3915, %v3910
        %v4485 = vpack.c.bf16 %v3925, %v3920
        %v4486 = vpack.c.bf16 %v3935, %v3930
        %v4487 = vpack.c.bf16 %v3945, %v3940
        %v4488 = vpack.c.bf16 %v3955, %v3950
        %v4489 = vpack.c.bf16 %v3965, %v3960
        %v4490 = vpack.c.bf16 %v3975, %v3970
        %v4491 = vpack.c.bf16 %v3985, %v3980
        %v4492 = vpack.c.bf16 %v3995, %v3990
        %v4493 = vpack.c.bf16 %v4005, %v4000
        %v4494 = vpack.c.bf16 %v4015, %v4010
        %v4495 = vpack.c.bf16 %v4025, %v4020
        %v4496 = vpack.c.bf16 %v4035, %v4030
        %v4497 = vpack.c.bf16 %v4045, %v4040
        %v4498 = vpack.c.bf16 %v4055, %v4050
        %v4499 = vpack.c.bf16 %v4065, %v4060
        %v4500 = vpack.c.bf16 %v4075, %v4070
        %v4501 = vpack.c.bf16 %v4085, %v4080
        %v4502 = vpack.c.bf16 %v4095, %v4090
        %v4503 = vpack.c.bf16 %v4105, %v4100
        %v4504 = vpack.c.bf16 %v4115, %v4110
        %v4505 = vpack.c.bf16 %v4125, %v4120
        %v4506 = vpack.c.bf16 %v4135, %v4130
        %v4507 = vpack.c.bf16 %v4145, %v4140
        %v4508 = vpack.c.bf16 %v4155, %v4150
        %v4509 = vpack.c.bf16 %v4165, %v4160
        %v4510 = vpack.c.bf16 %v4175, %v4170
        %v4511 = vpack.c.bf16 %v4185, %v4180
        %v4512 = vpack.c.bf16 %v4195, %v4190
        %v4513 = vpack.c.bf16 %v4205, %v4200
        %v4514 = vpack.c.bf16 %v4215, %v4210
        %v4515 = vpack.c.bf16 %v4225, %v4220
        %v4516 = vpack.c.bf16 %v4235, %v4230
        %v4517 = vpack.c.bf16 %v4245, %v4240
        %v4518 = vpack.c.bf16 %v4255, %v4250
        %v4519 = vpack.c.bf16 %v4265, %v4260
        %v4520 = vpack.c.bf16 %v4275, %v4270
        %v4521 = vpack.c.bf16 %v4285, %v4280
        %v4522 = vpack.c.bf16 %v4295, %v4290
        %v4523 = vpack.c.bf16 %v4305, %v4300
        %v4524 = vpack.c.bf16 %v4315, %v4310
        %v4525 = vpack.c.bf16 %v4325, %v4320
        %v4526 = vpack.c.bf16 %v4335, %v4330
        %v4527 = vpack.c.bf16 %v4345, %v4340
        %v4528 = vpack.c.bf16 %v4355, %v4350
        %v4529 = vpack.c.bf16 %v4365, %v4360
        %v4530 = vpack.c.bf16 %v4375, %v4370
        %v4531 = vpack.c.bf16 %v4385, %v4380
        %v4532 = vpack.c.bf16 %v4395, %v4390
        %v4533 = vpack.c.bf16 %v4405, %v4400
        %v4534 = vpack.c.bf16 %v4415, %v4410
        %v4535 = vpack.c.bf16 %v4425, %v4420
        %v4536 = vpack.c.bf16 %v4435, %v4430
        %v4537 = vpack.c.bf16 %v4445, %v4440
        %v4538 = vpack.c.bf16 %v4455, %v4450
        %v4539 = vpack.c.bf16 %v4465, %v4460
        %v4540 = vpack.c.bf16 %v4475, %v4470
        %v4541 = vld [vmem:[%s12] sm:$0xff]
        %v4542 = vld [vmem:[%s12 + $0x8] sm:$0xff]
        %v4543 = vld [vmem:[%s12 + $0x10] sm:$0xff]
        %v4544 = vld [vmem:[%s12 + $0x18] sm:$0xff]
        %v4545 = vld [vmem:[%s12 + $0x20] sm:$0xff]
        %v4546 = vld [vmem:[%s12 + $0x28] sm:$0xff]
        %v4547 = vld [vmem:[%s12 + $0x30] sm:$0xff]
        %v4548 = vld [vmem:[%s12 + $0x38] sm:$0xff]
        %v4549 = vld [vmem:[%s12 + $0x40] sm:$0xff]
        %v4550 = vld [vmem:[%s12 + $0x48] sm:$0xff]
        %v4551 = vld [vmem:[%s12 + $0x50] sm:$0xff]
        %v4552 = vld [vmem:[%s12 + $0x58] sm:$0xff]
        %v4553 = vld [vmem:[%s12 + $0x60] sm:$0xff]
        %v4554 = vld [vmem:[%s12 + $0x68] sm:$0xff]
        %v4555 = vld [vmem:[%s12 + $0x70] sm:$0xff]
        %v4556 = vld [vmem:[%s12 + $0x78] sm:$0xff]
        %v4557 = vld [vmem:[%s12 + $0x80] sm:$0xff]
        %v4558 = vld [vmem:[%s12 + $0x88] sm:$0xff]
        %v4559 = vld [vmem:[%s12 + $0x90] sm:$0xff]
        %v4560 = vld [vmem:[%s12 + $0x98] sm:$0xff]
        %v4561 = vld [vmem:[%s12 + $0xa0] sm:$0xff]
        %v4562 = vld [vmem:[%s12 + $0xa8] sm:$0xff]
        %v4563 = vld [vmem:[%s12 + $0xb0] sm:$0xff]
        %v4564 = vld [vmem:[%s12 + $0xb8] sm:$0xff]
        %v4565 = vld [vmem:[%s12 + $0xc0] sm:$0xff]
        %v4566 = vld [vmem:[%s12 + $0xc8] sm:$0xff]
        %v4567 = vld [vmem:[%s12 + $0xd0] sm:$0xff]
        %v4568 = vld [vmem:[%s12 + $0xd8] sm:$0xff]
        %v4569 = vld [vmem:[%s12 + $0xe0] sm:$0xff]
        %v4570 = vld [vmem:[%s12 + $0xe8] sm:$0xff]
        %v4571 = vld [vmem:[%s12 + $0xf0] sm:$0xff]
        %v4572 = vld [vmem:[%s12 + $0xf8] sm:$0xff]
        %v4573 = vld [vmem:[%s12 + $0x100] sm:$0xff]
        %v4574 = vld [vmem:[%s12 + $0x108] sm:$0xff]
        %v4575 = vld [vmem:[%s12 + $0x110] sm:$0xff]
        %v4576 = vld [vmem:[%s12 + $0x118] sm:$0xff]
        %v4577 = vld [vmem:[%s12 + $0x120] sm:$0xff]
        %v4578 = vld [vmem:[%s12 + $0x128] sm:$0xff]
        %v4579 = vld [vmem:[%s12 + $0x130] sm:$0xff]
        %v4580 = vld [vmem:[%s12 + $0x138] sm:$0xff]
        %v4581 = vld [vmem:[%s12 + $0x140] sm:$0xff]
        %v4582 = vld [vmem:[%s12 + $0x148] sm:$0xff]
        %v4583 = vld [vmem:[%s12 + $0x150] sm:$0xff]
        %v4584 = vld [vmem:[%s12 + $0x158] sm:$0xff]
        %v4585 = vld [vmem:[%s12 + $0x160] sm:$0xff]
        %v4586 = vld [vmem:[%s12 + $0x168] sm:$0xff]
        %v4587 = vld [vmem:[%s12 + $0x170] sm:$0xff]
        %v4588 = vld [vmem:[%s12 + $0x178] sm:$0xff]
        %v4589 = vld [vmem:[%s12 + $0x180] sm:$0xff]
        %v4590 = vld [vmem:[%s12 + $0x188] sm:$0xff]
        %v4591 = vld [vmem:[%s12 + $0x190] sm:$0xff]
        %v4592 = vld [vmem:[%s12 + $0x198] sm:$0xff]
        %v4593 = vld [vmem:[%s12 + $0x1a0] sm:$0xff]
        %v4594 = vld [vmem:[%s12 + $0x1a8] sm:$0xff]
        %v4595 = vld [vmem:[%s12 + $0x1b0] sm:$0xff]
        %v4596 = vld [vmem:[%s12 + $0x1b8] sm:$0xff]
        %v4597 = vld [vmem:[%s12 + $0x1c0] sm:$0xff]
        %v4598 = vld [vmem:[%s12 + $0x1c8] sm:$0xff]
        %v4599 = vld [vmem:[%s12 + $0x1d0] sm:$0xff]
        %v4600 = vld [vmem:[%s12 + $0x1d8] sm:$0xff]
        %v4601 = vld [vmem:[%s12 + $0x1e0] sm:$0xff]
        %v4602 = vld [vmem:[%s12 + $0x1e8] sm:$0xff]
        %v4603 = vld [vmem:[%s12 + $0x1f0] sm:$0xff]
        %v4604 = vld [vmem:[%s12 + $0x1f8] sm:$0xff]
        %v4605 = vld [vmem:[%s12 + $0x200] sm:$0xff]
        %v4606 = vld [vmem:[%s12 + $0x208] sm:$0xff]
        %v4607 = vld [vmem:[%s12 + $0x210] sm:$0xff]
        %v4608 = vld [vmem:[%s12 + $0x218] sm:$0xff]
        %v4609 = vld [vmem:[%s12 + $0x220] sm:$0xff]
        %v4610 = vld [vmem:[%s12 + $0x228] sm:$0xff]
        %v4611 = vld [vmem:[%s12 + $0x230] sm:$0xff]
        %v4612 = vld [vmem:[%s12 + $0x238] sm:$0xff]
        %v4613 = vld [vmem:[%s12 + $0x240] sm:$0xff]
        %v4614 = vld [vmem:[%s12 + $0x248] sm:$0xff]
        %v4615 = vld [vmem:[%s12 + $0x250] sm:$0xff]
        %v4616 = vld [vmem:[%s12 + $0x258] sm:$0xff]
        %v4617 = vld [vmem:[%s12 + $0x260] sm:$0xff]
        %v4618 = vld [vmem:[%s12 + $0x268] sm:$0xff]
        %v4619 = vld [vmem:[%s12 + $0x270] sm:$0xff]
        %v4620 = vld [vmem:[%s12 + $0x278] sm:$0xff]
        %v4621 = vld [vmem:[%s12 + $0x280] sm:$0xff]
        %v4622 = vld [vmem:[%s12 + $0x288] sm:$0xff]
        %v4623 = vld [vmem:[%s12 + $0x290] sm:$0xff]
        %v4624 = vld [vmem:[%s12 + $0x298] sm:$0xff]
        %v4625 = vld [vmem:[%s12 + $0x2a0] sm:$0xff]
        %v4626 = vld [vmem:[%s12 + $0x2a8] sm:$0xff]
        %v4627 = vld [vmem:[%s12 + $0x2b0] sm:$0xff]
        %v4628 = vld [vmem:[%s12 + $0x2b8] sm:$0xff]
        %v4629 = vld [vmem:[%s12 + $0x2c0] sm:$0xff]
        %v4630 = vld [vmem:[%s12 + $0x2c8] sm:$0xff]
        %v4631 = vld [vmem:[%s12 + $0x2d0] sm:$0xff]
        %v4632 = vld [vmem:[%s12 + $0x2d8] sm:$0xff]
        %v4633 = vld [vmem:[%s12 + $0x2e0] sm:$0xff]
        %v4634 = vld [vmem:[%s12 + $0x2e8] sm:$0xff]
        %v4635 = vld [vmem:[%s12 + $0x2f0] sm:$0xff]
        %v4636 = vld [vmem:[%s12 + $0x2f8] sm:$0xff]
        %v4637 = vld [vmem:[%s12 + $0x300] sm:$0xff]
        %v4638 = vld [vmem:[%s12 + $0x308] sm:$0xff]
        %v4639 = vld [vmem:[%s12 + $0x310] sm:$0xff]
        %v4640 = vld [vmem:[%s12 + $0x318] sm:$0xff]
        %v4641 = vld [vmem:[%s12 + $0x320] sm:$0xff]
        %v4642 = vld [vmem:[%s12 + $0x328] sm:$0xff]
        %v4643 = vld [vmem:[%s12 + $0x330] sm:$0xff]
        %v4644 = vld [vmem:[%s12 + $0x338] sm:$0xff]
        %v4645 = vld [vmem:[%s12 + $0x340] sm:$0xff]
        %v4646 = vld [vmem:[%s12 + $0x348] sm:$0xff]
        %v4647 = vld [vmem:[%s12 + $0x350] sm:$0xff]
        %v4648 = vld [vmem:[%s12 + $0x358] sm:$0xff]
        %v4649 = vld [vmem:[%s12 + $0x360] sm:$0xff]
        %v4650 = vld [vmem:[%s12 + $0x368] sm:$0xff]
        %v4651 = vld [vmem:[%s12 + $0x370] sm:$0xff]
        %v4652 = vld [vmem:[%s12 + $0x378] sm:$0xff]
        %v4653 = vld [vmem:[%s12 + $0x380] sm:$0xff]
        %v4654 = vld [vmem:[%s12 + $0x388] sm:$0xff]
        %v4655 = vld [vmem:[%s12 + $0x390] sm:$0xff]
        %v4656 = vld [vmem:[%s12 + $0x398] sm:$0xff]
        %v4657 = vld [vmem:[%s12 + $0x3a0] sm:$0xff]
        %v4658 = vld [vmem:[%s12 + $0x3a8] sm:$0xff]
        %v4659 = vld [vmem:[%s12 + $0x3b0] sm:$0xff]
        %v4660 = vld [vmem:[%s12 + $0x3b8] sm:$0xff]
        %v4661 = vld [vmem:[%s12 + $0x3c0] sm:$0xff]
        %v4662 = vld [vmem:[%s12 + $0x3c8] sm:$0xff]
        %v4663 = vld [vmem:[%s12 + $0x3d0] sm:$0xff]
        %v4664 = vld [vmem:[%s12 + $0x3d8] sm:$0xff]
        %v4665 = vld [vmem:[%s12 + $0x3e0] sm:$0xff]
        %v4666 = vld [vmem:[%s12 + $0x3e8] sm:$0xff]
        %v4667 = vld [vmem:[%s12 + $0x3f0] sm:$0xff]
        %v4668 = vld [vmem:[%s12 + $0x3f8] sm:$0xff]
        %v4669 = vld [vmem:[%s12 + $0x400] sm:$0xff]
        %v4670 = vld [vmem:[%s12 + $0x408] sm:$0xff]
        %v4671 = vld [vmem:[%s12 + $0x410] sm:$0xff]
        %v4672 = vld [vmem:[%s12 + $0x418] sm:$0xff]
        %v4673 = vld [vmem:[%s12 + $0x420] sm:$0xff]
        %v4674 = vld [vmem:[%s12 + $0x428] sm:$0xff]
        %v4675 = vld [vmem:[%s12 + $0x430] sm:$0xff]
        %v4676 = vld [vmem:[%s12 + $0x438] sm:$0xff]
        %v4677 = vld [vmem:[%s12 + $0x440] sm:$0xff]
        %v4678 = vld [vmem:[%s12 + $0x448] sm:$0xff]
        %v4679 = vld [vmem:[%s12 + $0x450] sm:$0xff]
        %v4680 = vld [vmem:[%s12 + $0x458] sm:$0xff]
        %v4681 = vld [vmem:[%s12 + $0x460] sm:$0xff]
        %v4682 = vld [vmem:[%s12 + $0x468] sm:$0xff]
        %v4683 = vld [vmem:[%s12 + $0x470] sm:$0xff]
        %v4684 = vld [vmem:[%s12 + $0x478] sm:$0xff]
        %v4685 = vld [vmem:[%s12 + $0x480] sm:$0xff]
        %v4686 = vld [vmem:[%s12 + $0x488] sm:$0xff]
        %v4687 = vld [vmem:[%s12 + $0x490] sm:$0xff]
        %v4688 = vld [vmem:[%s12 + $0x498] sm:$0xff]
        %v4689 = vld [vmem:[%s12 + $0x4a0] sm:$0xff]
        %v4690 = vld [vmem:[%s12 + $0x4a8] sm:$0xff]
        %v4691 = vld [vmem:[%s12 + $0x4b0] sm:$0xff]
        %v4692 = vld [vmem:[%s12 + $0x4b8] sm:$0xff]
        %v4693 = vld [vmem:[%s12 + $0x4c0] sm:$0xff]
        %v4694 = vld [vmem:[%s12 + $0x4c8] sm:$0xff]
        %v4695 = vld [vmem:[%s12 + $0x4d0] sm:$0xff]
        %v4696 = vld [vmem:[%s12 + $0x4d8] sm:$0xff]
        %v4697 = vld [vmem:[%s12 + $0x4e0] sm:$0xff]
        %v4698 = vld [vmem:[%s12 + $0x4e8] sm:$0xff]
        %v4699 = vld [vmem:[%s12 + $0x4f0] sm:$0xff]
        %v4700 = vld [vmem:[%s12 + $0x4f8] sm:$0xff]
        %v4701 = vld [vmem:[%s12 + $0x500] sm:$0xff]
        %v4702 = vld [vmem:[%s12 + $0x508] sm:$0xff]
        %v4703 = vld [vmem:[%s12 + $0x510] sm:$0xff]
        %v4704 = vld [vmem:[%s12 + $0x518] sm:$0xff]
        %v4705 = vld [vmem:[%s12 + $0x520] sm:$0xff]
        %v4706 = vld [vmem:[%s12 + $0x528] sm:$0xff]
        %v4707 = vld [vmem:[%s12 + $0x530] sm:$0xff]
        %v4708 = vld [vmem:[%s12 + $0x538] sm:$0xff]
        %v4709 = vld [vmem:[%s12 + $0x540] sm:$0xff]
        %v4710 = vld [vmem:[%s12 + $0x548] sm:$0xff]
        %v4711 = vld [vmem:[%s12 + $0x550] sm:$0xff]
        %v4712 = vld [vmem:[%s12 + $0x558] sm:$0xff]
        %v4713 = vld [vmem:[%s12 + $0x560] sm:$0xff]
        %v4714 = vld [vmem:[%s12 + $0x568] sm:$0xff]
        %v4715 = vld [vmem:[%s12 + $0x570] sm:$0xff]
        %v4716 = vld [vmem:[%s12 + $0x578] sm:$0xff]
        %v4717 = vld [vmem:[%s12 + $0x580] sm:$0xff]
        %v4718 = vld [vmem:[%s12 + $0x588] sm:$0xff]
        %v4719 = vld [vmem:[%s12 + $0x590] sm:$0xff]
        %v4720 = vld [vmem:[%s12 + $0x598] sm:$0xff]
        %v4721 = vld [vmem:[%s12 + $0x5a0] sm:$0xff]
        %v4722 = vld [vmem:[%s12 + $0x5a8] sm:$0xff]
        %v4723 = vld [vmem:[%s12 + $0x5b0] sm:$0xff]
        %v4724 = vld [vmem:[%s12 + $0x5b8] sm:$0xff]
        %v4725 = vld [vmem:[%s12 + $0x5c0] sm:$0xff]
        %v4726 = vld [vmem:[%s12 + $0x5c8] sm:$0xff]
        %v4727 = vld [vmem:[%s12 + $0x5d0] sm:$0xff]
        %v4728 = vld [vmem:[%s12 + $0x5d8] sm:$0xff]
        %v4729 = vld [vmem:[%s12 + $0x5e0] sm:$0xff]
        %v4730 = vld [vmem:[%s12 + $0x5e8] sm:$0xff]
        %v4731 = vld [vmem:[%s12 + $0x5f0] sm:$0xff]
        %v4732 = vld [vmem:[%s12 + $0x5f8] sm:$0xff]
        %v4733 = vld [vmem:[%s12 + $0x600] sm:$0xff]
        %v4734 = vld [vmem:[%s12 + $0x608] sm:$0xff]
        %v4735 = vld [vmem:[%s12 + $0x610] sm:$0xff]
        %v4736 = vld [vmem:[%s12 + $0x618] sm:$0xff]
        %v4737 = vld [vmem:[%s12 + $0x620] sm:$0xff]
        %v4738 = vld [vmem:[%s12 + $0x628] sm:$0xff]
        %v4739 = vld [vmem:[%s12 + $0x630] sm:$0xff]
        %v4740 = vld [vmem:[%s12 + $0x638] sm:$0xff]
        %v4741 = vld [vmem:[%s12 + $0x640] sm:$0xff]
        %v4742 = vld [vmem:[%s12 + $0x648] sm:$0xff]
        %v4743 = vld [vmem:[%s12 + $0x650] sm:$0xff]
        %v4744 = vld [vmem:[%s12 + $0x658] sm:$0xff]
        %v4745 = vld [vmem:[%s12 + $0x660] sm:$0xff]
        %v4746 = vld [vmem:[%s12 + $0x668] sm:$0xff]
        %v4747 = vld [vmem:[%s12 + $0x670] sm:$0xff]
        %v4748 = vld [vmem:[%s12 + $0x678] sm:$0xff]
        %v4749 = vld [vmem:[%s12 + $0x680] sm:$0xff]
        %v4750 = vld [vmem:[%s12 + $0x688] sm:$0xff]
        %v4751 = vld [vmem:[%s12 + $0x690] sm:$0xff]
        %v4752 = vld [vmem:[%s12 + $0x698] sm:$0xff]
        %v4753 = vld [vmem:[%s12 + $0x6a0] sm:$0xff]
        %v4754 = vld [vmem:[%s12 + $0x6a8] sm:$0xff]
        %v4755 = vld [vmem:[%s12 + $0x6b0] sm:$0xff]
        %v4756 = vld [vmem:[%s12 + $0x6b8] sm:$0xff]
        %v4757 = vld [vmem:[%s12 + $0x6c0] sm:$0xff]
        %v4758 = vld [vmem:[%s12 + $0x6c8] sm:$0xff]
        %v4759 = vld [vmem:[%s12 + $0x6d0] sm:$0xff]
        %v4760 = vld [vmem:[%s12 + $0x6d8] sm:$0xff]
        %v4761 = vld [vmem:[%s12 + $0x6e0] sm:$0xff]
        %v4762 = vld [vmem:[%s12 + $0x6e8] sm:$0xff]
        %v4763 = vld [vmem:[%s12 + $0x6f0] sm:$0xff]
        %v4764 = vld [vmem:[%s12 + $0x6f8] sm:$0xff]
        %v4765 = vld [vmem:[%s12 + $0x700] sm:$0xff]
        %v4766 = vld [vmem:[%s12 + $0x708] sm:$0xff]
        %v4767 = vld [vmem:[%s12 + $0x710] sm:$0xff]
        %v4768 = vld [vmem:[%s12 + $0x718] sm:$0xff]
        %v4769 = vld [vmem:[%s12 + $0x720] sm:$0xff]
        %v4770 = vld [vmem:[%s12 + $0x728] sm:$0xff]
        %v4771 = vld [vmem:[%s12 + $0x730] sm:$0xff]
        %v4772 = vld [vmem:[%s12 + $0x738] sm:$0xff]
        %v4773 = vld [vmem:[%s12 + $0x740] sm:$0xff]
        %v4774 = vld [vmem:[%s12 + $0x748] sm:$0xff]
        %v4775 = vld [vmem:[%s12 + $0x750] sm:$0xff]
        %v4776 = vld [vmem:[%s12 + $0x758] sm:$0xff]
        %v4777 = vld [vmem:[%s12 + $0x760] sm:$0xff]
        %v4778 = vld [vmem:[%s12 + $0x768] sm:$0xff]
        %v4779 = vld [vmem:[%s12 + $0x770] sm:$0xff]
        %v4780 = vld [vmem:[%s12 + $0x778] sm:$0xff]
        %v4781 = vld [vmem:[%s12 + $0x780] sm:$0xff]
        %v4782 = vld [vmem:[%s12 + $0x788] sm:$0xff]
        %v4783 = vld [vmem:[%s12 + $0x790] sm:$0xff]
        %v4784 = vld [vmem:[%s12 + $0x798] sm:$0xff]
        %v4785 = vld [vmem:[%s12 + $0x7a0] sm:$0xff]
        %v4786 = vld [vmem:[%s12 + $0x7a8] sm:$0xff]
        %v4787 = vld [vmem:[%s12 + $0x7b0] sm:$0xff]
        %v4788 = vld [vmem:[%s12 + $0x7b8] sm:$0xff]
        %v4789 = vld [vmem:[%s12 + $0x7c0] sm:$0xff]
        %v4790 = vld [vmem:[%s12 + $0x7c8] sm:$0xff]
        %v4791 = vld [vmem:[%s12 + $0x7d0] sm:$0xff]
        %v4792 = vld [vmem:[%s12 + $0x7d8] sm:$0xff]
        %v4793 = vld [vmem:[%s12 + $0x7e0] sm:$0xff]
        %v4794 = vld [vmem:[%s12 + $0x7e8] sm:$0xff]
        %v4795 = vld [vmem:[%s12 + $0x7f0] sm:$0xff]
        %v4796 = vld [vmem:[%s12 + $0x7f8] sm:$0xff]
        %v5053 = vunpack.c.l.b16 %v4541
        %v5054 = vunpack.c.h.b16 %v4541
        %v5055 = vunpack.c.l.b16 %v4542
        %v5056 = vunpack.c.h.b16 %v4542
        %v5057 = vunpack.c.l.b16 %v4543
        %v5058 = vunpack.c.h.b16 %v4543
        %v5059 = vunpack.c.l.b16 %v4544
        %v5060 = vunpack.c.h.b16 %v4544
        %v5061 = vunpack.c.l.b16 %v4545
        %v5062 = vunpack.c.h.b16 %v4545
        %v5063 = vunpack.c.l.b16 %v4546
        %v5064 = vunpack.c.h.b16 %v4546
        %v5065 = vunpack.c.l.b16 %v4547
        %v5066 = vunpack.c.h.b16 %v4547
        %v5067 = vunpack.c.l.b16 %v4548
        %v5068 = vunpack.c.h.b16 %v4548
        %v5069 = vunpack.c.l.b16 %v4549
        %v5070 = vunpack.c.h.b16 %v4549
        %v5071 = vunpack.c.l.b16 %v4550
        %v5072 = vunpack.c.h.b16 %v4550
        %v5073 = vunpack.c.l.b16 %v4551
        %v5074 = vunpack.c.h.b16 %v4551
        %v5075 = vunpack.c.l.b16 %v4552
        %v5076 = vunpack.c.h.b16 %v4552
        %v5077 = vunpack.c.l.b16 %v4553
        %v5078 = vunpack.c.h.b16 %v4553
        %v5079 = vunpack.c.l.b16 %v4554
        %v5080 = vunpack.c.h.b16 %v4554
        %v5081 = vunpack.c.l.b16 %v4555
        %v5082 = vunpack.c.h.b16 %v4555
        %v5083 = vunpack.c.l.b16 %v4556
        %v5084 = vunpack.c.h.b16 %v4556
        %v5085 = vunpack.c.l.b16 %v4557
        %v5086 = vunpack.c.h.b16 %v4557
        %v5087 = vunpack.c.l.b16 %v4558
        %v5088 = vunpack.c.h.b16 %v4558
        %v5089 = vunpack.c.l.b16 %v4559
        %v5090 = vunpack.c.h.b16 %v4559
        %v5091 = vunpack.c.l.b16 %v4560
        %v5092 = vunpack.c.h.b16 %v4560
        %v5093 = vunpack.c.l.b16 %v4561
        %v5094 = vunpack.c.h.b16 %v4561
        %v5095 = vunpack.c.l.b16 %v4562
        %v5096 = vunpack.c.h.b16 %v4562
        %v5097 = vunpack.c.l.b16 %v4563
        %v5098 = vunpack.c.h.b16 %v4563
        %v5099 = vunpack.c.l.b16 %v4564
        %v5100 = vunpack.c.h.b16 %v4564
        %v5101 = vunpack.c.l.b16 %v4565
        %v5102 = vunpack.c.h.b16 %v4565
        %v5103 = vunpack.c.l.b16 %v4566
        %v5104 = vunpack.c.h.b16 %v4566
        %v5105 = vunpack.c.l.b16 %v4567
        %v5106 = vunpack.c.h.b16 %v4567
        %v5107 = vunpack.c.l.b16 %v4568
        %v5108 = vunpack.c.h.b16 %v4568
        %v5109 = vunpack.c.l.b16 %v4569
        %v5110 = vunpack.c.h.b16 %v4569
        %v5111 = vunpack.c.l.b16 %v4570
        %v5112 = vunpack.c.h.b16 %v4570
        %v5113 = vunpack.c.l.b16 %v4571
        %v5114 = vunpack.c.h.b16 %v4571
        %v5115 = vunpack.c.l.b16 %v4572
        %v5116 = vunpack.c.h.b16 %v4572
        %v5117 = vunpack.c.l.b16 %v4573
        %v5118 = vunpack.c.h.b16 %v4573
        %v5119 = vunpack.c.l.b16 %v4574
        %v5120 = vunpack.c.h.b16 %v4574
        %v5121 = vunpack.c.l.b16 %v4575
        %v5122 = vunpack.c.h.b16 %v4575
        %v5123 = vunpack.c.l.b16 %v4576
        %v5124 = vunpack.c.h.b16 %v4576
        %v5125 = vunpack.c.l.b16 %v4577
        %v5126 = vunpack.c.h.b16 %v4577
        %v5127 = vunpack.c.l.b16 %v4578
        %v5128 = vunpack.c.h.b16 %v4578
        %v5129 = vunpack.c.l.b16 %v4579
        %v5130 = vunpack.c.h.b16 %v4579
        %v5131 = vunpack.c.l.b16 %v4580
        %v5132 = vunpack.c.h.b16 %v4580
        %v5133 = vunpack.c.l.b16 %v4581
        %v5134 = vunpack.c.h.b16 %v4581
        %v5135 = vunpack.c.l.b16 %v4582
        %v5136 = vunpack.c.h.b16 %v4582
        %v5137 = vunpack.c.l.b16 %v4583
        %v5138 = vunpack.c.h.b16 %v4583
        %v5139 = vunpack.c.l.b16 %v4584
        %v5140 = vunpack.c.h.b16 %v4584
        %v5141 = vunpack.c.l.b16 %v4585
        %v5142 = vunpack.c.h.b16 %v4585
        %v5143 = vunpack.c.l.b16 %v4586
        %v5144 = vunpack.c.h.b16 %v4586
        %v5145 = vunpack.c.l.b16 %v4587
        %v5146 = vunpack.c.h.b16 %v4587
        %v5147 = vunpack.c.l.b16 %v4588
        %v5148 = vunpack.c.h.b16 %v4588
        %v5149 = vunpack.c.l.b16 %v4589
        %v5150 = vunpack.c.h.b16 %v4589
        %v5151 = vunpack.c.l.b16 %v4590
        %v5152 = vunpack.c.h.b16 %v4590
        %v5153 = vunpack.c.l.b16 %v4591
        %v5154 = vunpack.c.h.b16 %v4591
        %v5155 = vunpack.c.l.b16 %v4592
        %v5156 = vunpack.c.h.b16 %v4592
        %v5157 = vunpack.c.l.b16 %v4593
        %v5158 = vunpack.c.h.b16 %v4593
        %v5159 = vunpack.c.l.b16 %v4594
        %v5160 = vunpack.c.h.b16 %v4594
        %v5161 = vunpack.c.l.b16 %v4595
        %v5162 = vunpack.c.h.b16 %v4595
        %v5163 = vunpack.c.l.b16 %v4596
        %v5164 = vunpack.c.h.b16 %v4596
        %v5165 = vunpack.c.l.b16 %v4597
        %v5166 = vunpack.c.h.b16 %v4597
        %v5167 = vunpack.c.l.b16 %v4598
        %v5168 = vunpack.c.h.b16 %v4598
        %v5169 = vunpack.c.l.b16 %v4599
        %v5170 = vunpack.c.h.b16 %v4599
        %v5171 = vunpack.c.l.b16 %v4600
        %v5172 = vunpack.c.h.b16 %v4600
        %v5173 = vunpack.c.l.b16 %v4601
        %v5174 = vunpack.c.h.b16 %v4601
        %v5175 = vunpack.c.l.b16 %v4602
        %v5176 = vunpack.c.h.b16 %v4602
        %v5177 = vunpack.c.l.b16 %v4603
        %v5178 = vunpack.c.h.b16 %v4603
        %v5179 = vunpack.c.l.b16 %v4604
        %v5180 = vunpack.c.h.b16 %v4604
        %v5181 = vunpack.c.l.b16 %v4605
        %v5182 = vunpack.c.h.b16 %v4605
        %v5183 = vunpack.c.l.b16 %v4606
        %v5184 = vunpack.c.h.b16 %v4606
        %v5185 = vunpack.c.l.b16 %v4607
        %v5186 = vunpack.c.h.b16 %v4607
        %v5187 = vunpack.c.l.b16 %v4608
        %v5188 = vunpack.c.h.b16 %v4608
        %v5189 = vunpack.c.l.b16 %v4609
        %v5190 = vunpack.c.h.b16 %v4609
        %v5191 = vunpack.c.l.b16 %v4610
        %v5192 = vunpack.c.h.b16 %v4610
        %v5193 = vunpack.c.l.b16 %v4611
        %v5194 = vunpack.c.h.b16 %v4611
        %v5195 = vunpack.c.l.b16 %v4612
        %v5196 = vunpack.c.h.b16 %v4612
        %v5197 = vunpack.c.l.b16 %v4613
        %v5198 = vunpack.c.h.b16 %v4613
        %v5199 = vunpack.c.l.b16 %v4614
        %v5200 = vunpack.c.h.b16 %v4614
        %v5201 = vunpack.c.l.b16 %v4615
        %v5202 = vunpack.c.h.b16 %v4615
        %v5203 = vunpack.c.l.b16 %v4616
        %v5204 = vunpack.c.h.b16 %v4616
        %v5205 = vunpack.c.l.b16 %v4617
        %v5206 = vunpack.c.h.b16 %v4617
        %v5207 = vunpack.c.l.b16 %v4618
        %v5208 = vunpack.c.h.b16 %v4618
        %v5209 = vunpack.c.l.b16 %v4619
        %v5210 = vunpack.c.h.b16 %v4619
        %v5211 = vunpack.c.l.b16 %v4620
        %v5212 = vunpack.c.h.b16 %v4620
        %v5213 = vunpack.c.l.b16 %v4621
        %v5214 = vunpack.c.h.b16 %v4621
        %v5215 = vunpack.c.l.b16 %v4622
        %v5216 = vunpack.c.h.b16 %v4622
        %v5217 = vunpack.c.l.b16 %v4623
        %v5218 = vunpack.c.h.b16 %v4623
        %v5219 = vunpack.c.l.b16 %v4624
        %v5220 = vunpack.c.h.b16 %v4624
        %v5221 = vunpack.c.l.b16 %v4625
        %v5222 = vunpack.c.h.b16 %v4625
        %v5223 = vunpack.c.l.b16 %v4626
        %v5224 = vunpack.c.h.b16 %v4626
        %v5225 = vunpack.c.l.b16 %v4627
        %v5226 = vunpack.c.h.b16 %v4627
        %v5227 = vunpack.c.l.b16 %v4628
        %v5228 = vunpack.c.h.b16 %v4628
        %v5229 = vunpack.c.l.b16 %v4629
        %v5230 = vunpack.c.h.b16 %v4629
        %v5231 = vunpack.c.l.b16 %v4630
        %v5232 = vunpack.c.h.b16 %v4630
        %v5233 = vunpack.c.l.b16 %v4631
        %v5234 = vunpack.c.h.b16 %v4631
        %v5235 = vunpack.c.l.b16 %v4632
        %v5236 = vunpack.c.h.b16 %v4632
        %v5237 = vunpack.c.l.b16 %v4633
        %v5238 = vunpack.c.h.b16 %v4633
        %v5239 = vunpack.c.l.b16 %v4634
        %v5240 = vunpack.c.h.b16 %v4634
        %v5241 = vunpack.c.l.b16 %v4635
        %v5242 = vunpack.c.h.b16 %v4635
        %v5243 = vunpack.c.l.b16 %v4636
        %v5244 = vunpack.c.h.b16 %v4636
        %v5245 = vunpack.c.l.b16 %v4637
        %v5246 = vunpack.c.h.b16 %v4637
        %v5247 = vunpack.c.l.b16 %v4638
        %v5248 = vunpack.c.h.b16 %v4638
        %v5249 = vunpack.c.l.b16 %v4639
        %v5250 = vunpack.c.h.b16 %v4639
        %v5251 = vunpack.c.l.b16 %v4640
        %v5252 = vunpack.c.h.b16 %v4640
        %v5253 = vunpack.c.l.b16 %v4641
        %v5254 = vunpack.c.h.b16 %v4641
        %v5255 = vunpack.c.l.b16 %v4642
        %v5256 = vunpack.c.h.b16 %v4642
        %v5257 = vunpack.c.l.b16 %v4643
        %v5258 = vunpack.c.h.b16 %v4643
        %v5259 = vunpack.c.l.b16 %v4644
        %v5260 = vunpack.c.h.b16 %v4644
        %v5261 = vunpack.c.l.b16 %v4645
        %v5262 = vunpack.c.h.b16 %v4645
        %v5263 = vunpack.c.l.b16 %v4646
        %v5264 = vunpack.c.h.b16 %v4646
        %v5265 = vunpack.c.l.b16 %v4647
        %v5266 = vunpack.c.h.b16 %v4647
        %v5267 = vunpack.c.l.b16 %v4648
        %v5268 = vunpack.c.h.b16 %v4648
        %v5269 = vunpack.c.l.b16 %v4649
        %v5270 = vunpack.c.h.b16 %v4649
        %v5271 = vunpack.c.l.b16 %v4650
        %v5272 = vunpack.c.h.b16 %v4650
        %v5273 = vunpack.c.l.b16 %v4651
        %v5274 = vunpack.c.h.b16 %v4651
        %v5275 = vunpack.c.l.b16 %v4652
        %v5276 = vunpack.c.h.b16 %v4652
        %v5277 = vunpack.c.l.b16 %v4653
        %v5278 = vunpack.c.h.b16 %v4653
        %v5279 = vunpack.c.l.b16 %v4654
        %v5280 = vunpack.c.h.b16 %v4654
        %v5281 = vunpack.c.l.b16 %v4655
        %v5282 = vunpack.c.h.b16 %v4655
        %v5283 = vunpack.c.l.b16 %v4656
        %v5284 = vunpack.c.h.b16 %v4656
        %v5285 = vunpack.c.l.b16 %v4657
        %v5286 = vunpack.c.h.b16 %v4657
        %v5287 = vunpack.c.l.b16 %v4658
        %v5288 = vunpack.c.h.b16 %v4658
        %v5289 = vunpack.c.l.b16 %v4659
        %v5290 = vunpack.c.h.b16 %v4659
        %v5291 = vunpack.c.l.b16 %v4660
        %v5292 = vunpack.c.h.b16 %v4660
        %v5293 = vunpack.c.l.b16 %v4661
        %v5294 = vunpack.c.h.b16 %v4661
        %v5295 = vunpack.c.l.b16 %v4662
        %v5296 = vunpack.c.h.b16 %v4662
        %v5297 = vunpack.c.l.b16 %v4663
        %v5298 = vunpack.c.h.b16 %v4663
        %v5299 = vunpack.c.l.b16 %v4664
        %v5300 = vunpack.c.h.b16 %v4664
        %v5301 = vunpack.c.l.b16 %v4665
        %v5302 = vunpack.c.h.b16 %v4665
        %v5303 = vunpack.c.l.b16 %v4666
        %v5304 = vunpack.c.h.b16 %v4666
        %v5305 = vunpack.c.l.b16 %v4667
        %v5306 = vunpack.c.h.b16 %v4667
        %v5307 = vunpack.c.l.b16 %v4668
        %v5308 = vunpack.c.h.b16 %v4668
        %v5309 = vunpack.c.l.b16 %v4669
        %v5310 = vunpack.c.h.b16 %v4669
        %v5311 = vunpack.c.l.b16 %v4670
        %v5312 = vunpack.c.h.b16 %v4670
        %v5313 = vunpack.c.l.b16 %v4671
        %v5314 = vunpack.c.h.b16 %v4671
        %v5315 = vunpack.c.l.b16 %v4672
        %v5316 = vunpack.c.h.b16 %v4672
        %v5317 = vunpack.c.l.b16 %v4673
        %v5318 = vunpack.c.h.b16 %v4673
        %v5319 = vunpack.c.l.b16 %v4674
        %v5320 = vunpack.c.h.b16 %v4674
        %v5321 = vunpack.c.l.b16 %v4675
        %v5322 = vunpack.c.h.b16 %v4675
        %v5323 = vunpack.c.l.b16 %v4676
        %v5324 = vunpack.c.h.b16 %v4676
        %v5325 = vunpack.c.l.b16 %v4677
        %v5326 = vunpack.c.h.b16 %v4677
        %v5327 = vunpack.c.l.b16 %v4678
        %v5328 = vunpack.c.h.b16 %v4678
        %v5329 = vunpack.c.l.b16 %v4679
        %v5330 = vunpack.c.h.b16 %v4679
        %v5331 = vunpack.c.l.b16 %v4680
        %v5332 = vunpack.c.h.b16 %v4680
        %v5333 = vunpack.c.l.b16 %v4681
        %v5334 = vunpack.c.h.b16 %v4681
        %v5335 = vunpack.c.l.b16 %v4682
        %v5336 = vunpack.c.h.b16 %v4682
        %v5337 = vunpack.c.l.b16 %v4683
        %v5338 = vunpack.c.h.b16 %v4683
        %v5339 = vunpack.c.l.b16 %v4684
        %v5340 = vunpack.c.h.b16 %v4684
        %v5341 = vunpack.c.l.b16 %v4685
        %v5342 = vunpack.c.h.b16 %v4685
        %v5343 = vunpack.c.l.b16 %v4686
        %v5344 = vunpack.c.h.b16 %v4686
        %v5345 = vunpack.c.l.b16 %v4687
        %v5346 = vunpack.c.h.b16 %v4687
        %v5347 = vunpack.c.l.b16 %v4688
        %v5348 = vunpack.c.h.b16 %v4688
        %v5349 = vunpack.c.l.b16 %v4689
        %v5350 = vunpack.c.h.b16 %v4689
        %v5351 = vunpack.c.l.b16 %v4690
        %v5352 = vunpack.c.h.b16 %v4690
        %v5353 = vunpack.c.l.b16 %v4691
        %v5354 = vunpack.c.h.b16 %v4691
        %v5355 = vunpack.c.l.b16 %v4692
        %v5356 = vunpack.c.h.b16 %v4692
        %v5357 = vunpack.c.l.b16 %v4693
        %v5358 = vunpack.c.h.b16 %v4693
        %v5359 = vunpack.c.l.b16 %v4694
        %v5360 = vunpack.c.h.b16 %v4694
        %v5361 = vunpack.c.l.b16 %v4695
        %v5362 = vunpack.c.h.b16 %v4695
        %v5363 = vunpack.c.l.b16 %v4696
        %v5364 = vunpack.c.h.b16 %v4696
        %v5365 = vunpack.c.l.b16 %v4697
        %v5366 = vunpack.c.h.b16 %v4697
        %v5367 = vunpack.c.l.b16 %v4698
        %v5368 = vunpack.c.h.b16 %v4698
        %v5369 = vunpack.c.l.b16 %v4699
        %v5370 = vunpack.c.h.b16 %v4699
        %v5371 = vunpack.c.l.b16 %v4700
        %v5372 = vunpack.c.h.b16 %v4700
        %v5373 = vunpack.c.l.b16 %v4701
        %v5374 = vunpack.c.h.b16 %v4701
        %v5375 = vunpack.c.l.b16 %v4702
        %v5376 = vunpack.c.h.b16 %v4702
        %v5377 = vunpack.c.l.b16 %v4703
        %v5378 = vunpack.c.h.b16 %v4703
        %v5379 = vunpack.c.l.b16 %v4704
        %v5380 = vunpack.c.h.b16 %v4704
        %v5381 = vunpack.c.l.b16 %v4705
        %v5382 = vunpack.c.h.b16 %v4705
        %v5383 = vunpack.c.l.b16 %v4706
        %v5384 = vunpack.c.h.b16 %v4706
        %v5385 = vunpack.c.l.b16 %v4707
        %v5386 = vunpack.c.h.b16 %v4707
        %v5387 = vunpack.c.l.b16 %v4708
        %v5388 = vunpack.c.h.b16 %v4708
        %v5389 = vunpack.c.l.b16 %v4709
        %v5390 = vunpack.c.h.b16 %v4709
        %v5391 = vunpack.c.l.b16 %v4710
        %v5392 = vunpack.c.h.b16 %v4710
        %v5393 = vunpack.c.l.b16 %v4711
        %v5394 = vunpack.c.h.b16 %v4711
        %v5395 = vunpack.c.l.b16 %v4712
        %v5396 = vunpack.c.h.b16 %v4712
        %v5397 = vunpack.c.l.b16 %v4713
        %v5398 = vunpack.c.h.b16 %v4713
        %v5399 = vunpack.c.l.b16 %v4714
        %v5400 = vunpack.c.h.b16 %v4714
        %v5401 = vunpack.c.l.b16 %v4715
        %v5402 = vunpack.c.h.b16 %v4715
        %v5403 = vunpack.c.l.b16 %v4716
        %v5404 = vunpack.c.h.b16 %v4716
        %v5405 = vunpack.c.l.b16 %v4717
        %v5406 = vunpack.c.h.b16 %v4717
        %v5407 = vunpack.c.l.b16 %v4718
        %v5408 = vunpack.c.h.b16 %v4718
        %v5409 = vunpack.c.l.b16 %v4719
        %v5410 = vunpack.c.h.b16 %v4719
        %v5411 = vunpack.c.l.b16 %v4720
        %v5412 = vunpack.c.h.b16 %v4720
        %v5413 = vunpack.c.l.b16 %v4721
        %v5414 = vunpack.c.h.b16 %v4721
        %v5415 = vunpack.c.l.b16 %v4722
        %v5416 = vunpack.c.h.b16 %v4722
        %v5417 = vunpack.c.l.b16 %v4723
        %v5418 = vunpack.c.h.b16 %v4723
        %v5419 = vunpack.c.l.b16 %v4724
        %v5420 = vunpack.c.h.b16 %v4724
        %v5421 = vunpack.c.l.b16 %v4725
        %v5422 = vunpack.c.h.b16 %v4725
        %v5423 = vunpack.c.l.b16 %v4726
        %v5424 = vunpack.c.h.b16 %v4726
        %v5425 = vunpack.c.l.b16 %v4727
        %v5426 = vunpack.c.h.b16 %v4727
        %v5427 = vunpack.c.l.b16 %v4728
        %v5428 = vunpack.c.h.b16 %v4728
        %v5429 = vunpack.c.l.b16 %v4729
        %v5430 = vunpack.c.h.b16 %v4729
        %v5431 = vunpack.c.l.b16 %v4730
        %v5432 = vunpack.c.h.b16 %v4730
        %v5433 = vunpack.c.l.b16 %v4731
        %v5434 = vunpack.c.h.b16 %v4731
        %v5435 = vunpack.c.l.b16 %v4732
        %v5436 = vunpack.c.h.b16 %v4732
        %v5437 = vunpack.c.l.b16 %v4733
        %v5438 = vunpack.c.h.b16 %v4733
        %v5439 = vunpack.c.l.b16 %v4734
        %v5440 = vunpack.c.h.b16 %v4734
        %v5441 = vunpack.c.l.b16 %v4735
        %v5442 = vunpack.c.h.b16 %v4735
        %v5443 = vunpack.c.l.b16 %v4736
        %v5444 = vunpack.c.h.b16 %v4736
        %v5445 = vunpack.c.l.b16 %v4737
        %v5446 = vunpack.c.h.b16 %v4737
        %v5447 = vunpack.c.l.b16 %v4738
        %v5448 = vunpack.c.h.b16 %v4738
        %v5449 = vunpack.c.l.b16 %v4739
        %v5450 = vunpack.c.h.b16 %v4739
        %v5451 = vunpack.c.l.b16 %v4740
        %v5452 = vunpack.c.h.b16 %v4740
        %v5453 = vunpack.c.l.b16 %v4741
        %v5454 = vunpack.c.h.b16 %v4741
        %v5455 = vunpack.c.l.b16 %v4742
        %v5456 = vunpack.c.h.b16 %v4742
        %v5457 = vunpack.c.l.b16 %v4743
        %v5458 = vunpack.c.h.b16 %v4743
        %v5459 = vunpack.c.l.b16 %v4744
        %v5460 = vunpack.c.h.b16 %v4744
        %v5461 = vunpack.c.l.b16 %v4745
        %v5462 = vunpack.c.h.b16 %v4745
        %v5463 = vunpack.c.l.b16 %v4746
        %v5464 = vunpack.c.h.b16 %v4746
        %v5465 = vunpack.c.l.b16 %v4747
        %v5466 = vunpack.c.h.b16 %v4747
        %v5467 = vunpack.c.l.b16 %v4748
        %v5468 = vunpack.c.h.b16 %v4748
        %v5469 = vunpack.c.l.b16 %v4749
        %v5470 = vunpack.c.h.b16 %v4749
        %v5471 = vunpack.c.l.b16 %v4750
        %v5472 = vunpack.c.h.b16 %v4750
        %v5473 = vunpack.c.l.b16 %v4751
        %v5474 = vunpack.c.h.b16 %v4751
        %v5475 = vunpack.c.l.b16 %v4752
        %v5476 = vunpack.c.h.b16 %v4752
        %v5477 = vunpack.c.l.b16 %v4753
        %v5478 = vunpack.c.h.b16 %v4753
        %v5479 = vunpack.c.l.b16 %v4754
        %v5480 = vunpack.c.h.b16 %v4754
        %v5481 = vunpack.c.l.b16 %v4755
        %v5482 = vunpack.c.h.b16 %v4755
        %v5483 = vunpack.c.l.b16 %v4756
        %v5484 = vunpack.c.h.b16 %v4756
        %v5485 = vunpack.c.l.b16 %v4757
        %v5486 = vunpack.c.h.b16 %v4757
        %v5487 = vunpack.c.l.b16 %v4758
        %v5488 = vunpack.c.h.b16 %v4758
        %v5489 = vunpack.c.l.b16 %v4759
        %v5490 = vunpack.c.h.b16 %v4759
        %v5491 = vunpack.c.l.b16 %v4760
        %v5492 = vunpack.c.h.b16 %v4760
        %v5493 = vunpack.c.l.b16 %v4761
        %v5494 = vunpack.c.h.b16 %v4761
        %v5495 = vunpack.c.l.b16 %v4762
        %v5496 = vunpack.c.h.b16 %v4762
        %v5497 = vunpack.c.l.b16 %v4763
        %v5498 = vunpack.c.h.b16 %v4763
        %v5499 = vunpack.c.l.b16 %v4764
        %v5500 = vunpack.c.h.b16 %v4764
        %v5501 = vunpack.c.l.b16 %v4765
        %v5502 = vunpack.c.h.b16 %v4765
        %v5503 = vunpack.c.l.b16 %v4766
        %v5504 = vunpack.c.h.b16 %v4766
        %v5505 = vunpack.c.l.b16 %v4767
        %v5506 = vunpack.c.h.b16 %v4767
        %v5507 = vunpack.c.l.b16 %v4768
        %v5508 = vunpack.c.h.b16 %v4768
        %v5509 = vunpack.c.l.b16 %v4769
        %v5510 = vunpack.c.h.b16 %v4769
        %v5511 = vunpack.c.l.b16 %v4770
        %v5512 = vunpack.c.h.b16 %v4770
        %v5513 = vunpack.c.l.b16 %v4771
        %v5514 = vunpack.c.h.b16 %v4771
        %v5515 = vunpack.c.l.b16 %v4772
        %v5516 = vunpack.c.h.b16 %v4772
        %v5517 = vunpack.c.l.b16 %v4773
        %v5518 = vunpack.c.h.b16 %v4773
        %v5519 = vunpack.c.l.b16 %v4774
        %v5520 = vunpack.c.h.b16 %v4774
        %v5521 = vunpack.c.l.b16 %v4775
        %v5522 = vunpack.c.h.b16 %v4775
        %v5523 = vunpack.c.l.b16 %v4776
        %v5524 = vunpack.c.h.b16 %v4776
        %v5525 = vunpack.c.l.b16 %v4777
        %v5526 = vunpack.c.h.b16 %v4777
        %v5527 = vunpack.c.l.b16 %v4778
        %v5528 = vunpack.c.h.b16 %v4778
        %v5529 = vunpack.c.l.b16 %v4779
        %v5530 = vunpack.c.h.b16 %v4779
        %v5531 = vunpack.c.l.b16 %v4780
        %v5532 = vunpack.c.h.b16 %v4780
        %v5533 = vunpack.c.l.b16 %v4781
        %v5534 = vunpack.c.h.b16 %v4781
        %v5535 = vunpack.c.l.b16 %v4782
        %v5536 = vunpack.c.h.b16 %v4782
        %v5537 = vunpack.c.l.b16 %v4783
        %v5538 = vunpack.c.h.b16 %v4783
        %v5539 = vunpack.c.l.b16 %v4784
        %v5540 = vunpack.c.h.b16 %v4784
        %v5541 = vunpack.c.l.b16 %v4785
        %v5542 = vunpack.c.h.b16 %v4785
        %v5543 = vunpack.c.l.b16 %v4786
        %v5544 = vunpack.c.h.b16 %v4786
        %v5545 = vunpack.c.l.b16 %v4787
        %v5546 = vunpack.c.h.b16 %v4787
        %v5547 = vunpack.c.l.b16 %v4788
        %v5548 = vunpack.c.h.b16 %v4788
        %v5549 = vunpack.c.l.b16 %v4789
        %v5550 = vunpack.c.h.b16 %v4789
        %v5551 = vunpack.c.l.b16 %v4790
        %v5552 = vunpack.c.h.b16 %v4790
        %v5553 = vunpack.c.l.b16 %v4791
        %v5554 = vunpack.c.h.b16 %v4791
        %v5555 = vunpack.c.l.b16 %v4792
        %v5556 = vunpack.c.h.b16 %v4792
        %v5557 = vunpack.c.l.b16 %v4793
        %v5558 = vunpack.c.h.b16 %v4793
        %v5559 = vunpack.c.l.b16 %v4794
        %v5560 = vunpack.c.h.b16 %v4794
        %v5561 = vunpack.c.l.b16 %v4795
        %v5562 = vunpack.c.h.b16 %v4795
        %v5563 = vunpack.c.l.b16 %v4796
        %v5564 = vunpack.c.h.b16 %v4796
        %v5565 = vpack.c.b16 %v5061, %v5053
        %v5566 = vpack.c.b16 %v5062, %v5054
        %v5567 = vpack.c.b16 %v5063, %v5055
        %v5568 = vpack.c.b16 %v5064, %v5056
        %v5569 = vpack.c.b16 %v5065, %v5057
        %v5570 = vpack.c.b16 %v5066, %v5058
        %v5571 = vpack.c.b16 %v5067, %v5059
        %v5572 = vpack.c.b16 %v5068, %v5060
        %v5573 = vpack.c.b16 %v5077, %v5069
        %v5574 = vpack.c.b16 %v5078, %v5070
        %v5575 = vpack.c.b16 %v5079, %v5071
        %v5576 = vpack.c.b16 %v5080, %v5072
        %v5577 = vpack.c.b16 %v5081, %v5073
        %v5578 = vpack.c.b16 %v5082, %v5074
        %v5579 = vpack.c.b16 %v5083, %v5075
        %v5580 = vpack.c.b16 %v5084, %v5076
        %v5581 = vpack.c.b16 %v5093, %v5085
        %v5582 = vpack.c.b16 %v5094, %v5086
        %v5583 = vpack.c.b16 %v5095, %v5087
        %v5584 = vpack.c.b16 %v5096, %v5088
        %v5585 = vpack.c.b16 %v5097, %v5089
        %v5586 = vpack.c.b16 %v5098, %v5090
        %v5587 = vpack.c.b16 %v5099, %v5091
        %v5588 = vpack.c.b16 %v5100, %v5092
        %v5589 = vpack.c.b16 %v5109, %v5101
        %v5590 = vpack.c.b16 %v5110, %v5102
        %v5591 = vpack.c.b16 %v5111, %v5103
        %v5592 = vpack.c.b16 %v5112, %v5104
        %v5593 = vpack.c.b16 %v5113, %v5105
        %v5594 = vpack.c.b16 %v5114, %v5106
        %v5595 = vpack.c.b16 %v5115, %v5107
        %v5596 = vpack.c.b16 %v5116, %v5108
        %v5597 = vpack.c.b16 %v5125, %v5117
        %v5598 = vpack.c.b16 %v5126, %v5118
        %v5599 = vpack.c.b16 %v5127, %v5119
        %v5600 = vpack.c.b16 %v5128, %v5120
        %v5601 = vpack.c.b16 %v5129, %v5121
        %v5602 = vpack.c.b16 %v5130, %v5122
        %v5603 = vpack.c.b16 %v5131, %v5123
        %v5604 = vpack.c.b16 %v5132, %v5124
        %v5605 = vpack.c.b16 %v5141, %v5133
        %v5606 = vpack.c.b16 %v5142, %v5134
        %v5607 = vpack.c.b16 %v5143, %v5135
        %v5608 = vpack.c.b16 %v5144, %v5136
        %v5609 = vpack.c.b16 %v5145, %v5137
        %v5610 = vpack.c.b16 %v5146, %v5138
        %v5611 = vpack.c.b16 %v5147, %v5139
        %v5612 = vpack.c.b16 %v5148, %v5140
        %v5613 = vpack.c.b16 %v5157, %v5149
        %v5614 = vpack.c.b16 %v5158, %v5150
        %v5615 = vpack.c.b16 %v5159, %v5151
        %v5616 = vpack.c.b16 %v5160, %v5152
        %v5617 = vpack.c.b16 %v5161, %v5153
        %v5618 = vpack.c.b16 %v5162, %v5154
        %v5619 = vpack.c.b16 %v5163, %v5155
        %v5620 = vpack.c.b16 %v5164, %v5156
        %v5621 = vpack.c.b16 %v5173, %v5165
        %v5622 = vpack.c.b16 %v5174, %v5166
        %v5623 = vpack.c.b16 %v5175, %v5167
        %v5624 = vpack.c.b16 %v5176, %v5168
        %v5625 = vpack.c.b16 %v5177, %v5169
        %v5626 = vpack.c.b16 %v5178, %v5170
        %v5627 = vpack.c.b16 %v5179, %v5171
        %v5628 = vpack.c.b16 %v5180, %v5172
        %v5629 = vpack.c.b16 %v5189, %v5181
        %v5630 = vpack.c.b16 %v5190, %v5182
        %v5631 = vpack.c.b16 %v5191, %v5183
        %v5632 = vpack.c.b16 %v5192, %v5184
        %v5633 = vpack.c.b16 %v5193, %v5185
        %v5634 = vpack.c.b16 %v5194, %v5186
        %v5635 = vpack.c.b16 %v5195, %v5187
        %v5636 = vpack.c.b16 %v5196, %v5188
        %v5637 = vpack.c.b16 %v5205, %v5197
        %v5638 = vpack.c.b16 %v5206, %v5198
        %v5639 = vpack.c.b16 %v5207, %v5199
        %v5640 = vpack.c.b16 %v5208, %v5200
        %v5641 = vpack.c.b16 %v5209, %v5201
        %v5642 = vpack.c.b16 %v5210, %v5202
        %v5643 = vpack.c.b16 %v5211, %v5203
        %v5644 = vpack.c.b16 %v5212, %v5204
        %v5645 = vpack.c.b16 %v5221, %v5213
        %v5646 = vpack.c.b16 %v5222, %v5214
        %v5647 = vpack.c.b16 %v5223, %v5215
        %v5648 = vpack.c.b16 %v5224, %v5216
        %v5649 = vpack.c.b16 %v5225, %v5217
        %v5650 = vpack.c.b16 %v5226, %v5218
        %v5651 = vpack.c.b16 %v5227, %v5219
        %v5652 = vpack.c.b16 %v5228, %v5220
        %v5653 = vpack.c.b16 %v5237, %v5229
        %v5654 = vpack.c.b16 %v5238, %v5230
        %v5655 = vpack.c.b16 %v5239, %v5231
        %v5656 = vpack.c.b16 %v5240, %v5232
        %v5657 = vpack.c.b16 %v5241, %v5233
        %v5658 = vpack.c.b16 %v5242, %v5234
        %v5659 = vpack.c.b16 %v5243, %v5235
        %v5660 = vpack.c.b16 %v5244, %v5236
        %v5661 = vpack.c.b16 %v5253, %v5245
        %v5662 = vpack.c.b16 %v5254, %v5246
        %v5663 = vpack.c.b16 %v5255, %v5247
        %v5664 = vpack.c.b16 %v5256, %v5248
        %v5665 = vpack.c.b16 %v5257, %v5249
        %v5666 = vpack.c.b16 %v5258, %v5250
        %v5667 = vpack.c.b16 %v5259, %v5251
        %v5668 = vpack.c.b16 %v5260, %v5252
        %v5669 = vpack.c.b16 %v5269, %v5261
        %v5670 = vpack.c.b16 %v5270, %v5262
        %v5671 = vpack.c.b16 %v5271, %v5263
        %v5672 = vpack.c.b16 %v5272, %v5264
        %v5673 = vpack.c.b16 %v5273, %v5265
        %v5674 = vpack.c.b16 %v5274, %v5266
        %v5675 = vpack.c.b16 %v5275, %v5267
        %v5676 = vpack.c.b16 %v5276, %v5268
        %v5677 = vpack.c.b16 %v5285, %v5277
        %v5678 = vpack.c.b16 %v5286, %v5278
        %v5679 = vpack.c.b16 %v5287, %v5279
        %v5680 = vpack.c.b16 %v5288, %v5280
        %v5681 = vpack.c.b16 %v5289, %v5281
        %v5682 = vpack.c.b16 %v5290, %v5282
        %v5683 = vpack.c.b16 %v5291, %v5283
        %v5684 = vpack.c.b16 %v5292, %v5284
        %v5685 = vpack.c.b16 %v5301, %v5293
        %v5686 = vpack.c.b16 %v5302, %v5294
        %v5687 = vpack.c.b16 %v5303, %v5295
        %v5688 = vpack.c.b16 %v5304, %v5296
        %v5689 = vpack.c.b16 %v5305, %v5297
        %v5690 = vpack.c.b16 %v5306, %v5298
        %v5691 = vpack.c.b16 %v5307, %v5299
        %v5692 = vpack.c.b16 %v5308, %v5300
        %v5693 = vpack.c.b16 %v5317, %v5309
        %v5694 = vpack.c.b16 %v5318, %v5310
        %v5695 = vpack.c.b16 %v5319, %v5311
        %v5696 = vpack.c.b16 %v5320, %v5312
        %v5697 = vpack.c.b16 %v5321, %v5313
        %v5698 = vpack.c.b16 %v5322, %v5314
        %v5699 = vpack.c.b16 %v5323, %v5315
        %v5700 = vpack.c.b16 %v5324, %v5316
        %v5701 = vpack.c.b16 %v5333, %v5325
        %v5702 = vpack.c.b16 %v5334, %v5326
        %v5703 = vpack.c.b16 %v5335, %v5327
        %v5704 = vpack.c.b16 %v5336, %v5328
        %v5705 = vpack.c.b16 %v5337, %v5329
        %v5706 = vpack.c.b16 %v5338, %v5330
        %v5707 = vpack.c.b16 %v5339, %v5331
        %v5708 = vpack.c.b16 %v5340, %v5332
        %v5709 = vpack.c.b16 %v5349, %v5341
        %v5710 = vpack.c.b16 %v5350, %v5342
        %v5711 = vpack.c.b16 %v5351, %v5343
        %v5712 = vpack.c.b16 %v5352, %v5344
        %v5713 = vpack.c.b16 %v5353, %v5345
        %v5714 = vpack.c.b16 %v5354, %v5346
        %v5715 = vpack.c.b16 %v5355, %v5347
        %v5716 = vpack.c.b16 %v5356, %v5348
        %v5717 = vpack.c.b16 %v5365, %v5357
        %v5718 = vpack.c.b16 %v5366, %v5358
        %v5719 = vpack.c.b16 %v5367, %v5359
        %v5720 = vpack.c.b16 %v5368, %v5360
        %v5721 = vpack.c.b16 %v5369, %v5361
        %v5722 = vpack.c.b16 %v5370, %v5362
        %v5723 = vpack.c.b16 %v5371, %v5363
        %v5724 = vpack.c.b16 %v5372, %v5364
        %v5725 = vpack.c.b16 %v5381, %v5373
        %v5726 = vpack.c.b16 %v5382, %v5374
        %v5727 = vpack.c.b16 %v5383, %v5375
        %v5728 = vpack.c.b16 %v5384, %v5376
        %v5729 = vpack.c.b16 %v5385, %v5377
        %v5730 = vpack.c.b16 %v5386, %v5378
        %v5731 = vpack.c.b16 %v5387, %v5379
        %v5732 = vpack.c.b16 %v5388, %v5380
        %v5733 = vpack.c.b16 %v5397, %v5389
        %v5734 = vpack.c.b16 %v5398, %v5390
        %v5735 = vpack.c.b16 %v5399, %v5391
        %v5736 = vpack.c.b16 %v5400, %v5392
        %v5737 = vpack.c.b16 %v5401, %v5393
        %v5738 = vpack.c.b16 %v5402, %v5394
        %v5739 = vpack.c.b16 %v5403, %v5395
        %v5740 = vpack.c.b16 %v5404, %v5396
        %v5741 = vpack.c.b16 %v5413, %v5405
        %v5742 = vpack.c.b16 %v5414, %v5406
        %v5743 = vpack.c.b16 %v5415, %v5407
        %v5744 = vpack.c.b16 %v5416, %v5408
        %v5745 = vpack.c.b16 %v5417, %v5409
        %v5746 = vpack.c.b16 %v5418, %v5410
        %v5747 = vpack.c.b16 %v5419, %v5411
        %v5748 = vpack.c.b16 %v5420, %v5412
        %v5749 = vpack.c.b16 %v5429, %v5421
        %v5750 = vpack.c.b16 %v5430, %v5422
        %v5751 = vpack.c.b16 %v5431, %v5423
        %v5752 = vpack.c.b16 %v5432, %v5424
        %v5753 = vpack.c.b16 %v5433, %v5425
        %v5754 = vpack.c.b16 %v5434, %v5426
        %v5755 = vpack.c.b16 %v5435, %v5427
        %v5756 = vpack.c.b16 %v5436, %v5428
        %v5757 = vpack.c.b16 %v5445, %v5437
        %v5758 = vpack.c.b16 %v5446, %v5438
        %v5759 = vpack.c.b16 %v5447, %v5439
        %v5760 = vpack.c.b16 %v5448, %v5440
        %v5761 = vpack.c.b16 %v5449, %v5441
        %v5762 = vpack.c.b16 %v5450, %v5442
        %v5763 = vpack.c.b16 %v5451, %v5443
        %v5764 = vpack.c.b16 %v5452, %v5444
        %v5765 = vpack.c.b16 %v5461, %v5453
        %v5766 = vpack.c.b16 %v5462, %v5454
        %v5767 = vpack.c.b16 %v5463, %v5455
        %v5768 = vpack.c.b16 %v5464, %v5456
        %v5769 = vpack.c.b16 %v5465, %v5457
        %v5770 = vpack.c.b16 %v5466, %v5458
        %v5771 = vpack.c.b16 %v5467, %v5459
        %v5772 = vpack.c.b16 %v5468, %v5460
        %v5773 = vpack.c.b16 %v5477, %v5469
        %v5774 = vpack.c.b16 %v5478, %v5470
        %v5775 = vpack.c.b16 %v5479, %v5471
        %v5776 = vpack.c.b16 %v5480, %v5472
        %v5777 = vpack.c.b16 %v5481, %v5473
        %v5778 = vpack.c.b16 %v5482, %v5474
        %v5779 = vpack.c.b16 %v5483, %v5475
        %v5780 = vpack.c.b16 %v5484, %v5476
        %v5781 = vpack.c.b16 %v5493, %v5485
        %v5782 = vpack.c.b16 %v5494, %v5486
        %v5783 = vpack.c.b16 %v5495, %v5487
        %v5784 = vpack.c.b16 %v5496, %v5488
        %v5785 = vpack.c.b16 %v5497, %v5489
        %v5786 = vpack.c.b16 %v5498, %v5490
        %v5787 = vpack.c.b16 %v5499, %v5491
        %v5788 = vpack.c.b16 %v5500, %v5492
        %v5789 = vpack.c.b16 %v5509, %v5501
        %v5790 = vpack.c.b16 %v5510, %v5502
        %v5791 = vpack.c.b16 %v5511, %v5503
        %v5792 = vpack.c.b16 %v5512, %v5504
        %v5793 = vpack.c.b16 %v5513, %v5505
        %v5794 = vpack.c.b16 %v5514, %v5506
        %v5795 = vpack.c.b16 %v5515, %v5507
        %v5796 = vpack.c.b16 %v5516, %v5508
        %v5797 = vpack.c.b16 %v5525, %v5517
        %v5798 = vpack.c.b16 %v5526, %v5518
        %v5799 = vpack.c.b16 %v5527, %v5519
        %v5800 = vpack.c.b16 %v5528, %v5520
        %v5801 = vpack.c.b16 %v5529, %v5521
        %v5802 = vpack.c.b16 %v5530, %v5522
        %v5803 = vpack.c.b16 %v5531, %v5523
        %v5804 = vpack.c.b16 %v5532, %v5524
        %v5805 = vpack.c.b16 %v5541, %v5533
        %v5806 = vpack.c.b16 %v5542, %v5534
        %v5807 = vpack.c.b16 %v5543, %v5535
        %v5808 = vpack.c.b16 %v5544, %v5536
        %v5809 = vpack.c.b16 %v5545, %v5537
        %v5810 = vpack.c.b16 %v5546, %v5538
        %v5811 = vpack.c.b16 %v5547, %v5539
        %v5812 = vpack.c.b16 %v5548, %v5540
        %v5813 = vpack.c.b16 %v5557, %v5549
        %v5814 = vpack.c.b16 %v5558, %v5550
        %v5815 = vpack.c.b16 %v5559, %v5551
        %v5816 = vpack.c.b16 %v5560, %v5552
        %v5817 = vpack.c.b16 %v5561, %v5553
        %v5818 = vpack.c.b16 %v5562, %v5554
        %v5819 = vpack.c.b16 %v5563, %v5555
        %v5820 = vpack.c.b16 %v5564, %v5556
        %6077 = vmatprep.subr.bf16.mxu0 0
        %6078 = vmatpush1.bf16.msra.mxu0 %v4477
        %6079 = vmatprep.subr.bf16.mxu0 0
        %6080 = vmatpush1.bf16.msra.mxu0 %v4478
        %6081 = vmatprep.subr.bf16.mxu0 0
        %6082 = vmatpush1.bf16.msra.mxu0 %v4479
        %6083 = vmatprep.subr.bf16.mxu0 0
        %6084 = vmatpush1.bf16.msra.mxu0 %v4480
        %6085 = vmatprep.subr.bf16.mxu0 0
        %6086 = vmatpush1.bf16.msra.mxu0 %v4481
        %6087 = vmatprep.subr.bf16.mxu0 0
        %6088 = vmatpush1.bf16.msra.mxu0 %v4482
        %6089 = vmatprep.subr.bf16.mxu0 0
        %6090 = vmatpush1.bf16.msra.mxu0 %v4483
        %6091 = vmatprep.subr.bf16.mxu0 0
        %6092 = vmatpush1.bf16.msra.mxu0 %v4484
        %6093 = vmatprep.subr.bf16.mxu0 0
        %6094 = vmatpush1.bf16.msra.mxu0 %v4485
        %6095 = vmatprep.subr.bf16.mxu0 0
        %6096 = vmatpush1.bf16.msra.mxu0 %v4486
        %6097 = vmatprep.subr.bf16.mxu0 0
        %6098 = vmatpush1.bf16.msra.mxu0 %v4487
        %6099 = vmatprep.subr.bf16.mxu0 0
        %6100 = vmatpush1.bf16.msra.mxu0 %v4488
        %6101 = vmatprep.subr.bf16.mxu0 0
        %6102 = vmatpush1.bf16.msra.mxu0 %v4489
        %6103 = vmatprep.subr.bf16.mxu0 0
        %6104 = vmatpush1.bf16.msra.mxu0 %v4490
        %6105 = vmatprep.subr.bf16.mxu0 0
        %6106 = vmatpush1.bf16.msra.mxu0 %v4491
        %6107 = vmatprep.subr.bf16.mxu0 0
        %6108 = vmatpush1.bf16.msra.mxu0 %v4492
        %6109 = vmatprep.mubr.bf16.mxu0 %v5566
        %6110 = vmatmul.mubr.bf16.gmra.mrb[0].mxu0 %v5565
        %v6111 = vpop.f32.mrb[0].mxu0
        %v6112 = vadd.f32 0.0, %v6111
        %v6113 = vpop.f32.mrb[0].mxu0
        %v6114 = vpop.f32.mrb[0].mxu0
        %v6115 = vadd.f32 0.0, %v6114
        %v6116 = vpop.f32.mrb[0].mxu0
        %6117 = vmatprep.mubr.bf16.mxu0 %v5574
        %6118 = vmatmul.mubr.bf16.gmra.mrb[0].mxu0 %v5573
        %v6119 = vpop.f32.mrb[0].mxu0
        %v6120 = vadd.f32 0.0, %v6119
        %v6121 = vpop.f32.mrb[0].mxu0
        %v6122 = vpop.f32.mrb[0].mxu0
        %v6123 = vadd.f32 0.0, %v6122
        %v6124 = vpop.f32.mrb[0].mxu0
        %6125 = vmatprep.mubr.bf16.mxu0 %v5582
        %6126 = vmatmul.mubr.bf16.gmra.mrb[0].mxu0 %v5581
        %v6127 = vpop.f32.mrb[0].mxu0
        %v6128 = vadd.f32 0.0, %v6127
        %v6129 = vpop.f32.mrb[0].mxu0
        %v6130 = vpop.f32.mrb[0].mxu0
        %v6131 = vadd.f32 0.0, %v6130
        %v6132 = vpop.f32.mrb[0].mxu0
        %6133 = vmatprep.mubr.bf16.mxu0 %v5590
        %6134 = vmatmul.mubr.bf16.gmra.mrb[0].mxu0 %v5589
        %v6135 = vpop.f32.mrb[0].mxu0
        %v6136 = vadd.f32 0.0, %v6135
        %v6137 = vpop.f32.mrb[0].mxu0
        %v6138 = vpop.f32.mrb[0].mxu0
        %v6139 = vadd.f32 0.0, %v6138
        %v6140 = vpop.f32.mrb[0].mxu0
        %6141 = vmatprep.mubr.bf16.mxu0 %v5598
        %6142 = vmatmul.mubr.bf16.gmra.mrb[0].mxu0 %v5597
        %v6143 = vpop.f32.mrb[0].mxu0
        %v6144 = vadd.f32 0.0, %v6143
        %v6145 = vpop.f32.mrb[0].mxu0
        %v6146 = vpop.f32.mrb[0].mxu0
        %v6147 = vadd.f32 0.0, %v6146
        %v6148 = vpop.f32.mrb[0].mxu0
        %6149 = vmatprep.mubr.bf16.mxu0 %v5606
        %6150 = vmatmul.mubr.bf16.gmra.mrb[0].mxu0 %v5605
        %v6151 = vpop.f32.mrb[0].mxu0
        %v6152 = vadd.f32 0.0, %v6151
        %v6153 = vpop.f32.mrb[0].mxu0
        %v6154 = vpop.f32.mrb[0].mxu0
        %v6155 = vadd.f32 0.0, %v6154
        %v6156 = vpop.f32.mrb[0].mxu0
        %6157 = vmatprep.mubr.bf16.mxu0 %v5614
        %6158 = vmatmul.mubr.bf16.gmra.mrb[0].mxu0 %v5613
        %v6159 = vpop.f32.mrb[0].mxu0
        %v6160 = vadd.f32 0.0, %v6159
        %v6161 = vpop.f32.mrb[0].mxu0
        %v6162 = vpop.f32.mrb[0].mxu0
        %v6163 = vadd.f32 0.0, %v6162
        %v6164 = vpop.f32.mrb[0].mxu0
        %6165 = vmatprep.mubr.bf16.mxu0 %v5622
        %6166 = vmatmul.mubr.bf16.gmra.mrb[0].mxu0 %v5621
        %v6167 = vpop.f32.mrb[0].mxu0
        %v6168 = vadd.f32 0.0, %v6167
        %v6169 = vpop.f32.mrb[0].mxu0
        %v6170 = vpop.f32.mrb[0].mxu0
        %v6171 = vadd.f32 0.0, %v6170
        %v6172 = vpop.f32.mrb[0].mxu0
        %6173 = vmatprep.mubr.bf16.mxu0 %v5630
        %6174 = vmatmul.mubr.bf16.gmra.mrb[0].mxu0 %v5629
        %v6175 = vpop.f32.mrb[0].mxu0
        %v6176 = vadd.f32 0.0, %v6175
        %v6177 = vpop.f32.mrb[0].mxu0
        %v6178 = vpop.f32.mrb[0].mxu0
        %v6179 = vadd.f32 0.0, %v6178
        %v6180 = vpop.f32.mrb[0].mxu0
        %6181 = vmatprep.mubr.bf16.mxu0 %v5638
        %6182 = vmatmul.mubr.bf16.gmra.mrb[0].mxu0 %v5637
        %v6183 = vpop.f32.mrb[0].mxu0
        %v6184 = vadd.f32 0.0, %v6183
        %v6185 = vpop.f32.mrb[0].mxu0
        %v6186 = vpop.f32.mrb[0].mxu0
        %v6187 = vadd.f32 0.0, %v6186
        %v6188 = vpop.f32.mrb[0].mxu0
        %6189 = vmatprep.mubr.bf16.mxu0 %v5646
        %6190 = vmatmul.mubr.bf16.gmra.mrb[0].mxu0 %v5645
        %v6191 = vpop.f32.mrb[0].mxu0
        %v6192 = vadd.f32 0.0, %v6191
        %v6193 = vpop.f32.mrb[0].mxu0
        %v6194 = vpop.f32.mrb[0].mxu0
        %v6195 = vadd.f32 0.0, %v6194
        %v6196 = vpop.f32.mrb[0].mxu0
        %6197 = vmatprep.mubr.bf16.mxu0 %v5654
        %6198 = vmatmul.mubr.bf16.gmra.mrb[0].mxu0 %v5653
        %v6199 = vpop.f32.mrb[0].mxu0
        %v6200 = vadd.f32 0.0, %v6199
        %v6201 = vpop.f32.mrb[0].mxu0
        %v6202 = vpop.f32.mrb[0].mxu0
        %v6203 = vadd.f32 0.0, %v6202
        %v6204 = vpop.f32.mrb[0].mxu0
        %6205 = vmatprep.mubr.bf16.mxu0 %v5662
        %6206 = vmatmul.mubr.bf16.gmra.mrb[0].mxu0 %v5661
        %v6207 = vpop.f32.mrb[0].mxu0
        %v6208 = vadd.f32 0.0, %v6207
        %v6209 = vpop.f32.mrb[0].mxu0
        %v6210 = vpop.f32.mrb[0].mxu0
        %v6211 = vadd.f32 0.0, %v6210
        %v6212 = vpop.f32.mrb[0].mxu0
        %6213 = vmatprep.mubr.bf16.mxu0 %v5670
        %6214 = vmatmul.mubr.bf16.gmra.mrb[0].mxu0 %v5669
        %v6215 = vpop.f32.mrb[0].mxu0
        %v6216 = vadd.f32 0.0, %v6215
        %v6217 = vpop.f32.mrb[0].mxu0
        %v6218 = vpop.f32.mrb[0].mxu0
        %v6219 = vadd.f32 0.0, %v6218
        %v6220 = vpop.f32.mrb[0].mxu0
        %6221 = vmatprep.mubr.bf16.mxu0 %v5678
        %6222 = vmatmul.mubr.bf16.gmra.mrb[0].mxu0 %v5677
        %v6223 = vpop.f32.mrb[0].mxu0
        %v6224 = vadd.f32 0.0, %v6223
        %v6225 = vpop.f32.mrb[0].mxu0
        %v6226 = vpop.f32.mrb[0].mxu0
        %v6227 = vadd.f32 0.0, %v6226
        %v6228 = vpop.f32.mrb[0].mxu0
        %6229 = vmatprep.mubr.bf16.mxu0 %v5686
        %6230 = vmatmul.mubr.bf16.gmra.mrb[0].mxu0 %v5685
        %v6231 = vpop.f32.mrb[0].mxu0
        %v6232 = vadd.f32 0.0, %v6231
        %v6233 = vpop.f32.mrb[0].mxu0
        %v6234 = vpop.f32.mrb[0].mxu0
        %v6235 = vadd.f32 0.0, %v6234
        %v6236 = vpop.f32.mrb[0].mxu0
        %6237 = vmatprep.mubr.bf16.mxu0 %v5694
        %6238 = vmatmul.mubr.bf16.gmra.mrb[0].mxu0 %v5693
        %v6239 = vpop.f32.mrb[0].mxu0
        %v6240 = vadd.f32 0.0, %v6239
        %v6241 = vpop.f32.mrb[0].mxu0
        %v6242 = vpop.f32.mrb[0].mxu0
        %v6243 = vadd.f32 0.0, %v6242
        %v6244 = vpop.f32.mrb[0].mxu0
        %6245 = vmatprep.mubr.bf16.mxu0 %v5702
        %6246 = vmatmul.mubr.bf16.gmra.mrb[0].mxu0 %v5701
        %v6247 = vpop.f32.mrb[0].mxu0
        %v6248 = vadd.f32 0.0, %v6247
        %v6249 = vpop.f32.mrb[0].mxu0
        %v6250 = vpop.f32.mrb[0].mxu0
        %v6251 = vadd.f32 0.0, %v6250
        %v6252 = vpop.f32.mrb[0].mxu0
        %6253 = vmatprep.mubr.bf16.mxu0 %v5710
        %6254 = vmatmul.mubr.bf16.gmra.mrb[0].mxu0 %v5709
        %v6255 = vpop.f32.mrb[0].mxu0
        %v6256 = vadd.f32 0.0, %v6255
        %v6257 = vpop.f32.mrb[0].mxu0
        %v6258 = vpop.f32.mrb[0].mxu0
        %v6259 = vadd.f32 0.0, %v6258
        %v6260 = vpop.f32.mrb[0].mxu0
        %6261 = vmatprep.mubr.bf16.mxu0 %v5718
        %6262 = vmatmul.mubr.bf16.gmra.mrb[0].mxu0 %v5717
        %v6263 = vpop.f32.mrb[0].mxu0
        %v6264 = vadd.f32 0.0, %v6263
        %v6265 = vpop.f32.mrb[0].mxu0
        %v6266 = vpop.f32.mrb[0].mxu0
        %v6267 = vadd.f32 0.0, %v6266
        %v6268 = vpop.f32.mrb[0].mxu0
        %6269 = vmatprep.mubr.bf16.mxu0 %v5726
        %6270 = vmatmul.mubr.bf16.gmra.mrb[0].mxu0 %v5725
        %v6271 = vpop.f32.mrb[0].mxu0
        %v6272 = vadd.f32 0.0, %v6271
        %v6273 = vpop.f32.mrb[0].mxu0
        %v6274 = vpop.f32.mrb[0].mxu0
        %v6275 = vadd.f32 0.0, %v6274
        %v6276 = vpop.f32.mrb[0].mxu0
        %6277 = vmatprep.mubr.bf16.mxu0 %v5734
        %6278 = vmatmul.mubr.bf16.gmra.mrb[0].mxu0 %v5733
        %v6279 = vpop.f32.mrb[0].mxu0
        %v6280 = vadd.f32 0.0, %v6279
        %v6281 = vpop.f32.mrb[0].mxu0
        %v6282 = vpop.f32.mrb[0].mxu0
        %v6283 = vadd.f32 0.0, %v6282
        %v6284 = vpop.f32.mrb[0].mxu0
        %6285 = vmatprep.mubr.bf16.mxu0 %v5742
        %6286 = vmatmul.mubr.bf16.gmra.mrb[0].mxu0 %v5741
        %v6287 = vpop.f32.mrb[0].mxu0
        %v6288 = vadd.f32 0.0, %v6287
        %v6289 = vpop.f32.mrb[0].mxu0
        %v6290 = vpop.f32.mrb[0].mxu0
        %v6291 = vadd.f32 0.0, %v6290
        %v6292 = vpop.f32.mrb[0].mxu0
        %6293 = vmatprep.mubr.bf16.mxu0 %v5750
        %6294 = vmatmul.mubr.bf16.gmra.mrb[0].mxu0 %v5749
        %v6295 = vpop.f32.mrb[0].mxu0
        %v6296 = vadd.f32 0.0, %v6295
        %v6297 = vpop.f32.mrb[0].mxu0
        %v6298 = vpop.f32.mrb[0].mxu0
        %v6299 = vadd.f32 0.0, %v6298
        %v6300 = vpop.f32.mrb[0].mxu0
        %6301 = vmatprep.mubr.bf16.mxu0 %v5758
        %6302 = vmatmul.mubr.bf16.gmra.mrb[0].mxu0 %v5757
        %v6303 = vpop.f32.mrb[0].mxu0
        %v6304 = vadd.f32 0.0, %v6303
        %v6305 = vpop.f32.mrb[0].mxu0
        %v6306 = vpop.f32.mrb[0].mxu0
        %v6307 = vadd.f32 0.0, %v6306
        %v6308 = vpop.f32.mrb[0].mxu0
        %6309 = vmatprep.mubr.bf16.mxu0 %v5766
        %6310 = vmatmul.mubr.bf16.gmra.mrb[0].mxu0 %v5765
        %v6311 = vpop.f32.mrb[0].mxu0
        %v6312 = vadd.f32 0.0, %v6311
        %v6313 = vpop.f32.mrb[0].mxu0
        %v6314 = vpop.f32.mrb[0].mxu0
        %v6315 = vadd.f32 0.0, %v6314
        %v6316 = vpop.f32.mrb[0].mxu0
        %6317 = vmatprep.mubr.bf16.mxu0 %v5774
        %6318 = vmatmul.mubr.bf16.gmra.mrb[0].mxu0 %v5773
        %v6319 = vpop.f32.mrb[0].mxu0
        %v6320 = vadd.f32 0.0, %v6319
        %v6321 = vpop.f32.mrb[0].mxu0
        %v6322 = vpop.f32.mrb[0].mxu0
        %v6323 = vadd.f32 0.0, %v6322
        %v6324 = vpop.f32.mrb[0].mxu0
        %6325 = vmatprep.mubr.bf16.mxu0 %v5782
        %6326 = vmatmul.mubr.bf16.gmra.mrb[0].mxu0 %v5781
        %v6327 = vpop.f32.mrb[0].mxu0
        %v6328 = vadd.f32 0.0, %v6327
        %v6329 = vpop.f32.mrb[0].mxu0
        %v6330 = vpop.f32.mrb[0].mxu0
        %v6331 = vadd.f32 0.0, %v6330
        %v6332 = vpop.f32.mrb[0].mxu0
        %6333 = vmatprep.mubr.bf16.mxu0 %v5790
        %6334 = vmatmul.mubr.bf16.gmra.mrb[0].mxu0 %v5789
        %v6335 = vpop.f32.mrb[0].mxu0
        %v6336 = vadd.f32 0.0, %v6335
        %v6337 = vpop.f32.mrb[0].mxu0
        %v6338 = vpop.f32.mrb[0].mxu0
        %v6339 = vadd.f32 0.0, %v6338
        %v6340 = vpop.f32.mrb[0].mxu0
        %6341 = vmatprep.mubr.bf16.mxu0 %v5798
        %6342 = vmatmul.mubr.bf16.gmra.mrb[0].mxu0 %v5797
        %v6343 = vpop.f32.mrb[0].mxu0
        %v6344 = vadd.f32 0.0, %v6343
        %v6345 = vpop.f32.mrb[0].mxu0
        %v6346 = vpop.f32.mrb[0].mxu0
        %v6347 = vadd.f32 0.0, %v6346
        %v6348 = vpop.f32.mrb[0].mxu0
        %6349 = vmatprep.mubr.bf16.mxu0 %v5806
        %6350 = vmatmul.mubr.bf16.gmra.mrb[0].mxu0 %v5805
        %v6351 = vpop.f32.mrb[0].mxu0
        %v6352 = vadd.f32 0.0, %v6351
        %v6353 = vpop.f32.mrb[0].mxu0
        %v6354 = vpop.f32.mrb[0].mxu0
        %v6355 = vadd.f32 0.0, %v6354
        %v6356 = vpop.f32.mrb[0].mxu0
        %6357 = vmatprep.mubr.bf16.mxu0 %v5814
        %6358 = vmatmul.mubr.bf16.gmra.mrb[0].mxu0 %v5813
        %v6359 = vpop.f32.mrb[0].mxu0
        %v6360 = vadd.f32 0.0, %v6359
        %v6361 = vpop.f32.mrb[0].mxu0
        %v6362 = vpop.f32.mrb[0].mxu0
        %v6363 = vadd.f32 0.0, %v6362
        %v6364 = vpop.f32.mrb[0].mxu0
        %6365 = vdwg.mxu0
        %6366 = vmatprep.subr.bf16.mxu0 0
        %6367 = vmatpush1.bf16.msra.mxu0 %v4493
        %6368 = vmatprep.subr.bf16.mxu0 0
        %6369 = vmatpush1.bf16.msra.mxu0 %v4494
        %6370 = vmatprep.subr.bf16.mxu0 0
        %6371 = vmatpush1.bf16.msra.mxu0 %v4495
        %6372 = vmatprep.subr.bf16.mxu0 0
        %6373 = vmatpush1.bf16.msra.mxu0 %v4496
        %6374 = vmatprep.subr.bf16.mxu0 0
        %6375 = vmatpush1.bf16.msra.mxu0 %v4497
        %6376 = vmatprep.subr.bf16.mxu0 0
        %6377 = vmatpush1.bf16.msra.mxu0 %v4498
        %6378 = vmatprep.subr.bf16.mxu0 0
        %6379 = vmatpush1.bf16.msra.mxu0 %v4499
        %6380 = vmatprep.subr.bf16.mxu0 0
        %6381 = vmatpush1.bf16.msra.mxu0 %v4500
        %6382 = vmatprep.subr.bf16.mxu0 0
        %6383 = vmatpush1.bf16.msra.mxu0 %v4501
        %6384 = vmatprep.subr.bf16.mxu0 0
        %6385 = vmatpush1.bf16.msra.mxu0 %v4502
        %6386 = vmatprep.subr.bf16.mxu0 0
        %6387 = vmatpush1.bf16.msra.mxu0 %v4503
        %6388 = vmatprep.subr.bf16.mxu0 0
        %6389 = vmatpush1.bf16.msra.mxu0 %v4504
        %6390 = vmatprep.subr.bf16.mxu0 0
        %6391 = vmatpush1.bf16.msra.mxu0 %v4505
        %6392 = vmatprep.subr.bf16.mxu0 0
        %6393 = vmatpush1.bf16.msra.mxu0 %v4506
        %6394 = vmatprep.subr.bf16.mxu0 0
        %6395 = vmatpush1.bf16.msra.mxu0 %v4507
        %6396 = vmatprep.subr.bf16.mxu0 0
        %6397 = vmatpush1.bf16.msra.mxu0 %v4508
        %6398 = vmatprep.mubr.bf16.mxu0 %v5568
        %6399 = vmatmul.mubr.bf16.gmra.mrb[0].mxu0 %v5567
        %v6400 = vpop.f32.mrb[0].mxu0
        %v6401 = vadd.f32 %v6112, %v6400
        %v6402 = vpop.f32.mrb[0].mxu0
        %v6403 = vpop.f32.mrb[0].mxu0
        %v6404 = vadd.f32 %v6115, %v6403
        %v6405 = vpop.f32.mrb[0].mxu0
        %6406 = vmatprep.mubr.bf16.mxu0 %v5576
        %6407 = vmatmul.mubr.bf16.gmra.mrb[0].mxu0 %v5575
        %v6408 = vpop.f32.mrb[0].mxu0
        %v6409 = vadd.f32 %v6120, %v6408
        %v6410 = vpop.f32.mrb[0].mxu0
        %v6411 = vpop.f32.mrb[0].mxu0
        %v6412 = vadd.f32 %v6123, %v6411
        %v6413 = vpop.f32.mrb[0].mxu0
        %6414 = vmatprep.mubr.bf16.mxu0 %v5584
        %6415 = vmatmul.mubr.bf16.gmra.mrb[0].mxu0 %v5583
        %v6416 = vpop.f32.mrb[0].mxu0
        %v6417 = vadd.f32 %v6128, %v6416
        %v6418 = vpop.f32.mrb[0].mxu0
        %v6419 = vpop.f32.mrb[0].mxu0
        %v6420 = vadd.f32 %v6131, %v6419
        %v6421 = vpop.f32.mrb[0].mxu0
        %6422 = vmatprep.mubr.bf16.mxu0 %v5592
        %6423 = vmatmul.mubr.bf16.gmra.mrb[0].mxu0 %v5591
        %v6424 = vpop.f32.mrb[0].mxu0
        %v6425 = vadd.f32 %v6136, %v6424
        %v6426 = vpop.f32.mrb[0].mxu0
        %v6427 = vpop.f32.mrb[0].mxu0
        %v6428 = vadd.f32 %v6139, %v6427
        %v6429 = vpop.f32.mrb[0].mxu0
        %6430 = vmatprep.mubr.bf16.mxu0 %v5600
        %6431 = vmatmul.mubr.bf16.gmra.mrb[0].mxu0 %v5599
        %v6432 = vpop.f32.mrb[0].mxu0
        %v6433 = vadd.f32 %v6144, %v6432
        %v6434 = vpop.f32.mrb[0].mxu0
        %v6435 = vpop.f32.mrb[0].mxu0
        %v6436 = vadd.f32 %v6147, %v6435
        %v6437 = vpop.f32.mrb[0].mxu0
        %6438 = vmatprep.mubr.bf16.mxu0 %v5608
        %6439 = vmatmul.mubr.bf16.gmra.mrb[0].mxu0 %v5607
        %v6440 = vpop.f32.mrb[0].mxu0
        %v6441 = vadd.f32 %v6152, %v6440
        %v6442 = vpop.f32.mrb[0].mxu0
        %v6443 = vpop.f32.mrb[0].mxu0
        %v6444 = vadd.f32 %v6155, %v6443
        %v6445 = vpop.f32.mrb[0].mxu0
        %6446 = vmatprep.mubr.bf16.mxu0 %v5616
        %6447 = vmatmul.mubr.bf16.gmra.mrb[0].mxu0 %v5615
        %v6448 = vpop.f32.mrb[0].mxu0
        %v6449 = vadd.f32 %v6160, %v6448
        %v6450 = vpop.f32.mrb[0].mxu0
        %v6451 = vpop.f32.mrb[0].mxu0
        %v6452 = vadd.f32 %v6163, %v6451
        %v6453 = vpop.f32.mrb[0].mxu0
        %6454 = vmatprep.mubr.bf16.mxu0 %v5624
        %6455 = vmatmul.mubr.bf16.gmra.mrb[0].mxu0 %v5623
        %v6456 = vpop.f32.mrb[0].mxu0
        %v6457 = vadd.f32 %v6168, %v6456
        %v6458 = vpop.f32.mrb[0].mxu0
        %v6459 = vpop.f32.mrb[0].mxu0
        %v6460 = vadd.f32 %v6171, %v6459
        %v6461 = vpop.f32.mrb[0].mxu0
        %6462 = vmatprep.mubr.bf16.mxu0 %v5632
        %6463 = vmatmul.mubr.bf16.gmra.mrb[0].mxu0 %v5631
        %v6464 = vpop.f32.mrb[0].mxu0
        %v6465 = vadd.f32 %v6176, %v6464
        %v6466 = vpop.f32.mrb[0].mxu0
        %v6467 = vpop.f32.mrb[0].mxu0
        %v6468 = vadd.f32 %v6179, %v6467
        %v6469 = vpop.f32.mrb[0].mxu0
        %6470 = vmatprep.mubr.bf16.mxu0 %v5640
        %6471 = vmatmul.mubr.bf16.gmra.mrb[0].mxu0 %v5639
        %v6472 = vpop.f32.mrb[0].mxu0
        %v6473 = vadd.f32 %v6184, %v6472
        %v6474 = vpop.f32.mrb[0].mxu0
        %v6475 = vpop.f32.mrb[0].mxu0
        %v6476 = vadd.f32 %v6187, %v6475
        %v6477 = vpop.f32.mrb[0].mxu0
        %6478 = vmatprep.mubr.bf16.mxu0 %v5648
        %6479 = vmatmul.mubr.bf16.gmra.mrb[0].mxu0 %v5647
        %v6480 = vpop.f32.mrb[0].mxu0
        %v6481 = vadd.f32 %v6192, %v6480
        %v6482 = vpop.f32.mrb[0].mxu0
        %v6483 = vpop.f32.mrb[0].mxu0
        %v6484 = vadd.f32 %v6195, %v6483
        %v6485 = vpop.f32.mrb[0].mxu0
        %6486 = vmatprep.mubr.bf16.mxu0 %v5656
        %6487 = vmatmul.mubr.bf16.gmra.mrb[0].mxu0 %v5655
        %v6488 = vpop.f32.mrb[0].mxu0
        %v6489 = vadd.f32 %v6200, %v6488
        %v6490 = vpop.f32.mrb[0].mxu0
        %v6491 = vpop.f32.mrb[0].mxu0
        %v6492 = vadd.f32 %v6203, %v6491
        %v6493 = vpop.f32.mrb[0].mxu0
        %6494 = vmatprep.mubr.bf16.mxu0 %v5664
        %6495 = vmatmul.mubr.bf16.gmra.mrb[0].mxu0 %v5663
        %v6496 = vpop.f32.mrb[0].mxu0
        %v6497 = vadd.f32 %v6208, %v6496
        %v6498 = vpop.f32.mrb[0].mxu0
        %v6499 = vpop.f32.mrb[0].mxu0
        %v6500 = vadd.f32 %v6211, %v6499
        %v6501 = vpop.f32.mrb[0].mxu0
        %6502 = vmatprep.mubr.bf16.mxu0 %v5672
        %6503 = vmatmul.mubr.bf16.gmra.mrb[0].mxu0 %v5671
        %v6504 = vpop.f32.mrb[0].mxu0
        %v6505 = vadd.f32 %v6216, %v6504
        %v6506 = vpop.f32.mrb[0].mxu0
        %v6507 = vpop.f32.mrb[0].mxu0
        %v6508 = vadd.f32 %v6219, %v6507
        %v6509 = vpop.f32.mrb[0].mxu0
        %6510 = vmatprep.mubr.bf16.mxu0 %v5680
        %6511 = vmatmul.mubr.bf16.gmra.mrb[0].mxu0 %v5679
        %v6512 = vpop.f32.mrb[0].mxu0
        %v6513 = vadd.f32 %v6224, %v6512
        %v6514 = vpop.f32.mrb[0].mxu0
        %v6515 = vpop.f32.mrb[0].mxu0
        %v6516 = vadd.f32 %v6227, %v6515
        %v6517 = vpop.f32.mrb[0].mxu0
        %6518 = vmatprep.mubr.bf16.mxu0 %v5688
        %6519 = vmatmul.mubr.bf16.gmra.mrb[0].mxu0 %v5687
        %v6520 = vpop.f32.mrb[0].mxu0
        %v6521 = vadd.f32 %v6232, %v6520
        %v6522 = vpop.f32.mrb[0].mxu0
        %v6523 = vpop.f32.mrb[0].mxu0
        %v6524 = vadd.f32 %v6235, %v6523
        %v6525 = vpop.f32.mrb[0].mxu0
        %6526 = vmatprep.mubr.bf16.mxu0 %v5696
        %6527 = vmatmul.mubr.bf16.gmra.mrb[0].mxu0 %v5695
        %v6528 = vpop.f32.mrb[0].mxu0
        %v6529 = vadd.f32 %v6240, %v6528
        %v6530 = vpop.f32.mrb[0].mxu0
        %v6531 = vpop.f32.mrb[0].mxu0
        %v6532 = vadd.f32 %v6243, %v6531
        %v6533 = vpop.f32.mrb[0].mxu0
        %6534 = vmatprep.mubr.bf16.mxu0 %v5704
        %6535 = vmatmul.mubr.bf16.gmra.mrb[0].mxu0 %v5703
        %v6536 = vpop.f32.mrb[0].mxu0
        %v6537 = vadd.f32 %v6248, %v6536
        %v6538 = vpop.f32.mrb[0].mxu0
        %v6539 = vpop.f32.mrb[0].mxu0
        %v6540 = vadd.f32 %v6251, %v6539
        %v6541 = vpop.f32.mrb[0].mxu0
        %6542 = vmatprep.mubr.bf16.mxu0 %v5712
        %6543 = vmatmul.mubr.bf16.gmra.mrb[0].mxu0 %v5711
        %v6544 = vpop.f32.mrb[0].mxu0
        %v6545 = vadd.f32 %v6256, %v6544
        %v6546 = vpop.f32.mrb[0].mxu0
        %v6547 = vpop.f32.mrb[0].mxu0
        %v6548 = vadd.f32 %v6259, %v6547
        %v6549 = vpop.f32.mrb[0].mxu0
        %6550 = vmatprep.mubr.bf16.mxu0 %v5720
        %6551 = vmatmul.mubr.bf16.gmra.mrb[0].mxu0 %v5719
        %v6552 = vpop.f32.mrb[0].mxu0
        %v6553 = vadd.f32 %v6264, %v6552
        %v6554 = vpop.f32.mrb[0].mxu0
        %v6555 = vpop.f32.mrb[0].mxu0
        %v6556 = vadd.f32 %v6267, %v6555
        %v6557 = vpop.f32.mrb[0].mxu0
        %6558 = vmatprep.mubr.bf16.mxu0 %v5728
        %6559 = vmatmul.mubr.bf16.gmra.mrb[0].mxu0 %v5727
        %v6560 = vpop.f32.mrb[0].mxu0
        %v6561 = vadd.f32 %v6272, %v6560
        %v6562 = vpop.f32.mrb[0].mxu0
        %v6563 = vpop.f32.mrb[0].mxu0
        %v6564 = vadd.f32 %v6275, %v6563
        %v6565 = vpop.f32.mrb[0].mxu0
        %6566 = vmatprep.mubr.bf16.mxu0 %v5736
        %6567 = vmatmul.mubr.bf16.gmra.mrb[0].mxu0 %v5735
        %v6568 = vpop.f32.mrb[0].mxu0
        %v6569 = vadd.f32 %v6280, %v6568
        %v6570 = vpop.f32.mrb[0].mxu0
        %v6571 = vpop.f32.mrb[0].mxu0
        %v6572 = vadd.f32 %v6283, %v6571
        %v6573 = vpop.f32.mrb[0].mxu0
        %6574 = vmatprep.mubr.bf16.mxu0 %v5744
        %6575 = vmatmul.mubr.bf16.gmra.mrb[0].mxu0 %v5743
        %v6576 = vpop.f32.mrb[0].mxu0
        %v6577 = vadd.f32 %v6288, %v6576
        %v6578 = vpop.f32.mrb[0].mxu0
        %v6579 = vpop.f32.mrb[0].mxu0
        %v6580 = vadd.f32 %v6291, %v6579
        %v6581 = vpop.f32.mrb[0].mxu0
        %6582 = vmatprep.mubr.bf16.mxu0 %v5752
        %6583 = vmatmul.mubr.bf16.gmra.mrb[0].mxu0 %v5751
        %v6584 = vpop.f32.mrb[0].mxu0
        %v6585 = vadd.f32 %v6296, %v6584
        %v6586 = vpop.f32.mrb[0].mxu0
        %v6587 = vpop.f32.mrb[0].mxu0
        %v6588 = vadd.f32 %v6299, %v6587
        %v6589 = vpop.f32.mrb[0].mxu0
        %6590 = vmatprep.mubr.bf16.mxu0 %v5760
        %6591 = vmatmul.mubr.bf16.gmra.mrb[0].mxu0 %v5759
        %v6592 = vpop.f32.mrb[0].mxu0
        %v6593 = vadd.f32 %v6304, %v6592
        %v6594 = vpop.f32.mrb[0].mxu0
        %v6595 = vpop.f32.mrb[0].mxu0
        %v6596 = vadd.f32 %v6307, %v6595
        %v6597 = vpop.f32.mrb[0].mxu0
        %6598 = vmatprep.mubr.bf16.mxu0 %v5768
        %6599 = vmatmul.mubr.bf16.gmra.mrb[0].mxu0 %v5767
        %v6600 = vpop.f32.mrb[0].mxu0
        %v6601 = vadd.f32 %v6312, %v6600
        %v6602 = vpop.f32.mrb[0].mxu0
        %v6603 = vpop.f32.mrb[0].mxu0
        %v6604 = vadd.f32 %v6315, %v6603
        %v6605 = vpop.f32.mrb[0].mxu0
        %6606 = vmatprep.mubr.bf16.mxu0 %v5776
        %6607 = vmatmul.mubr.bf16.gmra.mrb[0].mxu0 %v5775
        %v6608 = vpop.f32.mrb[0].mxu0
        %v6609 = vadd.f32 %v6320, %v6608
        %v6610 = vpop.f32.mrb[0].mxu0
        %v6611 = vpop.f32.mrb[0].mxu0
        %v6612 = vadd.f32 %v6323, %v6611
        %v6613 = vpop.f32.mrb[0].mxu0
        %6614 = vmatprep.mubr.bf16.mxu0 %v5784
        %6615 = vmatmul.mubr.bf16.gmra.mrb[0].mxu0 %v5783
        %v6616 = vpop.f32.mrb[0].mxu0
        %v6617 = vadd.f32 %v6328, %v6616
        %v6618 = vpop.f32.mrb[0].mxu0
        %v6619 = vpop.f32.mrb[0].mxu0
        %v6620 = vadd.f32 %v6331, %v6619
        %v6621 = vpop.f32.mrb[0].mxu0
        %6622 = vmatprep.mubr.bf16.mxu0 %v5792
        %6623 = vmatmul.mubr.bf16.gmra.mrb[0].mxu0 %v5791
        %v6624 = vpop.f32.mrb[0].mxu0
        %v6625 = vadd.f32 %v6336, %v6624
        %v6626 = vpop.f32.mrb[0].mxu0
        %v6627 = vpop.f32.mrb[0].mxu0
        %v6628 = vadd.f32 %v6339, %v6627
        %v6629 = vpop.f32.mrb[0].mxu0
        %6630 = vmatprep.mubr.bf16.mxu0 %v5800
        %6631 = vmatmul.mubr.bf16.gmra.mrb[0].mxu0 %v5799
        %v6632 = vpop.f32.mrb[0].mxu0
        %v6633 = vadd.f32 %v6344, %v6632
        %v6634 = vpop.f32.mrb[0].mxu0
        %v6635 = vpop.f32.mrb[0].mxu0
        %v6636 = vadd.f32 %v6347, %v6635
        %v6637 = vpop.f32.mrb[0].mxu0
        %6638 = vmatprep.mubr.bf16.mxu0 %v5808
        %6639 = vmatmul.mubr.bf16.gmra.mrb[0].mxu0 %v5807
        %v6640 = vpop.f32.mrb[0].mxu0
        %v6641 = vadd.f32 %v6352, %v6640
        %v6642 = vpop.f32.mrb[0].mxu0
        %v6643 = vpop.f32.mrb[0].mxu0
        %v6644 = vadd.f32 %v6355, %v6643
        %v6645 = vpop.f32.mrb[0].mxu0
        %6646 = vmatprep.mubr.bf16.mxu0 %v5816
        %6647 = vmatmul.mubr.bf16.gmra.mrb[0].mxu0 %v5815
        %v6648 = vpop.f32.mrb[0].mxu0
        %v6649 = vadd.f32 %v6360, %v6648
        %v6650 = vpop.f32.mrb[0].mxu0
        %v6651 = vpop.f32.mrb[0].mxu0
        %v6652 = vadd.f32 %v6363, %v6651
        %v6653 = vpop.f32.mrb[0].mxu0
        %6654 = vdwg.mxu0
        %6655 = vmatprep.subr.bf16.mxu0 0
        %6656 = vmatpush1.bf16.msra.mxu0 %v4509
        %6657 = vmatprep.subr.bf16.mxu0 0
        %6658 = vmatpush1.bf16.msra.mxu0 %v4510
        %6659 = vmatprep.subr.bf16.mxu0 0
        %6660 = vmatpush1.bf16.msra.mxu0 %v4511
        %6661 = vmatprep.subr.bf16.mxu0 0
        %6662 = vmatpush1.bf16.msra.mxu0 %v4512
        %6663 = vmatprep.subr.bf16.mxu0 0
        %6664 = vmatpush1.bf16.msra.mxu0 %v4513
        %6665 = vmatprep.subr.bf16.mxu0 0
        %6666 = vmatpush1.bf16.msra.mxu0 %v4514
        %6667 = vmatprep.subr.bf16.mxu0 0
        %6668 = vmatpush1.bf16.msra.mxu0 %v4515
        %6669 = vmatprep.subr.bf16.mxu0 0
        %6670 = vmatpush1.bf16.msra.mxu0 %v4516
        %6671 = vmatprep.subr.bf16.mxu0 0
        %6672 = vmatpush1.bf16.msra.mxu0 %v4517
        %6673 = vmatprep.subr.bf16.mxu0 0
        %6674 = vmatpush1.bf16.msra.mxu0 %v4518
        %6675 = vmatprep.subr.bf16.mxu0 0
        %6676 = vmatpush1.bf16.msra.mxu0 %v4519
        %6677 = vmatprep.subr.bf16.mxu0 0
        %6678 = vmatpush1.bf16.msra.mxu0 %v4520
        %6679 = vmatprep.subr.bf16.mxu0 0
        %6680 = vmatpush1.bf16.msra.mxu0 %v4521
        %6681 = vmatprep.subr.bf16.mxu0 0
        %6682 = vmatpush1.bf16.msra.mxu0 %v4522
        %6683 = vmatprep.subr.bf16.mxu0 0
        %6684 = vmatpush1.bf16.msra.mxu0 %v4523
        %6685 = vmatprep.subr.bf16.mxu0 0
        %6686 = vmatpush1.bf16.msra.mxu0 %v4524
        %6687 = vmatprep.mubr.bf16.mxu0 %v5570
        %6688 = vmatmul.mubr.bf16.gmra.mrb[0].mxu0 %v5569
        %v6689 = vpop.f32.mrb[0].mxu0
        %v6690 = vadd.f32 %v6401, %v6689
        %v6691 = vpop.f32.mrb[0].mxu0
        %v6692 = vpop.f32.mrb[0].mxu0
        %v6693 = vadd.f32 %v6404, %v6692
        %v6694 = vpop.f32.mrb[0].mxu0
        %6695 = vmatprep.mubr.bf16.mxu0 %v5578
        %6696 = vmatmul.mubr.bf16.gmra.mrb[0].mxu0 %v5577
        %v6697 = vpop.f32.mrb[0].mxu0
        %v6698 = vadd.f32 %v6409, %v6697
        %v6699 = vpop.f32.mrb[0].mxu0
        %v6700 = vpop.f32.mrb[0].mxu0
        %v6701 = vadd.f32 %v6412, %v6700
        %v6702 = vpop.f32.mrb[0].mxu0
        %6703 = vmatprep.mubr.bf16.mxu0 %v5586
        %6704 = vmatmul.mubr.bf16.gmra.mrb[0].mxu0 %v5585
        %v6705 = vpop.f32.mrb[0].mxu0
        %v6706 = vadd.f32 %v6417, %v6705
        %v6707 = vpop.f32.mrb[0].mxu0
        %v6708 = vpop.f32.mrb[0].mxu0
        %v6709 = vadd.f32 %v6420, %v6708
        %v6710 = vpop.f32.mrb[0].mxu0
        %6711 = vmatprep.mubr.bf16.mxu0 %v5594
        %6712 = vmatmul.mubr.bf16.gmra.mrb[0].mxu0 %v5593
        %v6713 = vpop.f32.mrb[0].mxu0
        %v6714 = vadd.f32 %v6425, %v6713
        %v6715 = vpop.f32.mrb[0].mxu0
        %v6716 = vpop.f32.mrb[0].mxu0
        %v6717 = vadd.f32 %v6428, %v6716
        %v6718 = vpop.f32.mrb[0].mxu0
        %6719 = vmatprep.mubr.bf16.mxu0 %v5602
        %6720 = vmatmul.mubr.bf16.gmra.mrb[0].mxu0 %v5601
        %v6721 = vpop.f32.mrb[0].mxu0
        %v6722 = vadd.f32 %v6433, %v6721
        %v6723 = vpop.f32.mrb[0].mxu0
        %v6724 = vpop.f32.mrb[0].mxu0
        %v6725 = vadd.f32 %v6436, %v6724
        %v6726 = vpop.f32.mrb[0].mxu0
        %6727 = vmatprep.mubr.bf16.mxu0 %v5610
        %6728 = vmatmul.mubr.bf16.gmra.mrb[0].mxu0 %v5609
        %v6729 = vpop.f32.mrb[0].mxu0
        %v6730 = vadd.f32 %v6441, %v6729
        %v6731 = vpop.f32.mrb[0].mxu0
        %v6732 = vpop.f32.mrb[0].mxu0
        %v6733 = vadd.f32 %v6444, %v6732
        %v6734 = vpop.f32.mrb[0].mxu0
        %6735 = vmatprep.mubr.bf16.mxu0 %v5618
        %6736 = vmatmul.mubr.bf16.gmra.mrb[0].mxu0 %v5617
        %v6737 = vpop.f32.mrb[0].mxu0
        %v6738 = vadd.f32 %v6449, %v6737
        %v6739 = vpop.f32.mrb[0].mxu0
        %v6740 = vpop.f32.mrb[0].mxu0
        %v6741 = vadd.f32 %v6452, %v6740
        %v6742 = vpop.f32.mrb[0].mxu0
        %6743 = vmatprep.mubr.bf16.mxu0 %v5626
        %6744 = vmatmul.mubr.bf16.gmra.mrb[0].mxu0 %v5625
        %v6745 = vpop.f32.mrb[0].mxu0
        %v6746 = vadd.f32 %v6457, %v6745
        %v6747 = vpop.f32.mrb[0].mxu0
        %v6748 = vpop.f32.mrb[0].mxu0
        %v6749 = vadd.f32 %v6460, %v6748
        %v6750 = vpop.f32.mrb[0].mxu0
        %6751 = vmatprep.mubr.bf16.mxu0 %v5634
        %6752 = vmatmul.mubr.bf16.gmra.mrb[0].mxu0 %v5633
        %v6753 = vpop.f32.mrb[0].mxu0
        %v6754 = vadd.f32 %v6465, %v6753
        %v6755 = vpop.f32.mrb[0].mxu0
        %v6756 = vpop.f32.mrb[0].mxu0
        %v6757 = vadd.f32 %v6468, %v6756
        %v6758 = vpop.f32.mrb[0].mxu0
        %6759 = vmatprep.mubr.bf16.mxu0 %v5642
        %6760 = vmatmul.mubr.bf16.gmra.mrb[0].mxu0 %v5641
        %v6761 = vpop.f32.mrb[0].mxu0
        %v6762 = vadd.f32 %v6473, %v6761
        %v6763 = vpop.f32.mrb[0].mxu0
        %v6764 = vpop.f32.mrb[0].mxu0
        %v6765 = vadd.f32 %v6476, %v6764
        %v6766 = vpop.f32.mrb[0].mxu0
        %6767 = vmatprep.mubr.bf16.mxu0 %v5650
        %6768 = vmatmul.mubr.bf16.gmra.mrb[0].mxu0 %v5649
        %v6769 = vpop.f32.mrb[0].mxu0
        %v6770 = vadd.f32 %v6481, %v6769
        %v6771 = vpop.f32.mrb[0].mxu0
        %v6772 = vpop.f32.mrb[0].mxu0
        %v6773 = vadd.f32 %v6484, %v6772
        %v6774 = vpop.f32.mrb[0].mxu0
        %6775 = vmatprep.mubr.bf16.mxu0 %v5658
        %6776 = vmatmul.mubr.bf16.gmra.mrb[0].mxu0 %v5657
        %v6777 = vpop.f32.mrb[0].mxu0
        %v6778 = vadd.f32 %v6489, %v6777
        %v6779 = vpop.f32.mrb[0].mxu0
        %v6780 = vpop.f32.mrb[0].mxu0
        %v6781 = vadd.f32 %v6492, %v6780
        %v6782 = vpop.f32.mrb[0].mxu0
        %6783 = vmatprep.mubr.bf16.mxu0 %v5666
        %6784 = vmatmul.mubr.bf16.gmra.mrb[0].mxu0 %v5665
        %v6785 = vpop.f32.mrb[0].mxu0
        %v6786 = vadd.f32 %v6497, %v6785
        %v6787 = vpop.f32.mrb[0].mxu0
        %v6788 = vpop.f32.mrb[0].mxu0
        %v6789 = vadd.f32 %v6500, %v6788
        %v6790 = vpop.f32.mrb[0].mxu0
        %6791 = vmatprep.mubr.bf16.mxu0 %v5674
        %6792 = vmatmul.mubr.bf16.gmra.mrb[0].mxu0 %v5673
        %v6793 = vpop.f32.mrb[0].mxu0
        %v6794 = vadd.f32 %v6505, %v6793
        %v6795 = vpop.f32.mrb[0].mxu0
        %v6796 = vpop.f32.mrb[0].mxu0
        %v6797 = vadd.f32 %v6508, %v6796
        %v6798 = vpop.f32.mrb[0].mxu0
        %6799 = vmatprep.mubr.bf16.mxu0 %v5682
        %6800 = vmatmul.mubr.bf16.gmra.mrb[0].mxu0 %v5681
        %v6801 = vpop.f32.mrb[0].mxu0
        %v6802 = vadd.f32 %v6513, %v6801
        %v6803 = vpop.f32.mrb[0].mxu0
        %v6804 = vpop.f32.mrb[0].mxu0
        %v6805 = vadd.f32 %v6516, %v6804
        %v6806 = vpop.f32.mrb[0].mxu0
        %6807 = vmatprep.mubr.bf16.mxu0 %v5690
        %6808 = vmatmul.mubr.bf16.gmra.mrb[0].mxu0 %v5689
        %v6809 = vpop.f32.mrb[0].mxu0
        %v6810 = vadd.f32 %v6521, %v6809
        %v6811 = vpop.f32.mrb[0].mxu0
        %v6812 = vpop.f32.mrb[0].mxu0
        %v6813 = vadd.f32 %v6524, %v6812
        %v6814 = vpop.f32.mrb[0].mxu0
        %6815 = vmatprep.mubr.bf16.mxu0 %v5698
        %6816 = vmatmul.mubr.bf16.gmra.mrb[0].mxu0 %v5697
        %v6817 = vpop.f32.mrb[0].mxu0
        %v6818 = vadd.f32 %v6529, %v6817
        %v6819 = vpop.f32.mrb[0].mxu0
        %v6820 = vpop.f32.mrb[0].mxu0
        %v6821 = vadd.f32 %v6532, %v6820
        %v6822 = vpop.f32.mrb[0].mxu0
        %6823 = vmatprep.mubr.bf16.mxu0 %v5706
        %6824 = vmatmul.mubr.bf16.gmra.mrb[0].mxu0 %v5705
        %v6825 = vpop.f32.mrb[0].mxu0
        %v6826 = vadd.f32 %v6537, %v6825
        %v6827 = vpop.f32.mrb[0].mxu0
        %v6828 = vpop.f32.mrb[0].mxu0
        %v6829 = vadd.f32 %v6540, %v6828
        %v6830 = vpop.f32.mrb[0].mxu0
        %6831 = vmatprep.mubr.bf16.mxu0 %v5714
        %6832 = vmatmul.mubr.bf16.gmra.mrb[0].mxu0 %v5713
        %v6833 = vpop.f32.mrb[0].mxu0
        %v6834 = vadd.f32 %v6545, %v6833
        %v6835 = vpop.f32.mrb[0].mxu0
        %v6836 = vpop.f32.mrb[0].mxu0
        %v6837 = vadd.f32 %v6548, %v6836
        %v6838 = vpop.f32.mrb[0].mxu0
        %6839 = vmatprep.mubr.bf16.mxu0 %v5722
        %6840 = vmatmul.mubr.bf16.gmra.mrb[0].mxu0 %v5721
        %v6841 = vpop.f32.mrb[0].mxu0
        %v6842 = vadd.f32 %v6553, %v6841
        %v6843 = vpop.f32.mrb[0].mxu0
        %v6844 = vpop.f32.mrb[0].mxu0
        %v6845 = vadd.f32 %v6556, %v6844
        %v6846 = vpop.f32.mrb[0].mxu0
        %6847 = vmatprep.mubr.bf16.mxu0 %v5730
        %6848 = vmatmul.mubr.bf16.gmra.mrb[0].mxu0 %v5729
        %v6849 = vpop.f32.mrb[0].mxu0
        %v6850 = vadd.f32 %v6561, %v6849
        %v6851 = vpop.f32.mrb[0].mxu0
        %v6852 = vpop.f32.mrb[0].mxu0
        %v6853 = vadd.f32 %v6564, %v6852
        %v6854 = vpop.f32.mrb[0].mxu0
        %6855 = vmatprep.mubr.bf16.mxu0 %v5738
        %6856 = vmatmul.mubr.bf16.gmra.mrb[0].mxu0 %v5737
        %v6857 = vpop.f32.mrb[0].mxu0
        %v6858 = vadd.f32 %v6569, %v6857
        %v6859 = vpop.f32.mrb[0].mxu0
        %v6860 = vpop.f32.mrb[0].mxu0
        %v6861 = vadd.f32 %v6572, %v6860
        %v6862 = vpop.f32.mrb[0].mxu0
        %6863 = vmatprep.mubr.bf16.mxu0 %v5746
        %6864 = vmatmul.mubr.bf16.gmra.mrb[0].mxu0 %v5745
        %v6865 = vpop.f32.mrb[0].mxu0
        %v6866 = vadd.f32 %v6577, %v6865
        %v6867 = vpop.f32.mrb[0].mxu0
        %v6868 = vpop.f32.mrb[0].mxu0
        %v6869 = vadd.f32 %v6580, %v6868
        %v6870 = vpop.f32.mrb[0].mxu0
        %6871 = vmatprep.mubr.bf16.mxu0 %v5754
        %6872 = vmatmul.mubr.bf16.gmra.mrb[0].mxu0 %v5753
        %v6873 = vpop.f32.mrb[0].mxu0
        %v6874 = vadd.f32 %v6585, %v6873
        %v6875 = vpop.f32.mrb[0].mxu0
        %v6876 = vpop.f32.mrb[0].mxu0
        %v6877 = vadd.f32 %v6588, %v6876
        %v6878 = vpop.f32.mrb[0].mxu0
        %6879 = vmatprep.mubr.bf16.mxu0 %v5762
        %6880 = vmatmul.mubr.bf16.gmra.mrb[0].mxu0 %v5761
        %v6881 = vpop.f32.mrb[0].mxu0
        %v6882 = vadd.f32 %v6593, %v6881
        %v6883 = vpop.f32.mrb[0].mxu0
        %v6884 = vpop.f32.mrb[0].mxu0
        %v6885 = vadd.f32 %v6596, %v6884
        %v6886 = vpop.f32.mrb[0].mxu0
        %6887 = vmatprep.mubr.bf16.mxu0 %v5770
        %6888 = vmatmul.mubr.bf16.gmra.mrb[0].mxu0 %v5769
        %v6889 = vpop.f32.mrb[0].mxu0
        %v6890 = vadd.f32 %v6601, %v6889
        %v6891 = vpop.f32.mrb[0].mxu0
        %v6892 = vpop.f32.mrb[0].mxu0
        %v6893 = vadd.f32 %v6604, %v6892
        %v6894 = vpop.f32.mrb[0].mxu0
        %6895 = vmatprep.mubr.bf16.mxu0 %v5778
        %6896 = vmatmul.mubr.bf16.gmra.mrb[0].mxu0 %v5777
        %v6897 = vpop.f32.mrb[0].mxu0
        %v6898 = vadd.f32 %v6609, %v6897
        %v6899 = vpop.f32.mrb[0].mxu0
        %v6900 = vpop.f32.mrb[0].mxu0
        %v6901 = vadd.f32 %v6612, %v6900
        %v6902 = vpop.f32.mrb[0].mxu0
        %6903 = vmatprep.mubr.bf16.mxu0 %v5786
        %6904 = vmatmul.mubr.bf16.gmra.mrb[0].mxu0 %v5785
        %v6905 = vpop.f32.mrb[0].mxu0
        %v6906 = vadd.f32 %v6617, %v6905
        %v6907 = vpop.f32.mrb[0].mxu0
        %v6908 = vpop.f32.mrb[0].mxu0
        %v6909 = vadd.f32 %v6620, %v6908
        %v6910 = vpop.f32.mrb[0].mxu0
        %6911 = vmatprep.mubr.bf16.mxu0 %v5794
        %6912 = vmatmul.mubr.bf16.gmra.mrb[0].mxu0 %v5793
        %v6913 = vpop.f32.mrb[0].mxu0
        %v6914 = vadd.f32 %v6625, %v6913
        %v6915 = vpop.f32.mrb[0].mxu0
        %v6916 = vpop.f32.mrb[0].mxu0
        %v6917 = vadd.f32 %v6628, %v6916
        %v6918 = vpop.f32.mrb[0].mxu0
        %6919 = vmatprep.mubr.bf16.mxu0 %v5802
        %6920 = vmatmul.mubr.bf16.gmra.mrb[0].mxu0 %v5801
        %v6921 = vpop.f32.mrb[0].mxu0
        %v6922 = vadd.f32 %v6633, %v6921
        %v6923 = vpop.f32.mrb[0].mxu0
        %v6924 = vpop.f32.mrb[0].mxu0
        %v6925 = vadd.f32 %v6636, %v6924
        %v6926 = vpop.f32.mrb[0].mxu0
        %6927 = vmatprep.mubr.bf16.mxu0 %v5810
        %6928 = vmatmul.mubr.bf16.gmra.mrb[0].mxu0 %v5809
        %v6929 = vpop.f32.mrb[0].mxu0
        %v6930 = vadd.f32 %v6641, %v6929
        %v6931 = vpop.f32.mrb[0].mxu0
        %v6932 = vpop.f32.mrb[0].mxu0
        %v6933 = vadd.f32 %v6644, %v6932
        %v6934 = vpop.f32.mrb[0].mxu0
        %6935 = vmatprep.mubr.bf16.mxu0 %v5818
        %6936 = vmatmul.mubr.bf16.gmra.mrb[0].mxu0 %v5817
        %v6937 = vpop.f32.mrb[0].mxu0
        %v6938 = vadd.f32 %v6649, %v6937
        %v6939 = vpop.f32.mrb[0].mxu0
        %v6940 = vpop.f32.mrb[0].mxu0
        %v6941 = vadd.f32 %v6652, %v6940
        %v6942 = vpop.f32.mrb[0].mxu0
        %6943 = vdwg.mxu0
        %6944 = vmatprep.subr.bf16.mxu0 0
        %6945 = vmatpush1.bf16.msra.mxu0 %v4525
        %6946 = vmatprep.subr.bf16.mxu0 0
        %6947 = vmatpush1.bf16.msra.mxu0 %v4526
        %6948 = vmatprep.subr.bf16.mxu0 0
        %6949 = vmatpush1.bf16.msra.mxu0 %v4527
        %6950 = vmatprep.subr.bf16.mxu0 0
        %6951 = vmatpush1.bf16.msra.mxu0 %v4528
        %6952 = vmatprep.subr.bf16.mxu0 0
        %6953 = vmatpush1.bf16.msra.mxu0 %v4529
        %6954 = vmatprep.subr.bf16.mxu0 0
        %6955 = vmatpush1.bf16.msra.mxu0 %v4530
        %6956 = vmatprep.subr.bf16.mxu0 0
        %6957 = vmatpush1.bf16.msra.mxu0 %v4531
        %6958 = vmatprep.subr.bf16.mxu0 0
        %6959 = vmatpush1.bf16.msra.mxu0 %v4532
        %6960 = vmatprep.subr.bf16.mxu0 0
        %6961 = vmatpush1.bf16.msra.mxu0 %v4533
        %6962 = vmatprep.subr.bf16.mxu0 0
        %6963 = vmatpush1.bf16.msra.mxu0 %v4534
        %6964 = vmatprep.subr.bf16.mxu0 0
        %6965 = vmatpush1.bf16.msra.mxu0 %v4535
        %6966 = vmatprep.subr.bf16.mxu0 0
        %6967 = vmatpush1.bf16.msra.mxu0 %v4536
        %6968 = vmatprep.subr.bf16.mxu0 0
        %6969 = vmatpush1.bf16.msra.mxu0 %v4537
        %6970 = vmatprep.subr.bf16.mxu0 0
        %6971 = vmatpush1.bf16.msra.mxu0 %v4538
        %6972 = vmatprep.subr.bf16.mxu0 0
        %6973 = vmatpush1.bf16.msra.mxu0 %v4539
        %6974 = vmatprep.subr.bf16.mxu0 0
        %6975 = vmatpush1.bf16.msra.mxu0 %v4540
        %6976 = vmatprep.mubr.bf16.mxu0 %v5572
        %6977 = vmatmul.mubr.bf16.gmra.mrb[0].mxu0 %v5571
        %v6978 = vpop.f32.mrb[0].mxu0
        %v6979 = vadd.f32 %v6690, %v6978
        %v6980 = vpop.f32.mrb[0].mxu0
        %v6981 = vpop.f32.mrb[0].mxu0
        %v6982 = vadd.f32 %v6693, %v6981
        %v6983 = vpop.f32.mrb[0].mxu0
        %6984 = vmatprep.mubr.bf16.mxu0 %v5580
        %6985 = vmatmul.mubr.bf16.gmra.mrb[0].mxu0 %v5579
        %v6986 = vpop.f32.mrb[0].mxu0
        %v6987 = vadd.f32 %v6698, %v6986
        %v6988 = vpop.f32.mrb[0].mxu0
        %v6989 = vpop.f32.mrb[0].mxu0
        %v6990 = vadd.f32 %v6701, %v6989
        %v6991 = vpop.f32.mrb[0].mxu0
        %6992 = vmatprep.mubr.bf16.mxu0 %v5588
        %6993 = vmatmul.mubr.bf16.gmra.mrb[0].mxu0 %v5587
        %v6994 = vpop.f32.mrb[0].mxu0
        %v6995 = vadd.f32 %v6706, %v6994
        %v6996 = vpop.f32.mrb[0].mxu0
        %v6997 = vpop.f32.mrb[0].mxu0
        %v6998 = vadd.f32 %v6709, %v6997
        %v6999 = vpop.f32.mrb[0].mxu0
        %7000 = vmatprep.mubr.bf16.mxu0 %v5596
        %7001 = vmatmul.mubr.bf16.gmra.mrb[0].mxu0 %v5595
        %v7002 = vpop.f32.mrb[0].mxu0
        %v7003 = vadd.f32 %v6714, %v7002
        %v7004 = vpop.f32.mrb[0].mxu0
        %v7005 = vpop.f32.mrb[0].mxu0
        %v7006 = vadd.f32 %v6717, %v7005
        %v7007 = vpop.f32.mrb[0].mxu0
        %7008 = vmatprep.mubr.bf16.mxu0 %v5604
        %7009 = vmatmul.mubr.bf16.gmra.mrb[0].mxu0 %v5603
        %v7010 = vpop.f32.mrb[0].mxu0
        %v7011 = vadd.f32 %v6722, %v7010
        %v7012 = vpop.f32.mrb[0].mxu0
        %v7013 = vpop.f32.mrb[0].mxu0
        %v7014 = vadd.f32 %v6725, %v7013
        %v7015 = vpop.f32.mrb[0].mxu0
        %7016 = vmatprep.mubr.bf16.mxu0 %v5612
        %7017 = vmatmul.mubr.bf16.gmra.mrb[0].mxu0 %v5611
        %v7018 = vpop.f32.mrb[0].mxu0
        %v7019 = vadd.f32 %v6730, %v7018
        %v7020 = vpop.f32.mrb[0].mxu0
        %v7021 = vpop.f32.mrb[0].mxu0
        %v7022 = vadd.f32 %v6733, %v7021
        %v7023 = vpop.f32.mrb[0].mxu0
        %7024 = vmatprep.mubr.bf16.mxu0 %v5620
        %7025 = vmatmul.mubr.bf16.gmra.mrb[0].mxu0 %v5619
        %v7026 = vpop.f32.mrb[0].mxu0
        %v7027 = vadd.f32 %v6738, %v7026
        %v7028 = vpop.f32.mrb[0].mxu0
        %v7029 = vpop.f32.mrb[0].mxu0
        %v7030 = vadd.f32 %v6741, %v7029
        %v7031 = vpop.f32.mrb[0].mxu0
        %7032 = vmatprep.mubr.bf16.mxu0 %v5628
        %7033 = vmatmul.mubr.bf16.gmra.mrb[0].mxu0 %v5627
        %v7034 = vpop.f32.mrb[0].mxu0
        %v7035 = vadd.f32 %v6746, %v7034
        %v7036 = vpop.f32.mrb[0].mxu0
        %v7037 = vpop.f32.mrb[0].mxu0
        %v7038 = vadd.f32 %v6749, %v7037
        %v7039 = vpop.f32.mrb[0].mxu0
        %7040 = vmatprep.mubr.bf16.mxu0 %v5636
        %7041 = vmatmul.mubr.bf16.gmra.mrb[0].mxu0 %v5635
        %v7042 = vpop.f32.mrb[0].mxu0
        %v7043 = vadd.f32 %v6754, %v7042
        %v7044 = vpop.f32.mrb[0].mxu0
        %v7045 = vpop.f32.mrb[0].mxu0
        %v7046 = vadd.f32 %v6757, %v7045
        %v7047 = vpop.f32.mrb[0].mxu0
        %7048 = vmatprep.mubr.bf16.mxu0 %v5644
        %7049 = vmatmul.mubr.bf16.gmra.mrb[0].mxu0 %v5643
        %v7050 = vpop.f32.mrb[0].mxu0
        %v7051 = vadd.f32 %v6762, %v7050
        %v7052 = vpop.f32.mrb[0].mxu0
        %v7053 = vpop.f32.mrb[0].mxu0
        %v7054 = vadd.f32 %v6765, %v7053
        %v7055 = vpop.f32.mrb[0].mxu0
        %7056 = vmatprep.mubr.bf16.mxu0 %v5652
        %7057 = vmatmul.mubr.bf16.gmra.mrb[0].mxu0 %v5651
        %v7058 = vpop.f32.mrb[0].mxu0
        %v7059 = vadd.f32 %v6770, %v7058
        %v7060 = vpop.f32.mrb[0].mxu0
        %v7061 = vpop.f32.mrb[0].mxu0
        %v7062 = vadd.f32 %v6773, %v7061
        %v7063 = vpop.f32.mrb[0].mxu0
        %7064 = vmatprep.mubr.bf16.mxu0 %v5660
        %7065 = vmatmul.mubr.bf16.gmra.mrb[0].mxu0 %v5659
        %v7066 = vpop.f32.mrb[0].mxu0
        %v7067 = vadd.f32 %v6778, %v7066
        %v7068 = vpop.f32.mrb[0].mxu0
        %v7069 = vpop.f32.mrb[0].mxu0
        %v7070 = vadd.f32 %v6781, %v7069
        %v7071 = vpop.f32.mrb[0].mxu0
        %7072 = vmatprep.mubr.bf16.mxu0 %v5668
        %7073 = vmatmul.mubr.bf16.gmra.mrb[0].mxu0 %v5667
        %v7074 = vpop.f32.mrb[0].mxu0
        %v7075 = vadd.f32 %v6786, %v7074
        %v7076 = vpop.f32.mrb[0].mxu0
        %v7077 = vpop.f32.mrb[0].mxu0
        %v7078 = vadd.f32 %v6789, %v7077
        %v7079 = vpop.f32.mrb[0].mxu0
        %7080 = vmatprep.mubr.bf16.mxu0 %v5676
        %7081 = vmatmul.mubr.bf16.gmra.mrb[0].mxu0 %v5675
        %v7082 = vpop.f32.mrb[0].mxu0
        %v7083 = vadd.f32 %v6794, %v7082
        %v7084 = vpop.f32.mrb[0].mxu0
        %v7085 = vpop.f32.mrb[0].mxu0
        %v7086 = vadd.f32 %v6797, %v7085
        %v7087 = vpop.f32.mrb[0].mxu0
        %7088 = vmatprep.mubr.bf16.mxu0 %v5684
        %7089 = vmatmul.mubr.bf16.gmra.mrb[0].mxu0 %v5683
        %v7090 = vpop.f32.mrb[0].mxu0
        %v7091 = vadd.f32 %v6802, %v7090
        %v7092 = vpop.f32.mrb[0].mxu0
        %v7093 = vpop.f32.mrb[0].mxu0
        %v7094 = vadd.f32 %v6805, %v7093
        %v7095 = vpop.f32.mrb[0].mxu0
        %7096 = vmatprep.mubr.bf16.mxu0 %v5692
        %7097 = vmatmul.mubr.bf16.gmra.mrb[0].mxu0 %v5691
        %v7098 = vpop.f32.mrb[0].mxu0
        %v7099 = vadd.f32 %v6810, %v7098
        %v7100 = vpop.f32.mrb[0].mxu0
        %v7101 = vpop.f32.mrb[0].mxu0
        %v7102 = vadd.f32 %v6813, %v7101
        %v7103 = vpop.f32.mrb[0].mxu0
        %7104 = vmatprep.mubr.bf16.mxu0 %v5700
        %7105 = vmatmul.mubr.bf16.gmra.mrb[0].mxu0 %v5699
        %v7106 = vpop.f32.mrb[0].mxu0
        %v7107 = vadd.f32 %v6818, %v7106
        %v7108 = vpop.f32.mrb[0].mxu0
        %v7109 = vpop.f32.mrb[0].mxu0
        %v7110 = vadd.f32 %v6821, %v7109
        %v7111 = vpop.f32.mrb[0].mxu0
        %7112 = vmatprep.mubr.bf16.mxu0 %v5708
        %7113 = vmatmul.mubr.bf16.gmra.mrb[0].mxu0 %v5707
        %v7114 = vpop.f32.mrb[0].mxu0
        %v7115 = vadd.f32 %v6826, %v7114
        %v7116 = vpop.f32.mrb[0].mxu0
        %v7117 = vpop.f32.mrb[0].mxu0
        %v7118 = vadd.f32 %v6829, %v7117
        %v7119 = vpop.f32.mrb[0].mxu0
        %7120 = vmatprep.mubr.bf16.mxu0 %v5716
        %7121 = vmatmul.mubr.bf16.gmra.mrb[0].mxu0 %v5715
        %v7122 = vpop.f32.mrb[0].mxu0
        %v7123 = vadd.f32 %v6834, %v7122
        %v7124 = vpop.f32.mrb[0].mxu0
        %v7125 = vpop.f32.mrb[0].mxu0
        %v7126 = vadd.f32 %v6837, %v7125
        %v7127 = vpop.f32.mrb[0].mxu0
        %7128 = vmatprep.mubr.bf16.mxu0 %v5724
        %7129 = vmatmul.mubr.bf16.gmra.mrb[0].mxu0 %v5723
        %v7130 = vpop.f32.mrb[0].mxu0
        %v7131 = vadd.f32 %v6842, %v7130
        %v7132 = vpop.f32.mrb[0].mxu0
        %v7133 = vpop.f32.mrb[0].mxu0
        %v7134 = vadd.f32 %v6845, %v7133
        %v7135 = vpop.f32.mrb[0].mxu0
        %7136 = vmatprep.mubr.bf16.mxu0 %v5732
        %7137 = vmatmul.mubr.bf16.gmra.mrb[0].mxu0 %v5731
        %v7138 = vpop.f32.mrb[0].mxu0
        %v7139 = vadd.f32 %v6850, %v7138
        %v7140 = vpop.f32.mrb[0].mxu0
        %v7141 = vpop.f32.mrb[0].mxu0
        %v7142 = vadd.f32 %v6853, %v7141
        %v7143 = vpop.f32.mrb[0].mxu0
        %7144 = vmatprep.mubr.bf16.mxu0 %v5740
        %7145 = vmatmul.mubr.bf16.gmra.mrb[0].mxu0 %v5739
        %v7146 = vpop.f32.mrb[0].mxu0
        %v7147 = vadd.f32 %v6858, %v7146
        %v7148 = vpop.f32.mrb[0].mxu0
        %v7149 = vpop.f32.mrb[0].mxu0
        %v7150 = vadd.f32 %v6861, %v7149
        %v7151 = vpop.f32.mrb[0].mxu0
        %7152 = vmatprep.mubr.bf16.mxu0 %v5748
        %7153 = vmatmul.mubr.bf16.gmra.mrb[0].mxu0 %v5747
        %v7154 = vpop.f32.mrb[0].mxu0
        %v7155 = vadd.f32 %v6866, %v7154
        %v7156 = vpop.f32.mrb[0].mxu0
        %v7157 = vpop.f32.mrb[0].mxu0
        %v7158 = vadd.f32 %v6869, %v7157
        %v7159 = vpop.f32.mrb[0].mxu0
        %7160 = vmatprep.mubr.bf16.mxu0 %v5756
        %7161 = vmatmul.mubr.bf16.gmra.mrb[0].mxu0 %v5755
        %v7162 = vpop.f32.mrb[0].mxu0
        %v7163 = vadd.f32 %v6874, %v7162
        %v7164 = vpop.f32.mrb[0].mxu0
        %v7165 = vpop.f32.mrb[0].mxu0
        %v7166 = vadd.f32 %v6877, %v7165
        %v7167 = vpop.f32.mrb[0].mxu0
        %7168 = vmatprep.mubr.bf16.mxu0 %v5764
        %7169 = vmatmul.mubr.bf16.gmra.mrb[0].mxu0 %v5763
        %v7170 = vpop.f32.mrb[0].mxu0
        %v7171 = vadd.f32 %v6882, %v7170
        %v7172 = vpop.f32.mrb[0].mxu0
        %v7173 = vpop.f32.mrb[0].mxu0
        %v7174 = vadd.f32 %v6885, %v7173
        %v7175 = vpop.f32.mrb[0].mxu0
        %7176 = vmatprep.mubr.bf16.mxu0 %v5772
        %7177 = vmatmul.mubr.bf16.gmra.mrb[0].mxu0 %v5771
        %v7178 = vpop.f32.mrb[0].mxu0
        %v7179 = vadd.f32 %v6890, %v7178
        %v7180 = vpop.f32.mrb[0].mxu0
        %v7181 = vpop.f32.mrb[0].mxu0
        %v7182 = vadd.f32 %v6893, %v7181
        %v7183 = vpop.f32.mrb[0].mxu0
        %7184 = vmatprep.mubr.bf16.mxu0 %v5780
        %7185 = vmatmul.mubr.bf16.gmra.mrb[0].mxu0 %v5779
        %v7186 = vpop.f32.mrb[0].mxu0
        %v7187 = vadd.f32 %v6898, %v7186
        %v7188 = vpop.f32.mrb[0].mxu0
        %v7189 = vpop.f32.mrb[0].mxu0
        %v7190 = vadd.f32 %v6901, %v7189
        %v7191 = vpop.f32.mrb[0].mxu0
        %7192 = vmatprep.mubr.bf16.mxu0 %v5788
        %7193 = vmatmul.mubr.bf16.gmra.mrb[0].mxu0 %v5787
        %v7194 = vpop.f32.mrb[0].mxu0
        %v7195 = vadd.f32 %v6906, %v7194
        %v7196 = vpop.f32.mrb[0].mxu0
        %v7197 = vpop.f32.mrb[0].mxu0
        %v7198 = vadd.f32 %v6909, %v7197
        %v7199 = vpop.f32.mrb[0].mxu0
        %7200 = vmatprep.mubr.bf16.mxu0 %v5796
        %7201 = vmatmul.mubr.bf16.gmra.mrb[0].mxu0 %v5795
        %v7202 = vpop.f32.mrb[0].mxu0
        %v7203 = vadd.f32 %v6914, %v7202
        %v7204 = vpop.f32.mrb[0].mxu0
        %v7205 = vpop.f32.mrb[0].mxu0
        %v7206 = vadd.f32 %v6917, %v7205
        %v7207 = vpop.f32.mrb[0].mxu0
        %7208 = vmatprep.mubr.bf16.mxu0 %v5804
        %7209 = vmatmul.mubr.bf16.gmra.mrb[0].mxu0 %v5803
        %v7210 = vpop.f32.mrb[0].mxu0
        %v7211 = vadd.f32 %v6922, %v7210
        %v7212 = vpop.f32.mrb[0].mxu0
        %v7213 = vpop.f32.mrb[0].mxu0
        %v7214 = vadd.f32 %v6925, %v7213
        %v7215 = vpop.f32.mrb[0].mxu0
        %7216 = vmatprep.mubr.bf16.mxu0 %v5812
        %7217 = vmatmul.mubr.bf16.gmra.mrb[0].mxu0 %v5811
        %v7218 = vpop.f32.mrb[0].mxu0
        %v7219 = vadd.f32 %v6930, %v7218
        %v7220 = vpop.f32.mrb[0].mxu0
        %v7221 = vpop.f32.mrb[0].mxu0
        %v7222 = vadd.f32 %v6933, %v7221
        %v7223 = vpop.f32.mrb[0].mxu0
        %7224 = vmatprep.mubr.bf16.mxu0 %v5820
        %7225 = vmatmul.mubr.bf16.gmra.mrb[0].mxu0 %v5819
        %v7226 = vpop.f32.mrb[0].mxu0
        %v7227 = vadd.f32 %v6938, %v7226
        %v7228 = vpop.f32.mrb[0].mxu0
        %v7229 = vpop.f32.mrb[0].mxu0
        %v7230 = vadd.f32 %v6941, %v7229
        %v7231 = vpop.f32.mrb[0].mxu0
        %7232 = vdwg.mxu0
        %v7233 = vld [vmem:[%s13] sm:$0xff]
        %v7234 = vld [vmem:[%s13 + $0x8] sm:$0xff]
        %v7235 = vld [vmem:[%s13 + $0x10] sm:$0xff]
        %v7236 = vld [vmem:[%s13 + $0x18] sm:$0xff]
        %v7237 = vld [vmem:[%s13 + $0x20] sm:$0xff]
        %v7238 = vld [vmem:[%s13 + $0x28] sm:$0xff]
        %v7239 = vld [vmem:[%s13 + $0x30] sm:$0xff]
        %v7240 = vld [vmem:[%s13 + $0x38] sm:$0xff]
        %v7241 = vld [vmem:[%s13 + $0x40] sm:$0xff]
        %v7242 = vld [vmem:[%s13 + $0x48] sm:$0xff]
        %v7243 = vld [vmem:[%s13 + $0x50] sm:$0xff]
        %v7244 = vld [vmem:[%s13 + $0x58] sm:$0xff]
        %v7245 = vld [vmem:[%s13 + $0x60] sm:$0xff]
        %v7246 = vld [vmem:[%s13 + $0x68] sm:$0xff]
        %v7247 = vld [vmem:[%s13 + $0x70] sm:$0xff]
        %v7248 = vld [vmem:[%s13 + $0x78] sm:$0xff]
        %v7249 = vld [vmem:[%s13 + $0x80] sm:$0xff]
        %v7250 = vld [vmem:[%s13 + $0x88] sm:$0xff]
        %v7251 = vld [vmem:[%s13 + $0x90] sm:$0xff]
        %v7252 = vld [vmem:[%s13 + $0x98] sm:$0xff]
        %v7253 = vld [vmem:[%s13 + $0xa0] sm:$0xff]
        %v7254 = vld [vmem:[%s13 + $0xa8] sm:$0xff]
        %v7255 = vld [vmem:[%s13 + $0xb0] sm:$0xff]
        %v7256 = vld [vmem:[%s13 + $0xb8] sm:$0xff]
        %v7257 = vld [vmem:[%s13 + $0xc0] sm:$0xff]
        %v7258 = vld [vmem:[%s13 + $0xc8] sm:$0xff]
        %v7259 = vld [vmem:[%s13 + $0xd0] sm:$0xff]
        %v7260 = vld [vmem:[%s13 + $0xd8] sm:$0xff]
        %v7261 = vld [vmem:[%s13 + $0xe0] sm:$0xff]
        %v7262 = vld [vmem:[%s13 + $0xe8] sm:$0xff]
        %v7263 = vld [vmem:[%s13 + $0xf0] sm:$0xff]
        %v7264 = vld [vmem:[%s13 + $0xf8] sm:$0xff]
        %v7265 = vld [vmem:[%s13 + $0x100] sm:$0xff]
        %v7266 = vld [vmem:[%s13 + $0x108] sm:$0xff]
        %v7267 = vld [vmem:[%s13 + $0x110] sm:$0xff]
        %v7268 = vld [vmem:[%s13 + $0x118] sm:$0xff]
        %v7269 = vld [vmem:[%s13 + $0x120] sm:$0xff]
        %v7270 = vld [vmem:[%s13 + $0x128] sm:$0xff]
        %v7271 = vld [vmem:[%s13 + $0x130] sm:$0xff]
        %v7272 = vld [vmem:[%s13 + $0x138] sm:$0xff]
        %v7273 = vld [vmem:[%s13 + $0x140] sm:$0xff]
        %v7274 = vld [vmem:[%s13 + $0x148] sm:$0xff]
        %v7275 = vld [vmem:[%s13 + $0x150] sm:$0xff]
        %v7276 = vld [vmem:[%s13 + $0x158] sm:$0xff]
        %v7277 = vld [vmem:[%s13 + $0x160] sm:$0xff]
        %v7278 = vld [vmem:[%s13 + $0x168] sm:$0xff]
        %v7279 = vld [vmem:[%s13 + $0x170] sm:$0xff]
        %v7280 = vld [vmem:[%s13 + $0x178] sm:$0xff]
        %v7281 = vld [vmem:[%s13 + $0x180] sm:$0xff]
        %v7282 = vld [vmem:[%s13 + $0x188] sm:$0xff]
        %v7283 = vld [vmem:[%s13 + $0x190] sm:$0xff]
        %v7284 = vld [vmem:[%s13 + $0x198] sm:$0xff]
        %v7285 = vld [vmem:[%s13 + $0x1a0] sm:$0xff]
        %v7286 = vld [vmem:[%s13 + $0x1a8] sm:$0xff]
        %v7287 = vld [vmem:[%s13 + $0x1b0] sm:$0xff]
        %v7288 = vld [vmem:[%s13 + $0x1b8] sm:$0xff]
        %v7289 = vld [vmem:[%s13 + $0x1c0] sm:$0xff]
        %v7290 = vld [vmem:[%s13 + $0x1c8] sm:$0xff]
        %v7291 = vld [vmem:[%s13 + $0x1d0] sm:$0xff]
        %v7292 = vld [vmem:[%s13 + $0x1d8] sm:$0xff]
        %v7293 = vld [vmem:[%s13 + $0x1e0] sm:$0xff]
        %v7294 = vld [vmem:[%s13 + $0x1e8] sm:$0xff]
        %v7295 = vld [vmem:[%s13 + $0x1f0] sm:$0xff]
        %v7296 = vld [vmem:[%s13 + $0x1f8] sm:$0xff]
        %v7297 = vadd.f32 %v6979, %v7233
        %v7298 = vadd.f32 %v6982, %v7234
        %v7299 = vadd.f32 %v6987, %v7235
        %v7300 = vadd.f32 %v6990, %v7236
        %v7301 = vadd.f32 %v6995, %v7237
        %v7302 = vadd.f32 %v6998, %v7238
        %v7303 = vadd.f32 %v7003, %v7239
        %v7304 = vadd.f32 %v7006, %v7240
        %v7305 = vadd.f32 %v7011, %v7241
        %v7306 = vadd.f32 %v7014, %v7242
        %v7307 = vadd.f32 %v7019, %v7243
        %v7308 = vadd.f32 %v7022, %v7244
        %v7309 = vadd.f32 %v7027, %v7245
        %v7310 = vadd.f32 %v7030, %v7246
        %v7311 = vadd.f32 %v7035, %v7247
        %v7312 = vadd.f32 %v7038, %v7248
        %v7313 = vadd.f32 %v7043, %v7249
        %v7314 = vadd.f32 %v7046, %v7250
        %v7315 = vadd.f32 %v7051, %v7251
        %v7316 = vadd.f32 %v7054, %v7252
        %v7317 = vadd.f32 %v7059, %v7253
        %v7318 = vadd.f32 %v7062, %v7254
        %v7319 = vadd.f32 %v7067, %v7255
        %v7320 = vadd.f32 %v7070, %v7256
        %v7321 = vadd.f32 %v7075, %v7257
        %v7322 = vadd.f32 %v7078, %v7258
        %v7323 = vadd.f32 %v7083, %v7259
        %v7324 = vadd.f32 %v7086, %v7260
        %v7325 = vadd.f32 %v7091, %v7261
        %v7326 = vadd.f32 %v7094, %v7262
        %v7327 = vadd.f32 %v7099, %v7263
        %v7328 = vadd.f32 %v7102, %v7264
        %v7329 = vadd.f32 %v7107, %v7265
        %v7330 = vadd.f32 %v7110, %v7266
        %v7331 = vadd.f32 %v7115, %v7267
        %v7332 = vadd.f32 %v7118, %v7268
        %v7333 = vadd.f32 %v7123, %v7269
        %v7334 = vadd.f32 %v7126, %v7270
        %v7335 = vadd.f32 %v7131, %v7271
        %v7336 = vadd.f32 %v7134, %v7272
        %v7337 = vadd.f32 %v7139, %v7273
        %v7338 = vadd.f32 %v7142, %v7274
        %v7339 = vadd.f32 %v7147, %v7275
        %v7340 = vadd.f32 %v7150, %v7276
        %v7341 = vadd.f32 %v7155, %v7277
        %v7342 = vadd.f32 %v7158, %v7278
        %v7343 = vadd.f32 %v7163, %v7279
        %v7344 = vadd.f32 %v7166, %v7280
        %v7345 = vadd.f32 %v7171, %v7281
        %v7346 = vadd.f32 %v7174, %v7282
        %v7347 = vadd.f32 %v7179, %v7283
        %v7348 = vadd.f32 %v7182, %v7284
        %v7349 = vadd.f32 %v7187, %v7285
        %v7350 = vadd.f32 %v7190, %v7286
        %v7351 = vadd.f32 %v7195, %v7287
        %v7352 = vadd.f32 %v7198, %v7288
        %v7353 = vadd.f32 %v7203, %v7289
        %v7354 = vadd.f32 %v7206, %v7290
        %v7355 = vadd.f32 %v7211, %v7291
        %v7356 = vadd.f32 %v7214, %v7292
        %v7357 = vadd.f32 %v7219, %v7293
        %v7358 = vadd.f32 %v7222, %v7294
        %v7359 = vadd.f32 %v7227, %v7295
        %v7360 = vadd.f32 %v7230, %v7296
        %v7361 = vld [vmem:[%s696] sm:$0xf]
        %v7362 = vld [vmem:[%s696 + $0x4] sm:$0xf]
        %v7363 = vld [vmem:[%s1] sm:$0xf]
        %v7364 = vld [vmem:[%s1 + $0x4] sm:$0xf]
        %v7365 = vld [vmem:[%s1 + $0x8] sm:$0xf]
        %v7366 = vld [vmem:[%s1 + $0xc] sm:$0xf]
        %v7367 = vld [vmem:[%s1 + $0x10] sm:$0xf]
        %v7368 = vld [vmem:[%s1 + $0x14] sm:$0xf]
        %v7369 = vld [vmem:[%s1 + $0x18] sm:$0xf]
        %v7370 = vld [vmem:[%s1 + $0x1c] sm:$0xf]
        %v7371 = vld [vmem:[%s2] sm:$0xff]
        %v7372 = vld [vmem:[%s2 + $0x8] sm:$0xff]
        %v7373 = vld [vmem:[%s2 + $0x10] sm:$0xff]
        %v7374 = vld [vmem:[%s2 + $0x18] sm:$0xff]
        %v7375 = vld [vmem:[%s2 + $0x20] sm:$0xff]
        %v7376 = vld [vmem:[%s2 + $0x28] sm:$0xff]
        %v7377 = vld [vmem:[%s2 + $0x30] sm:$0xff]
        %v7378 = vld [vmem:[%s2 + $0x38] sm:$0xff]
        %7380 = vset.pattern.permute.xlu0 0
        %7381 = vperm.xlu0 %7380, %v7371
        %v7382 = vpop.permute.xlu0 %7381
        %7385 = vset.pattern.permute.xlu0 0
        %7386 = vperm.xlu0 %7385, %v7372
        %v7387 = vpop.permute.xlu0 %7386
        %7390 = vset.pattern.permute.xlu0 0
        %7391 = vperm.xlu0 %7390, %v7373
        %v7392 = vpop.permute.xlu0 %7391
        %7395 = vset.pattern.permute.xlu0 0
        %7396 = vperm.xlu0 %7395, %v7374
        %v7397 = vpop.permute.xlu0 %7396
        %7400 = vset.pattern.permute.xlu0 0
        %7401 = vperm.xlu0 %7400, %v7375
        %v7402 = vpop.permute.xlu0 %7401
        %7405 = vset.pattern.permute.xlu0 0
        %7406 = vperm.xlu0 %7405, %v7376
        %v7407 = vpop.permute.xlu0 %7406
        %7410 = vset.pattern.permute.xlu0 0
        %7411 = vperm.xlu0 %7410, %v7377
        %v7412 = vpop.permute.xlu0 %7411
        %7415 = vset.pattern.permute.xlu0 0
        %7416 = vperm.xlu0 %7415, %v7378
        %v7417 = vpop.permute.xlu0 %7416
        %v7427 = vunpack.c.l.b16 %v7363
        %v7428 = vunpack.c.l.b16 %v7364
        %v7429 = vunpack.c.l.b16 %v7365
        %v7430 = vunpack.c.l.b16 %v7366
        %v7431 = vunpack.c.l.b16 %v7367
        %v7432 = vunpack.c.l.b16 %v7368
        %v7433 = vunpack.c.l.b16 %v7369
        %v7434 = vunpack.c.l.b16 %v7370
        %v7435 = vpack.c.b16 %v7428, %v7427
        %v7436 = vpack.c.b16 %v7430, %v7429
        %v7437 = vpack.c.b16 %v7432, %v7431
        %v7438 = vpack.c.b16 %v7434, %v7433
        %v7441 = vunpack.c.l.b16 %v7361
        %v7442 = vunpack.c.l.b16 %v7362
        %v7443 = vpack.c.b16 %v7442, %v7441
        %v7446 = vsel %vm910, %v7435, 0
        %v7449 = vsel %vm910, %v7436, 0
        %v7452 = vsel %vm910, %v7437, 0
        %v7455 = vsel %vm910, %v7438, 0
        %7457 = vmatprep.subr.bf16.mxu0 0
        %7458 = vmatpush1.bf16.msra.mxu0 %v7443
        %7459 = vmatprep.subr.bf16.mxu0 0
        %7460 = vmatpush1.bf16.msra.mxu0 0
        %7461 = vmatprep.subr.bf16.mxu0 0
        %7462 = vmatpush1.bf16.msra.mxu0 0
        %7463 = vmatprep.subr.bf16.mxu0 0
        %7464 = vmatpush1.bf16.msra.mxu0 0
        %7465 = vmatprep.subr.bf16.mxu0 0
        %7466 = vmatpush1.bf16.msra.mxu0 0
        %7467 = vmatprep.subr.bf16.mxu0 0
        %7468 = vmatpush1.bf16.msra.mxu0 0
        %7469 = vmatprep.subr.bf16.mxu0 0
        %7470 = vmatpush1.bf16.msra.mxu0 0
        %7471 = vmatprep.subr.bf16.mxu0 0
        %7472 = vmatpush1.bf16.msra.mxu0 0
        %7473 = vmatprep.subr.bf16.mxu0 0
        %7474 = vmatpush1.bf16.msra.mxu0 0
        %7475 = vmatprep.subr.bf16.mxu0 0
        %7476 = vmatpush1.bf16.msra.mxu0 0
        %7477 = vmatprep.subr.bf16.mxu0 0
        %7478 = vmatpush1.bf16.msra.mxu0 0
        %7479 = vmatprep.subr.bf16.mxu0 0
        %7480 = vmatpush1.bf16.msra.mxu0 0
        %7481 = vmatprep.subr.bf16.mxu0 0
        %7482 = vmatpush1.bf16.msra.mxu0 0
        %7483 = vmatprep.subr.bf16.mxu0 0
        %7484 = vmatpush1.bf16.msra.mxu0 0
        %7485 = vmatprep.subr.bf16.mxu0 0
        %7486 = vmatpush1.bf16.msra.mxu0 0
        %7487 = vmatprep.subr.bf16.mxu0 0
        %7488 = vmatpush1.bf16.msra.mxu0 0
        %7489 = vmatprep.mubr.bf16.mxu0 0
        %7490 = vmatmul.mubr.bf16.gmra.mrb[0].mxu0 %v7446
        %v7491 = vpop.f32.mrb[0].mxu0
        %v7492 = vadd.f32 %v7382, %v7491
        %v7493 = vpop.f32.mrb[0].mxu0
        %v7494 = vpop.f32.mrb[0].mxu0
        %v7495 = vadd.f32 %v7387, %v7494
        %v7496 = vpop.f32.mrb[0].mxu0
        %7497 = vmatprep.mubr.bf16.mxu0 0
        %7498 = vmatmul.mubr.bf16.gmra.mrb[0].mxu0 %v7449
        %v7499 = vpop.f32.mrb[0].mxu0
        %v7500 = vadd.f32 %v7392, %v7499
        %v7501 = vpop.f32.mrb[0].mxu0
        %v7502 = vpop.f32.mrb[0].mxu0
        %v7503 = vadd.f32 %v7397, %v7502
        %v7504 = vpop.f32.mrb[0].mxu0
        %7505 = vmatprep.mubr.bf16.mxu0 0
        %7506 = vmatmul.mubr.bf16.gmra.mrb[0].mxu0 %v7452
        %v7507 = vpop.f32.mrb[0].mxu0
        %v7508 = vadd.f32 %v7402, %v7507
        %v7509 = vpop.f32.mrb[0].mxu0
        %v7510 = vpop.f32.mrb[0].mxu0
        %v7511 = vadd.f32 %v7407, %v7510
        %v7512 = vpop.f32.mrb[0].mxu0
        %7513 = vmatprep.mubr.bf16.mxu0 0
        %7514 = vmatmul.mubr.bf16.gmra.mrb[0].mxu0 %v7455
        %v7515 = vpop.f32.mrb[0].mxu0
        %v7516 = vadd.f32 %v7412, %v7515
        %v7517 = vpop.f32.mrb[0].mxu0
        %v7518 = vpop.f32.mrb[0].mxu0
        %v7519 = vadd.f32 %v7417, %v7518
        %v7520 = vpop.f32.mrb[0].mxu0
        %7521 = vdwg.mxu0
        %v7522 = vtanh.pop %v7492
        %v7523 = vtanh.pop %v7495
        %v7524 = vtanh.pop %v7500
        %v7525 = vtanh.pop %v7503
        %v7526 = vtanh.pop %v7508
        %v7527 = vtanh.pop %v7511
        %v7528 = vtanh.pop %v7516
        %v7529 = vtanh.pop %v7519
        %v7530 = vpack.c.bf16 %v7523, %v7522
        %v7531 = vpack.c.bf16 %v7525, %v7524
        %v7532 = vpack.c.bf16 %v7527, %v7526
        %v7533 = vpack.c.bf16 %v7529, %v7528
        %v7534 = vld [vmem:[%s3] sm:$0xf]
        %v7535 = vld [vmem:[%s3 + $0x4] sm:$0xf]
        %v7536 = vld [vmem:[%s3 + $0x8] sm:$0xf]
        %v7537 = vld [vmem:[%s3 + $0xc] sm:$0xf]
        %v7538 = vld [vmem:[%s3 + $0x10] sm:$0xf]
        %v7539 = vld [vmem:[%s3 + $0x14] sm:$0xf]
        %v7540 = vld [vmem:[%s3 + $0x18] sm:$0xf]
        %v7541 = vld [vmem:[%s3 + $0x1c] sm:$0xf]
        %v7542 = vld [vmem:[%s4] sm:$0xff]
        %v7543 = vld [vmem:[%s4 + $0x8] sm:$0xff]
        %v7544 = vld [vmem:[%s4 + $0x10] sm:$0xff]
        %v7545 = vld [vmem:[%s4 + $0x18] sm:$0xff]
        %v7546 = vld [vmem:[%s4 + $0x20] sm:$0xff]
        %v7547 = vld [vmem:[%s4 + $0x28] sm:$0xff]
        %v7548 = vld [vmem:[%s4 + $0x30] sm:$0xff]
        %v7549 = vld [vmem:[%s4 + $0x38] sm:$0xff]
        %7551 = vset.pattern.permute.xlu0 0
        %7552 = vperm.xlu0 %7551, %v7542
        %v7553 = vpop.permute.xlu0 %7552
        %7556 = vset.pattern.permute.xlu0 0
        %7557 = vperm.xlu0 %7556, %v7543
        %v7558 = vpop.permute.xlu0 %7557
        %7561 = vset.pattern.permute.xlu0 0
        %7562 = vperm.xlu0 %7561, %v7544
        %v7563 = vpop.permute.xlu0 %7562
        %7566 = vset.pattern.permute.xlu0 0
        %7567 = vperm.xlu0 %7566, %v7545
        %v7568 = vpop.permute.xlu0 %7567
        %7571 = vset.pattern.permute.xlu0 0
        %7572 = vperm.xlu0 %7571, %v7546
        %v7573 = vpop.permute.xlu0 %7572
        %7576 = vset.pattern.permute.xlu0 0
        %7577 = vperm.xlu0 %7576, %v7547
        %v7578 = vpop.permute.xlu0 %7577
        %7581 = vset.pattern.permute.xlu0 0
        %7582 = vperm.xlu0 %7581, %v7548
        %v7583 = vpop.permute.xlu0 %7582
        %7586 = vset.pattern.permute.xlu0 0
        %7587 = vperm.xlu0 %7586, %v7549
        %v7588 = vpop.permute.xlu0 %7587
        %v7598 = vunpack.c.l.b16 %v7534
        %v7599 = vunpack.c.l.b16 %v7535
        %v7600 = vunpack.c.l.b16 %v7536
        %v7601 = vunpack.c.l.b16 %v7537
        %v7602 = vunpack.c.l.b16 %v7538
        %v7603 = vunpack.c.l.b16 %v7539
        %v7604 = vunpack.c.l.b16 %v7540
        %v7605 = vunpack.c.l.b16 %v7541
        %v7606 = vpack.c.b16 %v7599, %v7598
        %v7607 = vpack.c.b16 %v7601, %v7600
        %v7608 = vpack.c.b16 %v7603, %v7602
        %v7609 = vpack.c.b16 %v7605, %v7604
        %v7611 = vsel %vm1076, %v7606, 0
        %v7614 = vsel %vm1076, %v7607, 0
        %v7617 = vsel %vm1076, %v7608, 0
        %v7620 = vsel %vm1076, %v7609, 0
        %7622 = vmatprep.subr.bf16.mxu0 0
        %7623 = vmatpush1.bf16.msra.mxu0 %v7530
        %7624 = vmatprep.subr.bf16.mxu0 0
        %7625 = vmatpush1.bf16.msra.mxu0 %v7531
        %7626 = vmatprep.subr.bf16.mxu0 0
        %7627 = vmatpush1.bf16.msra.mxu0 %v7532
        %7628 = vmatprep.subr.bf16.mxu0 0
        %7629 = vmatpush1.bf16.msra.mxu0 %v7533
        %7630 = vmatprep.subr.bf16.mxu0 0
        %7631 = vmatpush1.bf16.msra.mxu0 0
        %7632 = vmatprep.subr.bf16.mxu0 0
        %7633 = vmatpush1.bf16.msra.mxu0 0
        %7634 = vmatprep.subr.bf16.mxu0 0
        %7635 = vmatpush1.bf16.msra.mxu0 0
        %7636 = vmatprep.subr.bf16.mxu0 0
        %7637 = vmatpush1.bf16.msra.mxu0 0
        %7638 = vmatprep.subr.bf16.mxu0 0
        %7639 = vmatpush1.bf16.msra.mxu0 0
        %7640 = vmatprep.subr.bf16.mxu0 0
        %7641 = vmatpush1.bf16.msra.mxu0 0
        %7642 = vmatprep.subr.bf16.mxu0 0
        %7643 = vmatpush1.bf16.msra.mxu0 0
        %7644 = vmatprep.subr.bf16.mxu0 0
        %7645 = vmatpush1.bf16.msra.mxu0 0
        %7646 = vmatprep.subr.bf16.mxu0 0
        %7647 = vmatpush1.bf16.msra.mxu0 0
        %7648 = vmatprep.subr.bf16.mxu0 0
        %7649 = vmatpush1.bf16.msra.mxu0 0
        %7650 = vmatprep.subr.bf16.mxu0 0
        %7651 = vmatpush1.bf16.msra.mxu0 0
        %7652 = vmatprep.subr.bf16.mxu0 0
        %7653 = vmatpush1.bf16.msra.mxu0 0
        %7654 = vmatprep.mubr.bf16.mxu0 0
        %7655 = vmatmul.mubr.bf16.gmra.mrb[0].mxu0 %v7611
        %v7656 = vpop.f32.mrb[0].mxu0
        %v7657 = vadd.f32 %v7553, %v7656
        %v7658 = vpop.f32.mrb[0].mxu0
        %v7659 = vpop.f32.mrb[0].mxu0
        %v7660 = vadd.f32 %v7558, %v7659
        %v7661 = vpop.f32.mrb[0].mxu0
        %7662 = vmatprep.mubr.bf16.mxu0 0
        %7663 = vmatmul.mubr.bf16.gmra.mrb[0].mxu0 %v7614
        %v7664 = vpop.f32.mrb[0].mxu0
        %v7665 = vadd.f32 %v7563, %v7664
        %v7666 = vpop.f32.mrb[0].mxu0
        %v7667 = vpop.f32.mrb[0].mxu0
        %v7668 = vadd.f32 %v7568, %v7667
        %v7669 = vpop.f32.mrb[0].mxu0
        %7670 = vmatprep.mubr.bf16.mxu0 0
        %7671 = vmatmul.mubr.bf16.gmra.mrb[0].mxu0 %v7617
        %v7672 = vpop.f32.mrb[0].mxu0
        %v7673 = vadd.f32 %v7573, %v7672
        %v7674 = vpop.f32.mrb[0].mxu0
        %v7675 = vpop.f32.mrb[0].mxu0
        %v7676 = vadd.f32 %v7578, %v7675
        %v7677 = vpop.f32.mrb[0].mxu0
        %7678 = vmatprep.mubr.bf16.mxu0 0
        %7679 = vmatmul.mubr.bf16.gmra.mrb[0].mxu0 %v7620
        %v7680 = vpop.f32.mrb[0].mxu0
        %v7681 = vadd.f32 %v7583, %v7680
        %v7682 = vpop.f32.mrb[0].mxu0
        %v7683 = vpop.f32.mrb[0].mxu0
        %v7684 = vadd.f32 %v7588, %v7683
        %v7685 = vpop.f32.mrb[0].mxu0
        %7686 = vdwg.mxu0
        %v7687 = vtanh.pop %v7657
        %v7688 = vtanh.pop %v7660
        %v7689 = vtanh.pop %v7665
        %v7690 = vtanh.pop %v7668
        %v7691 = vtanh.pop %v7673
        %v7692 = vtanh.pop %v7676
        %v7693 = vtanh.pop %v7681
        %v7694 = vtanh.pop %v7684
        %v7695 = vpack.c.bf16 %v7688, %v7687
        %v7696 = vpack.c.bf16 %v7690, %v7689
        %v7697 = vpack.c.bf16 %v7692, %v7691
        %v7698 = vpack.c.bf16 %v7694, %v7693
        %v7699 = vld [vmem:[%s11] sm:$0xf]
        %v7700 = vld [vmem:[%s11 + $0x4] sm:$0xf]
        %v7701 = vld [vmem:[%s11 + $0x8] sm:$0xf]
        %v7702 = vld [vmem:[%s11 + $0xc] sm:$0xf]
        %v7703 = vld [vmem:[%s11 + $0x10] sm:$0xf]
        %v7704 = vld [vmem:[%s11 + $0x14] sm:$0xf]
        %v7705 = vld [vmem:[%s11 + $0x18] sm:$0xf]
        %v7706 = vld [vmem:[%s11 + $0x1c] sm:$0xf]
        %v7707 = vld [vmem:[%s11 + $0x20] sm:$0xf]
        %v7708 = vld [vmem:[%s11 + $0x24] sm:$0xf]
        %v7709 = vld [vmem:[%s11 + $0x28] sm:$0xf]
        %v7710 = vld [vmem:[%s11 + $0x2c] sm:$0xf]
        %v7711 = vld [vmem:[%s11 + $0x30] sm:$0xf]
        %v7712 = vld [vmem:[%s11 + $0x34] sm:$0xf]
        %v7713 = vld [vmem:[%s11 + $0x38] sm:$0xf]
        %v7714 = vld [vmem:[%s11 + $0x3c] sm:$0xf]
        %v7715 = vld [vmem:[%s11 + $0x40] sm:$0xf]
        %v7716 = vld [vmem:[%s11 + $0x44] sm:$0xf]
        %v7717 = vld [vmem:[%s11 + $0x48] sm:$0xf]
        %v7718 = vld [vmem:[%s11 + $0x4c] sm:$0xf]
        %v7719 = vld [vmem:[%s11 + $0x50] sm:$0xf]
        %v7720 = vld [vmem:[%s11 + $0x54] sm:$0xf]
        %v7721 = vld [vmem:[%s11 + $0x58] sm:$0xf]
        %v7722 = vld [vmem:[%s11 + $0x5c] sm:$0xf]
        %v7723 = vld [vmem:[%s11 + $0x60] sm:$0xf]
        %v7724 = vld [vmem:[%s11 + $0x64] sm:$0xf]
        %v7725 = vld [vmem:[%s11 + $0x68] sm:$0xf]
        %v7726 = vld [vmem:[%s11 + $0x6c] sm:$0xf]
        %v7727 = vld [vmem:[%s11 + $0x70] sm:$0xf]
        %v7728 = vld [vmem:[%s11 + $0x74] sm:$0xf]
        %v7729 = vld [vmem:[%s11 + $0x78] sm:$0xf]
        %v7730 = vld [vmem:[%s11 + $0x7c] sm:$0xf]
        %v7731 = vld [vmem:[%s11 + $0x80] sm:$0xf]
        %v7732 = vld [vmem:[%s11 + $0x84] sm:$0xf]
        %v7733 = vld [vmem:[%s11 + $0x88] sm:$0xf]
        %v7734 = vld [vmem:[%s11 + $0x8c] sm:$0xf]
        %v7735 = vld [vmem:[%s11 + $0x90] sm:$0xf]
        %v7736 = vld [vmem:[%s11 + $0x94] sm:$0xf]
        %v7737 = vld [vmem:[%s11 + $0x98] sm:$0xf]
        %v7738 = vld [vmem:[%s11 + $0x9c] sm:$0xf]
        %v7739 = vld [vmem:[%s11 + $0xa0] sm:$0xf]
        %v7740 = vld [vmem:[%s11 + $0xa4] sm:$0xf]
        %v7741 = vld [vmem:[%s11 + $0xa8] sm:$0xf]
        %v7742 = vld [vmem:[%s11 + $0xac] sm:$0xf]
        %v7743 = vld [vmem:[%s11 + $0xb0] sm:$0xf]
        %v7744 = vld [vmem:[%s11 + $0xb4] sm:$0xf]
        %v7745 = vld [vmem:[%s11 + $0xb8] sm:$0xf]
        %v7746 = vld [vmem:[%s11 + $0xbc] sm:$0xf]
        %v7747 = vld [vmem:[%s11 + $0xc0] sm:$0xf]
        %v7748 = vld [vmem:[%s11 + $0xc4] sm:$0xf]
        %v7749 = vld [vmem:[%s11 + $0xc8] sm:$0xf]
        %v7750 = vld [vmem:[%s11 + $0xcc] sm:$0xf]
        %v7751 = vld [vmem:[%s11 + $0xd0] sm:$0xf]
        %v7752 = vld [vmem:[%s11 + $0xd4] sm:$0xf]
        %v7753 = vld [vmem:[%s11 + $0xd8] sm:$0xf]
        %v7754 = vld [vmem:[%s11 + $0xdc] sm:$0xf]
        %v7755 = vld [vmem:[%s11 + $0xe0] sm:$0xf]
        %v7756 = vld [vmem:[%s11 + $0xe4] sm:$0xf]
        %v7757 = vld [vmem:[%s11 + $0xe8] sm:$0xf]
        %v7758 = vld [vmem:[%s11 + $0xec] sm:$0xf]
        %v7759 = vld [vmem:[%s11 + $0xf0] sm:$0xf]
        %v7760 = vld [vmem:[%s11 + $0xf4] sm:$0xf]
        %v7761 = vld [vmem:[%s11 + $0xf8] sm:$0xf]
        %v7762 = vld [vmem:[%s11 + $0xfc] sm:$0xf]
        %7764 = vset.pattern.permute.xlu0 0
        %7765 = vperm.xlu0 %7764, %v7297
        %v7766 = vpop.permute.xlu0 %7765
        %7769 = vset.pattern.permute.xlu0 0
        %7770 = vperm.xlu0 %7769, %v7298
        %v7771 = vpop.permute.xlu0 %7770
        %7774 = vset.pattern.permute.xlu0 0
        %7775 = vperm.xlu0 %7774, %v7299
        %v7776 = vpop.permute.xlu0 %7775
        %7779 = vset.pattern.permute.xlu0 0
        %7780 = vperm.xlu0 %7779, %v7300
        %v7781 = vpop.permute.xlu0 %7780
        %7784 = vset.pattern.permute.xlu0 0
        %7785 = vperm.xlu0 %7784, %v7301
        %v7786 = vpop.permute.xlu0 %7785
        %7789 = vset.pattern.permute.xlu0 0
        %7790 = vperm.xlu0 %7789, %v7302
        %v7791 = vpop.permute.xlu0 %7790
        %7794 = vset.pattern.permute.xlu0 0
        %7795 = vperm.xlu0 %7794, %v7303
        %v7796 = vpop.permute.xlu0 %7795
        %7799 = vset.pattern.permute.xlu0 0
        %7800 = vperm.xlu0 %7799, %v7304
        %v7801 = vpop.permute.xlu0 %7800
        %7804 = vset.pattern.permute.xlu0 0
        %7805 = vperm.xlu0 %7804, %v7305
        %v7806 = vpop.permute.xlu0 %7805
        %7809 = vset.pattern.permute.xlu0 0
        %7810 = vperm.xlu0 %7809, %v7306
        %v7811 = vpop.permute.xlu0 %7810
        %7814 = vset.pattern.permute.xlu0 0
        %7815 = vperm.xlu0 %7814, %v7307
        %v7816 = vpop.permute.xlu0 %7815
        %7819 = vset.pattern.permute.xlu0 0
        %7820 = vperm.xlu0 %7819, %v7308
        %v7821 = vpop.permute.xlu0 %7820
        %7824 = vset.pattern.permute.xlu0 0
        %7825 = vperm.xlu0 %7824, %v7309
        %v7826 = vpop.permute.xlu0 %7825
        %7829 = vset.pattern.permute.xlu0 0
        %7830 = vperm.xlu0 %7829, %v7310
        %v7831 = vpop.permute.xlu0 %7830
        %7834 = vset.pattern.permute.xlu0 0
        %7835 = vperm.xlu0 %7834, %v7311
        %v7836 = vpop.permute.xlu0 %7835
        %7839 = vset.pattern.permute.xlu0 0
        %7840 = vperm.xlu0 %7839, %v7312
        %v7841 = vpop.permute.xlu0 %7840
        %7844 = vset.pattern.permute.xlu0 0
        %7845 = vperm.xlu0 %7844, %v7313
        %v7846 = vpop.permute.xlu0 %7845
        %7849 = vset.pattern.permute.xlu0 0
        %7850 = vperm.xlu0 %7849, %v7314
        %v7851 = vpop.permute.xlu0 %7850
        %7854 = vset.pattern.permute.xlu0 0
        %7855 = vperm.xlu0 %7854, %v7315
        %v7856 = vpop.permute.xlu0 %7855
        %7859 = vset.pattern.permute.xlu0 0
        %7860 = vperm.xlu0 %7859, %v7316
        %v7861 = vpop.permute.xlu0 %7860
        %7864 = vset.pattern.permute.xlu0 0
        %7865 = vperm.xlu0 %7864, %v7317
        %v7866 = vpop.permute.xlu0 %7865
        %7869 = vset.pattern.permute.xlu0 0
        %7870 = vperm.xlu0 %7869, %v7318
        %v7871 = vpop.permute.xlu0 %7870
        %7874 = vset.pattern.permute.xlu0 0
        %7875 = vperm.xlu0 %7874, %v7319
        %v7876 = vpop.permute.xlu0 %7875
        %7879 = vset.pattern.permute.xlu0 0
        %7880 = vperm.xlu0 %7879, %v7320
        %v7881 = vpop.permute.xlu0 %7880
        %7884 = vset.pattern.permute.xlu0 0
        %7885 = vperm.xlu0 %7884, %v7321
        %v7886 = vpop.permute.xlu0 %7885
        %7889 = vset.pattern.permute.xlu0 0
        %7890 = vperm.xlu0 %7889, %v7322
        %v7891 = vpop.permute.xlu0 %7890
        %7894 = vset.pattern.permute.xlu0 0
        %7895 = vperm.xlu0 %7894, %v7323
        %v7896 = vpop.permute.xlu0 %7895
        %7899 = vset.pattern.permute.xlu0 0
        %7900 = vperm.xlu0 %7899, %v7324
        %v7901 = vpop.permute.xlu0 %7900
        %7904 = vset.pattern.permute.xlu0 0
        %7905 = vperm.xlu0 %7904, %v7325
        %v7906 = vpop.permute.xlu0 %7905
        %7909 = vset.pattern.permute.xlu0 0
        %7910 = vperm.xlu0 %7909, %v7326
        %v7911 = vpop.permute.xlu0 %7910
        %7914 = vset.pattern.permute.xlu0 0
        %7915 = vperm.xlu0 %7914, %v7327
        %v7916 = vpop.permute.xlu0 %7915
        %7919 = vset.pattern.permute.xlu0 0
        %7920 = vperm.xlu0 %7919, %v7328
        %v7921 = vpop.permute.xlu0 %7920
        %7924 = vset.pattern.permute.xlu0 0
        %7925 = vperm.xlu0 %7924, %v7329
        %v7926 = vpop.permute.xlu0 %7925
        %7929 = vset.pattern.permute.xlu0 0
        %7930 = vperm.xlu0 %7929, %v7330
        %v7931 = vpop.permute.xlu0 %7930
        %7934 = vset.pattern.permute.xlu0 0
        %7935 = vperm.xlu0 %7934, %v7331
        %v7936 = vpop.permute.xlu0 %7935
        %7939 = vset.pattern.permute.xlu0 0
        %7940 = vperm.xlu0 %7939, %v7332
        %v7941 = vpop.permute.xlu0 %7940
        %7944 = vset.pattern.permute.xlu0 0
        %7945 = vperm.xlu0 %7944, %v7333
        %v7946 = vpop.permute.xlu0 %7945
        %7949 = vset.pattern.permute.xlu0 0
        %7950 = vperm.xlu0 %7949, %v7334
        %v7951 = vpop.permute.xlu0 %7950
        %7954 = vset.pattern.permute.xlu0 0
        %7955 = vperm.xlu0 %7954, %v7335
        %v7956 = vpop.permute.xlu0 %7955
        %7959 = vset.pattern.permute.xlu0 0
        %7960 = vperm.xlu0 %7959, %v7336
        %v7961 = vpop.permute.xlu0 %7960
        %7964 = vset.pattern.permute.xlu0 0
        %7965 = vperm.xlu0 %7964, %v7337
        %v7966 = vpop.permute.xlu0 %7965
        %7969 = vset.pattern.permute.xlu0 0
        %7970 = vperm.xlu0 %7969, %v7338
        %v7971 = vpop.permute.xlu0 %7970
        %7974 = vset.pattern.permute.xlu0 0
        %7975 = vperm.xlu0 %7974, %v7339
        %v7976 = vpop.permute.xlu0 %7975
        %7979 = vset.pattern.permute.xlu0 0
        %7980 = vperm.xlu0 %7979, %v7340
        %v7981 = vpop.permute.xlu0 %7980
        %7984 = vset.pattern.permute.xlu0 0
        %7985 = vperm.xlu0 %7984, %v7341
        %v7986 = vpop.permute.xlu0 %7985
        %7989 = vset.pattern.permute.xlu0 0
        %7990 = vperm.xlu0 %7989, %v7342
        %v7991 = vpop.permute.xlu0 %7990
        %7994 = vset.pattern.permute.xlu0 0
        %7995 = vperm.xlu0 %7994, %v7343
        %v7996 = vpop.permute.xlu0 %7995
        %7999 = vset.pattern.permute.xlu0 0
        %8000 = vperm.xlu0 %7999, %v7344
        %v8001 = vpop.permute.xlu0 %8000
        %8004 = vset.pattern.permute.xlu0 0
        %8005 = vperm.xlu0 %8004, %v7345
        %v8006 = vpop.permute.xlu0 %8005
        %8009 = vset.pattern.permute.xlu0 0
        %8010 = vperm.xlu0 %8009, %v7346
        %v8011 = vpop.permute.xlu0 %8010
        %8014 = vset.pattern.permute.xlu0 0
        %8015 = vperm.xlu0 %8014, %v7347
        %v8016 = vpop.permute.xlu0 %8015
        %8019 = vset.pattern.permute.xlu0 0
        %8020 = vperm.xlu0 %8019, %v7348
        %v8021 = vpop.permute.xlu0 %8020
        %8024 = vset.pattern.permute.xlu0 0
        %8025 = vperm.xlu0 %8024, %v7349
        %v8026 = vpop.permute.xlu0 %8025
        %8029 = vset.pattern.permute.xlu0 0
        %8030 = vperm.xlu0 %8029, %v7350
        %v8031 = vpop.permute.xlu0 %8030
        %8034 = vset.pattern.permute.xlu0 0
        %8035 = vperm.xlu0 %8034, %v7351
        %v8036 = vpop.permute.xlu0 %8035
        %8039 = vset.pattern.permute.xlu0 0
        %8040 = vperm.xlu0 %8039, %v7352
        %v8041 = vpop.permute.xlu0 %8040
        %8044 = vset.pattern.permute.xlu0 0
        %8045 = vperm.xlu0 %8044, %v7353
        %v8046 = vpop.permute.xlu0 %8045
        %8049 = vset.pattern.permute.xlu0 0
        %8050 = vperm.xlu0 %8049, %v7354
        %v8051 = vpop.permute.xlu0 %8050
        %8054 = vset.pattern.permute.xlu0 0
        %8055 = vperm.xlu0 %8054, %v7355
        %v8056 = vpop.permute.xlu0 %8055
        %8059 = vset.pattern.permute.xlu0 0
        %8060 = vperm.xlu0 %8059, %v7356
        %v8061 = vpop.permute.xlu0 %8060
        %8064 = vset.pattern.permute.xlu0 0
        %8065 = vperm.xlu0 %8064, %v7357
        %v8066 = vpop.permute.xlu0 %8065
        %8069 = vset.pattern.permute.xlu0 0
        %8070 = vperm.xlu0 %8069, %v7358
        %v8071 = vpop.permute.xlu0 %8070
        %8074 = vset.pattern.permute.xlu0 0
        %8075 = vperm.xlu0 %8074, %v7359
        %v8076 = vpop.permute.xlu0 %8075
        %8079 = vset.pattern.permute.xlu0 0
        %8080 = vperm.xlu0 %8079, %v7360
        %v8081 = vpop.permute.xlu0 %8080
        %v8147 = vunpack.c.l.b16 %v7699
        %v8148 = vunpack.c.l.b16 %v7700
        %v8149 = vunpack.c.l.b16 %v7701
        %v8150 = vunpack.c.l.b16 %v7702
        %v8151 = vunpack.c.l.b16 %v7703
        %v8152 = vunpack.c.l.b16 %v7704
        %v8153 = vunpack.c.l.b16 %v7705
        %v8154 = vunpack.c.l.b16 %v7706
        %v8155 = vunpack.c.l.b16 %v7707
        %v8156 = vunpack.c.l.b16 %v7708
        %v8157 = vunpack.c.l.b16 %v7709
        %v8158 = vunpack.c.l.b16 %v7710
        %v8159 = vunpack.c.l.b16 %v7711
        %v8160 = vunpack.c.l.b16 %v7712
        %v8161 = vunpack.c.l.b16 %v7713
        %v8162 = vunpack.c.l.b16 %v7714
        %v8163 = vunpack.c.l.b16 %v7715
        %v8164 = vunpack.c.l.b16 %v7716
        %v8165 = vunpack.c.l.b16 %v7717
        %v8166 = vunpack.c.l.b16 %v7718
        %v8167 = vunpack.c.l.b16 %v7719
        %v8168 = vunpack.c.l.b16 %v7720
        %v8169 = vunpack.c.l.b16 %v7721
        %v8170 = vunpack.c.l.b16 %v7722
        %v8171 = vunpack.c.l.b16 %v7723
        %v8172 = vunpack.c.l.b16 %v7724
        %v8173 = vunpack.c.l.b16 %v7725
        %v8174 = vunpack.c.l.b16 %v7726
        %v8175 = vunpack.c.l.b16 %v7727
        %v8176 = vunpack.c.l.b16 %v7728
        %v8177 = vunpack.c.l.b16 %v7729
        %v8178 = vunpack.c.l.b16 %v7730
        %v8179 = vunpack.c.l.b16 %v7731
        %v8180 = vunpack.c.l.b16 %v7732
        %v8181 = vunpack.c.l.b16 %v7733
        %v8182 = vunpack.c.l.b16 %v7734
        %v8183 = vunpack.c.l.b16 %v7735
        %v8184 = vunpack.c.l.b16 %v7736
        %v8185 = vunpack.c.l.b16 %v7737
        %v8186 = vunpack.c.l.b16 %v7738
        %v8187 = vunpack.c.l.b16 %v7739
        %v8188 = vunpack.c.l.b16 %v7740
        %v8189 = vunpack.c.l.b16 %v7741
        %v8190 = vunpack.c.l.b16 %v7742
        %v8191 = vunpack.c.l.b16 %v7743
        %v8192 = vunpack.c.l.b16 %v7744
        %v8193 = vunpack.c.l.b16 %v7745
        %v8194 = vunpack.c.l.b16 %v7746
        %v8195 = vunpack.c.l.b16 %v7747
        %v8196 = vunpack.c.l.b16 %v7748
        %v8197 = vunpack.c.l.b16 %v7749
        %v8198 = vunpack.c.l.b16 %v7750
        %v8199 = vunpack.c.l.b16 %v7751
        %v8200 = vunpack.c.l.b16 %v7752
        %v8201 = vunpack.c.l.b16 %v7753
        %v8202 = vunpack.c.l.b16 %v7754
        %v8203 = vunpack.c.l.b16 %v7755
        %v8204 = vunpack.c.l.b16 %v7756
        %v8205 = vunpack.c.l.b16 %v7757
        %v8206 = vunpack.c.l.b16 %v7758
        %v8207 = vunpack.c.l.b16 %v7759
        %v8208 = vunpack.c.l.b16 %v7760
        %v8209 = vunpack.c.l.b16 %v7761
        %v8210 = vunpack.c.l.b16 %v7762
        %v8211 = vpack.c.b16 %v8148, %v8147
        %v8212 = vpack.c.b16 %v8150, %v8149
        %v8213 = vpack.c.b16 %v8152, %v8151
        %v8214 = vpack.c.b16 %v8154, %v8153
        %v8215 = vpack.c.b16 %v8156, %v8155
        %v8216 = vpack.c.b16 %v8158, %v8157
        %v8217 = vpack.c.b16 %v8160, %v8159
        %v8218 = vpack.c.b16 %v8162, %v8161
        %v8219 = vpack.c.b16 %v8164, %v8163
        %v8220 = vpack.c.b16 %v8166, %v8165
        %v8221 = vpack.c.b16 %v8168, %v8167
        %v8222 = vpack.c.b16 %v8170, %v8169
        %v8223 = vpack.c.b16 %v8172, %v8171
        %v8224 = vpack.c.b16 %v8174, %v8173
        %v8225 = vpack.c.b16 %v8176, %v8175
        %v8226 = vpack.c.b16 %v8178, %v8177
        %v8227 = vpack.c.b16 %v8180, %v8179
        %v8228 = vpack.c.b16 %v8182, %v8181
        %v8229 = vpack.c.b16 %v8184, %v8183
        %v8230 = vpack.c.b16 %v8186, %v8185
        %v8231 = vpack.c.b16 %v8188, %v8187
        %v8232 = vpack.c.b16 %v8190, %v8189
        %v8233 = vpack.c.b16 %v8192, %v8191
        %v8234 = vpack.c.b16 %v8194, %v8193
        %v8235 = vpack.c.b16 %v8196, %v8195
        %v8236 = vpack.c.b16 %v8198, %v8197
        %v8237 = vpack.c.b16 %v8200, %v8199
        %v8238 = vpack.c.b16 %v8202, %v8201
        %v8239 = vpack.c.b16 %v8204, %v8203
        %v8240 = vpack.c.b16 %v8206, %v8205
        %v8241 = vpack.c.b16 %v8208, %v8207
        %v8242 = vpack.c.b16 %v8210, %v8209
        %v8244 = vsel %vm1076, %v8211, 0
        %v8247 = vsel %vm1076, %v8212, 0
        %v8250 = vsel %vm1076, %v8213, 0
        %v8253 = vsel %vm1076, %v8214, 0
        %v8256 = vsel %vm1076, %v8215, 0
        %v8259 = vsel %vm1076, %v8216, 0
        %v8262 = vsel %vm1076, %v8217, 0
        %v8265 = vsel %vm1076, %v8218, 0
        %v8268 = vsel %vm1076, %v8219, 0
        %v8271 = vsel %vm1076, %v8220, 0
        %v8274 = vsel %vm1076, %v8221, 0
        %v8277 = vsel %vm1076, %v8222, 0
        %v8280 = vsel %vm1076, %v8223, 0
        %v8283 = vsel %vm1076, %v8224, 0
        %v8286 = vsel %vm1076, %v8225, 0
        %v8289 = vsel %vm1076, %v8226, 0
        %v8292 = vsel %vm1076, %v8227, 0
        %v8295 = vsel %vm1076, %v8228, 0
        %v8298 = vsel %vm1076, %v8229, 0
        %v8301 = vsel %vm1076, %v8230, 0
        %v8304 = vsel %vm1076, %v8231, 0
        %v8307 = vsel %vm1076, %v8232, 0
        %v8310 = vsel %vm1076, %v8233, 0
        %v8313 = vsel %vm1076, %v8234, 0
        %v8316 = vsel %vm1076, %v8235, 0
        %v8319 = vsel %vm1076, %v8236, 0
        %v8322 = vsel %vm1076, %v8237, 0
        %v8325 = vsel %vm1076, %v8238, 0
        %v8328 = vsel %vm1076, %v8239, 0
        %v8331 = vsel %vm1076, %v8240, 0
        %v8334 = vsel %vm1076, %v8241, 0
        %v8337 = vsel %vm1076, %v8242, 0
        %8339 = vmatprep.subr.bf16.mxu0 0
        %8340 = vmatpush1.bf16.msra.mxu0 %v7695
        %8341 = vmatprep.subr.bf16.mxu0 0
        %8342 = vmatpush1.bf16.msra.mxu0 %v7696
        %8343 = vmatprep.subr.bf16.mxu0 0
        %8344 = vmatpush1.bf16.msra.mxu0 %v7697
        %8345 = vmatprep.subr.bf16.mxu0 0
        %8346 = vmatpush1.bf16.msra.mxu0 %v7698
        %8347 = vmatprep.subr.bf16.mxu0 0
        %8348 = vmatpush1.bf16.msra.mxu0 0
        %8349 = vmatprep.subr.bf16.mxu0 0
        %8350 = vmatpush1.bf16.msra.mxu0 0
        %8351 = vmatprep.subr.bf16.mxu0 0
        %8352 = vmatpush1.bf16.msra.mxu0 0
        %8353 = vmatprep.subr.bf16.mxu0 0
        %8354 = vmatpush1.bf16.msra.mxu0 0
        %8355 = vmatprep.subr.bf16.mxu0 0
        %8356 = vmatpush1.bf16.msra.mxu0 0
        %8357 = vmatprep.subr.bf16.mxu0 0
        %8358 = vmatpush1.bf16.msra.mxu0 0
        %8359 = vmatprep.subr.bf16.mxu0 0
        %8360 = vmatpush1.bf16.msra.mxu0 0
        %8361 = vmatprep.subr.bf16.mxu0 0
        %8362 = vmatpush1.bf16.msra.mxu0 0
        %8363 = vmatprep.subr.bf16.mxu0 0
        %8364 = vmatpush1.bf16.msra.mxu0 0
        %8365 = vmatprep.subr.bf16.mxu0 0
        %8366 = vmatpush1.bf16.msra.mxu0 0
        %8367 = vmatprep.subr.bf16.mxu0 0
        %8368 = vmatpush1.bf16.msra.mxu0 0
        %8369 = vmatprep.subr.bf16.mxu0 0
        %8370 = vmatpush1.bf16.msra.mxu0 0
        %8371 = vmatprep.mubr.bf16.mxu0 0
        %8372 = vmatmul.mubr.bf16.gmra.mrb[0].mxu0 %v8244
        %v8373 = vpop.f32.mrb[0].mxu0
        %v8374 = vadd.f32 %v7766, %v8373
        %v8375 = vpop.f32.mrb[0].mxu0
        %v8376 = vpop.f32.mrb[0].mxu0
        %v8377 = vadd.f32 %v7771, %v8376
        %v8378 = vpop.f32.mrb[0].mxu0
        %8379 = vmatprep.mubr.bf16.mxu0 0
        %8380 = vmatmul.mubr.bf16.gmra.mrb[0].mxu0 %v8247
        %v8381 = vpop.f32.mrb[0].mxu0
        %v8382 = vadd.f32 %v7776, %v8381
        %v8383 = vpop.f32.mrb[0].mxu0
        %v8384 = vpop.f32.mrb[0].mxu0
        %v8385 = vadd.f32 %v7781, %v8384
        %v8386 = vpop.f32.mrb[0].mxu0
        %8387 = vmatprep.mubr.bf16.mxu0 0
        %8388 = vmatmul.mubr.bf16.gmra.mrb[0].mxu0 %v8250
        %v8389 = vpop.f32.mrb[0].mxu0
        %v8390 = vadd.f32 %v7786, %v8389
        %v8391 = vpop.f32.mrb[0].mxu0
        %v8392 = vpop.f32.mrb[0].mxu0
        %v8393 = vadd.f32 %v7791, %v8392
        %v8394 = vpop.f32.mrb[0].mxu0
        %8395 = vmatprep.mubr.bf16.mxu0 0
        %8396 = vmatmul.mubr.bf16.gmra.mrb[0].mxu0 %v8253
        %v8397 = vpop.f32.mrb[0].mxu0
        %v8398 = vadd.f32 %v7796, %v8397
        %v8399 = vpop.f32.mrb[0].mxu0
        %v8400 = vpop.f32.mrb[0].mxu0
        %v8401 = vadd.f32 %v7801, %v8400
        %v8402 = vpop.f32.mrb[0].mxu0
        %8403 = vmatprep.mubr.bf16.mxu0 0
        %8404 = vmatmul.mubr.bf16.gmra.mrb[0].mxu0 %v8256
        %v8405 = vpop.f32.mrb[0].mxu0
        %v8406 = vadd.f32 %v7806, %v8405
        %v8407 = vpop.f32.mrb[0].mxu0
        %v8408 = vpop.f32.mrb[0].mxu0
        %v8409 = vadd.f32 %v7811, %v8408
        %v8410 = vpop.f32.mrb[0].mxu0
        %8411 = vmatprep.mubr.bf16.mxu0 0
        %8412 = vmatmul.mubr.bf16.gmra.mrb[0].mxu0 %v8259
        %v8413 = vpop.f32.mrb[0].mxu0
        %v8414 = vadd.f32 %v7816, %v8413
        %v8415 = vpop.f32.mrb[0].mxu0
        %v8416 = vpop.f32.mrb[0].mxu0
        %v8417 = vadd.f32 %v7821, %v8416
        %v8418 = vpop.f32.mrb[0].mxu0
        %8419 = vmatprep.mubr.bf16.mxu0 0
        %8420 = vmatmul.mubr.bf16.gmra.mrb[0].mxu0 %v8262
        %v8421 = vpop.f32.mrb[0].mxu0
        %v8422 = vadd.f32 %v7826, %v8421
        %v8423 = vpop.f32.mrb[0].mxu0
        %v8424 = vpop.f32.mrb[0].mxu0
        %v8425 = vadd.f32 %v7831, %v8424
        %v8426 = vpop.f32.mrb[0].mxu0
        %8427 = vmatprep.mubr.bf16.mxu0 0
        %8428 = vmatmul.mubr.bf16.gmra.mrb[0].mxu0 %v8265
        %v8429 = vpop.f32.mrb[0].mxu0
        %v8430 = vadd.f32 %v7836, %v8429
        %v8431 = vpop.f32.mrb[0].mxu0
        %v8432 = vpop.f32.mrb[0].mxu0
        %v8433 = vadd.f32 %v7841, %v8432
        %v8434 = vpop.f32.mrb[0].mxu0
        %8435 = vmatprep.mubr.bf16.mxu0 0
        %8436 = vmatmul.mubr.bf16.gmra.mrb[0].mxu0 %v8268
        %v8437 = vpop.f32.mrb[0].mxu0
        %v8438 = vadd.f32 %v7846, %v8437
        %v8439 = vpop.f32.mrb[0].mxu0
        %v8440 = vpop.f32.mrb[0].mxu0
        %v8441 = vadd.f32 %v7851, %v8440
        %v8442 = vpop.f32.mrb[0].mxu0
        %8443 = vmatprep.mubr.bf16.mxu0 0
        %8444 = vmatmul.mubr.bf16.gmra.mrb[0].mxu0 %v8271
        %v8445 = vpop.f32.mrb[0].mxu0
        %v8446 = vadd.f32 %v7856, %v8445
        %v8447 = vpop.f32.mrb[0].mxu0
        %v8448 = vpop.f32.mrb[0].mxu0
        %v8449 = vadd.f32 %v7861, %v8448
        %v8450 = vpop.f32.mrb[0].mxu0
        %8451 = vmatprep.mubr.bf16.mxu0 0
        %8452 = vmatmul.mubr.bf16.gmra.mrb[0].mxu0 %v8274
        %v8453 = vpop.f32.mrb[0].mxu0
        %v8454 = vadd.f32 %v7866, %v8453
        %v8455 = vpop.f32.mrb[0].mxu0
        %v8456 = vpop.f32.mrb[0].mxu0
        %v8457 = vadd.f32 %v7871, %v8456
        %v8458 = vpop.f32.mrb[0].mxu0
        %8459 = vmatprep.mubr.bf16.mxu0 0
        %8460 = vmatmul.mubr.bf16.gmra.mrb[0].mxu0 %v8277
        %v8461 = vpop.f32.mrb[0].mxu0
        %v8462 = vadd.f32 %v7876, %v8461
        %v8463 = vpop.f32.mrb[0].mxu0
        %v8464 = vpop.f32.mrb[0].mxu0
        %v8465 = vadd.f32 %v7881, %v8464
        %v8466 = vpop.f32.mrb[0].mxu0
        %8467 = vmatprep.mubr.bf16.mxu0 0
        %8468 = vmatmul.mubr.bf16.gmra.mrb[0].mxu0 %v8280
        %v8469 = vpop.f32.mrb[0].mxu0
        %v8470 = vadd.f32 %v7886, %v8469
        %v8471 = vpop.f32.mrb[0].mxu0
        %v8472 = vpop.f32.mrb[0].mxu0
        %v8473 = vadd.f32 %v7891, %v8472
        %v8474 = vpop.f32.mrb[0].mxu0
        %8475 = vmatprep.mubr.bf16.mxu0 0
        %8476 = vmatmul.mubr.bf16.gmra.mrb[0].mxu0 %v8283
        %v8477 = vpop.f32.mrb[0].mxu0
        %v8478 = vadd.f32 %v7896, %v8477
        %v8479 = vpop.f32.mrb[0].mxu0
        %v8480 = vpop.f32.mrb[0].mxu0
        %v8481 = vadd.f32 %v7901, %v8480
        %v8482 = vpop.f32.mrb[0].mxu0
        %8483 = vmatprep.mubr.bf16.mxu0 0
        %8484 = vmatmul.mubr.bf16.gmra.mrb[0].mxu0 %v8286
        %v8485 = vpop.f32.mrb[0].mxu0
        %v8486 = vadd.f32 %v7906, %v8485
        %v8487 = vpop.f32.mrb[0].mxu0
        %v8488 = vpop.f32.mrb[0].mxu0
        %v8489 = vadd.f32 %v7911, %v8488
        %v8490 = vpop.f32.mrb[0].mxu0
        %8491 = vmatprep.mubr.bf16.mxu0 0
        %8492 = vmatmul.mubr.bf16.gmra.mrb[0].mxu0 %v8289
        %v8493 = vpop.f32.mrb[0].mxu0
        %v8494 = vadd.f32 %v7916, %v8493
        %v8495 = vpop.f32.mrb[0].mxu0
        %v8496 = vpop.f32.mrb[0].mxu0
        %v8497 = vadd.f32 %v7921, %v8496
        %v8498 = vpop.f32.mrb[0].mxu0
        %8499 = vmatprep.mubr.bf16.mxu0 0
        %8500 = vmatmul.mubr.bf16.gmra.mrb[0].mxu0 %v8292
        %v8501 = vpop.f32.mrb[0].mxu0
        %v8502 = vadd.f32 %v7926, %v8501
        %v8503 = vpop.f32.mrb[0].mxu0
        %v8504 = vpop.f32.mrb[0].mxu0
        %v8505 = vadd.f32 %v7931, %v8504
        %v8506 = vpop.f32.mrb[0].mxu0
        %8507 = vmatprep.mubr.bf16.mxu0 0
        %8508 = vmatmul.mubr.bf16.gmra.mrb[0].mxu0 %v8295
        %v8509 = vpop.f32.mrb[0].mxu0
        %v8510 = vadd.f32 %v7936, %v8509
        %v8511 = vpop.f32.mrb[0].mxu0
        %v8512 = vpop.f32.mrb[0].mxu0
        %v8513 = vadd.f32 %v7941, %v8512
        %v8514 = vpop.f32.mrb[0].mxu0
        %8515 = vmatprep.mubr.bf16.mxu0 0
        %8516 = vmatmul.mubr.bf16.gmra.mrb[0].mxu0 %v8298
        %v8517 = vpop.f32.mrb[0].mxu0
        %v8518 = vadd.f32 %v7946, %v8517
        %v8519 = vpop.f32.mrb[0].mxu0
        %v8520 = vpop.f32.mrb[0].mxu0
        %v8521 = vadd.f32 %v7951, %v8520
        %v8522 = vpop.f32.mrb[0].mxu0
        %8523 = vmatprep.mubr.bf16.mxu0 0
        %8524 = vmatmul.mubr.bf16.gmra.mrb[0].mxu0 %v8301
        %v8525 = vpop.f32.mrb[0].mxu0
        %v8526 = vadd.f32 %v7956, %v8525
        %v8527 = vpop.f32.mrb[0].mxu0
        %v8528 = vpop.f32.mrb[0].mxu0
        %v8529 = vadd.f32 %v7961, %v8528
        %v8530 = vpop.f32.mrb[0].mxu0
        %8531 = vmatprep.mubr.bf16.mxu0 0
        %8532 = vmatmul.mubr.bf16.gmra.mrb[0].mxu0 %v8304
        %v8533 = vpop.f32.mrb[0].mxu0
        %v8534 = vadd.f32 %v7966, %v8533
        %v8535 = vpop.f32.mrb[0].mxu0
        %v8536 = vpop.f32.mrb[0].mxu0
        %v8537 = vadd.f32 %v7971, %v8536
        %v8538 = vpop.f32.mrb[0].mxu0
        %8539 = vmatprep.mubr.bf16.mxu0 0
        %8540 = vmatmul.mubr.bf16.gmra.mrb[0].mxu0 %v8307
        %v8541 = vpop.f32.mrb[0].mxu0
        %v8542 = vadd.f32 %v7976, %v8541
        %v8543 = vpop.f32.mrb[0].mxu0
        %v8544 = vpop.f32.mrb[0].mxu0
        %v8545 = vadd.f32 %v7981, %v8544
        %v8546 = vpop.f32.mrb[0].mxu0
        %8547 = vmatprep.mubr.bf16.mxu0 0
        %8548 = vmatmul.mubr.bf16.gmra.mrb[0].mxu0 %v8310
        %v8549 = vpop.f32.mrb[0].mxu0
        %v8550 = vadd.f32 %v7986, %v8549
        %v8551 = vpop.f32.mrb[0].mxu0
        %v8552 = vpop.f32.mrb[0].mxu0
        %v8553 = vadd.f32 %v7991, %v8552
        %v8554 = vpop.f32.mrb[0].mxu0
        %8555 = vmatprep.mubr.bf16.mxu0 0
        %8556 = vmatmul.mubr.bf16.gmra.mrb[0].mxu0 %v8313
        %v8557 = vpop.f32.mrb[0].mxu0
        %v8558 = vadd.f32 %v7996, %v8557
        %v8559 = vpop.f32.mrb[0].mxu0
        %v8560 = vpop.f32.mrb[0].mxu0
        %v8561 = vadd.f32 %v8001, %v8560
        %v8562 = vpop.f32.mrb[0].mxu0
        %8563 = vmatprep.mubr.bf16.mxu0 0
        %8564 = vmatmul.mubr.bf16.gmra.mrb[0].mxu0 %v8316
        %v8565 = vpop.f32.mrb[0].mxu0
        %v8566 = vadd.f32 %v8006, %v8565
        %v8567 = vpop.f32.mrb[0].mxu0
        %v8568 = vpop.f32.mrb[0].mxu0
        %v8569 = vadd.f32 %v8011, %v8568
        %v8570 = vpop.f32.mrb[0].mxu0
        %8571 = vmatprep.mubr.bf16.mxu0 0
        %8572 = vmatmul.mubr.bf16.gmra.mrb[0].mxu0 %v8319
        %v8573 = vpop.f32.mrb[0].mxu0
        %v8574 = vadd.f32 %v8016, %v8573
        %v8575 = vpop.f32.mrb[0].mxu0
        %v8576 = vpop.f32.mrb[0].mxu0
        %v8577 = vadd.f32 %v8021, %v8576
        %v8578 = vpop.f32.mrb[0].mxu0
        %8579 = vmatprep.mubr.bf16.mxu0 0
        %8580 = vmatmul.mubr.bf16.gmra.mrb[0].mxu0 %v8322
        %v8581 = vpop.f32.mrb[0].mxu0
        %v8582 = vadd.f32 %v8026, %v8581
        %v8583 = vpop.f32.mrb[0].mxu0
        %v8584 = vpop.f32.mrb[0].mxu0
        %v8585 = vadd.f32 %v8031, %v8584
        %v8586 = vpop.f32.mrb[0].mxu0
        %8587 = vmatprep.mubr.bf16.mxu0 0
        %8588 = vmatmul.mubr.bf16.gmra.mrb[0].mxu0 %v8325
        %v8589 = vpop.f32.mrb[0].mxu0
        %v8590 = vadd.f32 %v8036, %v8589
        %v8591 = vpop.f32.mrb[0].mxu0
        %v8592 = vpop.f32.mrb[0].mxu0
        %v8593 = vadd.f32 %v8041, %v8592
        %v8594 = vpop.f32.mrb[0].mxu0
        %8595 = vmatprep.mubr.bf16.mxu0 0
        %8596 = vmatmul.mubr.bf16.gmra.mrb[0].mxu0 %v8328
        %v8597 = vpop.f32.mrb[0].mxu0
        %v8598 = vadd.f32 %v8046, %v8597
        %v8599 = vpop.f32.mrb[0].mxu0
        %v8600 = vpop.f32.mrb[0].mxu0
        %v8601 = vadd.f32 %v8051, %v8600
        %v8602 = vpop.f32.mrb[0].mxu0
        %8603 = vmatprep.mubr.bf16.mxu0 0
        %8604 = vmatmul.mubr.bf16.gmra.mrb[0].mxu0 %v8331
        %v8605 = vpop.f32.mrb[0].mxu0
        %v8606 = vadd.f32 %v8056, %v8605
        %v8607 = vpop.f32.mrb[0].mxu0
        %v8608 = vpop.f32.mrb[0].mxu0
        %v8609 = vadd.f32 %v8061, %v8608
        %v8610 = vpop.f32.mrb[0].mxu0
        %8611 = vmatprep.mubr.bf16.mxu0 0
        %8612 = vmatmul.mubr.bf16.gmra.mrb[0].mxu0 %v8334
        %v8613 = vpop.f32.mrb[0].mxu0
        %v8614 = vadd.f32 %v8066, %v8613
        %v8615 = vpop.f32.mrb[0].mxu0
        %v8616 = vpop.f32.mrb[0].mxu0
        %v8617 = vadd.f32 %v8071, %v8616
        %v8618 = vpop.f32.mrb[0].mxu0
        %8619 = vmatprep.mubr.bf16.mxu0 0
        %8620 = vmatmul.mubr.bf16.gmra.mrb[0].mxu0 %v8337
        %v8621 = vpop.f32.mrb[0].mxu0
        %v8622 = vadd.f32 %v8076, %v8621
        %v8623 = vpop.f32.mrb[0].mxu0
        %v8624 = vpop.f32.mrb[0].mxu0
        %v8625 = vadd.f32 %v8081, %v8624
        %v8626 = vpop.f32.mrb[0].mxu0
        %8627 = vdwg.mxu0
        %v8628 = vtanh.pop %v8374
        %v8629 = vtanh.pop %v8377
        %v8630 = vtanh.pop %v8382
        %v8631 = vtanh.pop %v8385
        %v8632 = vtanh.pop %v8390
        %v8633 = vtanh.pop %v8393
        %v8634 = vtanh.pop %v8398
        %v8635 = vtanh.pop %v8401
        %v8636 = vtanh.pop %v8406
        %v8637 = vtanh.pop %v8409
        %v8638 = vtanh.pop %v8414
        %v8639 = vtanh.pop %v8417
        %v8640 = vtanh.pop %v8422
        %v8641 = vtanh.pop %v8425
        %v8642 = vtanh.pop %v8430
        %v8643 = vtanh.pop %v8433
        %v8644 = vtanh.pop %v8438
        %v8645 = vtanh.pop %v8441
        %v8646 = vtanh.pop %v8446
        %v8647 = vtanh.pop %v8449
        %v8648 = vtanh.pop %v8454
        %v8649 = vtanh.pop %v8457
        %v8650 = vtanh.pop %v8462
        %v8651 = vtanh.pop %v8465
        %v8652 = vtanh.pop %v8470
        %v8653 = vtanh.pop %v8473
        %v8654 = vtanh.pop %v8478
        %v8655 = vtanh.pop %v8481
        %v8656 = vtanh.pop %v8486
        %v8657 = vtanh.pop %v8489
        %v8658 = vtanh.pop %v8494
        %v8659 = vtanh.pop %v8497
        %v8660 = vtanh.pop %v8502
        %v8661 = vtanh.pop %v8505
        %v8662 = vtanh.pop %v8510
        %v8663 = vtanh.pop %v8513
        %v8664 = vtanh.pop %v8518
        %v8665 = vtanh.pop %v8521
        %v8666 = vtanh.pop %v8526
        %v8667 = vtanh.pop %v8529
        %v8668 = vtanh.pop %v8534
        %v8669 = vtanh.pop %v8537
        %v8670 = vtanh.pop %v8542
        %v8671 = vtanh.pop %v8545
        %v8672 = vtanh.pop %v8550
        %v8673 = vtanh.pop %v8553
        %v8674 = vtanh.pop %v8558
        %v8675 = vtanh.pop %v8561
        %v8676 = vtanh.pop %v8566
        %v8677 = vtanh.pop %v8569
        %v8678 = vtanh.pop %v8574
        %v8679 = vtanh.pop %v8577
        %v8680 = vtanh.pop %v8582
        %v8681 = vtanh.pop %v8585
        %v8682 = vtanh.pop %v8590
        %v8683 = vtanh.pop %v8593
        %v8684 = vtanh.pop %v8598
        %v8685 = vtanh.pop %v8601
        %v8686 = vtanh.pop %v8606
        %v8687 = vtanh.pop %v8609
        %v8688 = vtanh.pop %v8614
        %v8689 = vtanh.pop %v8617
        %v8690 = vtanh.pop %v8622
        %v8691 = vtanh.pop %v8625
        %v8692 = vpack.c.bf16 %v8629, %v8628
        %v8693 = vpack.c.bf16 %v8631, %v8630
        %v8694 = vpack.c.bf16 %v8633, %v8632
        %v8695 = vpack.c.bf16 %v8635, %v8634
        %v8696 = vpack.c.bf16 %v8637, %v8636
        %v8697 = vpack.c.bf16 %v8639, %v8638
        %v8698 = vpack.c.bf16 %v8641, %v8640
        %v8699 = vpack.c.bf16 %v8643, %v8642
        %v8700 = vpack.c.bf16 %v8645, %v8644
        %v8701 = vpack.c.bf16 %v8647, %v8646
        %v8702 = vpack.c.bf16 %v8649, %v8648
        %v8703 = vpack.c.bf16 %v8651, %v8650
        %v8704 = vpack.c.bf16 %v8653, %v8652
        %v8705 = vpack.c.bf16 %v8655, %v8654
        %v8706 = vpack.c.bf16 %v8657, %v8656
        %v8707 = vpack.c.bf16 %v8659, %v8658
        %v8708 = vpack.c.bf16 %v8661, %v8660
        %v8709 = vpack.c.bf16 %v8663, %v8662
        %v8710 = vpack.c.bf16 %v8665, %v8664
        %v8711 = vpack.c.bf16 %v8667, %v8666
        %v8712 = vpack.c.bf16 %v8669, %v8668
        %v8713 = vpack.c.bf16 %v8671, %v8670
        %v8714 = vpack.c.bf16 %v8673, %v8672
        %v8715 = vpack.c.bf16 %v8675, %v8674
        %v8716 = vpack.c.bf16 %v8677, %v8676
        %v8717 = vpack.c.bf16 %v8679, %v8678
        %v8718 = vpack.c.bf16 %v8681, %v8680
        %v8719 = vpack.c.bf16 %v8683, %v8682
        %v8720 = vpack.c.bf16 %v8685, %v8684
        %v8721 = vpack.c.bf16 %v8687, %v8686
        %v8722 = vpack.c.bf16 %v8689, %v8688
        %v8723 = vpack.c.bf16 %v8691, %v8690
        %v8724 = vld [vmem:[#allocation3] sm:$0xff]
        %v8725 = vld [vmem:[#allocation3 + $0x8] sm:$0xff]
        %v8726 = vld [vmem:[#allocation3 + $0x10] sm:$0xff]
        %v8727 = vld [vmem:[#allocation3 + $0x18] sm:$0xff]
        %v8728 = vld [vmem:[#allocation3 + $0x20] sm:$0xff]
        %v8729 = vld [vmem:[#allocation3 + $0x28] sm:$0xff]
        %v8730 = vld [vmem:[#allocation3 + $0x30] sm:$0xff]
        %v8731 = vld [vmem:[#allocation3 + $0x38] sm:$0xff]
        %v8732 = vld [vmem:[#allocation3 + $0x40] sm:$0xff]
        %v8733 = vld [vmem:[#allocation3 + $0x48] sm:$0xff]
        %v8734 = vld [vmem:[#allocation3 + $0x50] sm:$0xff]
        %v8735 = vld [vmem:[#allocation3 + $0x58] sm:$0xff]
        %v8736 = vld [vmem:[#allocation3 + $0x60] sm:$0xff]
        %v8737 = vld [vmem:[#allocation3 + $0x68] sm:$0xff]
        %v8738 = vld [vmem:[#allocation3 + $0x70] sm:$0xff]
        %v8739 = vld [vmem:[#allocation3 + $0x78] sm:$0xff]
        %v8740 = vld [vmem:[#allocation3 + $0x80] sm:$0xff]
        %v8741 = vld [vmem:[#allocation3 + $0x88] sm:$0xff]
        %v8742 = vld [vmem:[#allocation3 + $0x90] sm:$0xff]
        %v8743 = vld [vmem:[#allocation3 + $0x98] sm:$0xff]
        %v8744 = vld [vmem:[#allocation3 + $0xa0] sm:$0xff]
        %v8745 = vld [vmem:[#allocation3 + $0xa8] sm:$0xff]
        %v8746 = vld [vmem:[#allocation3 + $0xb0] sm:$0xff]
        %v8747 = vld [vmem:[#allocation3 + $0xb8] sm:$0xff]
        %v8748 = vld [vmem:[#allocation3 + $0xc0] sm:$0xff]
        %v8749 = vld [vmem:[#allocation3 + $0xc8] sm:$0xff]
        %v8750 = vld [vmem:[#allocation3 + $0xd0] sm:$0xff]
        %v8751 = vld [vmem:[#allocation3 + $0xd8] sm:$0xff]
        %v8752 = vld [vmem:[#allocation3 + $0xe0] sm:$0xff]
        %v8753 = vld [vmem:[#allocation3 + $0xe8] sm:$0xff]
        %v8754 = vld [vmem:[#allocation3 + $0xf0] sm:$0xff]
        %v8755 = vld [vmem:[#allocation3 + $0xf8] sm:$0xff]
        %v8756 = vld [vmem:[#allocation3 + $0x100] sm:$0xff]
        %v8757 = vld [vmem:[#allocation3 + $0x108] sm:$0xff]
        %v8758 = vld [vmem:[#allocation3 + $0x110] sm:$0xff]
        %v8759 = vld [vmem:[#allocation3 + $0x118] sm:$0xff]
        %v8760 = vld [vmem:[#allocation3 + $0x120] sm:$0xff]
        %v8761 = vld [vmem:[#allocation3 + $0x128] sm:$0xff]
        %v8762 = vld [vmem:[#allocation3 + $0x130] sm:$0xff]
        %v8763 = vld [vmem:[#allocation3 + $0x138] sm:$0xff]
        %v8764 = vld [vmem:[#allocation3 + $0x140] sm:$0xff]
        %v8765 = vld [vmem:[#allocation3 + $0x148] sm:$0xff]
        %v8766 = vld [vmem:[#allocation3 + $0x150] sm:$0xff]
        %v8767 = vld [vmem:[#allocation3 + $0x158] sm:$0xff]
        %v8768 = vld [vmem:[#allocation3 + $0x160] sm:$0xff]
        %v8769 = vld [vmem:[#allocation3 + $0x168] sm:$0xff]
        %v8770 = vld [vmem:[#allocation3 + $0x170] sm:$0xff]
        %v8771 = vld [vmem:[#allocation3 + $0x178] sm:$0xff]
        %v8772 = vld [vmem:[#allocation3 + $0x180] sm:$0xff]
        %v8773 = vld [vmem:[#allocation3 + $0x188] sm:$0xff]
        %v8774 = vld [vmem:[#allocation3 + $0x190] sm:$0xff]
        %v8775 = vld [vmem:[#allocation3 + $0x198] sm:$0xff]
        %v8776 = vld [vmem:[#allocation3 + $0x1a0] sm:$0xff]
        %v8777 = vld [vmem:[#allocation3 + $0x1a8] sm:$0xff]
        %v8778 = vld [vmem:[#allocation3 + $0x1b0] sm:$0xff]
        %v8779 = vld [vmem:[#allocation3 + $0x1b8] sm:$0xff]
        %v8780 = vld [vmem:[#allocation3 + $0x1c0] sm:$0xff]
        %v8781 = vld [vmem:[#allocation3 + $0x1c8] sm:$0xff]
        %v8782 = vld [vmem:[#allocation3 + $0x1d0] sm:$0xff]
        %v8783 = vld [vmem:[#allocation3 + $0x1d8] sm:$0xff]
        %v8784 = vld [vmem:[#allocation3 + $0x1e0] sm:$0xff]
        %v8785 = vld [vmem:[#allocation3 + $0x1e8] sm:$0xff]
        %v8786 = vld [vmem:[#allocation3 + $0x1f0] sm:$0xff]
        %v8787 = vld [vmem:[#allocation3 + $0x1f8] sm:$0xff]
        %v8788 = vld [vmem:[%s15] sm:$0xff]
        %v8789 = vld [vmem:[%s15 + $0x8] sm:$0xff]
        %v8790 = vld [vmem:[%s15 + $0x10] sm:$0xff]
        %v8791 = vld [vmem:[%s15 + $0x18] sm:$0xff]
        %v8792 = vld [vmem:[%s15 + $0x20] sm:$0xff]
        %v8793 = vld [vmem:[%s15 + $0x28] sm:$0xff]
        %v8794 = vld [vmem:[%s15 + $0x30] sm:$0xff]
        %v8795 = vld [vmem:[%s15 + $0x38] sm:$0xff]
        %v8796 = vld [vmem:[%s15 + $0x40] sm:$0xff]
        %v8797 = vld [vmem:[%s15 + $0x48] sm:$0xff]
        %v8798 = vld [vmem:[%s15 + $0x50] sm:$0xff]
        %v8799 = vld [vmem:[%s15 + $0x58] sm:$0xff]
        %v8800 = vld [vmem:[%s15 + $0x60] sm:$0xff]
        %v8801 = vld [vmem:[%s15 + $0x68] sm:$0xff]
        %v8802 = vld [vmem:[%s15 + $0x70] sm:$0xff]
        %v8803 = vld [vmem:[%s15 + $0x78] sm:$0xff]
        %v8804 = vld [vmem:[%s15 + $0x80] sm:$0xff]
        %v8805 = vld [vmem:[%s15 + $0x88] sm:$0xff]
        %v8806 = vld [vmem:[%s15 + $0x90] sm:$0xff]
        %v8807 = vld [vmem:[%s15 + $0x98] sm:$0xff]
        %v8808 = vld [vmem:[%s15 + $0xa0] sm:$0xff]
        %v8809 = vld [vmem:[%s15 + $0xa8] sm:$0xff]
        %v8810 = vld [vmem:[%s15 + $0xb0] sm:$0xff]
        %v8811 = vld [vmem:[%s15 + $0xb8] sm:$0xff]
        %v8812 = vld [vmem:[%s15 + $0xc0] sm:$0xff]
        %v8813 = vld [vmem:[%s15 + $0xc8] sm:$0xff]
        %v8814 = vld [vmem:[%s15 + $0xd0] sm:$0xff]
        %v8815 = vld [vmem:[%s15 + $0xd8] sm:$0xff]
        %v8816 = vld [vmem:[%s15 + $0xe0] sm:$0xff]
        %v8817 = vld [vmem:[%s15 + $0xe8] sm:$0xff]
        %v8818 = vld [vmem:[%s15 + $0xf0] sm:$0xff]
        %v8819 = vld [vmem:[%s15 + $0xf8] sm:$0xff]
        %8821 = vset.pattern.permute.xlu0 0
        %8822 = vperm.xlu0 %8821, %v8788
        %v8823 = vpop.permute.xlu0 %8822
        %8826 = vset.pattern.permute.xlu0 0
        %8827 = vperm.xlu0 %8826, %v8789
        %v8828 = vpop.permute.xlu0 %8827
        %8831 = vset.pattern.permute.xlu0 0
        %8832 = vperm.xlu0 %8831, %v8790
        %v8833 = vpop.permute.xlu0 %8832
        %8836 = vset.pattern.permute.xlu0 0
        %8837 = vperm.xlu0 %8836, %v8791
        %v8838 = vpop.permute.xlu0 %8837
        %8841 = vset.pattern.permute.xlu0 0
        %8842 = vperm.xlu0 %8841, %v8792
        %v8843 = vpop.permute.xlu0 %8842
        %8846 = vset.pattern.permute.xlu0 0
        %8847 = vperm.xlu0 %8846, %v8793
        %v8848 = vpop.permute.xlu0 %8847
        %8851 = vset.pattern.permute.xlu0 0
        %8852 = vperm.xlu0 %8851, %v8794
        %v8853 = vpop.permute.xlu0 %8852
        %8856 = vset.pattern.permute.xlu0 0
        %8857 = vperm.xlu0 %8856, %v8795
        %v8858 = vpop.permute.xlu0 %8857
        %8861 = vset.pattern.permute.xlu0 0
        %8862 = vperm.xlu0 %8861, %v8796
        %v8863 = vpop.permute.xlu0 %8862
        %8866 = vset.pattern.permute.xlu0 0
        %8867 = vperm.xlu0 %8866, %v8797
        %v8868 = vpop.permute.xlu0 %8867
        %8871 = vset.pattern.permute.xlu0 0
        %8872 = vperm.xlu0 %8871, %v8798
        %v8873 = vpop.permute.xlu0 %8872
        %8876 = vset.pattern.permute.xlu0 0
        %8877 = vperm.xlu0 %8876, %v8799
        %v8878 = vpop.permute.xlu0 %8877
        %8881 = vset.pattern.permute.xlu0 0
        %8882 = vperm.xlu0 %8881, %v8800
        %v8883 = vpop.permute.xlu0 %8882
        %8886 = vset.pattern.permute.xlu0 0
        %8887 = vperm.xlu0 %8886, %v8801
        %v8888 = vpop.permute.xlu0 %8887
        %8891 = vset.pattern.permute.xlu0 0
        %8892 = vperm.xlu0 %8891, %v8802
        %v8893 = vpop.permute.xlu0 %8892
        %8896 = vset.pattern.permute.xlu0 0
        %8897 = vperm.xlu0 %8896, %v8803
        %v8898 = vpop.permute.xlu0 %8897
        %8901 = vset.pattern.permute.xlu0 0
        %8902 = vperm.xlu0 %8901, %v8804
        %v8903 = vpop.permute.xlu0 %8902
        %8906 = vset.pattern.permute.xlu0 0
        %8907 = vperm.xlu0 %8906, %v8805
        %v8908 = vpop.permute.xlu0 %8907
        %8911 = vset.pattern.permute.xlu0 0
        %8912 = vperm.xlu0 %8911, %v8806
        %v8913 = vpop.permute.xlu0 %8912
        %8916 = vset.pattern.permute.xlu0 0
        %8917 = vperm.xlu0 %8916, %v8807
        %v8918 = vpop.permute.xlu0 %8917
        %8921 = vset.pattern.permute.xlu0 0
        %8922 = vperm.xlu0 %8921, %v8808
        %v8923 = vpop.permute.xlu0 %8922
        %8926 = vset.pattern.permute.xlu0 0
        %8927 = vperm.xlu0 %8926, %v8809
        %v8928 = vpop.permute.xlu0 %8927
        %8931 = vset.pattern.permute.xlu0 0
        %8932 = vperm.xlu0 %8931, %v8810
        %v8933 = vpop.permute.xlu0 %8932
        %8936 = vset.pattern.permute.xlu0 0
        %8937 = vperm.xlu0 %8936, %v8811
        %v8938 = vpop.permute.xlu0 %8937
        %8941 = vset.pattern.permute.xlu0 0
        %8942 = vperm.xlu0 %8941, %v8812
        %v8943 = vpop.permute.xlu0 %8942
        %8946 = vset.pattern.permute.xlu0 0
        %8947 = vperm.xlu0 %8946, %v8813
        %v8948 = vpop.permute.xlu0 %8947
        %8951 = vset.pattern.permute.xlu0 0
        %8952 = vperm.xlu0 %8951, %v8814
        %v8953 = vpop.permute.xlu0 %8952
        %8956 = vset.pattern.permute.xlu0 0
        %8957 = vperm.xlu0 %8956, %v8815
        %v8958 = vpop.permute.xlu0 %8957
        %8961 = vset.pattern.permute.xlu0 0
        %8962 = vperm.xlu0 %8961, %v8816
        %v8963 = vpop.permute.xlu0 %8962
        %8966 = vset.pattern.permute.xlu0 0
        %8967 = vperm.xlu0 %8966, %v8817
        %v8968 = vpop.permute.xlu0 %8967
        %8971 = vset.pattern.permute.xlu0 0
        %8972 = vperm.xlu0 %8971, %v8818
        %v8973 = vpop.permute.xlu0 %8972
        %8976 = vset.pattern.permute.xlu0 0
        %8977 = vperm.xlu0 %8976, %v8819
        %v8978 = vpop.permute.xlu0 %8977
        %v9044 = vunpack.c.l.b16 %v8724
        %v9045 = vunpack.c.h.b16 %v8724
        %v9046 = vunpack.c.l.b16 %v8725
        %v9047 = vunpack.c.h.b16 %v8725
        %v9048 = vunpack.c.l.b16 %v8726
        %v9049 = vunpack.c.h.b16 %v8726
        %v9050 = vunpack.c.l.b16 %v8727
        %v9051 = vunpack.c.h.b16 %v8727
        %v9052 = vunpack.c.l.b16 %v8728
        %v9053 = vunpack.c.h.b16 %v8728
        %v9054 = vunpack.c.l.b16 %v8729
        %v9055 = vunpack.c.h.b16 %v8729
        %v9056 = vunpack.c.l.b16 %v8730
        %v9057 = vunpack.c.h.b16 %v8730
        %v9058 = vunpack.c.l.b16 %v8731
        %v9059 = vunpack.c.h.b16 %v8731
        %v9060 = vunpack.c.l.b16 %v8732
        %v9061 = vunpack.c.h.b16 %v8732
        %v9062 = vunpack.c.l.b16 %v8733
        %v9063 = vunpack.c.h.b16 %v8733
        %v9064 = vunpack.c.l.b16 %v8734
        %v9065 = vunpack.c.h.b16 %v8734
        %v9066 = vunpack.c.l.b16 %v8735
        %v9067 = vunpack.c.h.b16 %v8735
        %v9068 = vunpack.c.l.b16 %v8736
        %v9069 = vunpack.c.h.b16 %v8736
        %v9070 = vunpack.c.l.b16 %v8737
        %v9071 = vunpack.c.h.b16 %v8737
        %v9072 = vunpack.c.l.b16 %v8738
        %v9073 = vunpack.c.h.b16 %v8738
        %v9074 = vunpack.c.l.b16 %v8739
        %v9075 = vunpack.c.h.b16 %v8739
        %v9076 = vunpack.c.l.b16 %v8740
        %v9077 = vunpack.c.h.b16 %v8740
        %v9078 = vunpack.c.l.b16 %v8741
        %v9079 = vunpack.c.h.b16 %v8741
        %v9080 = vunpack.c.l.b16 %v8742
        %v9081 = vunpack.c.h.b16 %v8742
        %v9082 = vunpack.c.l.b16 %v8743
        %v9083 = vunpack.c.h.b16 %v8743
        %v9084 = vunpack.c.l.b16 %v8744
        %v9085 = vunpack.c.h.b16 %v8744
        %v9086 = vunpack.c.l.b16 %v8745
        %v9087 = vunpack.c.h.b16 %v8745
        %v9088 = vunpack.c.l.b16 %v8746
        %v9089 = vunpack.c.h.b16 %v8746
        %v9090 = vunpack.c.l.b16 %v8747
        %v9091 = vunpack.c.h.b16 %v8747
        %v9092 = vunpack.c.l.b16 %v8748
        %v9093 = vunpack.c.h.b16 %v8748
        %v9094 = vunpack.c.l.b16 %v8749
        %v9095 = vunpack.c.h.b16 %v8749
        %v9096 = vunpack.c.l.b16 %v8750
        %v9097 = vunpack.c.h.b16 %v8750
        %v9098 = vunpack.c.l.b16 %v8751
        %v9099 = vunpack.c.h.b16 %v8751
        %v9100 = vunpack.c.l.b16 %v8752
        %v9101 = vunpack.c.h.b16 %v8752
        %v9102 = vunpack.c.l.b16 %v8753
        %v9103 = vunpack.c.h.b16 %v8753
        %v9104 = vunpack.c.l.b16 %v8754
        %v9105 = vunpack.c.h.b16 %v8754
        %v9106 = vunpack.c.l.b16 %v8755
        %v9107 = vunpack.c.h.b16 %v8755
        %v9108 = vunpack.c.l.b16 %v8756
        %v9109 = vunpack.c.h.b16 %v8756
        %v9110 = vunpack.c.l.b16 %v8757
        %v9111 = vunpack.c.h.b16 %v8757
        %v9112 = vunpack.c.l.b16 %v8758
        %v9113 = vunpack.c.h.b16 %v8758
        %v9114 = vunpack.c.l.b16 %v8759
        %v9115 = vunpack.c.h.b16 %v8759
        %v9116 = vunpack.c.l.b16 %v8760
        %v9117 = vunpack.c.h.b16 %v8760
        %v9118 = vunpack.c.l.b16 %v8761
        %v9119 = vunpack.c.h.b16 %v8761
        %v9120 = vunpack.c.l.b16 %v8762
        %v9121 = vunpack.c.h.b16 %v8762
        %v9122 = vunpack.c.l.b16 %v8763
        %v9123 = vunpack.c.h.b16 %v8763
        %v9124 = vunpack.c.l.b16 %v8764
        %v9125 = vunpack.c.h.b16 %v8764
        %v9126 = vunpack.c.l.b16 %v8765
        %v9127 = vunpack.c.h.b16 %v8765
        %v9128 = vunpack.c.l.b16 %v8766
        %v9129 = vunpack.c.h.b16 %v8766
        %v9130 = vunpack.c.l.b16 %v8767
        %v9131 = vunpack.c.h.b16 %v8767
        %v9132 = vunpack.c.l.b16 %v8768
        %v9133 = vunpack.c.h.b16 %v8768
        %v9134 = vunpack.c.l.b16 %v8769
        %v9135 = vunpack.c.h.b16 %v8769
        %v9136 = vunpack.c.l.b16 %v8770
        %v9137 = vunpack.c.h.b16 %v8770
        %v9138 = vunpack.c.l.b16 %v8771
        %v9139 = vunpack.c.h.b16 %v8771
        %v9140 = vunpack.c.l.b16 %v8772
        %v9141 = vunpack.c.h.b16 %v8772
        %v9142 = vunpack.c.l.b16 %v8773
        %v9143 = vunpack.c.h.b16 %v8773
        %v9144 = vunpack.c.l.b16 %v8774
        %v9145 = vunpack.c.h.b16 %v8774
        %v9146 = vunpack.c.l.b16 %v8775
        %v9147 = vunpack.c.h.b16 %v8775
        %v9148 = vunpack.c.l.b16 %v8776
        %v9149 = vunpack.c.h.b16 %v8776
        %v9150 = vunpack.c.l.b16 %v8777
        %v9151 = vunpack.c.h.b16 %v8777
        %v9152 = vunpack.c.l.b16 %v8778
        %v9153 = vunpack.c.h.b16 %v8778
        %v9154 = vunpack.c.l.b16 %v8779
        %v9155 = vunpack.c.h.b16 %v8779
        %v9156 = vunpack.c.l.b16 %v8780
        %v9157 = vunpack.c.h.b16 %v8780
        %v9158 = vunpack.c.l.b16 %v8781
        %v9159 = vunpack.c.h.b16 %v8781
        %v9160 = vunpack.c.l.b16 %v8782
        %v9161 = vunpack.c.h.b16 %v8782
        %v9162 = vunpack.c.l.b16 %v8783
        %v9163 = vunpack.c.h.b16 %v8783
        %v9164 = vunpack.c.l.b16 %v8784
        %v9165 = vunpack.c.h.b16 %v8784
        %v9166 = vunpack.c.l.b16 %v8785
        %v9167 = vunpack.c.h.b16 %v8785
        %v9168 = vunpack.c.l.b16 %v8786
        %v9169 = vunpack.c.h.b16 %v8786
        %v9170 = vunpack.c.l.b16 %v8787
        %v9171 = vunpack.c.h.b16 %v8787
        %v9172 = vpack.c.b16 %v9048, %v9044
        %v9173 = vpack.c.b16 %v9049, %v9045
        %v9174 = vpack.c.b16 %v9050, %v9046
        %v9175 = vpack.c.b16 %v9051, %v9047
        %v9176 = vpack.c.b16 %v9056, %v9052
        %v9177 = vpack.c.b16 %v9057, %v9053
        %v9178 = vpack.c.b16 %v9058, %v9054
        %v9179 = vpack.c.b16 %v9059, %v9055
        %v9180 = vpack.c.b16 %v9064, %v9060
        %v9181 = vpack.c.b16 %v9065, %v9061
        %v9182 = vpack.c.b16 %v9066, %v9062
        %v9183 = vpack.c.b16 %v9067, %v9063
        %v9184 = vpack.c.b16 %v9072, %v9068
        %v9185 = vpack.c.b16 %v9073, %v9069
        %v9186 = vpack.c.b16 %v9074, %v9070
        %v9187 = vpack.c.b16 %v9075, %v9071
        %v9188 = vpack.c.b16 %v9080, %v9076
        %v9189 = vpack.c.b16 %v9081, %v9077
        %v9190 = vpack.c.b16 %v9082, %v9078
        %v9191 = vpack.c.b16 %v9083, %v9079
        %v9192 = vpack.c.b16 %v9088, %v9084
        %v9193 = vpack.c.b16 %v9089, %v9085
        %v9194 = vpack.c.b16 %v9090, %v9086
        %v9195 = vpack.c.b16 %v9091, %v9087
        %v9196 = vpack.c.b16 %v9096, %v9092
        %v9197 = vpack.c.b16 %v9097, %v9093
        %v9198 = vpack.c.b16 %v9098, %v9094
        %v9199 = vpack.c.b16 %v9099, %v9095
        %v9200 = vpack.c.b16 %v9104, %v9100
        %v9201 = vpack.c.b16 %v9105, %v9101
        %v9202 = vpack.c.b16 %v9106, %v9102
        %v9203 = vpack.c.b16 %v9107, %v9103
        %v9204 = vpack.c.b16 %v9112, %v9108
        %v9205 = vpack.c.b16 %v9113, %v9109
        %v9206 = vpack.c.b16 %v9114, %v9110
        %v9207 = vpack.c.b16 %v9115, %v9111
        %v9208 = vpack.c.b16 %v9120, %v9116
        %v9209 = vpack.c.b16 %v9121, %v9117
        %v9210 = vpack.c.b16 %v9122, %v9118
        %v9211 = vpack.c.b16 %v9123, %v9119
        %v9212 = vpack.c.b16 %v9128, %v9124
        %v9213 = vpack.c.b16 %v9129, %v9125
        %v9214 = vpack.c.b16 %v9130, %v9126
        %v9215 = vpack.c.b16 %v9131, %v9127
        %v9216 = vpack.c.b16 %v9136, %v9132
        %v9217 = vpack.c.b16 %v9137, %v9133
        %v9218 = vpack.c.b16 %v9138, %v9134
        %v9219 = vpack.c.b16 %v9139, %v9135
        %v9220 = vpack.c.b16 %v9144, %v9140
        %v9221 = vpack.c.b16 %v9145, %v9141
        %v9222 = vpack.c.b16 %v9146, %v9142
        %v9223 = vpack.c.b16 %v9147, %v9143
        %v9224 = vpack.c.b16 %v9152, %v9148
        %v9225 = vpack.c.b16 %v9153, %v9149
        %v9226 = vpack.c.b16 %v9154, %v9150
        %v9227 = vpack.c.b16 %v9155, %v9151
        %v9228 = vpack.c.b16 %v9160, %v9156
        %v9229 = vpack.c.b16 %v9161, %v9157
        %v9230 = vpack.c.b16 %v9162, %v9158
        %v9231 = vpack.c.b16 %v9163, %v9159
        %v9232 = vpack.c.b16 %v9168, %v9164
        %v9233 = vpack.c.b16 %v9169, %v9165
        %v9234 = vpack.c.b16 %v9170, %v9166
        %v9235 = vpack.c.b16 %v9171, %v9167
        %9300 = vmatprep.subr.bf16.mxu0 0
        %9301 = vmatpush1.bf16.msra.mxu0 %v8692
        %9302 = vmatprep.subr.bf16.mxu0 0
        %9303 = vmatpush1.bf16.msra.mxu0 %v8693
        %9304 = vmatprep.subr.bf16.mxu0 0
        %9305 = vmatpush1.bf16.msra.mxu0 %v8694
        %9306 = vmatprep.subr.bf16.mxu0 0
        %9307 = vmatpush1.bf16.msra.mxu0 %v8695
        %9308 = vmatprep.subr.bf16.mxu0 0
        %9309 = vmatpush1.bf16.msra.mxu0 %v8696
        %9310 = vmatprep.subr.bf16.mxu0 0
        %9311 = vmatpush1.bf16.msra.mxu0 %v8697
        %9312 = vmatprep.subr.bf16.mxu0 0
        %9313 = vmatpush1.bf16.msra.mxu0 %v8698
        %9314 = vmatprep.subr.bf16.mxu0 0
        %9315 = vmatpush1.bf16.msra.mxu0 %v8699
        %9316 = vmatprep.subr.bf16.mxu0 0
        %9317 = vmatpush1.bf16.msra.mxu0 %v8700
        %9318 = vmatprep.subr.bf16.mxu0 0
        %9319 = vmatpush1.bf16.msra.mxu0 %v8701
        %9320 = vmatprep.subr.bf16.mxu0 0
        %9321 = vmatpush1.bf16.msra.mxu0 %v8702
        %9322 = vmatprep.subr.bf16.mxu0 0
        %9323 = vmatpush1.bf16.msra.mxu0 %v8703
        %9324 = vmatprep.subr.bf16.mxu0 0
        %9325 = vmatpush1.bf16.msra.mxu0 %v8704
        %9326 = vmatprep.subr.bf16.mxu0 0
        %9327 = vmatpush1.bf16.msra.mxu0 %v8705
        %9328 = vmatprep.subr.bf16.mxu0 0
        %9329 = vmatpush1.bf16.msra.mxu0 %v8706
        %9330 = vmatprep.subr.bf16.mxu0 0
        %9331 = vmatpush1.bf16.msra.mxu0 %v8707
        %9332 = vmatprep.mubr.bf16.mxu0 %v9173
        %9333 = vmatmul.mubr.bf16.gmra.mrb[0].mxu0 %v9172
        %v9334 = vpop.f32.mrb[0].mxu0
        %v9335 = vadd.f32 %v8823, %v9334
        %v9336 = vpop.f32.mrb[0].mxu0
        %v9337 = vpop.f32.mrb[0].mxu0
        %v9338 = vadd.f32 %v8828, %v9337
        %v9339 = vpop.f32.mrb[0].mxu0
        %9340 = vmatprep.mubr.bf16.mxu0 %v9177
        %9341 = vmatmul.mubr.bf16.gmra.mrb[0].mxu0 %v9176
        %v9342 = vpop.f32.mrb[0].mxu0
        %v9343 = vadd.f32 %v8833, %v9342
        %v9344 = vpop.f32.mrb[0].mxu0
        %v9345 = vpop.f32.mrb[0].mxu0
        %v9346 = vadd.f32 %v8838, %v9345
        %v9347 = vpop.f32.mrb[0].mxu0
        %9348 = vmatprep.mubr.bf16.mxu0 %v9181
        %9349 = vmatmul.mubr.bf16.gmra.mrb[0].mxu0 %v9180
        %v9350 = vpop.f32.mrb[0].mxu0
        %v9351 = vadd.f32 %v8843, %v9350
        %v9352 = vpop.f32.mrb[0].mxu0
        %v9353 = vpop.f32.mrb[0].mxu0
        %v9354 = vadd.f32 %v8848, %v9353
        %v9355 = vpop.f32.mrb[0].mxu0
        %9356 = vmatprep.mubr.bf16.mxu0 %v9185
        %9357 = vmatmul.mubr.bf16.gmra.mrb[0].mxu0 %v9184
        %v9358 = vpop.f32.mrb[0].mxu0
        %v9359 = vadd.f32 %v8853, %v9358
        %v9360 = vpop.f32.mrb[0].mxu0
        %v9361 = vpop.f32.mrb[0].mxu0
        %v9362 = vadd.f32 %v8858, %v9361
        %v9363 = vpop.f32.mrb[0].mxu0
        %9364 = vmatprep.mubr.bf16.mxu0 %v9189
        %9365 = vmatmul.mubr.bf16.gmra.mrb[0].mxu0 %v9188
        %v9366 = vpop.f32.mrb[0].mxu0
        %v9367 = vadd.f32 %v8863, %v9366
        %v9368 = vpop.f32.mrb[0].mxu0
        %v9369 = vpop.f32.mrb[0].mxu0
        %v9370 = vadd.f32 %v8868, %v9369
        %v9371 = vpop.f32.mrb[0].mxu0
        %9372 = vmatprep.mubr.bf16.mxu0 %v9193
        %9373 = vmatmul.mubr.bf16.gmra.mrb[0].mxu0 %v9192
        %v9374 = vpop.f32.mrb[0].mxu0
        %v9375 = vadd.f32 %v8873, %v9374
        %v9376 = vpop.f32.mrb[0].mxu0
        %v9377 = vpop.f32.mrb[0].mxu0
        %v9378 = vadd.f32 %v8878, %v9377
        %v9379 = vpop.f32.mrb[0].mxu0
        %9380 = vmatprep.mubr.bf16.mxu0 %v9197
        %9381 = vmatmul.mubr.bf16.gmra.mrb[0].mxu0 %v9196
        %v9382 = vpop.f32.mrb[0].mxu0
        %v9383 = vadd.f32 %v8883, %v9382
        %v9384 = vpop.f32.mrb[0].mxu0
        %v9385 = vpop.f32.mrb[0].mxu0
        %v9386 = vadd.f32 %v8888, %v9385
        %v9387 = vpop.f32.mrb[0].mxu0
        %9388 = vmatprep.mubr.bf16.mxu0 %v9201
        %9389 = vmatmul.mubr.bf16.gmra.mrb[0].mxu0 %v9200
        %v9390 = vpop.f32.mrb[0].mxu0
        %v9391 = vadd.f32 %v8893, %v9390
        %v9392 = vpop.f32.mrb[0].mxu0
        %v9393 = vpop.f32.mrb[0].mxu0
        %v9394 = vadd.f32 %v8898, %v9393
        %v9395 = vpop.f32.mrb[0].mxu0
        %9396 = vmatprep.mubr.bf16.mxu0 %v9205
        %9397 = vmatmul.mubr.bf16.gmra.mrb[0].mxu0 %v9204
        %v9398 = vpop.f32.mrb[0].mxu0
        %v9399 = vadd.f32 %v8903, %v9398
        %v9400 = vpop.f32.mrb[0].mxu0
        %v9401 = vpop.f32.mrb[0].mxu0
        %v9402 = vadd.f32 %v8908, %v9401
        %v9403 = vpop.f32.mrb[0].mxu0
        %9404 = vmatprep.mubr.bf16.mxu0 %v9209
        %9405 = vmatmul.mubr.bf16.gmra.mrb[0].mxu0 %v9208
        %v9406 = vpop.f32.mrb[0].mxu0
        %v9407 = vadd.f32 %v8913, %v9406
        %v9408 = vpop.f32.mrb[0].mxu0
        %v9409 = vpop.f32.mrb[0].mxu0
        %v9410 = vadd.f32 %v8918, %v9409
        %v9411 = vpop.f32.mrb[0].mxu0
        %9412 = vmatprep.mubr.bf16.mxu0 %v9213
        %9413 = vmatmul.mubr.bf16.gmra.mrb[0].mxu0 %v9212
        %v9414 = vpop.f32.mrb[0].mxu0
        %v9415 = vadd.f32 %v8923, %v9414
        %v9416 = vpop.f32.mrb[0].mxu0
        %v9417 = vpop.f32.mrb[0].mxu0
        %v9418 = vadd.f32 %v8928, %v9417
        %v9419 = vpop.f32.mrb[0].mxu0
        %9420 = vmatprep.mubr.bf16.mxu0 %v9217
        %9421 = vmatmul.mubr.bf16.gmra.mrb[0].mxu0 %v9216
        %v9422 = vpop.f32.mrb[0].mxu0
        %v9423 = vadd.f32 %v8933, %v9422
        %v9424 = vpop.f32.mrb[0].mxu0
        %v9425 = vpop.f32.mrb[0].mxu0
        %v9426 = vadd.f32 %v8938, %v9425
        %v9427 = vpop.f32.mrb[0].mxu0
        %9428 = vmatprep.mubr.bf16.mxu0 %v9221
        %9429 = vmatmul.mubr.bf16.gmra.mrb[0].mxu0 %v9220
        %v9430 = vpop.f32.mrb[0].mxu0
        %v9431 = vadd.f32 %v8943, %v9430
        %v9432 = vpop.f32.mrb[0].mxu0
        %v9433 = vpop.f32.mrb[0].mxu0
        %v9434 = vadd.f32 %v8948, %v9433
        %v9435 = vpop.f32.mrb[0].mxu0
        %9436 = vmatprep.mubr.bf16.mxu0 %v9225
        %9437 = vmatmul.mubr.bf16.gmra.mrb[0].mxu0 %v9224
        %v9438 = vpop.f32.mrb[0].mxu0
        %v9439 = vadd.f32 %v8953, %v9438
        %v9440 = vpop.f32.mrb[0].mxu0
        %v9441 = vpop.f32.mrb[0].mxu0
        %v9442 = vadd.f32 %v8958, %v9441
        %v9443 = vpop.f32.mrb[0].mxu0
        %9444 = vmatprep.mubr.bf16.mxu0 %v9229
        %9445 = vmatmul.mubr.bf16.gmra.mrb[0].mxu0 %v9228
        %v9446 = vpop.f32.mrb[0].mxu0
        %v9447 = vadd.f32 %v8963, %v9446
        %v9448 = vpop.f32.mrb[0].mxu0
        %v9449 = vpop.f32.mrb[0].mxu0
        %v9450 = vadd.f32 %v8968, %v9449
        %v9451 = vpop.f32.mrb[0].mxu0
        %9452 = vmatprep.mubr.bf16.mxu0 %v9233
        %9453 = vmatmul.mubr.bf16.gmra.mrb[0].mxu0 %v9232
        %v9454 = vpop.f32.mrb[0].mxu0
        %v9455 = vadd.f32 %v8973, %v9454
        %v9456 = vpop.f32.mrb[0].mxu0
        %v9457 = vpop.f32.mrb[0].mxu0
        %v9458 = vadd.f32 %v8978, %v9457
        %v9459 = vpop.f32.mrb[0].mxu0
        %9460 = vdwg.mxu0
        %9461 = vmatprep.subr.bf16.mxu0 0
        %9462 = vmatpush1.bf16.msra.mxu0 %v8708
        %9463 = vmatprep.subr.bf16.mxu0 0
        %9464 = vmatpush1.bf16.msra.mxu0 %v8709
        %9465 = vmatprep.subr.bf16.mxu0 0
        %9466 = vmatpush1.bf16.msra.mxu0 %v8710
        %9467 = vmatprep.subr.bf16.mxu0 0
        %9468 = vmatpush1.bf16.msra.mxu0 %v8711
        %9469 = vmatprep.subr.bf16.mxu0 0
        %9470 = vmatpush1.bf16.msra.mxu0 %v8712
        %9471 = vmatprep.subr.bf16.mxu0 0
        %9472 = vmatpush1.bf16.msra.mxu0 %v8713
        %9473 = vmatprep.subr.bf16.mxu0 0
        %9474 = vmatpush1.bf16.msra.mxu0 %v8714
        %9475 = vmatprep.subr.bf16.mxu0 0
        %9476 = vmatpush1.bf16.msra.mxu0 %v8715
        %9477 = vmatprep.subr.bf16.mxu0 0
        %9478 = vmatpush1.bf16.msra.mxu0 %v8716
        %9479 = vmatprep.subr.bf16.mxu0 0
        %9480 = vmatpush1.bf16.msra.mxu0 %v8717
        %9481 = vmatprep.subr.bf16.mxu0 0
        %9482 = vmatpush1.bf16.msra.mxu0 %v8718
        %9483 = vmatprep.subr.bf16.mxu0 0
        %9484 = vmatpush1.bf16.msra.mxu0 %v8719
        %9485 = vmatprep.subr.bf16.mxu0 0
        %9486 = vmatpush1.bf16.msra.mxu0 %v8720
        %9487 = vmatprep.subr.bf16.mxu0 0
        %9488 = vmatpush1.bf16.msra.mxu0 %v8721
        %9489 = vmatprep.subr.bf16.mxu0 0
        %9490 = vmatpush1.bf16.msra.mxu0 %v8722
        %9491 = vmatprep.subr.bf16.mxu0 0
        %9492 = vmatpush1.bf16.msra.mxu0 %v8723
        %9493 = vmatprep.mubr.bf16.mxu0 %v9175
        %9494 = vmatmul.mubr.bf16.gmra.mrb[0].mxu0 %v9174
        %v9495 = vpop.f32.mrb[0].mxu0
        %v9496 = vadd.f32 %v9335, %v9495
        %v9497 = vpop.f32.mrb[0].mxu0
        %v9498 = vpop.f32.mrb[0].mxu0
        %v9499 = vadd.f32 %v9338, %v9498
        %v9500 = vpop.f32.mrb[0].mxu0
        %9501 = vmatprep.mubr.bf16.mxu0 %v9179
        %9502 = vmatmul.mubr.bf16.gmra.mrb[0].mxu0 %v9178
        %v9503 = vpop.f32.mrb[0].mxu0
        %v9504 = vadd.f32 %v9343, %v9503
        %v9505 = vpop.f32.mrb[0].mxu0
        %v9506 = vpop.f32.mrb[0].mxu0
        %v9507 = vadd.f32 %v9346, %v9506
        %v9508 = vpop.f32.mrb[0].mxu0
        %9509 = vmatprep.mubr.bf16.mxu0 %v9183
        %9510 = vmatmul.mubr.bf16.gmra.mrb[0].mxu0 %v9182
        %v9511 = vpop.f32.mrb[0].mxu0
        %v9512 = vadd.f32 %v9351, %v9511
        %v9513 = vpop.f32.mrb[0].mxu0
        %v9514 = vpop.f32.mrb[0].mxu0
        %v9515 = vadd.f32 %v9354, %v9514
        %v9516 = vpop.f32.mrb[0].mxu0
        %9517 = vmatprep.mubr.bf16.mxu0 %v9187
        %9518 = vmatmul.mubr.bf16.gmra.mrb[0].mxu0 %v9186
        %v9519 = vpop.f32.mrb[0].mxu0
        %v9520 = vadd.f32 %v9359, %v9519
        %v9521 = vpop.f32.mrb[0].mxu0
        %v9522 = vpop.f32.mrb[0].mxu0
        %v9523 = vadd.f32 %v9362, %v9522
        %v9524 = vpop.f32.mrb[0].mxu0
        %9525 = vmatprep.mubr.bf16.mxu0 %v9191
        %9526 = vmatmul.mubr.bf16.gmra.mrb[0].mxu0 %v9190
        %v9527 = vpop.f32.mrb[0].mxu0
        %v9528 = vadd.f32 %v9367, %v9527
        %v9529 = vpop.f32.mrb[0].mxu0
        %v9530 = vpop.f32.mrb[0].mxu0
        %v9531 = vadd.f32 %v9370, %v9530
        %v9532 = vpop.f32.mrb[0].mxu0
        %9533 = vmatprep.mubr.bf16.mxu0 %v9195
        %9534 = vmatmul.mubr.bf16.gmra.mrb[0].mxu0 %v9194
        %v9535 = vpop.f32.mrb[0].mxu0
        %v9536 = vadd.f32 %v9375, %v9535
        %v9537 = vpop.f32.mrb[0].mxu0
        %v9538 = vpop.f32.mrb[0].mxu0
        %v9539 = vadd.f32 %v9378, %v9538
        %v9540 = vpop.f32.mrb[0].mxu0
        %9541 = vmatprep.mubr.bf16.mxu0 %v9199
        %9542 = vmatmul.mubr.bf16.gmra.mrb[0].mxu0 %v9198
        %v9543 = vpop.f32.mrb[0].mxu0
        %v9544 = vadd.f32 %v9383, %v9543
        %v9545 = vpop.f32.mrb[0].mxu0
        %v9546 = vpop.f32.mrb[0].mxu0
        %v9547 = vadd.f32 %v9386, %v9546
        %v9548 = vpop.f32.mrb[0].mxu0
        %9549 = vmatprep.mubr.bf16.mxu0 %v9203
        %9550 = vmatmul.mubr.bf16.gmra.mrb[0].mxu0 %v9202
        %v9551 = vpop.f32.mrb[0].mxu0
        %v9552 = vadd.f32 %v9391, %v9551
        %v9553 = vpop.f32.mrb[0].mxu0
        %v9554 = vpop.f32.mrb[0].mxu0
        %v9555 = vadd.f32 %v9394, %v9554
        %v9556 = vpop.f32.mrb[0].mxu0
        %9557 = vmatprep.mubr.bf16.mxu0 %v9207
        %9558 = vmatmul.mubr.bf16.gmra.mrb[0].mxu0 %v9206
        %v9559 = vpop.f32.mrb[0].mxu0
        %v9560 = vadd.f32 %v9399, %v9559
        %v9561 = vpop.f32.mrb[0].mxu0
        %v9562 = vpop.f32.mrb[0].mxu0
        %v9563 = vadd.f32 %v9402, %v9562
        %v9564 = vpop.f32.mrb[0].mxu0
        %9565 = vmatprep.mubr.bf16.mxu0 %v9211
        %9566 = vmatmul.mubr.bf16.gmra.mrb[0].mxu0 %v9210
        %v9567 = vpop.f32.mrb[0].mxu0
        %v9568 = vadd.f32 %v9407, %v9567
        %v9569 = vpop.f32.mrb[0].mxu0
        %v9570 = vpop.f32.mrb[0].mxu0
        %v9571 = vadd.f32 %v9410, %v9570
        %v9572 = vpop.f32.mrb[0].mxu0
        %9573 = vmatprep.mubr.bf16.mxu0 %v9215
        %9574 = vmatmul.mubr.bf16.gmra.mrb[0].mxu0 %v9214
        %v9575 = vpop.f32.mrb[0].mxu0
        %v9576 = vadd.f32 %v9415, %v9575
        %v9577 = vpop.f32.mrb[0].mxu0
        %v9578 = vpop.f32.mrb[0].mxu0
        %v9579 = vadd.f32 %v9418, %v9578
        %v9580 = vpop.f32.mrb[0].mxu0
        %9581 = vmatprep.mubr.bf16.mxu0 %v9219
        %9582 = vmatmul.mubr.bf16.gmra.mrb[0].mxu0 %v9218
        %v9583 = vpop.f32.mrb[0].mxu0
        %v9584 = vadd.f32 %v9423, %v9583
        %v9585 = vpop.f32.mrb[0].mxu0
        %v9586 = vpop.f32.mrb[0].mxu0
        %v9587 = vadd.f32 %v9426, %v9586
        %v9588 = vpop.f32.mrb[0].mxu0
        %9589 = vmatprep.mubr.bf16.mxu0 %v9223
        %9590 = vmatmul.mubr.bf16.gmra.mrb[0].mxu0 %v9222
        %v9591 = vpop.f32.mrb[0].mxu0
        %v9592 = vadd.f32 %v9431, %v9591
        %v9593 = vpop.f32.mrb[0].mxu0
        %v9594 = vpop.f32.mrb[0].mxu0
        %v9595 = vadd.f32 %v9434, %v9594
        %v9596 = vpop.f32.mrb[0].mxu0
        %9597 = vmatprep.mubr.bf16.mxu0 %v9227
        %9598 = vmatmul.mubr.bf16.gmra.mrb[0].mxu0 %v9226
        %v9599 = vpop.f32.mrb[0].mxu0
        %v9600 = vadd.f32 %v9439, %v9599
        %v9601 = vpop.f32.mrb[0].mxu0
        %v9602 = vpop.f32.mrb[0].mxu0
        %v9603 = vadd.f32 %v9442, %v9602
        %v9604 = vpop.f32.mrb[0].mxu0
        %9605 = vmatprep.mubr.bf16.mxu0 %v9231
        %9606 = vmatmul.mubr.bf16.gmra.mrb[0].mxu0 %v9230
        %v9607 = vpop.f32.mrb[0].mxu0
        %v9608 = vadd.f32 %v9447, %v9607
        %v9609 = vpop.f32.mrb[0].mxu0
        %v9610 = vpop.f32.mrb[0].mxu0
        %v9611 = vadd.f32 %v9450, %v9610
        %v9612 = vpop.f32.mrb[0].mxu0
        %9613 = vmatprep.mubr.bf16.mxu0 %v9235
        %9614 = vmatmul.mubr.bf16.gmra.mrb[0].mxu0 %v9234
        %v9615 = vpop.f32.mrb[0].mxu0
        %v9616 = vadd.f32 %v9455, %v9615
        %v9617 = vpop.f32.mrb[0].mxu0
        %v9618 = vpop.f32.mrb[0].mxu0
        %v9619 = vadd.f32 %v9458, %v9618
        %v9620 = vpop.f32.mrb[0].mxu0
        %9621 = vdwg.mxu0
        %v9622 = vtanh.pop %v9496
        %v9623 = vtanh.pop %v9499
        %v9624 = vtanh.pop %v9504
        %v9625 = vtanh.pop %v9507
        %v9626 = vtanh.pop %v9512
        %v9627 = vtanh.pop %v9515
        %v9628 = vtanh.pop %v9520
        %v9629 = vtanh.pop %v9523
        %v9630 = vtanh.pop %v9528
        %v9631 = vtanh.pop %v9531
        %v9632 = vtanh.pop %v9536
        %v9633 = vtanh.pop %v9539
        %v9634 = vtanh.pop %v9544
        %v9635 = vtanh.pop %v9547
        %v9636 = vtanh.pop %v9552
        %v9637 = vtanh.pop %v9555
        %v9638 = vtanh.pop %v9560
        %v9639 = vtanh.pop %v9563
        %v9640 = vtanh.pop %v9568
        %v9641 = vtanh.pop %v9571
        %v9642 = vtanh.pop %v9576
        %v9643 = vtanh.pop %v9579
        %v9644 = vtanh.pop %v9584
        %v9645 = vtanh.pop %v9587
        %v9646 = vtanh.pop %v9592
        %v9647 = vtanh.pop %v9595
        %v9648 = vtanh.pop %v9600
        %v9649 = vtanh.pop %v9603
        %v9650 = vtanh.pop %v9608
        %v9651 = vtanh.pop %v9611
        %v9652 = vtanh.pop %v9616
        %v9653 = vtanh.pop %v9619
        %v9654 = vpack.c.bf16 %v9623, %v9622
        %v9655 = vpack.c.bf16 %v9625, %v9624
        %v9656 = vpack.c.bf16 %v9627, %v9626
        %v9657 = vpack.c.bf16 %v9629, %v9628
        %v9658 = vpack.c.bf16 %v9631, %v9630
        %v9659 = vpack.c.bf16 %v9633, %v9632
        %v9660 = vpack.c.bf16 %v9635, %v9634
        %v9661 = vpack.c.bf16 %v9637, %v9636
        %v9662 = vpack.c.bf16 %v9639, %v9638
        %v9663 = vpack.c.bf16 %v9641, %v9640
        %v9664 = vpack.c.bf16 %v9643, %v9642
        %v9665 = vpack.c.bf16 %v9645, %v9644
        %v9666 = vpack.c.bf16 %v9647, %v9646
        %v9667 = vpack.c.bf16 %v9649, %v9648
        %v9668 = vpack.c.bf16 %v9651, %v9650
        %v9669 = vpack.c.bf16 %v9653, %v9652
        %v9670 = vld [vmem:[%s16] sm:$0xff]
        %v9671 = vld [vmem:[%s16 + $0x8] sm:$0xff]
        %v9672 = vld [vmem:[%s16 + $0x10] sm:$0xff]
        %v9673 = vld [vmem:[%s16 + $0x18] sm:$0xff]
        %v9674 = vld [vmem:[%s16 + $0x20] sm:$0xff]
        %v9675 = vld [vmem:[%s16 + $0x28] sm:$0xff]
        %v9676 = vld [vmem:[%s16 + $0x30] sm:$0xff]
        %v9677 = vld [vmem:[%s16 + $0x38] sm:$0xff]
        %v9678 = vld [vmem:[%s16 + $0x40] sm:$0xff]
        %v9679 = vld [vmem:[%s16 + $0x48] sm:$0xff]
        %v9680 = vld [vmem:[%s16 + $0x50] sm:$0xff]
        %v9681 = vld [vmem:[%s16 + $0x58] sm:$0xff]
        %v9682 = vld [vmem:[%s16 + $0x60] sm:$0xff]
        %v9683 = vld [vmem:[%s16 + $0x68] sm:$0xff]
        %v9684 = vld [vmem:[%s16 + $0x70] sm:$0xff]
        %v9685 = vld [vmem:[%s16 + $0x78] sm:$0xff]
        %v9686 = vld [vmem:[%s17] sm:$0xff]
        %v9687 = vld [vmem:[%s17 + $0x8] sm:$0xff]
        %v9688 = vld [vmem:[%s17 + $0x10] sm:$0xff]
        %v9689 = vld [vmem:[%s17 + $0x18] sm:$0xff]
        %v9690 = vld [vmem:[%s17 + $0x20] sm:$0xff]
        %v9691 = vld [vmem:[%s17 + $0x28] sm:$0xff]
        %v9692 = vld [vmem:[%s17 + $0x30] sm:$0xff]
        %v9693 = vld [vmem:[%s17 + $0x38] sm:$0xff]
        %v9694 = vld [vmem:[%s17 + $0x40] sm:$0xff]
        %v9695 = vld [vmem:[%s17 + $0x48] sm:$0xff]
        %v9696 = vld [vmem:[%s17 + $0x50] sm:$0xff]
        %v9697 = vld [vmem:[%s17 + $0x58] sm:$0xff]
        %v9698 = vld [vmem:[%s17 + $0x60] sm:$0xff]
        %v9699 = vld [vmem:[%s17 + $0x68] sm:$0xff]
        %v9700 = vld [vmem:[%s17 + $0x70] sm:$0xff]
        %v9701 = vld [vmem:[%s17 + $0x78] sm:$0xff]
        %9703 = vset.pattern.permute.xlu0 0
        %9704 = vperm.xlu0 %9703, %v9686
        %v9705 = vpop.permute.xlu0 %9704
        %9708 = vset.pattern.permute.xlu0 0
        %9709 = vperm.xlu0 %9708, %v9687
        %v9710 = vpop.permute.xlu0 %9709
        %9713 = vset.pattern.permute.xlu0 0
        %9714 = vperm.xlu0 %9713, %v9688
        %v9715 = vpop.permute.xlu0 %9714
        %9718 = vset.pattern.permute.xlu0 0
        %9719 = vperm.xlu0 %9718, %v9689
        %v9720 = vpop.permute.xlu0 %9719
        %9723 = vset.pattern.permute.xlu0 0
        %9724 = vperm.xlu0 %9723, %v9690
        %v9725 = vpop.permute.xlu0 %9724
        %9728 = vset.pattern.permute.xlu0 0
        %9729 = vperm.xlu0 %9728, %v9691
        %v9730 = vpop.permute.xlu0 %9729
        %9733 = vset.pattern.permute.xlu0 0
        %9734 = vperm.xlu0 %9733, %v9692
        %v9735 = vpop.permute.xlu0 %9734
        %9738 = vset.pattern.permute.xlu0 0
        %9739 = vperm.xlu0 %9738, %v9693
        %v9740 = vpop.permute.xlu0 %9739
        %9743 = vset.pattern.permute.xlu0 0
        %9744 = vperm.xlu0 %9743, %v9694
        %v9745 = vpop.permute.xlu0 %9744
        %9748 = vset.pattern.permute.xlu0 0
        %9749 = vperm.xlu0 %9748, %v9695
        %v9750 = vpop.permute.xlu0 %9749
        %9753 = vset.pattern.permute.xlu0 0
        %9754 = vperm.xlu0 %9753, %v9696
        %v9755 = vpop.permute.xlu0 %9754
        %9758 = vset.pattern.permute.xlu0 0
        %9759 = vperm.xlu0 %9758, %v9697
        %v9760 = vpop.permute.xlu0 %9759
        %9763 = vset.pattern.permute.xlu0 0
        %9764 = vperm.xlu0 %9763, %v9698
        %v9765 = vpop.permute.xlu0 %9764
        %9768 = vset.pattern.permute.xlu0 0
        %9769 = vperm.xlu0 %9768, %v9699
        %v9770 = vpop.permute.xlu0 %9769
        %9773 = vset.pattern.permute.xlu0 0
        %9774 = vperm.xlu0 %9773, %v9700
        %v9775 = vpop.permute.xlu0 %9774
        %9778 = vset.pattern.permute.xlu0 0
        %9779 = vperm.xlu0 %9778, %v9701
        %v9780 = vpop.permute.xlu0 %9779
        %v9798 = vunpack.c.l.b16 %v9670
        %v9799 = vunpack.c.h.b16 %v9670
        %v9800 = vunpack.c.l.b16 %v9671
        %v9801 = vunpack.c.h.b16 %v9671
        %v9802 = vunpack.c.l.b16 %v9672
        %v9803 = vunpack.c.h.b16 %v9672
        %v9804 = vunpack.c.l.b16 %v9673
        %v9805 = vunpack.c.h.b16 %v9673
        %v9806 = vunpack.c.l.b16 %v9674
        %v9807 = vunpack.c.h.b16 %v9674
        %v9808 = vunpack.c.l.b16 %v9675
        %v9809 = vunpack.c.h.b16 %v9675
        %v9810 = vunpack.c.l.b16 %v9676
        %v9811 = vunpack.c.h.b16 %v9676
        %v9812 = vunpack.c.l.b16 %v9677
        %v9813 = vunpack.c.h.b16 %v9677
        %v9814 = vunpack.c.l.b16 %v9678
        %v9815 = vunpack.c.h.b16 %v9678
        %v9816 = vunpack.c.l.b16 %v9679
        %v9817 = vunpack.c.h.b16 %v9679
        %v9818 = vunpack.c.l.b16 %v9680
        %v9819 = vunpack.c.h.b16 %v9680
        %v9820 = vunpack.c.l.b16 %v9681
        %v9821 = vunpack.c.h.b16 %v9681
        %v9822 = vunpack.c.l.b16 %v9682
        %v9823 = vunpack.c.h.b16 %v9682
        %v9824 = vunpack.c.l.b16 %v9683
        %v9825 = vunpack.c.h.b16 %v9683
        %v9826 = vunpack.c.l.b16 %v9684
        %v9827 = vunpack.c.h.b16 %v9684
        %v9828 = vunpack.c.l.b16 %v9685
        %v9829 = vunpack.c.h.b16 %v9685
        %v9830 = vpack.c.b16 %v9800, %v9798
        %v9831 = vpack.c.b16 %v9801, %v9799
        %v9832 = vpack.c.b16 %v9804, %v9802
        %v9833 = vpack.c.b16 %v9805, %v9803
        %v9834 = vpack.c.b16 %v9808, %v9806
        %v9835 = vpack.c.b16 %v9809, %v9807
        %v9836 = vpack.c.b16 %v9812, %v9810
        %v9837 = vpack.c.b16 %v9813, %v9811
        %v9838 = vpack.c.b16 %v9816, %v9814
        %v9839 = vpack.c.b16 %v9817, %v9815
        %v9840 = vpack.c.b16 %v9820, %v9818
        %v9841 = vpack.c.b16 %v9821, %v9819
        %v9842 = vpack.c.b16 %v9824, %v9822
        %v9843 = vpack.c.b16 %v9825, %v9823
        %v9844 = vpack.c.b16 %v9828, %v9826
        %v9845 = vpack.c.b16 %v9829, %v9827
        %9862 = vmatprep.subr.bf16.mxu0 0
        %9863 = vmatpush1.bf16.msra.mxu0 %v9654
        %9864 = vmatprep.subr.bf16.mxu0 0
        %9865 = vmatpush1.bf16.msra.mxu0 %v9655
        %9866 = vmatprep.subr.bf16.mxu0 0
        %9867 = vmatpush1.bf16.msra.mxu0 %v9656
        %9868 = vmatprep.subr.bf16.mxu0 0
        %9869 = vmatpush1.bf16.msra.mxu0 %v9657
        %9870 = vmatprep.subr.bf16.mxu0 0
        %9871 = vmatpush1.bf16.msra.mxu0 %v9658
        %9872 = vmatprep.subr.bf16.mxu0 0
        %9873 = vmatpush1.bf16.msra.mxu0 %v9659
        %9874 = vmatprep.subr.bf16.mxu0 0
        %9875 = vmatpush1.bf16.msra.mxu0 %v9660
        %9876 = vmatprep.subr.bf16.mxu0 0
        %9877 = vmatpush1.bf16.msra.mxu0 %v9661
        %9878 = vmatprep.subr.bf16.mxu0 0
        %9879 = vmatpush1.bf16.msra.mxu0 %v9662
        %9880 = vmatprep.subr.bf16.mxu0 0
        %9881 = vmatpush1.bf16.msra.mxu0 %v9663
        %9882 = vmatprep.subr.bf16.mxu0 0
        %9883 = vmatpush1.bf16.msra.mxu0 %v9664
        %9884 = vmatprep.subr.bf16.mxu0 0
        %9885 = vmatpush1.bf16.msra.mxu0 %v9665
        %9886 = vmatprep.subr.bf16.mxu0 0
        %9887 = vmatpush1.bf16.msra.mxu0 %v9666
        %9888 = vmatprep.subr.bf16.mxu0 0
        %9889 = vmatpush1.bf16.msra.mxu0 %v9667
        %9890 = vmatprep.subr.bf16.mxu0 0
        %9891 = vmatpush1.bf16.msra.mxu0 %v9668
        %9892 = vmatprep.subr.bf16.mxu0 0
        %9893 = vmatpush1.bf16.msra.mxu0 %v9669
        %9894 = vmatprep.mubr.bf16.mxu0 %v9831
        %9895 = vmatmul.mubr.bf16.gmra.mrb[0].mxu0 %v9830
        %v9896 = vpop.f32.mrb[0].mxu0
        %v9897 = vadd.f32 %v9705, %v9896
        %v9898 = vpop.f32.mrb[0].mxu0
        %v9899 = vpop.f32.mrb[0].mxu0
        %v9900 = vadd.f32 %v9710, %v9899
        %v9901 = vpop.f32.mrb[0].mxu0
        %9902 = vmatprep.mubr.bf16.mxu0 %v9833
        %9903 = vmatmul.mubr.bf16.gmra.mrb[0].mxu0 %v9832
        %v9904 = vpop.f32.mrb[0].mxu0
        %v9905 = vadd.f32 %v9715, %v9904
        %v9906 = vpop.f32.mrb[0].mxu0
        %v9907 = vpop.f32.mrb[0].mxu0
        %v9908 = vadd.f32 %v9720, %v9907
        %v9909 = vpop.f32.mrb[0].mxu0
        %9910 = vmatprep.mubr.bf16.mxu0 %v9835
        %9911 = vmatmul.mubr.bf16.gmra.mrb[0].mxu0 %v9834
        %v9912 = vpop.f32.mrb[0].mxu0
        %v9913 = vadd.f32 %v9725, %v9912
        %v9914 = vpop.f32.mrb[0].mxu0
        %v9915 = vpop.f32.mrb[0].mxu0
        %v9916 = vadd.f32 %v9730, %v9915
        %v9917 = vpop.f32.mrb[0].mxu0
        %9918 = vmatprep.mubr.bf16.mxu0 %v9837
        %9919 = vmatmul.mubr.bf16.gmra.mrb[0].mxu0 %v9836
        %v9920 = vpop.f32.mrb[0].mxu0
        %v9921 = vadd.f32 %v9735, %v9920
        %v9922 = vpop.f32.mrb[0].mxu0
        %v9923 = vpop.f32.mrb[0].mxu0
        %v9924 = vadd.f32 %v9740, %v9923
        %v9925 = vpop.f32.mrb[0].mxu0
        %9926 = vmatprep.mubr.bf16.mxu0 %v9839
        %9927 = vmatmul.mubr.bf16.gmra.mrb[0].mxu0 %v9838
        %v9928 = vpop.f32.mrb[0].mxu0
        %v9929 = vadd.f32 %v9745, %v9928
        %v9930 = vpop.f32.mrb[0].mxu0
        %v9931 = vpop.f32.mrb[0].mxu0
        %v9932 = vadd.f32 %v9750, %v9931
        %v9933 = vpop.f32.mrb[0].mxu0
        %9934 = vmatprep.mubr.bf16.mxu0 %v9841
        %9935 = vmatmul.mubr.bf16.gmra.mrb[0].mxu0 %v9840
        %v9936 = vpop.f32.mrb[0].mxu0
        %v9937 = vadd.f32 %v9755, %v9936
        %v9938 = vpop.f32.mrb[0].mxu0
        %v9939 = vpop.f32.mrb[0].mxu0
        %v9940 = vadd.f32 %v9760, %v9939
        %v9941 = vpop.f32.mrb[0].mxu0
        %9942 = vmatprep.mubr.bf16.mxu0 %v9843
        %9943 = vmatmul.mubr.bf16.gmra.mrb[0].mxu0 %v9842
        %v9944 = vpop.f32.mrb[0].mxu0
        %v9945 = vadd.f32 %v9765, %v9944
        %v9946 = vpop.f32.mrb[0].mxu0
        %v9947 = vpop.f32.mrb[0].mxu0
        %v9948 = vadd.f32 %v9770, %v9947
        %v9949 = vpop.f32.mrb[0].mxu0
        %9950 = vmatprep.mubr.bf16.mxu0 %v9845
        %9951 = vmatmul.mubr.bf16.gmra.mrb[0].mxu0 %v9844
        %v9952 = vpop.f32.mrb[0].mxu0
        %v9953 = vadd.f32 %v9775, %v9952
        %v9954 = vpop.f32.mrb[0].mxu0
        %v9955 = vpop.f32.mrb[0].mxu0
        %v9956 = vadd.f32 %v9780, %v9955
        %v9957 = vpop.f32.mrb[0].mxu0
        %9958 = vdwg.mxu0
        %v9959 = vtanh.pop %v9897
        %v9960 = vtanh.pop %v9900
        %v9961 = vtanh.pop %v9905
        %v9962 = vtanh.pop %v9908
        %v9963 = vtanh.pop %v9913
        %v9964 = vtanh.pop %v9916
        %v9965 = vtanh.pop %v9921
        %v9966 = vtanh.pop %v9924
        %v9967 = vtanh.pop %v9929
        %v9968 = vtanh.pop %v9932
        %v9969 = vtanh.pop %v9937
        %v9970 = vtanh.pop %v9940
        %v9971 = vtanh.pop %v9945
        %v9972 = vtanh.pop %v9948
        %v9973 = vtanh.pop %v9953
        %v9974 = vtanh.pop %v9956
        %v9975 = vpack.c.bf16 %v9960, %v9959
        %v9976 = vpack.c.bf16 %v9962, %v9961
        %v9977 = vpack.c.bf16 %v9964, %v9963
        %v9978 = vpack.c.bf16 %v9966, %v9965
        %v9979 = vpack.c.bf16 %v9968, %v9967
        %v9980 = vpack.c.bf16 %v9970, %v9969
        %v9981 = vpack.c.bf16 %v9972, %v9971
        %v9982 = vpack.c.bf16 %v9974, %v9973
        %v9983 = vld [vmem:[%s18] sm:$0xf]
        %v9984 = vld [vmem:[%s18 + $0x4] sm:$0xf]
        %v9985 = vld [vmem:[%s18 + $0x8] sm:$0xf]
        %v9986 = vld [vmem:[%s18 + $0xc] sm:$0xf]
        %v9987 = vld [vmem:[%s18 + $0x10] sm:$0xf]
        %v9988 = vld [vmem:[%s18 + $0x14] sm:$0xf]
        %v9989 = vld [vmem:[%s18 + $0x18] sm:$0xf]
        %v9990 = vld [vmem:[%s18 + $0x1c] sm:$0xf]
        %v9991 = vld [vmem:[%s18 + $0x20] sm:$0xf]
        %v9992 = vld [vmem:[%s18 + $0x24] sm:$0xf]
        %v9993 = vld [vmem:[%s18 + $0x28] sm:$0xf]
        %v9994 = vld [vmem:[%s18 + $0x2c] sm:$0xf]
        %v9995 = vld [vmem:[%s18 + $0x30] sm:$0xf]
        %v9996 = vld [vmem:[%s18 + $0x34] sm:$0xf]
        %v9997 = vld [vmem:[%s18 + $0x38] sm:$0xf]
        %v9998 = vld [vmem:[%s18 + $0x3c] sm:$0xf]
        %v9999 = vld [vmem:[%s19] sm:$0xff]
        %v10000 = vld [vmem:[%s19 + $0x8] sm:$0xff]
        %v10001 = vld [vmem:[%s19 + $0x10] sm:$0xff]
        %v10002 = vld [vmem:[%s19 + $0x18] sm:$0xff]
        %v10003 = vld [vmem:[%s19 + $0x20] sm:$0xff]
        %v10004 = vld [vmem:[%s19 + $0x28] sm:$0xff]
        %v10005 = vld [vmem:[%s19 + $0x30] sm:$0xff]
        %v10006 = vld [vmem:[%s19 + $0x38] sm:$0xff]
        %v10007 = vld [vmem:[%s19 + $0x40] sm:$0xff]
        %v10008 = vld [vmem:[%s19 + $0x48] sm:$0xff]
        %v10009 = vld [vmem:[%s19 + $0x50] sm:$0xff]
        %v10010 = vld [vmem:[%s19 + $0x58] sm:$0xff]
        %v10011 = vld [vmem:[%s19 + $0x60] sm:$0xff]
        %v10012 = vld [vmem:[%s19 + $0x68] sm:$0xff]
        %v10013 = vld [vmem:[%s19 + $0x70] sm:$0xff]
        %v10014 = vld [vmem:[%s19 + $0x78] sm:$0xff]
        %10016 = vset.pattern.permute.xlu0 0
        %10017 = vperm.xlu0 %10016, %v9999
        %v10018 = vpop.permute.xlu0 %10017
        %10021 = vset.pattern.permute.xlu0 0
        %10022 = vperm.xlu0 %10021, %v10000
        %v10023 = vpop.permute.xlu0 %10022
        %10026 = vset.pattern.permute.xlu0 0
        %10027 = vperm.xlu0 %10026, %v10001
        %v10028 = vpop.permute.xlu0 %10027
        %10031 = vset.pattern.permute.xlu0 0
        %10032 = vperm.xlu0 %10031, %v10002
        %v10033 = vpop.permute.xlu0 %10032
        %10036 = vset.pattern.permute.xlu0 0
        %10037 = vperm.xlu0 %10036, %v10003
        %v10038 = vpop.permute.xlu0 %10037
        %10041 = vset.pattern.permute.xlu0 0
        %10042 = vperm.xlu0 %10041, %v10004
        %v10043 = vpop.permute.xlu0 %10042
        %10046 = vset.pattern.permute.xlu0 0
        %10047 = vperm.xlu0 %10046, %v10005
        %v10048 = vpop.permute.xlu0 %10047
        %10051 = vset.pattern.permute.xlu0 0
        %10052 = vperm.xlu0 %10051, %v10006
        %v10053 = vpop.permute.xlu0 %10052
        %10056 = vset.pattern.permute.xlu0 0
        %10057 = vperm.xlu0 %10056, %v10007
        %v10058 = vpop.permute.xlu0 %10057
        %10061 = vset.pattern.permute.xlu0 0
        %10062 = vperm.xlu0 %10061, %v10008
        %v10063 = vpop.permute.xlu0 %10062
        %10066 = vset.pattern.permute.xlu0 0
        %10067 = vperm.xlu0 %10066, %v10009
        %v10068 = vpop.permute.xlu0 %10067
        %10071 = vset.pattern.permute.xlu0 0
        %10072 = vperm.xlu0 %10071, %v10010
        %v10073 = vpop.permute.xlu0 %10072
        %10076 = vset.pattern.permute.xlu0 0
        %10077 = vperm.xlu0 %10076, %v10011
        %v10078 = vpop.permute.xlu0 %10077
        %10081 = vset.pattern.permute.xlu0 0
        %10082 = vperm.xlu0 %10081, %v10012
        %v10083 = vpop.permute.xlu0 %10082
        %10086 = vset.pattern.permute.xlu0 0
        %10087 = vperm.xlu0 %10086, %v10013
        %v10088 = vpop.permute.xlu0 %10087
        %10091 = vset.pattern.permute.xlu0 0
        %10092 = vperm.xlu0 %10091, %v10014
        %v10093 = vpop.permute.xlu0 %10092
        %v10111 = vunpack.c.l.b16 %v9983
        %v10112 = vunpack.c.l.b16 %v9984
        %v10113 = vunpack.c.l.b16 %v9985
        %v10114 = vunpack.c.l.b16 %v9986
        %v10115 = vunpack.c.l.b16 %v9987
        %v10116 = vunpack.c.l.b16 %v9988
        %v10117 = vunpack.c.l.b16 %v9989
        %v10118 = vunpack.c.l.b16 %v9990
        %v10119 = vunpack.c.l.b16 %v9991
        %v10120 = vunpack.c.l.b16 %v9992
        %v10121 = vunpack.c.l.b16 %v9993
        %v10122 = vunpack.c.l.b16 %v9994
        %v10123 = vunpack.c.l.b16 %v9995
        %v10124 = vunpack.c.l.b16 %v9996
        %v10125 = vunpack.c.l.b16 %v9997
        %v10126 = vunpack.c.l.b16 %v9998
        %v10127 = vpack.c.b16 %v10112, %v10111
        %v10128 = vpack.c.b16 %v10114, %v10113
        %v10129 = vpack.c.b16 %v10116, %v10115
        %v10130 = vpack.c.b16 %v10118, %v10117
        %v10131 = vpack.c.b16 %v10120, %v10119
        %v10132 = vpack.c.b16 %v10122, %v10121
        %v10133 = vpack.c.b16 %v10124, %v10123
        %v10134 = vpack.c.b16 %v10126, %v10125
        %10143 = vmatprep.subr.bf16.mxu0 0
        %10144 = vmatpush1.bf16.msra.mxu0 %v9975
        %10145 = vmatprep.subr.bf16.mxu0 0
        %10146 = vmatpush1.bf16.msra.mxu0 %v9976
        %10147 = vmatprep.subr.bf16.mxu0 0
        %10148 = vmatpush1.bf16.msra.mxu0 %v9977
        %10149 = vmatprep.subr.bf16.mxu0 0
        %10150 = vmatpush1.bf16.msra.mxu0 %v9978
        %10151 = vmatprep.subr.bf16.mxu0 0
        %10152 = vmatpush1.bf16.msra.mxu0 %v9979
        %10153 = vmatprep.subr.bf16.mxu0 0
        %10154 = vmatpush1.bf16.msra.mxu0 %v9980
        %10155 = vmatprep.subr.bf16.mxu0 0
        %10156 = vmatpush1.bf16.msra.mxu0 %v9981
        %10157 = vmatprep.subr.bf16.mxu0 0
        %10158 = vmatpush1.bf16.msra.mxu0 %v9982
        %10159 = vmatprep.subr.bf16.mxu0 0
        %10160 = vmatpush1.bf16.msra.mxu0 0
        %10161 = vmatprep.subr.bf16.mxu0 0
        %10162 = vmatpush1.bf16.msra.mxu0 0
        %10163 = vmatprep.subr.bf16.mxu0 0
        %10164 = vmatpush1.bf16.msra.mxu0 0
        %10165 = vmatprep.subr.bf16.mxu0 0
        %10166 = vmatpush1.bf16.msra.mxu0 0
        %10167 = vmatprep.subr.bf16.mxu0 0
        %10168 = vmatpush1.bf16.msra.mxu0 0
        %10169 = vmatprep.subr.bf16.mxu0 0
        %10170 = vmatpush1.bf16.msra.mxu0 0
        %10171 = vmatprep.subr.bf16.mxu0 0
        %10172 = vmatpush1.bf16.msra.mxu0 0
        %10173 = vmatprep.subr.bf16.mxu0 0
        %10174 = vmatpush1.bf16.msra.mxu0 0
        %10175 = vmatprep.mubr.bf16.mxu0 0
        %10176 = vmatmul.mubr.bf16.gmra.mrb[0].mxu0 %v10127
        %v10177 = vpop.f32.mrb[0].mxu0
        %v10178 = vadd.f32 %v10018, %v10177
        %v10179 = vpop.f32.mrb[0].mxu0
        %v10180 = vpop.f32.mrb[0].mxu0
        %v10181 = vadd.f32 %v10023, %v10180
        %v10182 = vpop.f32.mrb[0].mxu0
        %10183 = vmatprep.mubr.bf16.mxu0 0
        %10184 = vmatmul.mubr.bf16.gmra.mrb[0].mxu0 %v10128
        %v10185 = vpop.f32.mrb[0].mxu0
        %v10186 = vadd.f32 %v10028, %v10185
        %v10187 = vpop.f32.mrb[0].mxu0
        %v10188 = vpop.f32.mrb[0].mxu0
        %v10189 = vadd.f32 %v10033, %v10188
        %v10190 = vpop.f32.mrb[0].mxu0
        %10191 = vmatprep.mubr.bf16.mxu0 0
        %10192 = vmatmul.mubr.bf16.gmra.mrb[0].mxu0 %v10129
        %v10193 = vpop.f32.mrb[0].mxu0
        %v10194 = vadd.f32 %v10038, %v10193
        %v10195 = vpop.f32.mrb[0].mxu0
        %v10196 = vpop.f32.mrb[0].mxu0
        %v10197 = vadd.f32 %v10043, %v10196
        %v10198 = vpop.f32.mrb[0].mxu0
        %10199 = vmatprep.mubr.bf16.mxu0 0
        %10200 = vmatmul.mubr.bf16.gmra.mrb[0].mxu0 %v10130
        %v10201 = vpop.f32.mrb[0].mxu0
        %v10202 = vadd.f32 %v10048, %v10201
        %v10203 = vpop.f32.mrb[0].mxu0
        %v10204 = vpop.f32.mrb[0].mxu0
        %v10205 = vadd.f32 %v10053, %v10204
        %v10206 = vpop.f32.mrb[0].mxu0
        %10207 = vmatprep.mubr.bf16.mxu0 0
        %10208 = vmatmul.mubr.bf16.gmra.mrb[0].mxu0 %v10131
        %v10209 = vpop.f32.mrb[0].mxu0
        %v10210 = vadd.f32 %v10058, %v10209
        %v10211 = vpop.f32.mrb[0].mxu0
        %v10212 = vpop.f32.mrb[0].mxu0
        %v10213 = vadd.f32 %v10063, %v10212
        %v10214 = vpop.f32.mrb[0].mxu0
        %10215 = vmatprep.mubr.bf16.mxu0 0
        %10216 = vmatmul.mubr.bf16.gmra.mrb[0].mxu0 %v10132
        %v10217 = vpop.f32.mrb[0].mxu0
        %v10218 = vadd.f32 %v10068, %v10217
        %v10219 = vpop.f32.mrb[0].mxu0
        %v10220 = vpop.f32.mrb[0].mxu0
        %v10221 = vadd.f32 %v10073, %v10220
        %v10222 = vpop.f32.mrb[0].mxu0
        %10223 = vmatprep.mubr.bf16.mxu0 0
        %10224 = vmatmul.mubr.bf16.gmra.mrb[0].mxu0 %v10133
        %v10225 = vpop.f32.mrb[0].mxu0
        %v10226 = vadd.f32 %v10078, %v10225
        %v10227 = vpop.f32.mrb[0].mxu0
        %v10228 = vpop.f32.mrb[0].mxu0
        %v10229 = vadd.f32 %v10083, %v10228
        %v10230 = vpop.f32.mrb[0].mxu0
        %10231 = vmatprep.mubr.bf16.mxu0 0
        %10232 = vmatmul.mubr.bf16.gmra.mrb[0].mxu0 %v10134
        %v10233 = vpop.f32.mrb[0].mxu0
        %v10234 = vadd.f32 %v10088, %v10233
        %v10235 = vpop.f32.mrb[0].mxu0
        %v10236 = vpop.f32.mrb[0].mxu0
        %v10237 = vadd.f32 %v10093, %v10236
        %v10238 = vpop.f32.mrb[0].mxu0
        %10239 = vdwg.mxu0
        %v10240 = vtanh.pop %v10178
        %v10241 = vtanh.pop %v10181
        %v10242 = vtanh.pop %v10186
        %v10243 = vtanh.pop %v10189
        %v10244 = vtanh.pop %v10194
        %v10245 = vtanh.pop %v10197
        %v10246 = vtanh.pop %v10202
        %v10247 = vtanh.pop %v10205
        %v10248 = vtanh.pop %v10210
        %v10249 = vtanh.pop %v10213
        %v10250 = vtanh.pop %v10218
        %v10251 = vtanh.pop %v10221
        %v10252 = vtanh.pop %v10226
        %v10253 = vtanh.pop %v10229
        %v10254 = vtanh.pop %v10234
        %v10255 = vtanh.pop %v10237
        %v10256 = vpack.c.bf16 %v10241, %v10240
        %v10257 = vpack.c.bf16 %v10243, %v10242
        %v10258 = vpack.c.bf16 %v10245, %v10244
        %v10259 = vpack.c.bf16 %v10247, %v10246
        %v10260 = vpack.c.bf16 %v10249, %v10248
        %v10261 = vpack.c.bf16 %v10251, %v10250
        %v10262 = vpack.c.bf16 %v10253, %v10252
        %v10263 = vpack.c.bf16 %v10255, %v10254
        %v10264 = vld [vmem:[%s20] sm:$0x3]
        %v10265 = vld [vmem:[%s21] sm:$0xf]
        %10267 = vset.pattern.permute.xlu0 0
        %10268 = vperm.xlu0 %10267, %v10265
        %v10269 = vpop.permute.xlu0 %10268
        %10271 = vmatprep.subr.bf16.mxu0 0
        %10272 = vmatpush1.bf16.msra.mxu0 %v10256
        %10273 = vmatprep.subr.bf16.mxu0 0
        %10274 = vmatpush1.bf16.msra.mxu0 %v10257
        %10275 = vmatprep.subr.bf16.mxu0 0
        %10276 = vmatpush1.bf16.msra.mxu0 %v10258
        %10277 = vmatprep.subr.bf16.mxu0 0
        %10278 = vmatpush1.bf16.msra.mxu0 %v10259
        %10279 = vmatprep.subr.bf16.mxu0 0
        %10280 = vmatpush1.bf16.msra.mxu0 %v10260
        %10281 = vmatprep.subr.bf16.mxu0 0
        %10282 = vmatpush1.bf16.msra.mxu0 %v10261
        %10283 = vmatprep.subr.bf16.mxu0 0
        %10284 = vmatpush1.bf16.msra.mxu0 %v10262
        %10285 = vmatprep.subr.bf16.mxu0 0
        %10286 = vmatpush1.bf16.msra.mxu0 %v10263
        %10287 = vmatprep.subr.bf16.mxu0 0
        %10288 = vmatpush1.bf16.msra.mxu0 0
        %10289 = vmatprep.subr.bf16.mxu0 0
        %10290 = vmatpush1.bf16.msra.mxu0 0
        %10291 = vmatprep.subr.bf16.mxu0 0
        %10292 = vmatpush1.bf16.msra.mxu0 0
        %10293 = vmatprep.subr.bf16.mxu0 0
        %10294 = vmatpush1.bf16.msra.mxu0 0
        %10295 = vmatprep.subr.bf16.mxu0 0
        %10296 = vmatpush1.bf16.msra.mxu0 0
        %10297 = vmatprep.subr.bf16.mxu0 0
        %10298 = vmatpush1.bf16.msra.mxu0 0
        %10299 = vmatprep.subr.bf16.mxu0 0
        %10300 = vmatpush1.bf16.msra.mxu0 0
        %10301 = vmatprep.subr.bf16.mxu0 0
        %10302 = vmatpush1.bf16.msra.mxu0 0
        %10303 = vmatprep.mubr.bf16.mxu0 0
        %10304 = vmatmul.mubr.bf16.gmra.mrb[0].mxu0 %v10264
        %v10305 = vpop.f32.mrb[0].mxu0
        %v10306 = vadd.f32 %v10269, %v10305
        %v10307 = vpop.f32.mrb[0].mxu0
        %v10308 = vpop.f32.mrb[0].mxu0
        %v10309 = vpop.f32.mrb[0].mxu0
        %10310 = vdwg.mxu0
        %v10311 = vtanh.pop %v10306
        %10312 = vst [vmem:[%s691] sm:$0xf] %v10311
        %s10313 = sand.u32 %s512, 1
        %s10314 = scalar_lea.sflag [#allocation5], %s10313
        %s10315 = sand.u32 %s512, 1
        %s10316 = smul.addr %s10315, 4
        %s10317 = scalar_lea.vmem [#allocation6], %s10316
        // Predicated region
        $region113: #{tpu_custom_call.1} parent=107 // pred_check
          %p10318 = pneg %p522
        $region114: #{tpu_custom_call.1} parent=107 // pred_check_branch
          %10320 = sbr.rel (%p10318) target = $region116
        $region115: #{tpu_custom_call.1} parent=107 // pred_region
          %s10322 = ssub.s32 64, 64
          %10323 = vsyncadd %s10314, %s10322
          %s10324 = smul.addr %s37, 64
          %s10325 = scalar_lea.hbm %s22, %s10324
          %s10327 = sshll.u32 %s10317, 4
          %s10328 = int_to_ptr.vmem [resolvable:$true] %s10327
          %10330 = dma.vmem_to_hbm [thread:$0]  %s10328, 64, %s10325, %s10314
        $region116: #{tpu_custom_call.1} parent=107 // pred_fallthru
          _
      $region108: #{tpu_custom_call.1} parent=5 // pred_fallthru
        _
      %p10331 = scmp.le.s32.totalorder 2, %s32
      // Predicated region
      $region117: #{tpu_custom_call.1} parent=5 // pred_check
        %p10332 = pneg %p10331
      $region118: #{tpu_custom_call.1} parent=5 // pred_check_branch
        %10334 = sbr.rel (%p10332) target = $region120
      $region119: #{tpu_custom_call.1} parent=5 // pred_region
        %s10335 = ssub.s32 %s32, 2
        // Predicated region
        $region121: #{tpu_custom_call.1} parent=119 // pred_check
          %p10336 = pneg %p528
        $region122: #{tpu_custom_call.1} parent=119 // pred_check_branch
          %10338 = sbr.rel (%p10336) target = $region124
        $region123: #{tpu_custom_call.1} parent=119 // pred_region
          %s10339 = sand.u32 %s513, 1
          %s10340 = scalar_lea.sflag [#allocation5], %s10339
          %s10341 = sand.u32 %s513, 1
          %s10342 = smul.addr %s10341, 4
          %s10343 = scalar_lea.vmem [#allocation6], %s10342
          %10344 = dma.done %s10340, 64
        $region124: #{tpu_custom_call.1} parent=119 // pred_fallthru
          _
      $region120: #{tpu_custom_call.1} parent=5 // pred_fallthru
        _
    $region6: #{tpu_custom_call.1} parent=1 // loop_footer
      %s36 = sadd.s32 1, %s32
    $region7: #{tpu_custom_call.1} parent=1 // loop_footer_branch
      %31 = sbr.rel target = $region3
    $region8: #{tpu_custom_call.1} parent=1 // loop_exit
      _
    %10345 = vsyncpa [#allocation4], 1
    %s10346 = scalar_lea.sflag [#allocation4], 1
    %10347 = vsyncpa %s10346, 1
    %10348 = vsyncpa [#allocation5], 1
    %s10349 = scalar_lea.sflag [#allocation5], 1
    %10350 = vsyncpa %s10349, 1

</llo_original>
